<compile_context>
chip_gen: v5e
topology: v5e:2x2
jax: 0.10.0
libtpu: 0.0.40
codegen_flags: <defaults>
</compile_context>

<pallas_src>
import jax
import jax.numpy as jnp
from jax import lax
from jax.experimental import pallas as pl
from jax.experimental.pallas import tpu as pltpu


# ----------------------------- Pallas kernels ------------------------------


def _conv1_pool1_kernel(q0, q1, q2, q3, w_ref, b_ref, o_ref):
    """Fused conv1 matmul + MaxPool2d(2,2) for one sample.

    q0..q3: (1, 100, 256) im2col patches, one per position of the 2x2 pool window
    (rows ordered (pool_h, pool_w); features ordered (c, kh, kw))."""
    w = w_ref[...]
    c0 = jnp.dot(q0[0], w, preferred_element_type=jnp.float32)
    c1 = jnp.dot(q1[0], w, preferred_element_type=jnp.float32)
    c2 = jnp.dot(q2[0], w, preferred_element_type=jnp.float32)
    c3 = jnp.dot(q3[0], w, preferred_element_type=jnp.float32)
    pooled = jnp.maximum(jnp.maximum(c0, c1), jnp.maximum(c2, c3)) + b_ref[...]
    o_ref[0] = pooled.astype(o_ref.dtype)


def conv1_pool1(quads, w1, b1):
    """quads: 4 x (N, 100, 256) -> pooled conv1 output (N, 100, 32), rows (ph, pw)."""
    N = quads[0].shape[0]
    return pl.pallas_call(
        _conv1_pool1_kernel,
        out_shape=jax.ShapeDtypeStruct((N, 100, 32), jnp.float32),
        grid=(N,),
        in_specs=[pl.BlockSpec((1, 100, 256), lambda i: (i, 0, 0))] * 4 + [
            pl.BlockSpec((256, 32), lambda i: (0, 0)),
            pl.BlockSpec((1, 32), lambda i: (0, 0)),
        ],
        out_specs=pl.BlockSpec((1, 100, 32), lambda i: (i, 0, 0)),
        compiler_params=pltpu.CompilerParams(dimension_semantics=("parallel",)),
    )(*quads, w1, b1)


def _tail_kernel(q0, q1, q2, q3, w2_ref, b2_ref, w4_ref, b4_ref,
                 w5_ref, b5_ref, w6_ref, b6_ref, o_ref):
    """Fused conv2 + pool2 + flatten + fc4(ReLU) + fc5(ReLU) + fc6 for a batch block.

    q0..q3: (4, NB, 512) conv2 im2col patches, one array per position of the 2x2
    pool window; leading axis = pool2 output position p = ph*2+pw.
    w4_ref: (4, 64, 1024) fc4 weight pre-permuted so the pooled conv2 block at
    position p contracts directly over channels (PyTorch's (C,H,W) flatten is
    folded into the weight layout; no in-kernel transpose)."""
    nb = o_ref.shape[0]
    w2 = w2_ref[...]
    b2 = b2_ref[...]
    h4 = jnp.broadcast_to(b4_ref[...], (nb, 1024))
    for p in range(4):  # 4 pool2 output positions, static unroll
        conv = jnp.maximum(
            jnp.maximum(jnp.dot(q0[p], w2, preferred_element_type=jnp.float32),
                        jnp.dot(q1[p], w2, preferred_element_type=jnp.float32)),
            jnp.maximum(jnp.dot(q2[p], w2, preferred_element_type=jnp.float32),
                        jnp.dot(q3[p], w2, preferred_element_type=jnp.float32)),
        ) + b2                                                     # pooled conv2, (NB, 64)
        h4 = h4 + jnp.dot(conv, w4_ref[p], preferred_element_type=jnp.float32)
    h4 = jnp.maximum(h4, 0.0)                                      # fc4 + ReLU
    h5 = jnp.dot(h4.astype(jnp.bfloat16), w5_ref[...],
                 preferred_element_type=jnp.float32) + b5_ref[...]
    h5 = jnp.maximum(h5, 0.0)                                      # fc5 + ReLU
    out = jnp.dot(h5, w6_ref[...], preferred_element_type=jnp.float32) + b6_ref[...]
    o_ref[...] = out.astype(o_ref.dtype)


def tail_fused(quads, w2, b2, w4, b4, w5, b5, w6, b6):
    N = quads[0].shape[1]
    NB = N if N <= 8 else 8          # batch block; weights stay VMEM-resident across steps
    assert N % NB == 0, "batch must be a multiple of the batch block"
    return pl.pallas_call(
        _tail_kernel,
        out_shape=jax.ShapeDtypeStruct((N, 2), jnp.float32),
        grid=(N // NB,),
        in_specs=[pl.BlockSpec((4, NB, 512), lambda i: (0, i, 0))] * 4 + [
            pl.BlockSpec((512, 64), lambda i: (0, 0)),
            pl.BlockSpec((1, 64), lambda i: (0, 0)),
            pl.BlockSpec((4, 64, 1024), lambda i: (0, 0, 0)),
            pl.BlockSpec((1, 1024), lambda i: (0, 0)),
            pl.BlockSpec((1024, 1024), lambda i: (0, 0)),
            pl.BlockSpec((1, 1024), lambda i: (0, 0)),
            pl.BlockSpec((1024, 2), lambda i: (0, 0)),
            pl.BlockSpec((1, 2), lambda i: (0, 0)),
        ],
        out_specs=pl.BlockSpec((NB, 2), lambda i: (i, 0)),
        compiler_params=pltpu.CompilerParams(dimension_semantics=("parallel",)),
    )(*quads, w2, b2, w4, b4, w5, b5, w6, b6)


# ------------------------------ JAX glue ------------------------------------


def _im2col_nchw(x, k, s):
    """x: (N, C, H, W) -> (N, Ho*Wo, C*k*k), features ordered (c, kh, kw)."""
    N, C, H, W = x.shape
    Ho = (H - k) // s + 1
    Wo = (W - k) // s + 1
    cols = []
    for i in range(k):
        for j in range(k):
            cols.append(x[:, :, i:i + s * Ho:s, j:j + s * Wo:s])   # (N, C, Ho, Wo)
    p = jnp.stack(cols, axis=2).reshape(N, C, k, k, Ho, Wo)
    p = p.transpose(0, 4, 5, 1, 2, 3)                               # (N, Ho, Wo, C, kh, kw)
    return p.reshape(N, Ho * Wo, C * k * k)


def _im2col_nhwc(x, k, s):
    """x: (N, H, W, C) -> (N, Ho*Wo, C*k*k), features ordered (c, kh, kw)."""
    N, H, W, C = x.shape
    Ho = (H - k) // s + 1
    Wo = (W - k) // s + 1
    cols = []
    for i in range(k):
        for j in range(k):
            cols.append(x[:, i:i + s * Ho:s, j:j + s * Wo:s, :])    # (N, Ho, Wo, C)
    p = jnp.stack(cols, axis=3).reshape(N, Ho, Wo, k, k, C)
    p = p.transpose(0, 1, 2, 5, 3, 4)                               # (N, Ho, Wo, C, kh, kw)
    return p.reshape(N, Ho * Wo, C * k * k)


def init_params(key):
    # deterministic synthetic init, mirroring init_weights: U(-0.01, 0.01), bias = 0.01
    def uni(k, shape):
        return jax.random.uniform(k, shape, jnp.float32, -0.01, 0.01)

    ks = jax.random.split(key, 5)
    return {
        "conv1_w": uni(ks[0], (32, 4, 8, 8)),
        "conv1_b": jnp.full((32,), 0.01, jnp.float32),
        "conv2_w": uni(ks[1], (64, 32, 4, 4)),
        "conv2_b": jnp.full((64,), 0.01, jnp.float32),
        "fc4_w": uni(ks[2], (1024, 256)),
        "fc4_b": jnp.full((1024,), 0.01, jnp.float32),
        "fc5_w": uni(ks[3], (1024, 1024)),
        "fc5_b": jnp.full((1024,), 0.01, jnp.float32),
        "fc6_w": uni(ks[4], (2, 1024)),
        "fc6_b": jnp.full((2,), 0.01, jnp.float32),
    }


def prepare_params(params):
    """One-time weight re-layout: pre-transpose FC weights, permute fc4 to absorb
    PyTorch's (C,H,W) flatten, cast the big fc5 weight to bf16 (f32 accumulation)."""
    w4 = params["fc4_w"].reshape(1024, 64, 2, 2)        # (o, c, h, w)
    w4 = w4.transpose(2, 3, 1, 0).reshape(4, 64, 1024)  # (p=h*2+w, c, o)
    return {
        "w1": params["conv1_w"].reshape(32, 4 * 8 * 8).T,            # (256, 32)
        "b1": params["conv1_b"].reshape(1, 32),
        "w2": params["conv2_w"].reshape(64, 32 * 4 * 4).T,           # (512, 64)
        "b2": params["conv2_b"].reshape(1, 64),
        "w4": w4,
        "b4": params["fc4_b"].reshape(1, 1024),
        "w5": params["fc5_w"].T.astype(jnp.bfloat16),                # (1024, 1024) bf16
        "b5": params["fc5_b"].reshape(1, 1024),
        "w6": params["fc6_w"].T,                                     # (1024, 2)
        "b6": params["fc6_b"].reshape(1, 2),
    }


@jax.jit
def forward(prep, x):
    N = x.shape[0]
    # conv1+pool1: one stride-8 im2col slab per position of each 2x2 pool window.
    # TODO(synk): patch extraction (im2col) stays as XLA glue; the strided 8x8/stride-4
    # window gather has no clean single-kernel Pallas form here.
    q1 = [_im2col_nchw(x[:, :, 4 * qh:, 4 * qw:], 8, 8)
          for qh in (0, 1) for qw in (0, 1)]                         # 4 x (N, 100, 256)
    h1 = conv1_pool1(q1, prep["w1"], prep["b1"])                     # (N, 100, 32)
    h1 = h1.reshape(N, 10, 10, 32)                                   # NHWC pooled map
    # conv2 patches for the 4 pool-window positions of the tiny 10x10x32 map.
    q2 = [_im2col_nhwc(h1[:, 2 * qh:, 2 * qw:, :], 4, 4).transpose(1, 0, 2)
          for qh in (0, 1) for qw in (0, 1)]                         # 4 x (4, N, 512)
    return tail_fused(q2, prep["w2"], prep["b2"], prep["w4"], prep["b4"],
                      prep["w5"], prep["b5"], prep["w6"], prep["b6"])


def forward_reference(params, x):
    """Pure-JAX reference for a correctness sanity check."""
    dn = ("NCHW", "OIHW", "NCHW")
    h = lax.conv_general_dilated(x, params["conv1_w"], (4, 4), "VALID",
                                 dimension_numbers=dn,
                                 precision=lax.Precision.HIGHEST)
    h = h + params["conv1_b"][None, :, None, None]
    N, C, H, W = h.shape
    h = h.reshape(N, C, H // 2, 2, W // 2, 2).max(axis=(3, 5))
    h = lax.conv_general_dilated(h, params["conv2_w"], (2, 2), "VALID",
                                 dimension_numbers=dn,
                                 precision=lax.Precision.HIGHEST)
    h = h + params["conv2_b"][None, :, None, None]
    N, C, H, W = h.shape
    h = h.reshape(N, C, H // 2, 2, W // 2, 2).max(axis=(3, 5))
    h = h.reshape(N, -1)
    h = jnp.maximum(h @ params["fc4_w"].T + params["fc4_b"], 0.0)
    h = jnp.maximum(h @ params["fc5_w"].T + params["fc5_b"], 0.0)
    h = h @ params["fc6_w"].T + params["fc6_b"]
    return h


if __name__ == "__main__":
    key = jax.random.PRNGKey(0)
    pkey, xkey = jax.random.split(key)
    params = init_params(pkey)
    prep = prepare_params(params)

    # 4 stacked 84x84 frames per sample (fc4 in_features=256 implies 84x84 input)
    x = jax.random.normal(xkey, (2, 4, 84, 84), jnp.float32)

    out = jax.block_until_ready(forward(prep, x))
    assert out.shape == (2, 2) and out.dtype == jnp.float32

    ref = jax.block_until_ready(forward_reference(params, x))
    assert jnp.allclose(out, ref, rtol=5e-2, atol=2e-3), (out, ref)

    print("KERNEL_OK")
</pallas_src>

<mosaic_0001>
module attributes {stable_mosaic.version = 11 : i64} {
  func.func @_conv1_pool1_kernel(%arg0: i32, %arg1: memref<1x100x256xf32, #tpu.memory_space<vmem>>, %arg2: memref<1x100x256xf32, #tpu.memory_space<vmem>>, %arg3: memref<1x100x256xf32, #tpu.memory_space<vmem>>, %arg4: memref<1x100x256xf32, #tpu.memory_space<vmem>>, %arg5: memref<256x32xf32, #tpu.memory_space<vmem>>, %arg6: memref<1x32xf32, #tpu.memory_space<vmem>>, %arg7: memref<1x100x32xf32, #tpu.memory_space<vmem>>) attributes {dimension_semantics = [#tpu.dimension_semantics<parallel>], iteration_bounds = array<i64: 2>, scalar_prefetch = 0 : i64, scratch_operands = 0 : i64, tpu.core_type = #tpu.core_type<tc>, window_params = [{transform_indices = @transform_0, window_bounds = array<i64: 1, 100, 256>}, {transform_indices = @transform_1, window_bounds = array<i64: 1, 100, 256>}, {transform_indices = @transform_2, window_bounds = array<i64: 1, 100, 256>}, {transform_indices = @transform_3, window_bounds = array<i64: 1, 100, 256>}, {pipeline_mode = #tpu.pipeline_mode<synchronous>, transform_indices = @transform_4, window_bounds = array<i64: 256, 32>}, {pipeline_mode = #tpu.pipeline_mode<synchronous>, transform_indices = @transform_5, window_bounds = array<i64: 1, 32>}, {transform_indices = @transform_6, window_bounds = array<i64: 1, 100, 32>}]} {
    %c0 = arith.constant 0 : index
    %c0_0 = arith.constant 0 : index
    %0 = vector.load %arg5[%c0, %c0_0] : memref<256x32xf32, #tpu.memory_space<vmem>>, vector<256x32xf32>
    %c0_1 = arith.constant 0 : index
    %c0_2 = arith.constant 0 : index
    %c0_3 = arith.constant 0 : index
    %1 = vector.load %arg1[%c0_1, %c0_2, %c0_3] : memref<1x100x256xf32, #tpu.memory_space<vmem>>, vector<1x100x256xf32>
    %2 = vector.shape_cast %1 : vector<1x100x256xf32> to vector<100x256xf32>
    %cst = arith.constant dense<0.000000e+00> : vector<100x32xf32>
    %3 = tpu.matmul %2, %0, %cst {dimension_numbers = #tpu.dot_dimension_numbers<[1], [0], [0], [1], [0, 0, 1, 1], [], []>} : vector<100x256xf32>, vector<256x32xf32>, vector<100x32xf32> -> vector<100x32xf32>
    %c0_4 = arith.constant 0 : index
    %c0_5 = arith.constant 0 : index
    %c0_6 = arith.constant 0 : index
    %4 = vector.load %arg2[%c0_4, %c0_5, %c0_6] : memref<1x100x256xf32, #tpu.memory_space<vmem>>, vector<1x100x256xf32>
    %5 = vector.shape_cast %4 : vector<1x100x256xf32> to vector<100x256xf32>
    %cst_7 = arith.constant dense<0.000000e+00> : vector<100x32xf32>
    %6 = tpu.matmul %5, %0, %cst_7 {dimension_numbers = #tpu.dot_dimension_numbers<[1], [0], [0], [1], [0, 0, 1, 1], [], []>} : vector<100x256xf32>, vector<256x32xf32>, vector<100x32xf32> -> vector<100x32xf32>
    %c0_8 = arith.constant 0 : index
    %c0_9 = arith.constant 0 : index
    %c0_10 = arith.constant 0 : index
    %7 = vector.load %arg3[%c0_8, %c0_9, %c0_10] : memref<1x100x256xf32, #tpu.memory_space<vmem>>, vector<1x100x256xf32>
    %8 = vector.shape_cast %7 : vector<1x100x256xf32> to vector<100x256xf32>
    %cst_11 = arith.constant dense<0.000000e+00> : vector<100x32xf32>
    %9 = tpu.matmul %8, %0, %cst_11 {dimension_numbers = #tpu.dot_dimension_numbers<[1], [0], [0], [1], [0, 0, 1, 1], [], []>} : vector<100x256xf32>, vector<256x32xf32>, vector<100x32xf32> -> vector<100x32xf32>
    %c0_12 = arith.constant 0 : index
    %c0_13 = arith.constant 0 : index
    %c0_14 = arith.constant 0 : index
    %10 = vector.load %arg4[%c0_12, %c0_13, %c0_14] : memref<1x100x256xf32, #tpu.memory_space<vmem>>, vector<1x100x256xf32>
    %11 = vector.shape_cast %10 : vector<1x100x256xf32> to vector<100x256xf32>
    %cst_15 = arith.constant dense<0.000000e+00> : vector<100x32xf32>
    %12 = tpu.matmul %11, %0, %cst_15 {dimension_numbers = #tpu.dot_dimension_numbers<[1], [0], [0], [1], [0, 0, 1, 1], [], []>} : vector<100x256xf32>, vector<256x32xf32>, vector<100x32xf32> -> vector<100x32xf32>
    %13 = arith.maximumf %3, %6 : vector<100x32xf32>
    %14 = arith.maximumf %9, %12 : vector<100x32xf32>
    %15 = arith.maximumf %13, %14 : vector<100x32xf32>
    %c0_16 = arith.constant 0 : index
    %c0_17 = arith.constant 0 : index
    %16 = vector.load %arg6[%c0_16, %c0_17] : memref<1x32xf32, #tpu.memory_space<vmem>>, vector<1x32xf32>
    %17 = vector.broadcast %16 : vector<1x32xf32> to vector<100x32xf32>
    %18 = arith.addf %15, %17 : vector<100x32xf32>
    %c0_18 = arith.constant 0 : index
    %c0_19 = arith.constant 0 : index
    %c0_20 = arith.constant 0 : index
    %19 = vector.load %arg7[%c0_18, %c0_19, %c0_20] : memref<1x100x32xf32, #tpu.memory_space<vmem>>, vector<1x100x32xf32>
    %20 = vector.shape_cast %19 : vector<1x100x32xf32> to vector<100x32xf32>
    %21 = vector.shape_cast %18 : vector<100x32xf32> to vector<1x100x32xf32>
    tpu.vector_store %arg7[%c0_18, %c0_19, %c0_20], %21 {strides = array<i32>} : memref<1x100x32xf32, #tpu.memory_space<vmem>>, vector<1x100x32xf32>,
    return
  }
  func.func @transform_0(%arg0: i32) -> (i32, i32, i32) {
    %c0_i32 = arith.constant 0 : i32
    %c0_i32_0 = arith.constant 0 : i32
    %c0_i32_1 = arith.constant 0 : i32
    return %arg0, %c0_i32, %c0_i32_0 : i32, i32, i32
  }
  func.func @transform_1(%arg0: i32) -> (i32, i32, i32) {
    %c0_i32 = arith.constant 0 : i32
    %c0_i32_0 = arith.constant 0 : i32
    %c0_i32_1 = arith.constant 0 : i32
    return %arg0, %c0_i32, %c0_i32_0 : i32, i32, i32
  }
  func.func @transform_2(%arg0: i32) -> (i32, i32, i32) {
    %c0_i32 = arith.constant 0 : i32
    %c0_i32_0 = arith.constant 0 : i32
    %c0_i32_1 = arith.constant 0 : i32
    return %arg0, %c0_i32, %c0_i32_0 : i32, i32, i32
  }
  func.func @transform_3(%arg0: i32) -> (i32, i32, i32) {
    %c0_i32 = arith.constant 0 : i32
    %c0_i32_0 = arith.constant 0 : i32
    %c0_i32_1 = arith.constant 0 : i32
    return %arg0, %c0_i32, %c0_i32_0 : i32, i32, i32
  }
  func.func @transform_4(%arg0: i32) -> (i32, i32) {
    %c0_i32 = arith.constant 0 : i32
    %c0_i32_0 = arith.constant 0 : i32
    %c0_i32_1 = arith.constant 0 : i32
    return %c0_i32, %c0_i32_0 : i32, i32
  }
  func.func @transform_5(%arg0: i32) -> (i32, i32) {
    %c0_i32 = arith.constant 0 : i32
    %c0_i32_0 = arith.constant 0 : i32
    %c0_i32_1 = arith.constant 0 : i32
    return %c0_i32, %c0_i32_0 : i32, i32
  }
  func.func @transform_6(%arg0: i32) -> (i32, i32, i32) {
    %c0_i32 = arith.constant 0 : i32
    %c0_i32_0 = arith.constant 0 : i32
    %c0_i32_1 = arith.constant 0 : i32
    return %arg0, %c0_i32, %c0_i32_0 : i32, i32, i32
  }
}

module attributes {stable_mosaic.version = 11 : i64} {
  func.func @_tail_kernel(%arg0: i32, %arg1: memref<4x2x512xf32, #tpu.memory_space<vmem>>, %arg2: memref<4x2x512xf32, #tpu.memory_space<vmem>>, %arg3: memref<4x2x512xf32, #tpu.memory_space<vmem>>, %arg4: memref<4x2x512xf32, #tpu.memory_space<vmem>>, %arg5: memref<512x64xf32, #tpu.memory_space<vmem>>, %arg6: memref<1x64xf32, #tpu.memory_space<vmem>>, %arg7: memref<4x64x1024xf32, #tpu.memory_space<vmem>>, %arg8: memref<1x1024xf32, #tpu.memory_space<vmem>>, %arg9: memref<1024x1024xbf16, #tpu.memory_space<vmem>>, %arg10: memref<1x1024xf32, #tpu.memory_space<vmem>>, %arg11: memref<1024x2xf32, #tpu.memory_space<vmem>>, %arg12: memref<1x2xf32, #tpu.memory_space<vmem>>, %arg13: memref<2x2xf32, #tpu.memory_space<vmem>>) attributes {dimension_semantics = [#tpu.dimension_semantics<parallel>], iteration_bounds = array<i64: 1>, scalar_prefetch = 0 : i64, scratch_operands = 0 : i64, tpu.core_type = #tpu.core_type<tc>, window_params = [{transform_indices = @transform_0, window_bounds = array<i64: 4, 2, 512>}, {transform_indices = @transform_1, window_bounds = array<i64: 4, 2, 512>}, {transform_indices = @transform_2, window_bounds = array<i64: 4, 2, 512>}, {transform_indices = @transform_3, window_bounds = array<i64: 4, 2, 512>}, {pipeline_mode = #tpu.pipeline_mode<synchronous>, transform_indices = @transform_4, window_bounds = array<i64: 512, 64>}, {pipeline_mode = #tpu.pipeline_mode<synchronous>, transform_indices = @transform_5, window_bounds = array<i64: 1, 64>}, {pipeline_mode = #tpu.pipeline_mode<synchronous>, transform_indices = @transform_6, window_bounds = array<i64: 4, 64, 1024>}, {pipeline_mode = #tpu.pipeline_mode<synchronous>, transform_indices = @transform_7, window_bounds = array<i64: 1, 1024>}, {pipeline_mode = #tpu.pipeline_mode<synchronous>, transform_indices = @transform_8, window_bounds = array<i64: 1024, 1024>}, {pipeline_mode = #tpu.pipeline_mode<synchronous>, transform_indices = @transform_9, window_bounds = array<i64: 1, 1024>}, {pipeline_mode = #tpu.pipeline_mode<synchronous>, transform_indices = @transform_10, window_bounds = array<i64: 1024, 2>}, {pipeline_mode = #tpu.pipeline_mode<synchronous>, transform_indices = @transform_11, window_bounds = array<i64: 1, 2>}, {transform_indices = @transform_12, window_bounds = array<i64: 2, 2>}]} {
    %c0 = arith.constant 0 : index
    %c0_0 = arith.constant 0 : index
    %0 = vector.load %arg5[%c0, %c0_0] : memref<512x64xf32, #tpu.memory_space<vmem>>, vector<512x64xf32>
    %c0_1 = arith.constant 0 : index
    %c0_2 = arith.constant 0 : index
    %1 = vector.load %arg6[%c0_1, %c0_2] : memref<1x64xf32, #tpu.memory_space<vmem>>, vector<1x64xf32>
    %c0_3 = arith.constant 0 : index
    %c0_4 = arith.constant 0 : index
    %2 = vector.load %arg8[%c0_3, %c0_4] : memref<1x1024xf32, #tpu.memory_space<vmem>>, vector<1x1024xf32>
    %3 = vector.shape_cast %2 : vector<1x1024xf32> to vector<1x1024xf32>
    %4 = vector.broadcast %3 : vector<1x1024xf32> to vector<2x1024xf32>
    %c0_5 = arith.constant 0 : index
    %c0_6 = arith.constant 0 : index
    %c0_7 = arith.constant 0 : index
    %5 = vector.load %arg1[%c0_5, %c0_6, %c0_7] : memref<4x2x512xf32, #tpu.memory_space<vmem>>, vector<1x2x512xf32>
    %6 = vector.shape_cast %5 : vector<1x2x512xf32> to vector<2x512xf32>
    %cst = arith.constant dense<0.000000e+00> : vector<2x64xf32>
    %7 = tpu.matmul %6, %0, %cst {dimension_numbers = #tpu.dot_dimension_numbers<[1], [0], [0], [1], [0, 0, 1, 1], [], []>} : vector<2x512xf32>, vector<512x64xf32>, vector<2x64xf32> -> vector<2x64xf32>
    %c0_8 = arith.constant 0 : index
    %c0_9 = arith.constant 0 : index
    %c0_10 = arith.constant 0 : index
    %8 = vector.load %arg2[%c0_8, %c0_9, %c0_10] : memref<4x2x512xf32, #tpu.memory_space<vmem>>, vector<1x2x512xf32>
    %9 = vector.shape_cast %8 : vector<1x2x512xf32> to vector<2x512xf32>
    %cst_11 = arith.constant dense<0.000000e+00> : vector<2x64xf32>
    %10 = tpu.matmul %9, %0, %cst_11 {dimension_numbers = #tpu.dot_dimension_numbers<[1], [0], [0], [1], [0, 0, 1, 1], [], []>} : vector<2x512xf32>, vector<512x64xf32>, vector<2x64xf32> -> vector<2x64xf32>
    %11 = arith.maximumf %7, %10 : vector<2x64xf32>
    %c0_12 = arith.constant 0 : index
    %c0_13 = arith.constant 0 : index
    %c0_14 = arith.constant 0 : index
    %12 = vector.load %arg3[%c0_12, %c0_13, %c0_14] : memref<4x2x512xf32, #tpu.memory_space<vmem>>, vector<1x2x512xf32>
    %13 = vector.shape_cast %12 : vector<1x2x512xf32> to vector<2x512xf32>
    %cst_15 = arith.constant dense<0.000000e+00> : vector<2x64xf32>
    %14 = tpu.matmul %13, %0, %cst_15 {dimension_numbers = #tpu.dot_dimension_numbers<[1], [0], [0], [1], [0, 0, 1, 1], [], []>} : vector<2x512xf32>, vector<512x64xf32>, vector<2x64xf32> -> vector<2x64xf32>
    %c0_16 = arith.constant 0 : index
    %c0_17 = arith.constant 0 : index
    %c0_18 = arith.constant 0 : index
    %15 = vector.load %arg4[%c0_16, %c0_17, %c0_18] : memref<4x2x512xf32, #tpu.memory_space<vmem>>, vector<1x2x512xf32>
    %16 = vector.shape_cast %15 : vector<1x2x512xf32> to vector<2x512xf32>
    %cst_19 = arith.constant dense<0.000000e+00> : vector<2x64xf32>
    %17 = tpu.matmul %16, %0, %cst_19 {dimension_numbers = #tpu.dot_dimension_numbers<[1], [0], [0], [1], [0, 0, 1, 1], [], []>} : vector<2x512xf32>, vector<512x64xf32>, vector<2x64xf32> -> vector<2x64xf32>
    %18 = arith.maximumf %14, %17 : vector<2x64xf32>
    %19 = arith.maximumf %11, %18 : vector<2x64xf32>
    %20 = vector.broadcast %1 : vector<1x64xf32> to vector<2x64xf32>
    %21 = arith.addf %19, %20 : vector<2x64xf32>
    %c0_20 = arith.constant 0 : index
    %c0_21 = arith.constant 0 : index
    %c0_22 = arith.constant 0 : index
    %22 = vector.load %arg7[%c0_20, %c0_21, %c0_22] : memref<4x64x1024xf32, #tpu.memory_space<vmem>>, vector<1x64x1024xf32>
    %23 = vector.shape_cast %22 : vector<1x64x1024xf32> to vector<64x1024xf32>
    %cst_23 = arith.constant dense<0.000000e+00> : vector<2x1024xf32>
    %24 = tpu.matmul %21, %23, %cst_23 {dimension_numbers = #tpu.dot_dimension_numbers<[1], [0], [0], [1], [0, 0, 1, 1], [], []>} : vector<2x64xf32>, vector<64x1024xf32>, vector<2x1024xf32> -> vector<2x1024xf32>
    %25 = arith.addf %4, %24 : vector<2x1024xf32>
    %c1 = arith.constant 1 : index
    %c0_24 = arith.constant 0 : index
    %c0_25 = arith.constant 0 : index
    %26 = vector.load %arg1[%c1, %c0_24, %c0_25] : memref<4x2x512xf32, #tpu.memory_space<vmem>>, vector<1x2x512xf32>
    %27 = vector.shape_cast %26 : vector<1x2x512xf32> to vector<2x512xf32>
    %cst_26 = arith.constant dense<0.000000e+00> : vector<2x64xf32>
    %28 = tpu.matmul %27, %0, %cst_26 {dimension_numbers = #tpu.dot_dimension_numbers<[1], [0], [0], [1], [0, 0, 1, 1], [], []>} : vector<2x512xf32>, vector<512x64xf32>, vector<2x64xf32> -> vector<2x64xf32>
    %c1_27 = arith.constant 1 : index
    %c0_28 = arith.constant 0 : index
    %c0_29 = arith.constant 0 : index
    %29 = vector.load %arg2[%c1_27, %c0_28, %c0_29] : memref<4x2x512xf32, #tpu.memory_space<vmem>>, vector<1x2x512xf32>
    %30 = vector.shape_cast %29 : vector<1x2x512xf32> to vector<2x512xf32>
    %cst_30 = arith.constant dense<0.000000e+00> : vector<2x64xf32>
    %31 = tpu.matmul %30, %0, %cst_30 {dimension_numbers = #tpu.dot_dimension_numbers<[1], [0], [0], [1], [0, 0, 1, 1], [], []>} : vector<2x512xf32>, vector<512x64xf32>, vector<2x64xf32> -> vector<2x64xf32>
    %32 = arith.maximumf %28, %31 : vector<2x64xf32>
    %c1_31 = arith.constant 1 : index
    %c0_32 = arith.constant 0 : index
    %c0_33 = arith.constant 0 : index
    %33 = vector.load %arg3[%c1_31, %c0_32, %c0_33] : memref<4x2x512xf32, #tpu.memory_space<vmem>>, vector<1x2x512xf32>
    %34 = vector.shape_cast %33 : vector<1x2x512xf32> to vector<2x512xf32>
    %cst_34 = arith.constant dense<0.000000e+00> : vector<2x64xf32>
    %35 = tpu.matmul %34, %0, %cst_34 {dimension_numbers = #tpu.dot_dimension_numbers<[1], [0], [0], [1], [0, 0, 1, 1], [], []>} : vector<2x512xf32>, vector<512x64xf32>, vector<2x64xf32> -> vector<2x64xf32>
    %c1_35 = arith.constant 1 : index
    %c0_36 = arith.constant 0 : index
    %c0_37 = arith.constant 0 : index
    %36 = vector.load %arg4[%c1_35, %c0_36, %c0_37] : memref<4x2x512xf32, #tpu.memory_space<vmem>>, vector<1x2x512xf32>
    %37 = vector.shape_cast %36 : vector<1x2x512xf32> to vector<2x512xf32>
    %cst_38 = arith.constant dense<0.000000e+00> : vector<2x64xf32>
    %38 = tpu.matmul %37, %0, %cst_38 {dimension_numbers = #tpu.dot_dimension_numbers<[1], [0], [0], [1], [0, 0, 1, 1], [], []>} : vector<2x512xf32>, vector<512x64xf32>, vector<2x64xf32> -> vector<2x64xf32>
    %39 = arith.maximumf %35, %38 : vector<2x64xf32>
    %40 = arith.maximumf %32, %39 : vector<2x64xf32>
    %41 = vector.broadcast %1 : vector<1x64xf32> to vector<2x64xf32>
    %42 = arith.addf %40, %41 : vector<2x64xf32>
    %c1_39 = arith.constant 1 : index
    %c0_40 = arith.constant 0 : index
    %c0_41 = arith.constant 0 : index
    %43 = vector.load %arg7[%c1_39, %c0_40, %c0_41] : memref<4x64x1024xf32, #tpu.memory_space<vmem>>, vector<1x64x1024xf32>
    %44 = vector.shape_cast %43 : vector<1x64x1024xf32> to vector<64x1024xf32>
    %cst_42 = arith.constant dense<0.000000e+00> : vector<2x1024xf32>
    %45 = tpu.matmul %42, %44, %cst_42 {dimension_numbers = #tpu.dot_dimension_numbers<[1], [0], [0], [1], [0, 0, 1, 1], [], []>} : vector<2x64xf32>, vector<64x1024xf32>, vector<2x1024xf32> -> vector<2x1024xf32>
    %46 = arith.addf %25, %45 : vector<2x1024xf32>
    %c2 = arith.constant 2 : index
    %c0_43 = arith.constant 0 : index
    %c0_44 = arith.constant 0 : index
    %47 = vector.load %arg1[%c2, %c0_43, %c0_44] : memref<4x2x512xf32, #tpu.memory_space<vmem>>, vector<1x2x512xf32>
    %48 = vector.shape_cast %47 : vector<1x2x512xf32> to vector<2x512xf32>
    %cst_45 = arith.constant dense<0.000000e+00> : vector<2x64xf32>
    %49 = tpu.matmul %48, %0, %cst_45 {dimension_numbers = #tpu.dot_dimension_numbers<[1], [0], [0], [1], [0, 0, 1, 1], [], []>} : vector<2x512xf32>, vector<512x64xf32>, vector<2x64xf32> -> vector<2x64xf32>
    %c2_46 = arith.constant 2 : index
    %c0_47 = arith.constant 0 : index
    %c0_48 = arith.constant 0 : index
    %50 = vector.load %arg2[%c2_46, %c0_47, %c0_48] : memref<4x2x512xf32, #tpu.memory_space<vmem>>, vector<1x2x512xf32>
    %51 = vector.shape_cast %50 : vector<1x2x512xf32> to vector<2x512xf32>
    %cst_49 = arith.constant dense<0.000000e+00> : vector<2x64xf32>
    %52 = tpu.matmul %51, %0, %cst_49 {dimension_numbers = #tpu.dot_dimension_numbers<[1], [0], [0], [1], [0, 0, 1, 1], [], []>} : vector<2x512xf32>, vector<512x64xf32>, vector<2x64xf32> -> vector<2x64xf32>
    %53 = arith.maximumf %49, %52 : vector<2x64xf32>
    %c2_50 = arith.constant 2 : index
    %c0_51 = arith.constant 0 : index
    %c0_52 = arith.constant 0 : index
    %54 = vector.load %arg3[%c2_50, %c0_51, %c0_52] : memref<4x2x512xf32, #tpu.memory_space<vmem>>, vector<1x2x512xf32>
    %55 = vector.shape_cast %54 : vector<1x2x512xf32> to vector<2x512xf32>
    %cst_53 = arith.constant dense<0.000000e+00> : vector<2x64xf32>
    %56 = tpu.matmul %55, %0, %cst_53 {dimension_numbers = #tpu.dot_dimension_numbers<[1], [0], [0], [1], [0, 0, 1, 1], [], []>} : vector<2x512xf32>, vector<512x64xf32>, vector<2x64xf32> -> vector<2x64xf32>
    %c2_54 = arith.constant 2 : index
    %c0_55 = arith.constant 0 : index
    %c0_56 = arith.constant 0 : index
    %57 = vector.load %arg4[%c2_54, %c0_55, %c0_56] : memref<4x2x512xf32, #tpu.memory_space<vmem>>, vector<1x2x512xf32>
    %58 = vector.shape_cast %57 : vector<1x2x512xf32> to vector<2x512xf32>
    %cst_57 = arith.constant dense<0.000000e+00> : vector<2x64xf32>
    %59 = tpu.matmul %58, %0, %cst_57 {dimension_numbers = #tpu.dot_dimension_numbers<[1], [0], [0], [1], [0, 0, 1, 1], [], []>} : vector<2x512xf32>, vector<512x64xf32>, vector<2x64xf32> -> vector<2x64xf32>
    %60 = arith.maximumf %56, %59 : vector<2x64xf32>
    %61 = arith.maximumf %53, %60 : vector<2x64xf32>
    %62 = vector.broadcast %1 : vector<1x64xf32> to vector<2x64xf32>
    %63 = arith.addf %61, %62 : vector<2x64xf32>
    %c2_58 = arith.constant 2 : index
    %c0_59 = arith.constant 0 : index
    %c0_60 = arith.constant 0 : index
    %64 = vector.load %arg7[%c2_58, %c0_59, %c0_60] : memref<4x64x1024xf32, #tpu.memory_space<vmem>>, vector<1x64x1024xf32>
    %65 = vector.shape_cast %64 : vector<1x64x1024xf32> to vector<64x1024xf32>
    %cst_61 = arith.constant dense<0.000000e+00> : vector<2x1024xf32>
    %66 = tpu.matmul %63, %65, %cst_61 {dimension_numbers = #tpu.dot_dimension_numbers<[1], [0], [0], [1], [0, 0, 1, 1], [], []>} : vector<2x64xf32>, vector<64x1024xf32>, vector<2x1024xf32> -> vector<2x1024xf32>
    %67 = arith.addf %46, %66 : vector<2x1024xf32>
    %c3 = arith.constant 3 : index
    %c0_62 = arith.constant 0 : index
    %c0_63 = arith.constant 0 : index
    %68 = vector.load %arg1[%c3, %c0_62, %c0_63] : memref<4x2x512xf32, #tpu.memory_space<vmem>>, vector<1x2x512xf32>
    %69 = vector.shape_cast %68 : vector<1x2x512xf32> to vector<2x512xf32>
    %cst_64 = arith.constant dense<0.000000e+00> : vector<2x64xf32>
    %70 = tpu.matmul %69, %0, %cst_64 {dimension_numbers = #tpu.dot_dimension_numbers<[1], [0], [0], [1], [0, 0, 1, 1], [], []>} : vector<2x512xf32>, vector<512x64xf32>, vector<2x64xf32> -> vector<2x64xf32>
    %c3_65 = arith.constant 3 : index
    %c0_66 = arith.constant 0 : index
    %c0_67 = arith.constant 0 : index
    %71 = vector.load %arg2[%c3_65, %c0_66, %c0_67] : memref<4x2x512xf32, #tpu.memory_space<vmem>>, vector<1x2x512xf32>
    %72 = vector.shape_cast %71 : vector<1x2x512xf32> to vector<2x512xf32>
    %cst_68 = arith.constant dense<0.000000e+00> : vector<2x64xf32>
    %73 = tpu.matmul %72, %0, %cst_68 {dimension_numbers = #tpu.dot_dimension_numbers<[1], [0], [0], [1], [0, 0, 1, 1], [], []>} : vector<2x512xf32>, vector<512x64xf32>, vector<2x64xf32> -> vector<2x64xf32>
    %74 = arith.maximumf %70, %73 : vector<2x64xf32>
    %c3_69 = arith.constant 3 : index
    %c0_70 = arith.constant 0 : index
    %c0_71 = arith.constant 0 : index
    %75 = vector.load %arg3[%c3_69, %c0_70, %c0_71] : memref<4x2x512xf32, #tpu.memory_space<vmem>>, vector<1x2x512xf32>
    %76 = vector.shape_cast %75 : vector<1x2x512xf32> to vector<2x512xf32>
    %cst_72 = arith.constant dense<0.000000e+00> : vector<2x64xf32>
    %77 = tpu.matmul %76, %0, %cst_72 {dimension_numbers = #tpu.dot_dimension_numbers<[1], [0], [0], [1], [0, 0, 1, 1], [], []>} : vector<2x512xf32>, vector<512x64xf32>, vector<2x64xf32> -> vector<2x64xf32>
    %c3_73 = arith.constant 3 : index
    %c0_74 = arith.constant 0 : index
    %c0_75 = arith.constant 0 : index
    %78 = vector.load %arg4[%c3_73, %c0_74, %c0_75] : memref<4x2x512xf32, #tpu.memory_space<vmem>>, vector<1x2x512xf32>
    %79 = vector.shape_cast %78 : vector<1x2x512xf32> to vector<2x512xf32>
    %cst_76 = arith.constant dense<0.000000e+00> : vector<2x64xf32>
    %80 = tpu.matmul %79, %0, %cst_76 {dimension_numbers = #tpu.dot_dimension_numbers<[1], [0], [0], [1], [0, 0, 1, 1], [], []>} : vector<2x512xf32>, vector<512x64xf32>, vector<2x64xf32> -> vector<2x64xf32>
    %81 = arith.maximumf %77, %80 : vector<2x64xf32>
    %82 = arith.maximumf %74, %81 : vector<2x64xf32>
    %83 = vector.broadcast %1 : vector<1x64xf32> to vector<2x64xf32>
    %84 = arith.addf %82, %83 : vector<2x64xf32>
    %c3_77 = arith.constant 3 : index
    %c0_78 = arith.constant 0 : index
    %c0_79 = arith.constant 0 : index
    %85 = vector.load %arg7[%c3_77, %c0_78, %c0_79] : memref<4x64x1024xf32, #tpu.memory_space<vmem>>, vector<1x64x1024xf32>
    %86 = vector.shape_cast %85 : vector<1x64x1024xf32> to vector<64x1024xf32>
    %cst_80 = arith.constant dense<0.000000e+00> : vector<2x1024xf32>
    %87 = tpu.matmul %84, %86, %cst_80 {dimension_numbers = #tpu.dot_dimension_numbers<[1], [0], [0], [1], [0, 0, 1, 1], [], []>} : vector<2x64xf32>, vector<64x1024xf32>, vector<2x1024xf32> -> vector<2x1024xf32>
    %88 = arith.addf %67, %87 : vector<2x1024xf32>
    %cst_81 = arith.constant 0.000000e+00 : f32
    %89 = vector.broadcast %cst_81 : f32 to vector<2x1024xf32>
    %90 = arith.maximumf %88, %89 : vector<2x1024xf32>
    %91 = arith.truncf %90 : vector<2x1024xf32> to vector<2x1024xbf16>
    %c0_82 = arith.constant 0 : index
    %c0_83 = arith.constant 0 : index
    %92 = vector.load %arg9[%c0_82, %c0_83] : memref<1024x1024xbf16, #tpu.memory_space<vmem>>, vector<1024x1024xbf16>
    %cst_84 = arith.constant dense<0.000000e+00> : vector<2x1024xf32>
    %93 = tpu.matmul %91, %92, %cst_84 {dimension_numbers = #tpu.dot_dimension_numbers<[1], [0], [0], [1], [0, 0, 1, 1], [], []>} : vector<2x1024xbf16>, vector<1024x1024xbf16>, vector<2x1024xf32> -> vector<2x1024xf32>
    %c0_85 = arith.constant 0 : index
    %c0_86 = arith.constant 0 : index
    %94 = vector.load %arg10[%c0_85, %c0_86] : memref<1x1024xf32, #tpu.memory_space<vmem>>, vector<1x1024xf32>
    %95 = vector.broadcast %94 : vector<1x1024xf32> to vector<2x1024xf32>
    %96 = arith.addf %93, %95 : vector<2x1024xf32>
    %cst_87 = arith.constant 0.000000e+00 : f32
    %97 = vector.broadcast %cst_87 : f32 to vector<2x1024xf32>
    %98 = arith.maximumf %96, %97 : vector<2x1024xf32>
    %c0_88 = arith.constant 0 : index
    %c0_89 = arith.constant 0 : index
    %99 = vector.load %arg11[%c0_88, %c0_89] : memref<1024x2xf32, #tpu.memory_space<vmem>>, vector<1024x2xf32>
    %cst_90 = arith.constant dense<0.000000e+00> : vector<2x2xf32>
    %100 = tpu.matmul %98, %99, %cst_90 {dimension_numbers = #tpu.dot_dimension_numbers<[1], [0], [0], [1], [0, 0, 1, 1], [], []>} : vector<2x1024xf32>, vector<1024x2xf32>, vector<2x2xf32> -> vector<2x2xf32>
    %c0_91 = arith.constant 0 : index
    %c0_92 = arith.constant 0 : index
    %101 = vector.load %arg12[%c0_91, %c0_92] : memref<1x2xf32, #tpu.memory_space<vmem>>, vector<1x2xf32>
    %102 = vector.broadcast %101 : vector<1x2xf32> to vector<2x2xf32>
    %103 = arith.addf %100, %102 : vector<2x2xf32>
    %c0_93 = arith.constant 0 : index
    %c0_94 = arith.constant 0 : index
    %104 = vector.load %arg13[%c0_93, %c0_94] : memref<2x2xf32, #tpu.memory_space<vmem>>, vector<2x2xf32>
    tpu.vector_store %arg13[%c0_93, %c0_94], %103 {strides = array<i32>} : memref<2x2xf32, #tpu.memory_space<vmem>>, vector<2x2xf32>,
    return
  }
  func.func @transform_0(%arg0: i32) -> (i32, i32, i32) {
    %c0_i32 = arith.constant 0 : i32
    %c0_i32_0 = arith.constant 0 : i32
    %c0_i32_1 = arith.constant 0 : i32
    return %c0_i32, %arg0, %c0_i32_0 : i32, i32, i32
  }
  func.func @transform_1(%arg0: i32) -> (i32, i32, i32) {
    %c0_i32 = arith.constant 0 : i32
    %c0_i32_0 = arith.constant 0 : i32
    %c0_i32_1 = arith.constant 0 : i32
    return %c0_i32, %arg0, %c0_i32_0 : i32, i32, i32
  }
  func.func @transform_2(%arg0: i32) -> (i32, i32, i32) {
    %c0_i32 = arith.constant 0 : i32
    %c0_i32_0 = arith.constant 0 : i32
    %c0_i32_1 = arith.constant 0 : i32
    return %c0_i32, %arg0, %c0_i32_0 : i32, i32, i32
  }
  func.func @transform_3(%arg0: i32) -> (i32, i32, i32) {
    %c0_i32 = arith.constant 0 : i32
    %c0_i32_0 = arith.constant 0 : i32
    %c0_i32_1 = arith.constant 0 : i32
    return %c0_i32, %arg0, %c0_i32_0 : i32, i32, i32
  }
  func.func @transform_4(%arg0: i32) -> (i32, i32) {
    %c0_i32 = arith.constant 0 : i32
    %c0_i32_0 = arith.constant 0 : i32
    %c0_i32_1 = arith.constant 0 : i32
    return %c0_i32, %c0_i32_0 : i32, i32
  }
  func.func @transform_5(%arg0: i32) -> (i32, i32) {
    %c0_i32 = arith.constant 0 : i32
    %c0_i32_0 = arith.constant 0 : i32
    %c0_i32_1 = arith.constant 0 : i32
    return %c0_i32, %c0_i32_0 : i32, i32
  }
  func.func @transform_6(%arg0: i32) -> (i32, i32, i32) {
    %c0_i32 = arith.constant 0 : i32
    %c0_i32_0 = arith.constant 0 : i32
    %c0_i32_1 = arith.constant 0 : i32
    %c0_i32_2 = arith.constant 0 : i32
    return %c0_i32, %c0_i32_0, %c0_i32_1 : i32, i32, i32
  }
  func.func @transform_7(%arg0: i32) -> (i32, i32) {
    %c0_i32 = arith.constant 0 : i32
    %c0_i32_0 = arith.constant 0 : i32
    %c0_i32_1 = arith.constant 0 : i32
    return %c0_i32, %c0_i32_0 : i32, i32
  }
  func.func @transform_8(%arg0: i32) -> (i32, i32) {
    %c0_i32 = arith.constant 0 : i32
    %c0_i32_0 = arith.constant 0 : i32
    %c0_i32_1 = arith.constant 0 : i32
    return %c0_i32, %c0_i32_0 : i32, i32
  }
  func.func @transform_9(%arg0: i32) -> (i32, i32) {
    %c0_i32 = arith.constant 0 : i32
    %c0_i32_0 = arith.constant 0 : i32
    %c0_i32_1 = arith.constant 0 : i32
    return %c0_i32, %c0_i32_0 : i32, i32
  }
  func.func @transform_10(%arg0: i32) -> (i32, i32) {
    %c0_i32 = arith.constant 0 : i32
    %c0_i32_0 = arith.constant 0 : i32
    %c0_i32_1 = arith.constant 0 : i32
    return %c0_i32, %c0_i32_0 : i32, i32
  }
  func.func @transform_11(%arg0: i32) -> (i32, i32) {
    %c0_i32 = arith.constant 0 : i32
    %c0_i32_0 = arith.constant 0 : i32
    %c0_i32_1 = arith.constant 0 : i32
    return %c0_i32, %c0_i32_0 : i32, i32
  }
  func.func @transform_12(%arg0: i32) -> (i32, i32) {
    %c0_i32 = arith.constant 0 : i32
    %c0_i32_0 = arith.constant 0 : i32
    return %arg0, %c0_i32 : i32, i32
  }
}

</mosaic_0001>

<llo_original>
// kernel: forward.2
$region0: #{forward.2}
  #allocation0 [shape = 'u32[]', space=smem, size = 0x4, offset = 0x4, fixed_abs, tag = 'smem constant byte address 0x4 - core index']
  #allocation1 [shape = 'u32[72,128]{1,0:T(1,128)}', space=vmem, size = 0x9000, scoped, tag = 'internal scratch']
  %s0 = inlined_call_operand.vmem [shape: f32[2,100,256], index: 0, kind: input, shape index: {}]
  %s1 = inlined_call_operand.vmem [shape: f32[2,100,256], index: 1, kind: input, shape index: {}]
  %s2 = inlined_call_operand.vmem [shape: f32[2,100,256], index: 2, kind: input, shape index: {}]
  %s3 = inlined_call_operand.vmem [shape: f32[2,100,256], index: 3, kind: input, shape index: {}]
  %s4 = inlined_call_operand.vmem [shape: f32[256,32], index: 4, kind: input, shape index: {}]
  %s5 = inlined_call_operand.vmem [shape: f32[1,32], index: 5, kind: input, shape index: {}]
  %s6 = inlined_call_operand.vmem [shape: f32[2,100,32], index: 6, kind: output, shape index: {}]
  %s7 = sld [smem:[#allocation0]]
  $region57: #{forward.2} parent=0
    _
  %s9 = ssub.s32 1, %s7
  %s10 = scalar_select 0, %s9, %s7
  loop: start=0, step=1, limit=4
  $region2: #{forward.2} parent=0 // loop_pre_header
    _
  $region3: #{forward.2} parent=0 // loop_header
    %s12 = sphi 0, %s16
    %p13 = scmp.ge.s32.totalorder %s12, 4
    %s22 = sphi 0, %s24
    %s25 = sphi 0, %s22
    %s26 = sphi 0, %s25
    %s42 = sphi 0, %s26
    %s48 = sphi 0, %s50
    %s51 = sphi 0, %s48
    %s52 = sphi 0, %s51
    %s68 = sphi 0, %s52
    %s74 = sphi 0, %s76
    %s77 = sphi 0, %s74
    %s78 = sphi 0, %s77
    %s94 = sphi 0, %s78
    %s100 = sphi 0, %s102
    %s103 = sphi 0, %s100
    %s104 = sphi 0, %s103
    %s120 = sphi 0, %s104
    %s124 = sphi 0, %s124
    %s126 = sphi 0, %s124
    %s127 = sphi 0, %s126
    %s141 = sphi 0, %s127
    %s145 = sphi 0, %s145
    %s147 = sphi 0, %s145
    %s148 = sphi 0, %s147
    %s162 = sphi 0, %s148
    %s168 = sphi 0, %s170
    %s171 = sphi 0, %s168
    %s172 = sphi 0, %s171
    %s188 = sphi 0, %s172
  $region4: #{forward.2} parent=0 // loop_header_branch
    %15 = sbr.rel (%p13) target = $region8
  $region5: #{forward.2} parent=0 // loop_body
    %s17 = ssub.s32 %s12, 1
    %s18 = ssub.s32 %s12, 2
    %s19 = sadd.s32 %s12, 1
    %s20 = ssub.s32 %s12, %s19
    %p21 = scmp.eq.s32.totalorder %s20, 0
    %s23 = sadd.s32 %s22, 1
    %s24 = scalar_select %p21, %s22, %s23
    %p27 = pneg %p21
    %p28 = scmp.eq.s32.totalorder %s12, 1
    %p29 = por %p27, %p28
    %p30 = scmp.ne.s32.totalorder %s22, %s25
    %p31 = scmp.eq.s32.totalorder %s12, 0
    %p32 = por %p30, %p31
    %p33 = scmp.ne.s32.totalorder %s22, %s25
    %p34 = scmp.eq.s32.totalorder %s17, 1
    %p35 = por %p33, %p34
    %p36 = scmp.ne.s32.totalorder %s25, %s26
    %p37 = scmp.eq.s32.totalorder %s17, 0
    %p38 = por %p36, %p37
    %p39 = scmp.ne.s32.totalorder %s25, %s26
    %p40 = scmp.eq.s32.totalorder %s18, 1
    %p41 = por %p39, %p40
    %p43 = scmp.ne.s32.totalorder %s26, %s42
    %p44 = scmp.eq.s32.totalorder %s18, 0
    %p45 = por %p43, %p44
    %s46 = ssub.s32 %s12, %s19
    %p47 = scmp.eq.s32.totalorder %s46, 0
    %s49 = sadd.s32 %s48, 1
    %s50 = scalar_select %p47, %s48, %s49
    %p53 = pneg %p47
    %p54 = scmp.eq.s32.totalorder %s12, 1
    %p55 = por %p53, %p54
    %p56 = scmp.ne.s32.totalorder %s48, %s51
    %p57 = scmp.eq.s32.totalorder %s12, 0
    %p58 = por %p56, %p57
    %p59 = scmp.ne.s32.totalorder %s48, %s51
    %p60 = scmp.eq.s32.totalorder %s17, 1
    %p61 = por %p59, %p60
    %p62 = scmp.ne.s32.totalorder %s51, %s52
    %p63 = scmp.eq.s32.totalorder %s17, 0
    %p64 = por %p62, %p63
    %p65 = scmp.ne.s32.totalorder %s51, %s52
    %p66 = scmp.eq.s32.totalorder %s18, 1
    %p67 = por %p65, %p66
    %p69 = scmp.ne.s32.totalorder %s52, %s68
    %p70 = scmp.eq.s32.totalorder %s18, 0
    %p71 = por %p69, %p70
    %s72 = ssub.s32 %s12, %s19
    %p73 = scmp.eq.s32.totalorder %s72, 0
    %s75 = sadd.s32 %s74, 1
    %s76 = scalar_select %p73, %s74, %s75
    %p79 = pneg %p73
    %p80 = scmp.eq.s32.totalorder %s12, 1
    %p81 = por %p79, %p80
    %p82 = scmp.ne.s32.totalorder %s74, %s77
    %p83 = scmp.eq.s32.totalorder %s12, 0
    %p84 = por %p82, %p83
    %p85 = scmp.ne.s32.totalorder %s74, %s77
    %p86 = scmp.eq.s32.totalorder %s17, 1
    %p87 = por %p85, %p86
    %p88 = scmp.ne.s32.totalorder %s77, %s78
    %p89 = scmp.eq.s32.totalorder %s17, 0
    %p90 = por %p88, %p89
    %p91 = scmp.ne.s32.totalorder %s77, %s78
    %p92 = scmp.eq.s32.totalorder %s18, 1
    %p93 = por %p91, %p92
    %p95 = scmp.ne.s32.totalorder %s78, %s94
    %p96 = scmp.eq.s32.totalorder %s18, 0
    %p97 = por %p95, %p96
    %s98 = ssub.s32 %s12, %s19
    %p99 = scmp.eq.s32.totalorder %s98, 0
    %s101 = sadd.s32 %s100, 1
    %s102 = scalar_select %p99, %s100, %s101
    %p105 = pneg %p99
    %p106 = scmp.eq.s32.totalorder %s12, 1
    %p107 = por %p105, %p106
    %p108 = scmp.ne.s32.totalorder %s100, %s103
    %p109 = scmp.eq.s32.totalorder %s12, 0
    %p110 = por %p108, %p109
    %p111 = scmp.ne.s32.totalorder %s100, %s103
    %p112 = scmp.eq.s32.totalorder %s17, 1
    %p113 = por %p111, %p112
    %p114 = scmp.ne.s32.totalorder %s103, %s104
    %p115 = scmp.eq.s32.totalorder %s17, 0
    %p116 = por %p114, %p115
    %p117 = scmp.ne.s32.totalorder %s103, %s104
    %p118 = scmp.eq.s32.totalorder %s18, 1
    %p119 = por %p117, %p118
    %p121 = scmp.ne.s32.totalorder %s104, %s120
    %p122 = scmp.eq.s32.totalorder %s18, 0
    %p123 = por %p121, %p122
    %s125 = sadd.s32 %s124, 1
    %p128 = scmp.eq.s32.totalorder %s12, 1
    %p129 = scmp.ne.s32.totalorder %s124, %s126
    %p130 = scmp.eq.s32.totalorder %s12, 0
    %p131 = por %p129, %p130
    %p132 = scmp.ne.s32.totalorder %s124, %s126
    %p133 = scmp.eq.s32.totalorder %s17, 1
    %p134 = por %p132, %p133
    %p135 = scmp.ne.s32.totalorder %s126, %s127
    %p136 = scmp.eq.s32.totalorder %s17, 0
    %p137 = por %p135, %p136
    %p138 = scmp.ne.s32.totalorder %s126, %s127
    %p139 = scmp.eq.s32.totalorder %s18, 1
    %p140 = por %p138, %p139
    %p142 = scmp.ne.s32.totalorder %s127, %s141
    %p143 = scmp.eq.s32.totalorder %s18, 0
    %p144 = por %p142, %p143
    %s146 = sadd.s32 %s145, 1
    %p149 = scmp.eq.s32.totalorder %s12, 1
    %p150 = scmp.ne.s32.totalorder %s145, %s147
    %p151 = scmp.eq.s32.totalorder %s12, 0
    %p152 = por %p150, %p151
    %p153 = scmp.ne.s32.totalorder %s145, %s147
    %p154 = scmp.eq.s32.totalorder %s17, 1
    %p155 = por %p153, %p154
    %p156 = scmp.ne.s32.totalorder %s147, %s148
    %p157 = scmp.eq.s32.totalorder %s17, 0
    %p158 = por %p156, %p157
    %p159 = scmp.ne.s32.totalorder %s147, %s148
    %p160 = scmp.eq.s32.totalorder %s18, 1
    %p161 = por %p159, %p160
    %p163 = scmp.ne.s32.totalorder %s148, %s162
    %p164 = scmp.eq.s32.totalorder %s18, 0
    %p165 = por %p163, %p164
    %s166 = ssub.s32 %s12, %s19
    %p167 = scmp.eq.s32.totalorder %s166, 0
    %s169 = sadd.s32 %s168, 1
    %s170 = scalar_select %p167, %s168, %s169
    %p173 = pneg %p167
    %p174 = scmp.eq.s32.totalorder %s12, 1
    %p175 = por %p173, %p174
    %p176 = scmp.ne.s32.totalorder %s168, %s171
    %p177 = scmp.eq.s32.totalorder %s12, 0
    %p178 = por %p176, %p177
    %p179 = scmp.ne.s32.totalorder %s168, %s171
    %p180 = scmp.eq.s32.totalorder %s17, 1
    %p181 = por %p179, %p180
    %p182 = scmp.ne.s32.totalorder %s171, %s172
    %p183 = scmp.eq.s32.totalorder %s17, 0
    %p184 = por %p182, %p183
    %p185 = scmp.ne.s32.totalorder %s171, %s172
    %p186 = scmp.eq.s32.totalorder %s18, 1
    %p187 = por %p185, %p186
    %p189 = scmp.ne.s32.totalorder %s172, %s188
    %p190 = scmp.eq.s32.totalorder %s18, 0
    %p191 = por %p189, %p190
    %p192 = scmp.le.s32.totalorder 1, %s12
    %p193 = scmp.lt.s32.totalorder %s12, 3
    %p194 = pnand %p192, %p193
    %p195 = pneg %p194
    // Predicated region
    $region9: #{forward.2} parent=5 // pred_check
      _
    $region10: #{forward.2} parent=5 // pred_check_branch
      %197 = sbr.rel (%p194) target = $region12
    $region11: #{forward.2} parent=5 // pred_region
      %s198 = ssub.s32 %s12, 1
      // Predicated region
      $region13: #{forward.2} parent=11 // pred_check
        %p199 = pneg %p137
      $region14: #{forward.2} parent=11 // pred_check_branch
        %201 = sbr.rel (%p199) target = $region16
      $region15: #{forward.2} parent=11 // pred_region
        _
      $region16: #{forward.2} parent=11 // pred_fallthru
        _
      // Predicated region
      $region17: #{forward.2} parent=11 // pred_check
        %p202 = pneg %p158
      $region18: #{forward.2} parent=11 // pred_check_branch
        %204 = sbr.rel (%p202) target = $region20
      $region19: #{forward.2} parent=11 // pred_region
        _
      $region20: #{forward.2} parent=11 // pred_fallthru
        _
    $region12: #{forward.2} parent=5 // pred_fallthru
      _
    %p205 = scmp.lt.s32.totalorder %s12, 2
    // Predicated region
    $region21: #{forward.2} parent=5 // pred_check
      %p206 = pneg %p205
    $region22: #{forward.2} parent=5 // pred_check_branch
      %208 = sbr.rel (%p206) target = $region24
    $region23: #{forward.2} parent=5 // pred_region
      // Predicated region
      $region25: #{forward.2} parent=23 // pred_check
        %p209 = pneg %p32
      $region26: #{forward.2} parent=23 // pred_check_branch
        %211 = sbr.rel (%p209) target = $region28
      $region27: #{forward.2} parent=23 // pred_region
        %p212 = scmp.lt.s32.totalorder %s12, 1
        %s213 = scalar_select %p212, %s12, 1
        %s214 = smul.addr %s213, 26
        %s215 = smul.addr %s214, 8
        %s216 = scalar_lea.vmem %s0, %s215
      $region28: #{forward.2} parent=23 // pred_fallthru
        _
      // Predicated region
      $region29: #{forward.2} parent=23 // pred_check
        %p217 = pneg %p58
      $region30: #{forward.2} parent=23 // pred_check_branch
        %219 = sbr.rel (%p217) target = $region32
      $region31: #{forward.2} parent=23 // pred_region
        %p220 = scmp.lt.s32.totalorder %s12, 1
        %s221 = scalar_select %p220, %s12, 1
        %s222 = smul.addr %s221, 26
        %s223 = smul.addr %s222, 8
        %s224 = scalar_lea.vmem %s1, %s223
      $region32: #{forward.2} parent=23 // pred_fallthru
        _
      // Predicated region
      $region33: #{forward.2} parent=23 // pred_check
        %p225 = pneg %p84
      $region34: #{forward.2} parent=23 // pred_check_branch
        %227 = sbr.rel (%p225) target = $region36
      $region35: #{forward.2} parent=23 // pred_region
        %p228 = scmp.lt.s32.totalorder %s12, 1
        %s229 = scalar_select %p228, %s12, 1
        %s230 = smul.addr %s229, 26
        %s231 = smul.addr %s230, 8
        %s232 = scalar_lea.vmem %s2, %s231
      $region36: #{forward.2} parent=23 // pred_fallthru
        _
      // Predicated region
      $region37: #{forward.2} parent=23 // pred_check
        %p233 = pneg %p110
      $region38: #{forward.2} parent=23 // pred_check_branch
        %235 = sbr.rel (%p233) target = $region40
      $region39: #{forward.2} parent=23 // pred_region
        %p236 = scmp.lt.s32.totalorder %s12, 1
        %s237 = scalar_select %p236, %s12, 1
        %s238 = smul.addr %s237, 26
        %s239 = smul.addr %s238, 8
        %s240 = scalar_lea.vmem %s3, %s239
      $region40: #{forward.2} parent=23 // pred_fallthru
        _
    $region24: #{forward.2} parent=5 // pred_fallthru
      _
    %p241 = scmp.le.s32.totalorder 1, %s12
    %p242 = scmp.lt.s32.totalorder %s12, 3
    %p243 = pnand %p241, %p242
    %p244 = pneg %p243
    // Predicated region
    $region41: #{forward.2} parent=5 // pred_check
      _
    $region42: #{forward.2} parent=5 // pred_check_branch
      %246 = sbr.rel (%p243) target = $region44
    $region43: #{forward.2} parent=5 // pred_region
      %s247 = ssub.s32 %s12, 1
      %p248 = scmp.lt.s32.totalorder %s17, 1
      %s249 = scalar_select %p248, %s17, 1
      %s250 = smul.addr %s249, 26
      %s251 = smul.addr %s250, 8
      %s252 = scalar_lea.vmem %s0, %s251
      %p253 = pneg %p38
      %p254 = pneg %p35
      %p255 = scmp.lt.s32.totalorder %s17, 1
      %s256 = scalar_select %p255, %s17, 1
      %s257 = smul.addr %s256, 26
      %s258 = smul.addr %s257, 8
      %s259 = scalar_lea.vmem %s1, %s258
      %p260 = pneg %p64
      %p261 = pneg %p61
      %p262 = scmp.lt.s32.totalorder %s17, 1
      %s263 = scalar_select %p262, %s17, 1
      %s264 = smul.addr %s263, 26
      %s265 = smul.addr %s264, 8
      %s266 = scalar_lea.vmem %s2, %s265
      %p267 = pneg %p90
      %p268 = pneg %p87
      %p269 = scmp.lt.s32.totalorder %s17, 1
      %s270 = scalar_select %p269, %s17, 1
      %s271 = smul.addr %s270, 26
      %s272 = smul.addr %s271, 8
      %s273 = scalar_lea.vmem %s3, %s272
      %p274 = pneg %p116
      %p275 = pneg %p113
      %p276 = pneg %p137
      %p277 = pneg %p134
      %p278 = pneg %p158
      %p279 = pneg %p155
      %p280 = pneg %p184
      %p281 = pneg %p181
      %p282 = scmp.lt.s32.totalorder %s17, 1
      %s283 = scalar_select %p282, %s17, 1
      %s284 = smul.addr %s283, 13
      %s285 = smul.addr %s284, 8
      %s286 = scalar_lea.vmem %s6, %s285
      %p287 = scmp.lt.s32.totalorder %s17, 1
      %s288 = scalar_select %p287, %s17, 1
      %s289 = smul.addr %s288, 26
      %s290 = smul.addr %s289, 8
      %s291 = scalar_lea.vmem %s0, %s290
      %p292 = scmp.lt.s32.totalorder %s17, 1
      %s293 = scalar_select %p292, %s17, 1
      %s294 = smul.addr %s293, 26
      %s295 = smul.addr %s294, 8
      %s296 = scalar_lea.vmem %s1, %s295
      %p297 = scmp.lt.s32.totalorder %s17, 1
      %s298 = scalar_select %p297, %s17, 1
      %s299 = smul.addr %s298, 26
      %s300 = smul.addr %s299, 8
      %s301 = scalar_lea.vmem %s2, %s300
      %p302 = scmp.lt.s32.totalorder %s17, 1
      %s303 = scalar_select %p302, %s17, 1
      %s304 = smul.addr %s303, 26
      %s305 = smul.addr %s304, 8
      %s306 = scalar_lea.vmem %s3, %s305
      %p307 = scmp.lt.s32.totalorder %s17, 1
      %s308 = scalar_select %p307, %s17, 1
      %s309 = smul.addr %s308, 13
      %s310 = smul.addr %s309, 8
      %s311 = scalar_lea.vmem %s6, %s310
      %v312 = vld [vmem:[%s4] sm:$0xff]
      %v313 = vld [vmem:[%s4 + $0x8] sm:$0xff]
      %v314 = vld [vmem:[%s4 + $0x10] sm:$0xff]
      %v315 = vld [vmem:[%s4 + $0x18] sm:$0xff]
      %v316 = vld [vmem:[%s4 + $0x20] sm:$0xff]
      %v317 = vld [vmem:[%s4 + $0x28] sm:$0xff]
      %v318 = vld [vmem:[%s4 + $0x30] sm:$0xff]
      %v319 = vld [vmem:[%s4 + $0x38] sm:$0xff]
      %v320 = vld [vmem:[%s4 + $0x40] sm:$0xff]
      %v321 = vld [vmem:[%s4 + $0x48] sm:$0xff]
      %v322 = vld [vmem:[%s4 + $0x50] sm:$0xff]
      %v323 = vld [vmem:[%s4 + $0x58] sm:$0xff]
      %v324 = vld [vmem:[%s4 + $0x60] sm:$0xff]
      %v325 = vld [vmem:[%s4 + $0x68] sm:$0xff]
      %v326 = vld [vmem:[%s4 + $0x70] sm:$0xff]
      %v327 = vld [vmem:[%s4 + $0x78] sm:$0xff]
      %v328 = vld [vmem:[%s4 + $0x80] sm:$0xff]
      %v329 = vld [vmem:[%s4 + $0x88] sm:$0xff]
      %v330 = vld [vmem:[%s4 + $0x90] sm:$0xff]
      %v331 = vld [vmem:[%s4 + $0x98] sm:$0xff]
      %v332 = vld [vmem:[%s4 + $0xa0] sm:$0xff]
      %v333 = vld [vmem:[%s4 + $0xa8] sm:$0xff]
      %v334 = vld [vmem:[%s4 + $0xb0] sm:$0xff]
      %v335 = vld [vmem:[%s4 + $0xb8] sm:$0xff]
      %v336 = vld [vmem:[%s4 + $0xc0] sm:$0xff]
      %v337 = vld [vmem:[%s4 + $0xc8] sm:$0xff]
      %v338 = vld [vmem:[%s4 + $0xd0] sm:$0xff]
      %v339 = vld [vmem:[%s4 + $0xd8] sm:$0xff]
      %v340 = vld [vmem:[%s4 + $0xe0] sm:$0xff]
      %v341 = vld [vmem:[%s4 + $0xe8] sm:$0xff]
      %v342 = vld [vmem:[%s4 + $0xf0] sm:$0xff]
      %v343 = vld [vmem:[%s4 + $0xf8] sm:$0xff]
      %v344 = vld [vmem:[%s291] sm:$0xff]
      %v345 = vld [vmem:[%s291 + $0x8] sm:$0xff]
      %v346 = vld [vmem:[%s291 + $0x10] sm:$0xff]
      %v347 = vld [vmem:[%s291 + $0x18] sm:$0xff]
      %v348 = vld [vmem:[%s291 + $0x20] sm:$0xff]
      %v349 = vld [vmem:[%s291 + $0x28] sm:$0xff]
      %v350 = vld [vmem:[%s291 + $0x30] sm:$0xff]
      %v351 = vld [vmem:[%s291 + $0x38] sm:$0xff]
      %v352 = vld [vmem:[%s291 + $0x40] sm:$0xff]
      %v353 = vld [vmem:[%s291 + $0x48] sm:$0xff]
      %v354 = vld [vmem:[%s291 + $0x50] sm:$0xff]
      %v355 = vld [vmem:[%s291 + $0x58] sm:$0xff]
      %v356 = vld [vmem:[%s291 + $0x60] sm:$0xff]
      %v357 = vld [vmem:[%s291 + $0x68] sm:$0xff]
      %v358 = vld [vmem:[%s291 + $0x70] sm:$0xff]
      %v359 = vld [vmem:[%s291 + $0x78] sm:$0xff]
      %v360 = vld [vmem:[%s291 + $0x80] sm:$0xff]
      %v361 = vld [vmem:[%s291 + $0x88] sm:$0xff]
      %v362 = vld [vmem:[%s291 + $0x90] sm:$0xff]
      %v363 = vld [vmem:[%s291 + $0x98] sm:$0xff]
      %v364 = vld [vmem:[%s291 + $0xa0] sm:$0xff]
      %v365 = vld [vmem:[%s291 + $0xa8] sm:$0xff]
      %v366 = vld [vmem:[%s291 + $0xb0] sm:$0xff]
      %v367 = vld [vmem:[%s291 + $0xb8] sm:$0xff]
      %v368 = vld [vmem:[%s291 + $0xc0] sm:$0xf]
      %v369 = vld [vmem:[%s291 + $0xc8] sm:$0xf]
      %370 = vmatpush.msra.mxu0 %v327
      %371 = vmatpush.msra.mxu0 %v326
      %372 = vmatpush.msra.mxu0 %v325
      %373 = vmatpush.msra.mxu0 %v324
      %374 = vmatpush.msra.mxu0 %v323
      %375 = vmatpush.msra.mxu0 %v322
      %376 = vmatpush.msra.mxu0 %v321
      %377 = vmatpush.msra.mxu0 %v320
      %378 = vmatpush.msra.mxu0 %v319
      %379 = vmatpush.msra.mxu0 %v318
      %380 = vmatpush.msra.mxu0 %v317
      %381 = vmatpush.msra.mxu0 %v316
      %382 = vmatpush.msra.mxu0 %v315
      %383 = vmatpush.msra.mxu0 %v314
      %384 = vmatpush.msra.mxu0 %v313
      %385 = vmatpush.msra.mxu0 %v312
      %386 = vmatmul.f32.gmra.mxu0 %v344
      %v387 = vpop.f32.mrf.mxu0
      %v388 = vadd.f32 0.0, %v387
      %389 = vmatmul.f32.gmra.mxu0 %v346
      %v390 = vpop.f32.mrf.mxu0
      %v391 = vadd.f32 0.0, %v390
      %392 = vmatmul.f32.gmra.mxu0 %v348
      %v393 = vpop.f32.mrf.mxu0
      %v394 = vadd.f32 0.0, %v393
      %395 = vmatmul.f32.gmra.mxu0 %v350
      %v396 = vpop.f32.mrf.mxu0
      %v397 = vadd.f32 0.0, %v396
      %398 = vmatmul.f32.gmra.mxu0 %v352
      %v399 = vpop.f32.mrf.mxu0
      %v400 = vadd.f32 0.0, %v399
      %401 = vmatmul.f32.gmra.mxu0 %v354
      %v402 = vpop.f32.mrf.mxu0
      %v403 = vadd.f32 0.0, %v402
      %404 = vmatmul.f32.gmra.mxu0 %v356
      %v405 = vpop.f32.mrf.mxu0
      %v406 = vadd.f32 0.0, %v405
      %407 = vmatmul.f32.gmra.mxu0 %v358
      %v408 = vpop.f32.mrf.mxu0
      %v409 = vadd.f32 0.0, %v408
      %410 = vmatmul.f32.gmra.mxu0 %v360
      %v411 = vpop.f32.mrf.mxu0
      %v412 = vadd.f32 0.0, %v411
      %413 = vmatmul.f32.gmra.mxu0 %v362
      %v414 = vpop.f32.mrf.mxu0
      %v415 = vadd.f32 0.0, %v414
      %416 = vmatmul.f32.gmra.mxu0 %v364
      %v417 = vpop.f32.mrf.mxu0
      %v418 = vadd.f32 0.0, %v417
      %419 = vmatmul.f32.gmra.mxu0 %v366
      %v420 = vpop.f32.mrf.mxu0
      %v421 = vadd.f32 0.0, %v420
      %422 = vmatmul.f32.gmra.mxu0 %v368
      %v423 = vpop.f32.mrf.mxu0
      %v424 = vadd.f32 0.0, %v423
      %425 = vdwg.mxu0
      %426 = vmatpush.msra.mxu0 %v343
      %427 = vmatpush.msra.mxu0 %v342
      %428 = vmatpush.msra.mxu0 %v341
      %429 = vmatpush.msra.mxu0 %v340
      %430 = vmatpush.msra.mxu0 %v339
      %431 = vmatpush.msra.mxu0 %v338
      %432 = vmatpush.msra.mxu0 %v337
      %433 = vmatpush.msra.mxu0 %v336
      %434 = vmatpush.msra.mxu0 %v335
      %435 = vmatpush.msra.mxu0 %v334
      %436 = vmatpush.msra.mxu0 %v333
      %437 = vmatpush.msra.mxu0 %v332
      %438 = vmatpush.msra.mxu0 %v331
      %439 = vmatpush.msra.mxu0 %v330
      %440 = vmatpush.msra.mxu0 %v329
      %441 = vmatpush.msra.mxu0 %v328
      %442 = vmatmul.f32.gmra.mxu0 %v345
      %v443 = vpop.f32.mrf.mxu0
      %v444 = vadd.f32 %v388, %v443
      %445 = vmatmul.f32.gmra.mxu0 %v347
      %v446 = vpop.f32.mrf.mxu0
      %v447 = vadd.f32 %v391, %v446
      %448 = vmatmul.f32.gmra.mxu0 %v349
      %v449 = vpop.f32.mrf.mxu0
      %v450 = vadd.f32 %v394, %v449
      %451 = vmatmul.f32.gmra.mxu0 %v351
      %v452 = vpop.f32.mrf.mxu0
      %v453 = vadd.f32 %v397, %v452
      %454 = vmatmul.f32.gmra.mxu0 %v353
      %v455 = vpop.f32.mrf.mxu0
      %v456 = vadd.f32 %v400, %v455
      %457 = vmatmul.f32.gmra.mxu0 %v355
      %v458 = vpop.f32.mrf.mxu0
      %v459 = vadd.f32 %v403, %v458
      %460 = vmatmul.f32.gmra.mxu0 %v357
      %v461 = vpop.f32.mrf.mxu0
      %v462 = vadd.f32 %v406, %v461
      %463 = vmatmul.f32.gmra.mxu0 %v359
      %v464 = vpop.f32.mrf.mxu0
      %v465 = vadd.f32 %v409, %v464
      %466 = vmatmul.f32.gmra.mxu0 %v361
      %v467 = vpop.f32.mrf.mxu0
      %v468 = vadd.f32 %v412, %v467
      %469 = vmatmul.f32.gmra.mxu0 %v363
      %v470 = vpop.f32.mrf.mxu0
      %v471 = vadd.f32 %v415, %v470
      %472 = vmatmul.f32.gmra.mxu0 %v365
      %v473 = vpop.f32.mrf.mxu0
      %v474 = vadd.f32 %v418, %v473
      %475 = vmatmul.f32.gmra.mxu0 %v367
      %v476 = vpop.f32.mrf.mxu0
      %v477 = vadd.f32 %v421, %v476
      %478 = vmatmul.f32.gmra.mxu0 %v369
      %v479 = vpop.f32.mrf.mxu0
      %v480 = vadd.f32 %v424, %v479
      %481 = vdwg.mxu0
      %v482 = vld [vmem:[%s296] sm:$0xff]
      %v483 = vld [vmem:[%s296 + $0x8] sm:$0xff]
      %v484 = vld [vmem:[%s296 + $0x10] sm:$0xff]
      %v485 = vld [vmem:[%s296 + $0x18] sm:$0xff]
      %v486 = vld [vmem:[%s296 + $0x20] sm:$0xff]
      %v487 = vld [vmem:[%s296 + $0x28] sm:$0xff]
      %v488 = vld [vmem:[%s296 + $0x30] sm:$0xff]
      %v489 = vld [vmem:[%s296 + $0x38] sm:$0xff]
      %v490 = vld [vmem:[%s296 + $0x40] sm:$0xff]
      %v491 = vld [vmem:[%s296 + $0x48] sm:$0xff]
      %v492 = vld [vmem:[%s296 + $0x50] sm:$0xff]
      %v493 = vld [vmem:[%s296 + $0x58] sm:$0xff]
      %v494 = vld [vmem:[%s296 + $0x60] sm:$0xff]
      %v495 = vld [vmem:[%s296 + $0x68] sm:$0xff]
      %v496 = vld [vmem:[%s296 + $0x70] sm:$0xff]
      %v497 = vld [vmem:[%s296 + $0x78] sm:$0xff]
      %v498 = vld [vmem:[%s296 + $0x80] sm:$0xff]
      %v499 = vld [vmem:[%s296 + $0x88] sm:$0xff]
      %v500 = vld [vmem:[%s296 + $0x90] sm:$0xff]
      %v501 = vld [vmem:[%s296 + $0x98] sm:$0xff]
      %v502 = vld [vmem:[%s296 + $0xa0] sm:$0xff]
      %v503 = vld [vmem:[%s296 + $0xa8] sm:$0xff]
      %v504 = vld [vmem:[%s296 + $0xb0] sm:$0xff]
      %v505 = vld [vmem:[%s296 + $0xb8] sm:$0xff]
      %v506 = vld [vmem:[%s296 + $0xc0] sm:$0xf]
      %v507 = vld [vmem:[%s296 + $0xc8] sm:$0xf]
      %508 = vmatpush.msra.mxu0 %v327
      %509 = vmatpush.msra.mxu0 %v326
      %510 = vmatpush.msra.mxu0 %v325
      %511 = vmatpush.msra.mxu0 %v324
      %512 = vmatpush.msra.mxu0 %v323
      %513 = vmatpush.msra.mxu0 %v322
      %514 = vmatpush.msra.mxu0 %v321
      %515 = vmatpush.msra.mxu0 %v320
      %516 = vmatpush.msra.mxu0 %v319
      %517 = vmatpush.msra.mxu0 %v318
      %518 = vmatpush.msra.mxu0 %v317
      %519 = vmatpush.msra.mxu0 %v316
      %520 = vmatpush.msra.mxu0 %v315
      %521 = vmatpush.msra.mxu0 %v314
      %522 = vmatpush.msra.mxu0 %v313
      %523 = vmatpush.msra.mxu0 %v312
      %524 = vmatmul.f32.gmra.mxu0 %v482
      %v525 = vpop.f32.mrf.mxu0
      %v526 = vadd.f32 0.0, %v525
      %527 = vmatmul.f32.gmra.mxu0 %v484
      %v528 = vpop.f32.mrf.mxu0
      %v529 = vadd.f32 0.0, %v528
      %530 = vmatmul.f32.gmra.mxu0 %v486
      %v531 = vpop.f32.mrf.mxu0
      %v532 = vadd.f32 0.0, %v531
      %533 = vmatmul.f32.gmra.mxu0 %v488
      %v534 = vpop.f32.mrf.mxu0
      %v535 = vadd.f32 0.0, %v534
      %536 = vmatmul.f32.gmra.mxu0 %v490
      %v537 = vpop.f32.mrf.mxu0
      %v538 = vadd.f32 0.0, %v537
      %539 = vmatmul.f32.gmra.mxu0 %v492
      %v540 = vpop.f32.mrf.mxu0
      %v541 = vadd.f32 0.0, %v540
      %542 = vmatmul.f32.gmra.mxu0 %v494
      %v543 = vpop.f32.mrf.mxu0
      %v544 = vadd.f32 0.0, %v543
      %545 = vmatmul.f32.gmra.mxu0 %v496
      %v546 = vpop.f32.mrf.mxu0
      %v547 = vadd.f32 0.0, %v546
      %548 = vmatmul.f32.gmra.mxu0 %v498
      %v549 = vpop.f32.mrf.mxu0
      %v550 = vadd.f32 0.0, %v549
      %551 = vmatmul.f32.gmra.mxu0 %v500
      %v552 = vpop.f32.mrf.mxu0
      %v553 = vadd.f32 0.0, %v552
      %554 = vmatmul.f32.gmra.mxu0 %v502
      %v555 = vpop.f32.mrf.mxu0
      %v556 = vadd.f32 0.0, %v555
      %557 = vmatmul.f32.gmra.mxu0 %v504
      %v558 = vpop.f32.mrf.mxu0
      %v559 = vadd.f32 0.0, %v558
      %560 = vmatmul.f32.gmra.mxu0 %v506
      %v561 = vpop.f32.mrf.mxu0
      %v562 = vadd.f32 0.0, %v561
      %563 = vdwg.mxu0
      %564 = vmatpush.msra.mxu0 %v343
      %565 = vmatpush.msra.mxu0 %v342
      %566 = vmatpush.msra.mxu0 %v341
      %567 = vmatpush.msra.mxu0 %v340
      %568 = vmatpush.msra.mxu0 %v339
      %569 = vmatpush.msra.mxu0 %v338
      %570 = vmatpush.msra.mxu0 %v337
      %571 = vmatpush.msra.mxu0 %v336
      %572 = vmatpush.msra.mxu0 %v335
      %573 = vmatpush.msra.mxu0 %v334
      %574 = vmatpush.msra.mxu0 %v333
      %575 = vmatpush.msra.mxu0 %v332
      %576 = vmatpush.msra.mxu0 %v331
      %577 = vmatpush.msra.mxu0 %v330
      %578 = vmatpush.msra.mxu0 %v329
      %579 = vmatpush.msra.mxu0 %v328
      %580 = vmatmul.f32.gmra.mxu0 %v483
      %v581 = vpop.f32.mrf.mxu0
      %v582 = vadd.f32 %v526, %v581
      %583 = vmatmul.f32.gmra.mxu0 %v485
      %v584 = vpop.f32.mrf.mxu0
      %v585 = vadd.f32 %v529, %v584
      %586 = vmatmul.f32.gmra.mxu0 %v487
      %v587 = vpop.f32.mrf.mxu0
      %v588 = vadd.f32 %v532, %v587
      %589 = vmatmul.f32.gmra.mxu0 %v489
      %v590 = vpop.f32.mrf.mxu0
      %v591 = vadd.f32 %v535, %v590
      %592 = vmatmul.f32.gmra.mxu0 %v491
      %v593 = vpop.f32.mrf.mxu0
      %v594 = vadd.f32 %v538, %v593
      %595 = vmatmul.f32.gmra.mxu0 %v493
      %v596 = vpop.f32.mrf.mxu0
      %v597 = vadd.f32 %v541, %v596
      %598 = vmatmul.f32.gmra.mxu0 %v495
      %v599 = vpop.f32.mrf.mxu0
      %v600 = vadd.f32 %v544, %v599
      %601 = vmatmul.f32.gmra.mxu0 %v497
      %v602 = vpop.f32.mrf.mxu0
      %v603 = vadd.f32 %v547, %v602
      %604 = vmatmul.f32.gmra.mxu0 %v499
      %v605 = vpop.f32.mrf.mxu0
      %v606 = vadd.f32 %v550, %v605
      %607 = vmatmul.f32.gmra.mxu0 %v501
      %v608 = vpop.f32.mrf.mxu0
      %v609 = vadd.f32 %v553, %v608
      %610 = vmatmul.f32.gmra.mxu0 %v503
      %v611 = vpop.f32.mrf.mxu0
      %v612 = vadd.f32 %v556, %v611
      %613 = vmatmul.f32.gmra.mxu0 %v505
      %v614 = vpop.f32.mrf.mxu0
      %v615 = vadd.f32 %v559, %v614
      %616 = vmatmul.f32.gmra.mxu0 %v507
      %v617 = vpop.f32.mrf.mxu0
      %v618 = vadd.f32 %v562, %v617
      %619 = vdwg.mxu0
      %v620 = vld [vmem:[%s301] sm:$0xff]
      %v621 = vld [vmem:[%s301 + $0x8] sm:$0xff]
      %v622 = vld [vmem:[%s301 + $0x10] sm:$0xff]
      %v623 = vld [vmem:[%s301 + $0x18] sm:$0xff]
      %v624 = vld [vmem:[%s301 + $0x20] sm:$0xff]
      %v625 = vld [vmem:[%s301 + $0x28] sm:$0xff]
      %v626 = vld [vmem:[%s301 + $0x30] sm:$0xff]
      %v627 = vld [vmem:[%s301 + $0x38] sm:$0xff]
      %v628 = vld [vmem:[%s301 + $0x40] sm:$0xff]
      %v629 = vld [vmem:[%s301 + $0x48] sm:$0xff]
      %v630 = vld [vmem:[%s301 + $0x50] sm:$0xff]
      %v631 = vld [vmem:[%s301 + $0x58] sm:$0xff]
      %v632 = vld [vmem:[%s301 + $0x60] sm:$0xff]
      %v633 = vld [vmem:[%s301 + $0x68] sm:$0xff]
      %v634 = vld [vmem:[%s301 + $0x70] sm:$0xff]
      %v635 = vld [vmem:[%s301 + $0x78] sm:$0xff]
      %v636 = vld [vmem:[%s301 + $0x80] sm:$0xff]
      %v637 = vld [vmem:[%s301 + $0x88] sm:$0xff]
      %v638 = vld [vmem:[%s301 + $0x90] sm:$0xff]
      %v639 = vld [vmem:[%s301 + $0x98] sm:$0xff]
      %v640 = vld [vmem:[%s301 + $0xa0] sm:$0xff]
      %v641 = vld [vmem:[%s301 + $0xa8] sm:$0xff]
      %v642 = vld [vmem:[%s301 + $0xb0] sm:$0xff]
      %v643 = vld [vmem:[%s301 + $0xb8] sm:$0xff]
      %v644 = vld [vmem:[%s301 + $0xc0] sm:$0xf]
      %v645 = vld [vmem:[%s301 + $0xc8] sm:$0xf]
      %646 = vmatpush.msra.mxu0 %v327
      %647 = vmatpush.msra.mxu0 %v326
      %648 = vmatpush.msra.mxu0 %v325
      %649 = vmatpush.msra.mxu0 %v324
      %650 = vmatpush.msra.mxu0 %v323
      %651 = vmatpush.msra.mxu0 %v322
      %652 = vmatpush.msra.mxu0 %v321
      %653 = vmatpush.msra.mxu0 %v320
      %654 = vmatpush.msra.mxu0 %v319
      %655 = vmatpush.msra.mxu0 %v318
      %656 = vmatpush.msra.mxu0 %v317
      %657 = vmatpush.msra.mxu0 %v316
      %658 = vmatpush.msra.mxu0 %v315
      %659 = vmatpush.msra.mxu0 %v314
      %660 = vmatpush.msra.mxu0 %v313
      %661 = vmatpush.msra.mxu0 %v312
      %662 = vmatmul.f32.gmra.mxu0 %v620
      %v663 = vpop.f32.mrf.mxu0
      %v664 = vadd.f32 0.0, %v663
      %665 = vmatmul.f32.gmra.mxu0 %v622
      %v666 = vpop.f32.mrf.mxu0
      %v667 = vadd.f32 0.0, %v666
      %668 = vmatmul.f32.gmra.mxu0 %v624
      %v669 = vpop.f32.mrf.mxu0
      %v670 = vadd.f32 0.0, %v669
      %671 = vmatmul.f32.gmra.mxu0 %v626
      %v672 = vpop.f32.mrf.mxu0
      %v673 = vadd.f32 0.0, %v672
      %674 = vmatmul.f32.gmra.mxu0 %v628
      %v675 = vpop.f32.mrf.mxu0
      %v676 = vadd.f32 0.0, %v675
      %677 = vmatmul.f32.gmra.mxu0 %v630
      %v678 = vpop.f32.mrf.mxu0
      %v679 = vadd.f32 0.0, %v678
      %680 = vmatmul.f32.gmra.mxu0 %v632
      %v681 = vpop.f32.mrf.mxu0
      %v682 = vadd.f32 0.0, %v681
      %683 = vmatmul.f32.gmra.mxu0 %v634
      %v684 = vpop.f32.mrf.mxu0
      %v685 = vadd.f32 0.0, %v684
      %686 = vmatmul.f32.gmra.mxu0 %v636
      %v687 = vpop.f32.mrf.mxu0
      %v688 = vadd.f32 0.0, %v687
      %689 = vmatmul.f32.gmra.mxu0 %v638
      %v690 = vpop.f32.mrf.mxu0
      %v691 = vadd.f32 0.0, %v690
      %692 = vmatmul.f32.gmra.mxu0 %v640
      %v693 = vpop.f32.mrf.mxu0
      %v694 = vadd.f32 0.0, %v693
      %695 = vmatmul.f32.gmra.mxu0 %v642
      %v696 = vpop.f32.mrf.mxu0
      %v697 = vadd.f32 0.0, %v696
      %698 = vmatmul.f32.gmra.mxu0 %v644
      %v699 = vpop.f32.mrf.mxu0
      %v700 = vadd.f32 0.0, %v699
      %701 = vdwg.mxu0
      %702 = vmatpush.msra.mxu0 %v343
      %703 = vmatpush.msra.mxu0 %v342
      %704 = vmatpush.msra.mxu0 %v341
      %705 = vmatpush.msra.mxu0 %v340
      %706 = vmatpush.msra.mxu0 %v339
      %707 = vmatpush.msra.mxu0 %v338
      %708 = vmatpush.msra.mxu0 %v337
      %709 = vmatpush.msra.mxu0 %v336
      %710 = vmatpush.msra.mxu0 %v335
      %711 = vmatpush.msra.mxu0 %v334
      %712 = vmatpush.msra.mxu0 %v333
      %713 = vmatpush.msra.mxu0 %v332
      %714 = vmatpush.msra.mxu0 %v331
      %715 = vmatpush.msra.mxu0 %v330
      %716 = vmatpush.msra.mxu0 %v329
      %717 = vmatpush.msra.mxu0 %v328
      %718 = vmatmul.f32.gmra.mxu0 %v621
      %v719 = vpop.f32.mrf.mxu0
      %v720 = vadd.f32 %v664, %v719
      %721 = vmatmul.f32.gmra.mxu0 %v623
      %v722 = vpop.f32.mrf.mxu0
      %v723 = vadd.f32 %v667, %v722
      %724 = vmatmul.f32.gmra.mxu0 %v625
      %v725 = vpop.f32.mrf.mxu0
      %v726 = vadd.f32 %v670, %v725
      %727 = vmatmul.f32.gmra.mxu0 %v627
      %v728 = vpop.f32.mrf.mxu0
      %v729 = vadd.f32 %v673, %v728
      %730 = vmatmul.f32.gmra.mxu0 %v629
      %v731 = vpop.f32.mrf.mxu0
      %v732 = vadd.f32 %v676, %v731
      %733 = vmatmul.f32.gmra.mxu0 %v631
      %v734 = vpop.f32.mrf.mxu0
      %v735 = vadd.f32 %v679, %v734
      %736 = vmatmul.f32.gmra.mxu0 %v633
      %v737 = vpop.f32.mrf.mxu0
      %v738 = vadd.f32 %v682, %v737
      %739 = vmatmul.f32.gmra.mxu0 %v635
      %v740 = vpop.f32.mrf.mxu0
      %v741 = vadd.f32 %v685, %v740
      %742 = vmatmul.f32.gmra.mxu0 %v637
      %v743 = vpop.f32.mrf.mxu0
      %v744 = vadd.f32 %v688, %v743
      %745 = vmatmul.f32.gmra.mxu0 %v639
      %v746 = vpop.f32.mrf.mxu0
      %v747 = vadd.f32 %v691, %v746
      %748 = vmatmul.f32.gmra.mxu0 %v641
      %v749 = vpop.f32.mrf.mxu0
      %v750 = vadd.f32 %v694, %v749
      %751 = vmatmul.f32.gmra.mxu0 %v643
      %v752 = vpop.f32.mrf.mxu0
      %v753 = vadd.f32 %v697, %v752
      %754 = vmatmul.f32.gmra.mxu0 %v645
      %v755 = vpop.f32.mrf.mxu0
      %v756 = vadd.f32 %v700, %v755
      %757 = vdwg.mxu0
      %v758 = vld [vmem:[%s306] sm:$0xff]
      %v759 = vld [vmem:[%s306 + $0x8] sm:$0xff]
      %v760 = vld [vmem:[%s306 + $0x10] sm:$0xff]
      %v761 = vld [vmem:[%s306 + $0x18] sm:$0xff]
      %v762 = vld [vmem:[%s306 + $0x20] sm:$0xff]
      %v763 = vld [vmem:[%s306 + $0x28] sm:$0xff]
      %v764 = vld [vmem:[%s306 + $0x30] sm:$0xff]
      %v765 = vld [vmem:[%s306 + $0x38] sm:$0xff]
      %v766 = vld [vmem:[%s306 + $0x40] sm:$0xff]
      %v767 = vld [vmem:[%s306 + $0x48] sm:$0xff]
      %v768 = vld [vmem:[%s306 + $0x50] sm:$0xff]
      %v769 = vld [vmem:[%s306 + $0x58] sm:$0xff]
      %v770 = vld [vmem:[%s306 + $0x60] sm:$0xff]
      %v771 = vld [vmem:[%s306 + $0x68] sm:$0xff]
      %v772 = vld [vmem:[%s306 + $0x70] sm:$0xff]
      %v773 = vld [vmem:[%s306 + $0x78] sm:$0xff]
      %v774 = vld [vmem:[%s306 + $0x80] sm:$0xff]
      %v775 = vld [vmem:[%s306 + $0x88] sm:$0xff]
      %v776 = vld [vmem:[%s306 + $0x90] sm:$0xff]
      %v777 = vld [vmem:[%s306 + $0x98] sm:$0xff]
      %v778 = vld [vmem:[%s306 + $0xa0] sm:$0xff]
      %v779 = vld [vmem:[%s306 + $0xa8] sm:$0xff]
      %v780 = vld [vmem:[%s306 + $0xb0] sm:$0xff]
      %v781 = vld [vmem:[%s306 + $0xb8] sm:$0xff]
      %v782 = vld [vmem:[%s306 + $0xc0] sm:$0xf]
      %v783 = vld [vmem:[%s306 + $0xc8] sm:$0xf]
      %784 = vmatpush.msra.mxu0 %v327
      %785 = vmatpush.msra.mxu0 %v326
      %786 = vmatpush.msra.mxu0 %v325
      %787 = vmatpush.msra.mxu0 %v324
      %788 = vmatpush.msra.mxu0 %v323
      %789 = vmatpush.msra.mxu0 %v322
      %790 = vmatpush.msra.mxu0 %v321
      %791 = vmatpush.msra.mxu0 %v320
      %792 = vmatpush.msra.mxu0 %v319
      %793 = vmatpush.msra.mxu0 %v318
      %794 = vmatpush.msra.mxu0 %v317
      %795 = vmatpush.msra.mxu0 %v316
      %796 = vmatpush.msra.mxu0 %v315
      %797 = vmatpush.msra.mxu0 %v314
      %798 = vmatpush.msra.mxu0 %v313
      %799 = vmatpush.msra.mxu0 %v312
      %800 = vmatmul.f32.gmra.mxu0 %v758
      %v801 = vpop.f32.mrf.mxu0
      %v802 = vadd.f32 0.0, %v801
      %803 = vmatmul.f32.gmra.mxu0 %v760
      %v804 = vpop.f32.mrf.mxu0
      %v805 = vadd.f32 0.0, %v804
      %806 = vmatmul.f32.gmra.mxu0 %v762
      %v807 = vpop.f32.mrf.mxu0
      %v808 = vadd.f32 0.0, %v807
      %809 = vmatmul.f32.gmra.mxu0 %v764
      %v810 = vpop.f32.mrf.mxu0
      %v811 = vadd.f32 0.0, %v810
      %812 = vmatmul.f32.gmra.mxu0 %v766
      %v813 = vpop.f32.mrf.mxu0
      %v814 = vadd.f32 0.0, %v813
      %815 = vmatmul.f32.gmra.mxu0 %v768
      %v816 = vpop.f32.mrf.mxu0
      %v817 = vadd.f32 0.0, %v816
      %818 = vmatmul.f32.gmra.mxu0 %v770
      %v819 = vpop.f32.mrf.mxu0
      %v820 = vadd.f32 0.0, %v819
      %821 = vmatmul.f32.gmra.mxu0 %v772
      %v822 = vpop.f32.mrf.mxu0
      %v823 = vadd.f32 0.0, %v822
      %824 = vmatmul.f32.gmra.mxu0 %v774
      %v825 = vpop.f32.mrf.mxu0
      %v826 = vadd.f32 0.0, %v825
      %827 = vmatmul.f32.gmra.mxu0 %v776
      %v828 = vpop.f32.mrf.mxu0
      %v829 = vadd.f32 0.0, %v828
      %830 = vmatmul.f32.gmra.mxu0 %v778
      %v831 = vpop.f32.mrf.mxu0
      %v832 = vadd.f32 0.0, %v831
      %833 = vmatmul.f32.gmra.mxu0 %v780
      %v834 = vpop.f32.mrf.mxu0
      %v835 = vadd.f32 0.0, %v834
      %836 = vmatmul.f32.gmra.mxu0 %v782
      %v837 = vpop.f32.mrf.mxu0
      %v838 = vadd.f32 0.0, %v837
      %839 = vdwg.mxu0
      %840 = vmatpush.msra.mxu0 %v343
      %841 = vmatpush.msra.mxu0 %v342
      %842 = vmatpush.msra.mxu0 %v341
      %843 = vmatpush.msra.mxu0 %v340
      %844 = vmatpush.msra.mxu0 %v339
      %845 = vmatpush.msra.mxu0 %v338
      %846 = vmatpush.msra.mxu0 %v337
      %847 = vmatpush.msra.mxu0 %v336
      %848 = vmatpush.msra.mxu0 %v335
      %849 = vmatpush.msra.mxu0 %v334
      %850 = vmatpush.msra.mxu0 %v333
      %851 = vmatpush.msra.mxu0 %v332
      %852 = vmatpush.msra.mxu0 %v331
      %853 = vmatpush.msra.mxu0 %v330
      %854 = vmatpush.msra.mxu0 %v329
      %855 = vmatpush.msra.mxu0 %v328
      %856 = vmatmul.f32.gmra.mxu0 %v759
      %v857 = vpop.f32.mrf.mxu0
      %v858 = vadd.f32 %v802, %v857
      %859 = vmatmul.f32.gmra.mxu0 %v761
      %v860 = vpop.f32.mrf.mxu0
      %v861 = vadd.f32 %v805, %v860
      %862 = vmatmul.f32.gmra.mxu0 %v763
      %v863 = vpop.f32.mrf.mxu0
      %v864 = vadd.f32 %v808, %v863
      %865 = vmatmul.f32.gmra.mxu0 %v765
      %v866 = vpop.f32.mrf.mxu0
      %v867 = vadd.f32 %v811, %v866
      %868 = vmatmul.f32.gmra.mxu0 %v767
      %v869 = vpop.f32.mrf.mxu0
      %v870 = vadd.f32 %v814, %v869
      %871 = vmatmul.f32.gmra.mxu0 %v769
      %v872 = vpop.f32.mrf.mxu0
      %v873 = vadd.f32 %v817, %v872
      %874 = vmatmul.f32.gmra.mxu0 %v771
      %v875 = vpop.f32.mrf.mxu0
      %v876 = vadd.f32 %v820, %v875
      %877 = vmatmul.f32.gmra.mxu0 %v773
      %v878 = vpop.f32.mrf.mxu0
      %v879 = vadd.f32 %v823, %v878
      %880 = vmatmul.f32.gmra.mxu0 %v775
      %v881 = vpop.f32.mrf.mxu0
      %v882 = vadd.f32 %v826, %v881
      %883 = vmatmul.f32.gmra.mxu0 %v777
      %v884 = vpop.f32.mrf.mxu0
      %v885 = vadd.f32 %v829, %v884
      %886 = vmatmul.f32.gmra.mxu0 %v779
      %v887 = vpop.f32.mrf.mxu0
      %v888 = vadd.f32 %v832, %v887
      %889 = vmatmul.f32.gmra.mxu0 %v781
      %v890 = vpop.f32.mrf.mxu0
      %v891 = vadd.f32 %v835, %v890
      %892 = vmatmul.f32.gmra.mxu0 %v783
      %v893 = vpop.f32.mrf.mxu0
      %v894 = vadd.f32 %v838, %v893
      %895 = vdwg.mxu0
      %v896 = vmax.f32 %v444, %v582
      %v897 = vmax.f32 %v447, %v585
      %v898 = vmax.f32 %v450, %v588
      %v899 = vmax.f32 %v453, %v591
      %v900 = vmax.f32 %v456, %v594
      %v901 = vmax.f32 %v459, %v597
      %v902 = vmax.f32 %v462, %v600
      %v903 = vmax.f32 %v465, %v603
      %v904 = vmax.f32 %v468, %v606
      %v905 = vmax.f32 %v471, %v609
      %v906 = vmax.f32 %v474, %v612
      %v907 = vmax.f32 %v477, %v615
      %v908 = vmax.f32 %v480, %v618
      %v909 = vmax.f32 %v720, %v858
      %v910 = vmax.f32 %v723, %v861
      %v911 = vmax.f32 %v726, %v864
      %v912 = vmax.f32 %v729, %v867
      %v913 = vmax.f32 %v732, %v870
      %v914 = vmax.f32 %v735, %v873
      %v915 = vmax.f32 %v738, %v876
      %v916 = vmax.f32 %v741, %v879
      %v917 = vmax.f32 %v744, %v882
      %v918 = vmax.f32 %v747, %v885
      %v919 = vmax.f32 %v750, %v888
      %v920 = vmax.f32 %v753, %v891
      %v921 = vmax.f32 %v756, %v894
      %v922 = vmax.f32 %v896, %v909
      %v923 = vmax.f32 %v897, %v910
      %v924 = vmax.f32 %v898, %v911
      %v925 = vmax.f32 %v899, %v912
      %v926 = vmax.f32 %v900, %v913
      %v927 = vmax.f32 %v901, %v914
      %v928 = vmax.f32 %v902, %v915
      %v929 = vmax.f32 %v903, %v916
      %v930 = vmax.f32 %v904, %v917
      %v931 = vmax.f32 %v905, %v918
      %v932 = vmax.f32 %v906, %v919
      %v933 = vmax.f32 %v907, %v920
      %v934 = vmax.f32 %v908, %v921
      %v935 = vld [vmem:[%s5] sm:$0x1]
      %v937 = vperm.slane %v935, 0
      %v939 = vadd.f32 %v922, %v937
      %v940 = vadd.f32 %v923, %v937
      %v941 = vadd.f32 %v924, %v937
      %v942 = vadd.f32 %v925, %v937
      %v943 = vadd.f32 %v926, %v937
      %v944 = vadd.f32 %v927, %v937
      %v945 = vadd.f32 %v928, %v937
      %v946 = vadd.f32 %v929, %v937
      %v947 = vadd.f32 %v930, %v937
      %v948 = vadd.f32 %v931, %v937
      %v949 = vadd.f32 %v932, %v937
      %v950 = vadd.f32 %v933, %v937
      %v951 = vadd.f32 %v934, %v937
      %vm952 = vcmask 261120
      %953 = vst.msk [vmem:[%s311] sm:$0xff] %vm952, %v939
      %954 = vst.msk [vmem:[%s311 + $0x8] sm:$0xff] %vm952, %v940
      %955 = vst.msk [vmem:[%s311 + $0x10] sm:$0xff] %vm952, %v941
      %956 = vst.msk [vmem:[%s311 + $0x18] sm:$0xff] %vm952, %v942
      %957 = vst.msk [vmem:[%s311 + $0x20] sm:$0xff] %vm952, %v943
      %958 = vst.msk [vmem:[%s311 + $0x28] sm:$0xff] %vm952, %v944
      %959 = vst.msk [vmem:[%s311 + $0x30] sm:$0xff] %vm952, %v945
      %960 = vst.msk [vmem:[%s311 + $0x38] sm:$0xff] %vm952, %v946
      %961 = vst.msk [vmem:[%s311 + $0x40] sm:$0xff] %vm952, %v947
      %962 = vst.msk [vmem:[%s311 + $0x48] sm:$0xff] %vm952, %v948
      %963 = vst.msk [vmem:[%s311 + $0x50] sm:$0xff] %vm952, %v949
      %964 = vst.msk [vmem:[%s311 + $0x58] sm:$0xff] %vm952, %v950
      %vm965 = vcmask 257024
      %966 = vst.msk [vmem:[%s311 + $0x60] sm:$0xf] %vm965, %v951
      %p967 = scmp.lt.s32.totalorder %s17, 1
      %s968 = scalar_select %p967, %s17, 1
      %s969 = smul.addr %s968, 13
      %s970 = smul.addr %s969, 8
      %s971 = scalar_lea.vmem %s6, %s970
      // Predicated region
      $region45: #{forward.2} parent=43 // pred_check
        %p972 = pneg %p181
      $region46: #{forward.2} parent=43 // pred_check_branch
        %974 = sbr.rel (%p972) target = $region48
      $region47: #{forward.2} parent=43 // pred_region
        _
      $region48: #{forward.2} parent=43 // pred_fallthru
        _
    $region44: #{forward.2} parent=5 // pred_fallthru
      _
    %p975 = scmp.le.s32.totalorder 2, %s12
    // Predicated region
    $region49: #{forward.2} parent=5 // pred_check
      %p976 = pneg %p975
    $region50: #{forward.2} parent=5 // pred_check_branch
      %978 = sbr.rel (%p976) target = $region52
    $region51: #{forward.2} parent=5 // pred_region
      %s979 = ssub.s32 %s12, 2
      // Predicated region
      $region53: #{forward.2} parent=51 // pred_check
        %p980 = pneg %p187
      $region54: #{forward.2} parent=51 // pred_check_branch
        %982 = sbr.rel (%p980) target = $region56
      $region55: #{forward.2} parent=51 // pred_region
        %p983 = scmp.lt.s32.totalorder %s18, 1
        %s984 = scalar_select %p983, %s18, 1
        %s985 = smul.addr %s984, 13
        %s986 = smul.addr %s985, 8
        %s987 = scalar_lea.vmem %s6, %s986
      $region56: #{forward.2} parent=51 // pred_fallthru
        _
    $region52: #{forward.2} parent=5 // pred_fallthru
      _
  $region6: #{forward.2} parent=0 // loop_footer
    %s16 = sadd.s32 1, %s12
  $region7: #{forward.2} parent=0 // loop_footer_branch
    %11 = sbr.rel target = $region3
  $region8: #{forward.2} parent=0 // loop_exit
    _

// kernel: forward.3
$region0: #{forward.3}
  #allocation0 [shape = 'u32[]', space=smem, size = 0x4, offset = 0x4, fixed_abs, tag = 'smem constant byte address 0x4 - core index']
  #allocation1 [shape = 'u32[72,128]{1,0:T(1,128)}', space=vmem, size = 0x9000, scoped, tag = 'internal scratch']
  %s0 = inlined_call_operand.vmem [shape: f32[4,2,512], index: 0, kind: input, shape index: {}]
  %s1 = inlined_call_operand.vmem [shape: f32[4,2,512], index: 1, kind: input, shape index: {}]
  %s2 = inlined_call_operand.vmem [shape: f32[4,2,512], index: 2, kind: input, shape index: {}]
  %s3 = inlined_call_operand.vmem [shape: f32[4,2,512], index: 3, kind: input, shape index: {}]
  %s4 = inlined_call_operand.vmem [shape: f32[512,64], index: 4, kind: input, shape index: {}]
  %s5 = inlined_call_operand.vmem [shape: f32[1,64], index: 5, kind: input, shape index: {}]
  %s6 = inlined_call_operand.vmem [shape: f32[4,64,1024], index: 6, kind: input, shape index: {}]
  %s7 = inlined_call_operand.vmem [shape: f32[1,1024], index: 7, kind: input, shape index: {}]
  %s8 = inlined_call_operand.vmem [shape: bf16[1024,1024], index: 8, kind: input, shape index: {}]
  %s9 = inlined_call_operand.vmem [shape: f32[1,1024], index: 9, kind: input, shape index: {}]
  %s10 = inlined_call_operand.vmem [shape: f32[1024,2], index: 10, kind: input, shape index: {}]
  %s11 = inlined_call_operand.vmem [shape: f32[1,2], index: 11, kind: input, shape index: {}]
  %s12 = inlined_call_operand.hbm [shape: f32[2,2], index: 12, kind: output, shape index: {}]
  %s13 = sld [smem:[#allocation0]]
  $region58: #{forward.3} parent=0
    _
  %s15 = ssub.s32 1, %s13
  %s16 = scalar_select 0, %s15, %s13
  $region1: #{forward.3} parent=0
    #allocation2 [shape = 'u8[1024]{0}', space=vmem, size = 0x400, scoped, tag = 'output window, operand 0, single buffered']
    #allocation3 [shape = 's32[1]{0}', space=sflag, size = 0x4, scoped, tag = 'scoped memory for forward.3']
    %17 = vsyncpa [#allocation3], 0
    // Predicated region
    $region2: #{forward.3} parent=1 // pred_check
      _
    $region3: #{forward.3} parent=1 // pred_check_branch
      %19 = sbr.rel (0) target = $region5
    $region4: #{forward.3} parent=1 // pred_region
      _
    $region5: #{forward.3} parent=1 // pred_fallthru
      _
    // Predicated region
    $region6: #{forward.3} parent=1 // pred_check
      _
    $region7: #{forward.3} parent=1 // pred_check_branch
      %21 = sbr.rel (0) target = $region9
    $region8: #{forward.3} parent=1 // pred_region
      _
    $region9: #{forward.3} parent=1 // pred_fallthru
      _
    // Predicated region
    $region10: #{forward.3} parent=1 // pred_check
      _
    $region11: #{forward.3} parent=1 // pred_check_branch
      %23 = sbr.rel (0) target = $region13
    $region12: #{forward.3} parent=1 // pred_region
      _
    $region13: #{forward.3} parent=1 // pred_fallthru
      _
    // Predicated region
    $region14: #{forward.3} parent=1 // pred_check
      _
    $region15: #{forward.3} parent=1 // pred_check_branch
      %25 = sbr.rel (0) target = $region17
    $region16: #{forward.3} parent=1 // pred_region
      _
    $region17: #{forward.3} parent=1 // pred_fallthru
      _
    // Predicated region
    $region18: #{forward.3} parent=1 // pred_check
      _
    $region19: #{forward.3} parent=1 // pred_check_branch
      %27 = sbr.rel (0) target = $region21
    $region20: #{forward.3} parent=1 // pred_region
      _
    $region21: #{forward.3} parent=1 // pred_fallthru
      _
    // Predicated region
    $region22: #{forward.3} parent=1 // pred_check
      _
    $region23: #{forward.3} parent=1 // pred_check_branch
      %29 = sbr.rel (0) target = $region25
    $region24: #{forward.3} parent=1 // pred_region
      _
    $region25: #{forward.3} parent=1 // pred_fallthru
      _
    // Predicated region
    $region26: #{forward.3} parent=1 // pred_check
      _
    $region27: #{forward.3} parent=1 // pred_check_branch
      %31 = sbr.rel (0) target = $region29
    $region28: #{forward.3} parent=1 // pred_region
      _
    $region29: #{forward.3} parent=1 // pred_fallthru
      _
    // Predicated region
    $region30: #{forward.3} parent=1 // pred_check
      _
    $region31: #{forward.3} parent=1 // pred_check_branch
      %33 = sbr.rel (0) target = $region33
    $region32: #{forward.3} parent=1 // pred_region
      _
    $region33: #{forward.3} parent=1 // pred_fallthru
      _
    // Predicated region
    $region34: #{forward.3} parent=1 // pred_check
      _
    $region35: #{forward.3} parent=1 // pred_check_branch
      %35 = sbr.rel (0) target = $region37
    $region36: #{forward.3} parent=1 // pred_region
      _
    $region37: #{forward.3} parent=1 // pred_fallthru
      _
    // Predicated region
    $region38: #{forward.3} parent=1 // pred_check
      _
    $region39: #{forward.3} parent=1 // pred_check_branch
      %37 = sbr.rel (0) target = $region41
    $region40: #{forward.3} parent=1 // pred_region
      _
    $region41: #{forward.3} parent=1 // pred_fallthru
      _
    // Predicated region
    $region42: #{forward.3} parent=1 // pred_check
      _
    $region43: #{forward.3} parent=1 // pred_check_branch
      %39 = sbr.rel (0) target = $region45
    $region44: #{forward.3} parent=1 // pred_region
      _
    $region45: #{forward.3} parent=1 // pred_fallthru
      _
    // Predicated region
    $region46: #{forward.3} parent=1 // pred_check
      _
    $region47: #{forward.3} parent=1 // pred_check_branch
      %41 = sbr.rel (0) target = $region49
    $region48: #{forward.3} parent=1 // pred_region
      _
    $region49: #{forward.3} parent=1 // pred_fallthru
      _
    %v42 = vld [vmem:[%s4] sm:$0xff]
    %v43 = vld [vmem:[%s4 + $0x8] sm:$0xff]
    %v44 = vld [vmem:[%s4 + $0x10] sm:$0xff]
    %v45 = vld [vmem:[%s4 + $0x18] sm:$0xff]
    %v46 = vld [vmem:[%s4 + $0x20] sm:$0xff]
    %v47 = vld [vmem:[%s4 + $0x28] sm:$0xff]
    %v48 = vld [vmem:[%s4 + $0x30] sm:$0xff]
    %v49 = vld [vmem:[%s4 + $0x38] sm:$0xff]
    %v50 = vld [vmem:[%s4 + $0x40] sm:$0xff]
    %v51 = vld [vmem:[%s4 + $0x48] sm:$0xff]
    %v52 = vld [vmem:[%s4 + $0x50] sm:$0xff]
    %v53 = vld [vmem:[%s4 + $0x58] sm:$0xff]
    %v54 = vld [vmem:[%s4 + $0x60] sm:$0xff]
    %v55 = vld [vmem:[%s4 + $0x68] sm:$0xff]
    %v56 = vld [vmem:[%s4 + $0x70] sm:$0xff]
    %v57 = vld [vmem:[%s4 + $0x78] sm:$0xff]
    %v58 = vld [vmem:[%s4 + $0x80] sm:$0xff]
    %v59 = vld [vmem:[%s4 + $0x88] sm:$0xff]
    %v60 = vld [vmem:[%s4 + $0x90] sm:$0xff]
    %v61 = vld [vmem:[%s4 + $0x98] sm:$0xff]
    %v62 = vld [vmem:[%s4 + $0xa0] sm:$0xff]
    %v63 = vld [vmem:[%s4 + $0xa8] sm:$0xff]
    %v64 = vld [vmem:[%s4 + $0xb0] sm:$0xff]
    %v65 = vld [vmem:[%s4 + $0xb8] sm:$0xff]
    %v66 = vld [vmem:[%s4 + $0xc0] sm:$0xff]
    %v67 = vld [vmem:[%s4 + $0xc8] sm:$0xff]
    %v68 = vld [vmem:[%s4 + $0xd0] sm:$0xff]
    %v69 = vld [vmem:[%s4 + $0xd8] sm:$0xff]
    %v70 = vld [vmem:[%s4 + $0xe0] sm:$0xff]
    %v71 = vld [vmem:[%s4 + $0xe8] sm:$0xff]
    %v72 = vld [vmem:[%s4 + $0xf0] sm:$0xff]
    %v73 = vld [vmem:[%s4 + $0xf8] sm:$0xff]
    %v74 = vld [vmem:[%s4 + $0x100] sm:$0xff]
    %v75 = vld [vmem:[%s4 + $0x108] sm:$0xff]
    %v76 = vld [vmem:[%s4 + $0x110] sm:$0xff]
    %v77 = vld [vmem:[%s4 + $0x118] sm:$0xff]
    %v78 = vld [vmem:[%s4 + $0x120] sm:$0xff]
    %v79 = vld [vmem:[%s4 + $0x128] sm:$0xff]
    %v80 = vld [vmem:[%s4 + $0x130] sm:$0xff]
    %v81 = vld [vmem:[%s4 + $0x138] sm:$0xff]
    %v82 = vld [vmem:[%s4 + $0x140] sm:$0xff]
    %v83 = vld [vmem:[%s4 + $0x148] sm:$0xff]
    %v84 = vld [vmem:[%s4 + $0x150] sm:$0xff]
    %v85 = vld [vmem:[%s4 + $0x158] sm:$0xff]
    %v86 = vld [vmem:[%s4 + $0x160] sm:$0xff]
    %v87 = vld [vmem:[%s4 + $0x168] sm:$0xff]
    %v88 = vld [vmem:[%s4 + $0x170] sm:$0xff]
    %v89 = vld [vmem:[%s4 + $0x178] sm:$0xff]
    %v90 = vld [vmem:[%s4 + $0x180] sm:$0xff]
    %v91 = vld [vmem:[%s4 + $0x188] sm:$0xff]
    %v92 = vld [vmem:[%s4 + $0x190] sm:$0xff]
    %v93 = vld [vmem:[%s4 + $0x198] sm:$0xff]
    %v94 = vld [vmem:[%s4 + $0x1a0] sm:$0xff]
    %v95 = vld [vmem:[%s4 + $0x1a8] sm:$0xff]
    %v96 = vld [vmem:[%s4 + $0x1b0] sm:$0xff]
    %v97 = vld [vmem:[%s4 + $0x1b8] sm:$0xff]
    %v98 = vld [vmem:[%s4 + $0x1c0] sm:$0xff]
    %v99 = vld [vmem:[%s4 + $0x1c8] sm:$0xff]
    %v100 = vld [vmem:[%s4 + $0x1d0] sm:$0xff]
    %v101 = vld [vmem:[%s4 + $0x1d8] sm:$0xff]
    %v102 = vld [vmem:[%s4 + $0x1e0] sm:$0xff]
    %v103 = vld [vmem:[%s4 + $0x1e8] sm:$0xff]
    %v104 = vld [vmem:[%s4 + $0x1f0] sm:$0xff]
    %v105 = vld [vmem:[%s4 + $0x1f8] sm:$0xff]
    %v106 = vld [vmem:[%s5] sm:$0x1]
    %v107 = vld [vmem:[%s7] sm:$0xff]
    %v109 = vperm.slane %v107, 0
    %v110 = vperm.slane %v107, 1
    %v111 = vperm.slane %v107, 2
    %v112 = vperm.slane %v107, 3
    %v113 = vperm.slane %v107, 4
    %v114 = vperm.slane %v107, 5
    %v115 = vperm.slane %v107, 6
    %v116 = vperm.slane %v107, 7
    %v125 = vld [vmem:[%s0] sm:$0xff]
    %127 = vst [vmem:[#allocation1] ss:$4 sm:$0xff] %v125
    %v128 = vld.sshfl [vmem:[#allocation1] sm:$0xff pattern:$0x73625140]
    %v129 = vld.sshfl [vmem:[#allocation1 + $0x8] sm:$0xff pattern:$0x73625140]
    %v130 = vld.sshfl [vmem:[#allocation1 + $0x10] sm:$0xff pattern:$0x73625140]
    %v131 = vld.sshfl [vmem:[#allocation1 + $0x18] sm:$0xff pattern:$0x73625140]
    %136 = vmatpush.msra.mxu0 %v57
    %137 = vmatpush.msra.mxu0 %v56
    %138 = vmatpush.msra.mxu0 %v55
    %139 = vmatpush.msra.mxu0 %v54
    %140 = vmatpush.msra.mxu0 %v53
    %141 = vmatpush.msra.mxu0 %v52
    %142 = vmatpush.msra.mxu0 %v51
    %143 = vmatpush.msra.mxu0 %v50
    %144 = vmatpush.msra.mxu0 %v49
    %145 = vmatpush.msra.mxu0 %v48
    %146 = vmatpush.msra.mxu0 %v47
    %147 = vmatpush.msra.mxu0 %v46
    %148 = vmatpush.msra.mxu0 %v45
    %149 = vmatpush.msra.mxu0 %v44
    %150 = vmatpush.msra.mxu0 %v43
    %151 = vmatpush.msra.mxu0 %v42
    %152 = vmatmul.f32.gmra.mxu0 %v128
    %v153 = vpop.f32.mrf.mxu0
    %v154 = vadd.f32 0.0, %v153
    %155 = vdwg.mxu0
    %156 = vmatpush.msra.mxu0 %v73
    %157 = vmatpush.msra.mxu0 %v72
    %158 = vmatpush.msra.mxu0 %v71
    %159 = vmatpush.msra.mxu0 %v70
    %160 = vmatpush.msra.mxu0 %v69
    %161 = vmatpush.msra.mxu0 %v68
    %162 = vmatpush.msra.mxu0 %v67
    %163 = vmatpush.msra.mxu0 %v66
    %164 = vmatpush.msra.mxu0 %v65
    %165 = vmatpush.msra.mxu0 %v64
    %166 = vmatpush.msra.mxu0 %v63
    %167 = vmatpush.msra.mxu0 %v62
    %168 = vmatpush.msra.mxu0 %v61
    %169 = vmatpush.msra.mxu0 %v60
    %170 = vmatpush.msra.mxu0 %v59
    %171 = vmatpush.msra.mxu0 %v58
    %172 = vmatmul.f32.gmra.mxu0 %v129
    %v173 = vpop.f32.mrf.mxu0
    %v174 = vadd.f32 %v154, %v173
    %175 = vdwg.mxu0
    %176 = vmatpush.msra.mxu0 %v89
    %177 = vmatpush.msra.mxu0 %v88
    %178 = vmatpush.msra.mxu0 %v87
    %179 = vmatpush.msra.mxu0 %v86
    %180 = vmatpush.msra.mxu0 %v85
    %181 = vmatpush.msra.mxu0 %v84
    %182 = vmatpush.msra.mxu0 %v83
    %183 = vmatpush.msra.mxu0 %v82
    %184 = vmatpush.msra.mxu0 %v81
    %185 = vmatpush.msra.mxu0 %v80
    %186 = vmatpush.msra.mxu0 %v79
    %187 = vmatpush.msra.mxu0 %v78
    %188 = vmatpush.msra.mxu0 %v77
    %189 = vmatpush.msra.mxu0 %v76
    %190 = vmatpush.msra.mxu0 %v75
    %191 = vmatpush.msra.mxu0 %v74
    %192 = vmatmul.f32.gmra.mxu0 %v130
    %v193 = vpop.f32.mrf.mxu0
    %v194 = vadd.f32 %v174, %v193
    %195 = vdwg.mxu0
    %196 = vmatpush.msra.mxu0 %v105
    %197 = vmatpush.msra.mxu0 %v104
    %198 = vmatpush.msra.mxu0 %v103
    %199 = vmatpush.msra.mxu0 %v102
    %200 = vmatpush.msra.mxu0 %v101
    %201 = vmatpush.msra.mxu0 %v100
    %202 = vmatpush.msra.mxu0 %v99
    %203 = vmatpush.msra.mxu0 %v98
    %204 = vmatpush.msra.mxu0 %v97
    %205 = vmatpush.msra.mxu0 %v96
    %206 = vmatpush.msra.mxu0 %v95
    %207 = vmatpush.msra.mxu0 %v94
    %208 = vmatpush.msra.mxu0 %v93
    %209 = vmatpush.msra.mxu0 %v92
    %210 = vmatpush.msra.mxu0 %v91
    %211 = vmatpush.msra.mxu0 %v90
    %212 = vmatmul.f32.gmra.mxu0 %v131
    %v213 = vpop.f32.mrf.mxu0
    %v214 = vadd.f32 %v194, %v213
    %215 = vdwg.mxu0
    %v216 = vld [vmem:[%s1] sm:$0xff]
    %218 = vst [vmem:[#allocation1] ss:$4 sm:$0xff] %v216
    %v219 = vld.sshfl [vmem:[#allocation1] sm:$0xff pattern:$0x73625140]
    %v220 = vld.sshfl [vmem:[#allocation1 + $0x8] sm:$0xff pattern:$0x73625140]
    %v221 = vld.sshfl [vmem:[#allocation1 + $0x10] sm:$0xff pattern:$0x73625140]
    %v222 = vld.sshfl [vmem:[#allocation1 + $0x18] sm:$0xff pattern:$0x73625140]
    %227 = vmatpush.msra.mxu0 %v57
    %228 = vmatpush.msra.mxu0 %v56
    %229 = vmatpush.msra.mxu0 %v55
    %230 = vmatpush.msra.mxu0 %v54
    %231 = vmatpush.msra.mxu0 %v53
    %232 = vmatpush.msra.mxu0 %v52
    %233 = vmatpush.msra.mxu0 %v51
    %234 = vmatpush.msra.mxu0 %v50
    %235 = vmatpush.msra.mxu0 %v49
    %236 = vmatpush.msra.mxu0 %v48
    %237 = vmatpush.msra.mxu0 %v47
    %238 = vmatpush.msra.mxu0 %v46
    %239 = vmatpush.msra.mxu0 %v45
    %240 = vmatpush.msra.mxu0 %v44
    %241 = vmatpush.msra.mxu0 %v43
    %242 = vmatpush.msra.mxu0 %v42
    %243 = vmatmul.f32.gmra.mxu0 %v219
    %v244 = vpop.f32.mrf.mxu0
    %v245 = vadd.f32 0.0, %v244
    %246 = vdwg.mxu0
    %247 = vmatpush.msra.mxu0 %v73
    %248 = vmatpush.msra.mxu0 %v72
    %249 = vmatpush.msra.mxu0 %v71
    %250 = vmatpush.msra.mxu0 %v70
    %251 = vmatpush.msra.mxu0 %v69
    %252 = vmatpush.msra.mxu0 %v68
    %253 = vmatpush.msra.mxu0 %v67
    %254 = vmatpush.msra.mxu0 %v66
    %255 = vmatpush.msra.mxu0 %v65
    %256 = vmatpush.msra.mxu0 %v64
    %257 = vmatpush.msra.mxu0 %v63
    %258 = vmatpush.msra.mxu0 %v62
    %259 = vmatpush.msra.mxu0 %v61
    %260 = vmatpush.msra.mxu0 %v60
    %261 = vmatpush.msra.mxu0 %v59
    %262 = vmatpush.msra.mxu0 %v58
    %263 = vmatmul.f32.gmra.mxu0 %v220
    %v264 = vpop.f32.mrf.mxu0
    %v265 = vadd.f32 %v245, %v264
    %266 = vdwg.mxu0
    %267 = vmatpush.msra.mxu0 %v89
    %268 = vmatpush.msra.mxu0 %v88
    %269 = vmatpush.msra.mxu0 %v87
    %270 = vmatpush.msra.mxu0 %v86
    %271 = vmatpush.msra.mxu0 %v85
    %272 = vmatpush.msra.mxu0 %v84
    %273 = vmatpush.msra.mxu0 %v83
    %274 = vmatpush.msra.mxu0 %v82
    %275 = vmatpush.msra.mxu0 %v81
    %276 = vmatpush.msra.mxu0 %v80
    %277 = vmatpush.msra.mxu0 %v79
    %278 = vmatpush.msra.mxu0 %v78
    %279 = vmatpush.msra.mxu0 %v77
    %280 = vmatpush.msra.mxu0 %v76
    %281 = vmatpush.msra.mxu0 %v75
    %282 = vmatpush.msra.mxu0 %v74
    %283 = vmatmul.f32.gmra.mxu0 %v221
    %v284 = vpop.f32.mrf.mxu0
    %v285 = vadd.f32 %v265, %v284
    %286 = vdwg.mxu0
    %287 = vmatpush.msra.mxu0 %v105
    %288 = vmatpush.msra.mxu0 %v104
    %289 = vmatpush.msra.mxu0 %v103
    %290 = vmatpush.msra.mxu0 %v102
    %291 = vmatpush.msra.mxu0 %v101
    %292 = vmatpush.msra.mxu0 %v100
    %293 = vmatpush.msra.mxu0 %v99
    %294 = vmatpush.msra.mxu0 %v98
    %295 = vmatpush.msra.mxu0 %v97
    %296 = vmatpush.msra.mxu0 %v96
    %297 = vmatpush.msra.mxu0 %v95
    %298 = vmatpush.msra.mxu0 %v94
    %299 = vmatpush.msra.mxu0 %v93
    %300 = vmatpush.msra.mxu0 %v92
    %301 = vmatpush.msra.mxu0 %v91
    %302 = vmatpush.msra.mxu0 %v90
    %303 = vmatmul.f32.gmra.mxu0 %v222
    %v304 = vpop.f32.mrf.mxu0
    %v305 = vadd.f32 %v285, %v304
    %306 = vdwg.mxu0
    %v307 = vmax.f32 %v214, %v305
    %v308 = vld [vmem:[%s2] sm:$0xff]
    %310 = vst [vmem:[#allocation1] ss:$4 sm:$0xff] %v308
    %v311 = vld.sshfl [vmem:[#allocation1] sm:$0xff pattern:$0x73625140]
    %v312 = vld.sshfl [vmem:[#allocation1 + $0x8] sm:$0xff pattern:$0x73625140]
    %v313 = vld.sshfl [vmem:[#allocation1 + $0x10] sm:$0xff pattern:$0x73625140]
    %v314 = vld.sshfl [vmem:[#allocation1 + $0x18] sm:$0xff pattern:$0x73625140]
    %319 = vmatpush.msra.mxu0 %v57
    %320 = vmatpush.msra.mxu0 %v56
    %321 = vmatpush.msra.mxu0 %v55
    %322 = vmatpush.msra.mxu0 %v54
    %323 = vmatpush.msra.mxu0 %v53
    %324 = vmatpush.msra.mxu0 %v52
    %325 = vmatpush.msra.mxu0 %v51
    %326 = vmatpush.msra.mxu0 %v50
    %327 = vmatpush.msra.mxu0 %v49
    %328 = vmatpush.msra.mxu0 %v48
    %329 = vmatpush.msra.mxu0 %v47
    %330 = vmatpush.msra.mxu0 %v46
    %331 = vmatpush.msra.mxu0 %v45
    %332 = vmatpush.msra.mxu0 %v44
    %333 = vmatpush.msra.mxu0 %v43
    %334 = vmatpush.msra.mxu0 %v42
    %335 = vmatmul.f32.gmra.mxu0 %v311
    %v336 = vpop.f32.mrf.mxu0
    %v337 = vadd.f32 0.0, %v336
    %338 = vdwg.mxu0
    %339 = vmatpush.msra.mxu0 %v73
    %340 = vmatpush.msra.mxu0 %v72
    %341 = vmatpush.msra.mxu0 %v71
    %342 = vmatpush.msra.mxu0 %v70
    %343 = vmatpush.msra.mxu0 %v69
    %344 = vmatpush.msra.mxu0 %v68
    %345 = vmatpush.msra.mxu0 %v67
    %346 = vmatpush.msra.mxu0 %v66
    %347 = vmatpush.msra.mxu0 %v65
    %348 = vmatpush.msra.mxu0 %v64
    %349 = vmatpush.msra.mxu0 %v63
    %350 = vmatpush.msra.mxu0 %v62
    %351 = vmatpush.msra.mxu0 %v61
    %352 = vmatpush.msra.mxu0 %v60
    %353 = vmatpush.msra.mxu0 %v59
    %354 = vmatpush.msra.mxu0 %v58
    %355 = vmatmul.f32.gmra.mxu0 %v312
    %v356 = vpop.f32.mrf.mxu0
    %v357 = vadd.f32 %v337, %v356
    %358 = vdwg.mxu0
    %359 = vmatpush.msra.mxu0 %v89
    %360 = vmatpush.msra.mxu0 %v88
    %361 = vmatpush.msra.mxu0 %v87
    %362 = vmatpush.msra.mxu0 %v86
    %363 = vmatpush.msra.mxu0 %v85
    %364 = vmatpush.msra.mxu0 %v84
    %365 = vmatpush.msra.mxu0 %v83
    %366 = vmatpush.msra.mxu0 %v82
    %367 = vmatpush.msra.mxu0 %v81
    %368 = vmatpush.msra.mxu0 %v80
    %369 = vmatpush.msra.mxu0 %v79
    %370 = vmatpush.msra.mxu0 %v78
    %371 = vmatpush.msra.mxu0 %v77
    %372 = vmatpush.msra.mxu0 %v76
    %373 = vmatpush.msra.mxu0 %v75
    %374 = vmatpush.msra.mxu0 %v74
    %375 = vmatmul.f32.gmra.mxu0 %v313
    %v376 = vpop.f32.mrf.mxu0
    %v377 = vadd.f32 %v357, %v376
    %378 = vdwg.mxu0
    %379 = vmatpush.msra.mxu0 %v105
    %380 = vmatpush.msra.mxu0 %v104
    %381 = vmatpush.msra.mxu0 %v103
    %382 = vmatpush.msra.mxu0 %v102
    %383 = vmatpush.msra.mxu0 %v101
    %384 = vmatpush.msra.mxu0 %v100
    %385 = vmatpush.msra.mxu0 %v99
    %386 = vmatpush.msra.mxu0 %v98
    %387 = vmatpush.msra.mxu0 %v97
    %388 = vmatpush.msra.mxu0 %v96
    %389 = vmatpush.msra.mxu0 %v95
    %390 = vmatpush.msra.mxu0 %v94
    %391 = vmatpush.msra.mxu0 %v93
    %392 = vmatpush.msra.mxu0 %v92
    %393 = vmatpush.msra.mxu0 %v91
    %394 = vmatpush.msra.mxu0 %v90
    %395 = vmatmul.f32.gmra.mxu0 %v314
    %v396 = vpop.f32.mrf.mxu0
    %v397 = vadd.f32 %v377, %v396
    %398 = vdwg.mxu0
    %v399 = vld [vmem:[%s3] sm:$0xff]
    %401 = vst [vmem:[#allocation1] ss:$4 sm:$0xff] %v399
    %v402 = vld.sshfl [vmem:[#allocation1] sm:$0xff pattern:$0x73625140]
    %v403 = vld.sshfl [vmem:[#allocation1 + $0x8] sm:$0xff pattern:$0x73625140]
    %v404 = vld.sshfl [vmem:[#allocation1 + $0x10] sm:$0xff pattern:$0x73625140]
    %v405 = vld.sshfl [vmem:[#allocation1 + $0x18] sm:$0xff pattern:$0x73625140]
    %410 = vmatpush.msra.mxu0 %v57
    %411 = vmatpush.msra.mxu0 %v56
    %412 = vmatpush.msra.mxu0 %v55
    %413 = vmatpush.msra.mxu0 %v54
    %414 = vmatpush.msra.mxu0 %v53
    %415 = vmatpush.msra.mxu0 %v52
    %416 = vmatpush.msra.mxu0 %v51
    %417 = vmatpush.msra.mxu0 %v50
    %418 = vmatpush.msra.mxu0 %v49
    %419 = vmatpush.msra.mxu0 %v48
    %420 = vmatpush.msra.mxu0 %v47
    %421 = vmatpush.msra.mxu0 %v46
    %422 = vmatpush.msra.mxu0 %v45
    %423 = vmatpush.msra.mxu0 %v44
    %424 = vmatpush.msra.mxu0 %v43
    %425 = vmatpush.msra.mxu0 %v42
    %426 = vmatmul.f32.gmra.mxu0 %v402
    %v427 = vpop.f32.mrf.mxu0
    %v428 = vadd.f32 0.0, %v427
    %429 = vdwg.mxu0
    %430 = vmatpush.msra.mxu0 %v73
    %431 = vmatpush.msra.mxu0 %v72
    %432 = vmatpush.msra.mxu0 %v71
    %433 = vmatpush.msra.mxu0 %v70
    %434 = vmatpush.msra.mxu0 %v69
    %435 = vmatpush.msra.mxu0 %v68
    %436 = vmatpush.msra.mxu0 %v67
    %437 = vmatpush.msra.mxu0 %v66
    %438 = vmatpush.msra.mxu0 %v65
    %439 = vmatpush.msra.mxu0 %v64
    %440 = vmatpush.msra.mxu0 %v63
    %441 = vmatpush.msra.mxu0 %v62
    %442 = vmatpush.msra.mxu0 %v61
    %443 = vmatpush.msra.mxu0 %v60
    %444 = vmatpush.msra.mxu0 %v59
    %445 = vmatpush.msra.mxu0 %v58
    %446 = vmatmul.f32.gmra.mxu0 %v403
    %v447 = vpop.f32.mrf.mxu0
    %v448 = vadd.f32 %v428, %v447
    %449 = vdwg.mxu0
    %450 = vmatpush.msra.mxu0 %v89
    %451 = vmatpush.msra.mxu0 %v88
    %452 = vmatpush.msra.mxu0 %v87
    %453 = vmatpush.msra.mxu0 %v86
    %454 = vmatpush.msra.mxu0 %v85
    %455 = vmatpush.msra.mxu0 %v84
    %456 = vmatpush.msra.mxu0 %v83
    %457 = vmatpush.msra.mxu0 %v82
    %458 = vmatpush.msra.mxu0 %v81
    %459 = vmatpush.msra.mxu0 %v80
    %460 = vmatpush.msra.mxu0 %v79
    %461 = vmatpush.msra.mxu0 %v78
    %462 = vmatpush.msra.mxu0 %v77
    %463 = vmatpush.msra.mxu0 %v76
    %464 = vmatpush.msra.mxu0 %v75
    %465 = vmatpush.msra.mxu0 %v74
    %466 = vmatmul.f32.gmra.mxu0 %v404
    %v467 = vpop.f32.mrf.mxu0
    %v468 = vadd.f32 %v448, %v467
    %469 = vdwg.mxu0
    %470 = vmatpush.msra.mxu0 %v105
    %471 = vmatpush.msra.mxu0 %v104
    %472 = vmatpush.msra.mxu0 %v103
    %473 = vmatpush.msra.mxu0 %v102
    %474 = vmatpush.msra.mxu0 %v101
    %475 = vmatpush.msra.mxu0 %v100
    %476 = vmatpush.msra.mxu0 %v99
    %477 = vmatpush.msra.mxu0 %v98
    %478 = vmatpush.msra.mxu0 %v97
    %479 = vmatpush.msra.mxu0 %v96
    %480 = vmatpush.msra.mxu0 %v95
    %481 = vmatpush.msra.mxu0 %v94
    %482 = vmatpush.msra.mxu0 %v93
    %483 = vmatpush.msra.mxu0 %v92
    %484 = vmatpush.msra.mxu0 %v91
    %485 = vmatpush.msra.mxu0 %v90
    %486 = vmatmul.f32.gmra.mxu0 %v405
    %v487 = vpop.f32.mrf.mxu0
    %v488 = vadd.f32 %v468, %v487
    %489 = vdwg.mxu0
    %v490 = vmax.f32 %v397, %v488
    %v491 = vmax.f32 %v307, %v490
    %v493 = vperm.slane %v106, 0
    %v495 = vadd.f32 %v491, %v493
    %v496 = vld [vmem:[%s6] sm:$0xff]
    %v497 = vld [vmem:[%s6 + $0x8] sm:$0xff]
    %v498 = vld [vmem:[%s6 + $0x10] sm:$0xff]
    %v499 = vld [vmem:[%s6 + $0x18] sm:$0xff]
    %v500 = vld [vmem:[%s6 + $0x20] sm:$0xff]
    %v501 = vld [vmem:[%s6 + $0x28] sm:$0xff]
    %v502 = vld [vmem:[%s6 + $0x30] sm:$0xff]
    %v503 = vld [vmem:[%s6 + $0x38] sm:$0xff]
    %v504 = vld [vmem:[%s6 + $0x40] sm:$0xff]
    %v505 = vld [vmem:[%s6 + $0x48] sm:$0xff]
    %v506 = vld [vmem:[%s6 + $0x50] sm:$0xff]
    %v507 = vld [vmem:[%s6 + $0x58] sm:$0xff]
    %v508 = vld [vmem:[%s6 + $0x60] sm:$0xff]
    %v509 = vld [vmem:[%s6 + $0x68] sm:$0xff]
    %v510 = vld [vmem:[%s6 + $0x70] sm:$0xff]
    %v511 = vld [vmem:[%s6 + $0x78] sm:$0xff]
    %v512 = vld [vmem:[%s6 + $0x80] sm:$0xff]
    %v513 = vld [vmem:[%s6 + $0x88] sm:$0xff]
    %v514 = vld [vmem:[%s6 + $0x90] sm:$0xff]
    %v515 = vld [vmem:[%s6 + $0x98] sm:$0xff]
    %v516 = vld [vmem:[%s6 + $0xa0] sm:$0xff]
    %v517 = vld [vmem:[%s6 + $0xa8] sm:$0xff]
    %v518 = vld [vmem:[%s6 + $0xb0] sm:$0xff]
    %v519 = vld [vmem:[%s6 + $0xb8] sm:$0xff]
    %v520 = vld [vmem:[%s6 + $0xc0] sm:$0xff]
    %v521 = vld [vmem:[%s6 + $0xc8] sm:$0xff]
    %v522 = vld [vmem:[%s6 + $0xd0] sm:$0xff]
    %v523 = vld [vmem:[%s6 + $0xd8] sm:$0xff]
    %v524 = vld [vmem:[%s6 + $0xe0] sm:$0xff]
    %v525 = vld [vmem:[%s6 + $0xe8] sm:$0xff]
    %v526 = vld [vmem:[%s6 + $0xf0] sm:$0xff]
    %v527 = vld [vmem:[%s6 + $0xf8] sm:$0xff]
    %v528 = vld [vmem:[%s6 + $0x100] sm:$0xff]
    %v529 = vld [vmem:[%s6 + $0x108] sm:$0xff]
    %v530 = vld [vmem:[%s6 + $0x110] sm:$0xff]
    %v531 = vld [vmem:[%s6 + $0x118] sm:$0xff]
    %v532 = vld [vmem:[%s6 + $0x120] sm:$0xff]
    %v533 = vld [vmem:[%s6 + $0x128] sm:$0xff]
    %v534 = vld [vmem:[%s6 + $0x130] sm:$0xff]
    %v535 = vld [vmem:[%s6 + $0x138] sm:$0xff]
    %v536 = vld [vmem:[%s6 + $0x140] sm:$0xff]
    %v537 = vld [vmem:[%s6 + $0x148] sm:$0xff]
    %v538 = vld [vmem:[%s6 + $0x150] sm:$0xff]
    %v539 = vld [vmem:[%s6 + $0x158] sm:$0xff]
    %v540 = vld [vmem:[%s6 + $0x160] sm:$0xff]
    %v541 = vld [vmem:[%s6 + $0x168] sm:$0xff]
    %v542 = vld [vmem:[%s6 + $0x170] sm:$0xff]
    %v543 = vld [vmem:[%s6 + $0x178] sm:$0xff]
    %v544 = vld [vmem:[%s6 + $0x180] sm:$0xff]
    %v545 = vld [vmem:[%s6 + $0x188] sm:$0xff]
    %v546 = vld [vmem:[%s6 + $0x190] sm:$0xff]
    %v547 = vld [vmem:[%s6 + $0x198] sm:$0xff]
    %v548 = vld [vmem:[%s6 + $0x1a0] sm:$0xff]
    %v549 = vld [vmem:[%s6 + $0x1a8] sm:$0xff]
    %v550 = vld [vmem:[%s6 + $0x1b0] sm:$0xff]
    %v551 = vld [vmem:[%s6 + $0x1b8] sm:$0xff]
    %v552 = vld [vmem:[%s6 + $0x1c0] sm:$0xff]
    %v553 = vld [vmem:[%s6 + $0x1c8] sm:$0xff]
    %v554 = vld [vmem:[%s6 + $0x1d0] sm:$0xff]
    %v555 = vld [vmem:[%s6 + $0x1d8] sm:$0xff]
    %v556 = vld [vmem:[%s6 + $0x1e0] sm:$0xff]
    %v557 = vld [vmem:[%s6 + $0x1e8] sm:$0xff]
    %v558 = vld [vmem:[%s6 + $0x1f0] sm:$0xff]
    %v559 = vld [vmem:[%s6 + $0x1f8] sm:$0xff]
    %vm560 = vcmask 523264
    %v562 = vsel %vm560, %v495, 0
    %564 = vmatpush.msra.mxu0 0.0
    %565 = vmatpush.msra.mxu0 0.0
    %566 = vmatpush.msra.mxu0 0.0
    %567 = vmatpush.msra.mxu0 0.0
    %568 = vmatpush.msra.mxu0 0.0
    %569 = vmatpush.msra.mxu0 0.0
    %570 = vmatpush.msra.mxu0 0.0
    %571 = vmatpush.msra.mxu0 0.0
    %572 = vmatpush.msra.mxu0 %v552
    %573 = vmatpush.msra.mxu0 %v544
    %574 = vmatpush.msra.mxu0 %v536
    %575 = vmatpush.msra.mxu0 %v528
    %576 = vmatpush.msra.mxu0 %v520
    %577 = vmatpush.msra.mxu0 %v512
    %578 = vmatpush.msra.mxu0 %v504
    %579 = vmatpush.msra.mxu0 %v496
    %580 = vmatmul.f32.gmra.mxu0 %v562
    %v581 = vpop.f32.mrf.mxu0
    %v582 = vadd.f32 0.0, %v581
    %583 = vdwg.mxu0
    %584 = vmatpush.msra.mxu0 0.0
    %585 = vmatpush.msra.mxu0 0.0
    %586 = vmatpush.msra.mxu0 0.0
    %587 = vmatpush.msra.mxu0 0.0
    %588 = vmatpush.msra.mxu0 0.0
    %589 = vmatpush.msra.mxu0 0.0
    %590 = vmatpush.msra.mxu0 0.0
    %591 = vmatpush.msra.mxu0 0.0
    %592 = vmatpush.msra.mxu0 %v553
    %593 = vmatpush.msra.mxu0 %v545
    %594 = vmatpush.msra.mxu0 %v537
    %595 = vmatpush.msra.mxu0 %v529
    %596 = vmatpush.msra.mxu0 %v521
    %597 = vmatpush.msra.mxu0 %v513
    %598 = vmatpush.msra.mxu0 %v505
    %599 = vmatpush.msra.mxu0 %v497
    %600 = vmatmul.f32.gmra.mxu0 %v562
    %v601 = vpop.f32.mrf.mxu0
    %v602 = vadd.f32 0.0, %v601
    %603 = vdwg.mxu0
    %604 = vmatpush.msra.mxu0 0.0
    %605 = vmatpush.msra.mxu0 0.0
    %606 = vmatpush.msra.mxu0 0.0
    %607 = vmatpush.msra.mxu0 0.0
    %608 = vmatpush.msra.mxu0 0.0
    %609 = vmatpush.msra.mxu0 0.0
    %610 = vmatpush.msra.mxu0 0.0
    %611 = vmatpush.msra.mxu0 0.0
    %612 = vmatpush.msra.mxu0 %v554
    %613 = vmatpush.msra.mxu0 %v546
    %614 = vmatpush.msra.mxu0 %v538
    %615 = vmatpush.msra.mxu0 %v530
    %616 = vmatpush.msra.mxu0 %v522
    %617 = vmatpush.msra.mxu0 %v514
    %618 = vmatpush.msra.mxu0 %v506
    %619 = vmatpush.msra.mxu0 %v498
    %620 = vmatmul.f32.gmra.mxu0 %v562
    %v621 = vpop.f32.mrf.mxu0
    %v622 = vadd.f32 0.0, %v621
    %623 = vdwg.mxu0
    %624 = vmatpush.msra.mxu0 0.0
    %625 = vmatpush.msra.mxu0 0.0
    %626 = vmatpush.msra.mxu0 0.0
    %627 = vmatpush.msra.mxu0 0.0
    %628 = vmatpush.msra.mxu0 0.0
    %629 = vmatpush.msra.mxu0 0.0
    %630 = vmatpush.msra.mxu0 0.0
    %631 = vmatpush.msra.mxu0 0.0
    %632 = vmatpush.msra.mxu0 %v555
    %633 = vmatpush.msra.mxu0 %v547
    %634 = vmatpush.msra.mxu0 %v539
    %635 = vmatpush.msra.mxu0 %v531
    %636 = vmatpush.msra.mxu0 %v523
    %637 = vmatpush.msra.mxu0 %v515
    %638 = vmatpush.msra.mxu0 %v507
    %639 = vmatpush.msra.mxu0 %v499
    %640 = vmatmul.f32.gmra.mxu0 %v562
    %v641 = vpop.f32.mrf.mxu0
    %v642 = vadd.f32 0.0, %v641
    %643 = vdwg.mxu0
    %644 = vmatpush.msra.mxu0 0.0
    %645 = vmatpush.msra.mxu0 0.0
    %646 = vmatpush.msra.mxu0 0.0
    %647 = vmatpush.msra.mxu0 0.0
    %648 = vmatpush.msra.mxu0 0.0
    %649 = vmatpush.msra.mxu0 0.0
    %650 = vmatpush.msra.mxu0 0.0
    %651 = vmatpush.msra.mxu0 0.0
    %652 = vmatpush.msra.mxu0 %v556
    %653 = vmatpush.msra.mxu0 %v548
    %654 = vmatpush.msra.mxu0 %v540
    %655 = vmatpush.msra.mxu0 %v532
    %656 = vmatpush.msra.mxu0 %v524
    %657 = vmatpush.msra.mxu0 %v516
    %658 = vmatpush.msra.mxu0 %v508
    %659 = vmatpush.msra.mxu0 %v500
    %660 = vmatmul.f32.gmra.mxu0 %v562
    %v661 = vpop.f32.mrf.mxu0
    %v662 = vadd.f32 0.0, %v661
    %663 = vdwg.mxu0
    %664 = vmatpush.msra.mxu0 0.0
    %665 = vmatpush.msra.mxu0 0.0
    %666 = vmatpush.msra.mxu0 0.0
    %667 = vmatpush.msra.mxu0 0.0
    %668 = vmatpush.msra.mxu0 0.0
    %669 = vmatpush.msra.mxu0 0.0
    %670 = vmatpush.msra.mxu0 0.0
    %671 = vmatpush.msra.mxu0 0.0
    %672 = vmatpush.msra.mxu0 %v557
    %673 = vmatpush.msra.mxu0 %v549
    %674 = vmatpush.msra.mxu0 %v541
    %675 = vmatpush.msra.mxu0 %v533
    %676 = vmatpush.msra.mxu0 %v525
    %677 = vmatpush.msra.mxu0 %v517
    %678 = vmatpush.msra.mxu0 %v509
    %679 = vmatpush.msra.mxu0 %v501
    %680 = vmatmul.f32.gmra.mxu0 %v562
    %v681 = vpop.f32.mrf.mxu0
    %v682 = vadd.f32 0.0, %v681
    %683 = vdwg.mxu0
    %684 = vmatpush.msra.mxu0 0.0
    %685 = vmatpush.msra.mxu0 0.0
    %686 = vmatpush.msra.mxu0 0.0
    %687 = vmatpush.msra.mxu0 0.0
    %688 = vmatpush.msra.mxu0 0.0
    %689 = vmatpush.msra.mxu0 0.0
    %690 = vmatpush.msra.mxu0 0.0
    %691 = vmatpush.msra.mxu0 0.0
    %692 = vmatpush.msra.mxu0 %v558
    %693 = vmatpush.msra.mxu0 %v550
    %694 = vmatpush.msra.mxu0 %v542
    %695 = vmatpush.msra.mxu0 %v534
    %696 = vmatpush.msra.mxu0 %v526
    %697 = vmatpush.msra.mxu0 %v518
    %698 = vmatpush.msra.mxu0 %v510
    %699 = vmatpush.msra.mxu0 %v502
    %700 = vmatmul.f32.gmra.mxu0 %v562
    %v701 = vpop.f32.mrf.mxu0
    %v702 = vadd.f32 0.0, %v701
    %703 = vdwg.mxu0
    %704 = vmatpush.msra.mxu0 0.0
    %705 = vmatpush.msra.mxu0 0.0
    %706 = vmatpush.msra.mxu0 0.0
    %707 = vmatpush.msra.mxu0 0.0
    %708 = vmatpush.msra.mxu0 0.0
    %709 = vmatpush.msra.mxu0 0.0
    %710 = vmatpush.msra.mxu0 0.0
    %711 = vmatpush.msra.mxu0 0.0
    %712 = vmatpush.msra.mxu0 %v559
    %713 = vmatpush.msra.mxu0 %v551
    %714 = vmatpush.msra.mxu0 %v543
    %715 = vmatpush.msra.mxu0 %v535
    %716 = vmatpush.msra.mxu0 %v527
    %717 = vmatpush.msra.mxu0 %v519
    %718 = vmatpush.msra.mxu0 %v511
    %719 = vmatpush.msra.mxu0 %v503
    %720 = vmatmul.f32.gmra.mxu0 %v562
    %v721 = vpop.f32.mrf.mxu0
    %v722 = vadd.f32 0.0, %v721
    %723 = vdwg.mxu0
    %v724 = vadd.f32 %v109, %v582
    %v725 = vadd.f32 %v110, %v602
    %v726 = vadd.f32 %v111, %v622
    %v727 = vadd.f32 %v112, %v642
    %v728 = vadd.f32 %v113, %v662
    %v729 = vadd.f32 %v114, %v682
    %v730 = vadd.f32 %v115, %v702
    %v731 = vadd.f32 %v116, %v722
    %s732 = scalar_lea.vmem %s0, 8
    %v733 = vld [vmem:[%s732] sm:$0xff]
    %735 = vst [vmem:[#allocation1] ss:$4 sm:$0xff] %v733
    %v736 = vld.sshfl [vmem:[#allocation1] sm:$0xff pattern:$0x73625140]
    %v737 = vld.sshfl [vmem:[#allocation1 + $0x8] sm:$0xff pattern:$0x73625140]
    %v738 = vld.sshfl [vmem:[#allocation1 + $0x10] sm:$0xff pattern:$0x73625140]
    %v739 = vld.sshfl [vmem:[#allocation1 + $0x18] sm:$0xff pattern:$0x73625140]
    %744 = vmatpush.msra.mxu0 %v57
    %745 = vmatpush.msra.mxu0 %v56
    %746 = vmatpush.msra.mxu0 %v55
    %747 = vmatpush.msra.mxu0 %v54
    %748 = vmatpush.msra.mxu0 %v53
    %749 = vmatpush.msra.mxu0 %v52
    %750 = vmatpush.msra.mxu0 %v51
    %751 = vmatpush.msra.mxu0 %v50
    %752 = vmatpush.msra.mxu0 %v49
    %753 = vmatpush.msra.mxu0 %v48
    %754 = vmatpush.msra.mxu0 %v47
    %755 = vmatpush.msra.mxu0 %v46
    %756 = vmatpush.msra.mxu0 %v45
    %757 = vmatpush.msra.mxu0 %v44
    %758 = vmatpush.msra.mxu0 %v43
    %759 = vmatpush.msra.mxu0 %v42
    %760 = vmatmul.f32.gmra.mxu0 %v736
    %v761 = vpop.f32.mrf.mxu0
    %v762 = vadd.f32 0.0, %v761
    %763 = vdwg.mxu0
    %764 = vmatpush.msra.mxu0 %v73
    %765 = vmatpush.msra.mxu0 %v72
    %766 = vmatpush.msra.mxu0 %v71
    %767 = vmatpush.msra.mxu0 %v70
    %768 = vmatpush.msra.mxu0 %v69
    %769 = vmatpush.msra.mxu0 %v68
    %770 = vmatpush.msra.mxu0 %v67
    %771 = vmatpush.msra.mxu0 %v66
    %772 = vmatpush.msra.mxu0 %v65
    %773 = vmatpush.msra.mxu0 %v64
    %774 = vmatpush.msra.mxu0 %v63
    %775 = vmatpush.msra.mxu0 %v62
    %776 = vmatpush.msra.mxu0 %v61
    %777 = vmatpush.msra.mxu0 %v60
    %778 = vmatpush.msra.mxu0 %v59
    %779 = vmatpush.msra.mxu0 %v58
    %780 = vmatmul.f32.gmra.mxu0 %v737
    %v781 = vpop.f32.mrf.mxu0
    %v782 = vadd.f32 %v762, %v781
    %783 = vdwg.mxu0
    %784 = vmatpush.msra.mxu0 %v89
    %785 = vmatpush.msra.mxu0 %v88
    %786 = vmatpush.msra.mxu0 %v87
    %787 = vmatpush.msra.mxu0 %v86
    %788 = vmatpush.msra.mxu0 %v85
    %789 = vmatpush.msra.mxu0 %v84
    %790 = vmatpush.msra.mxu0 %v83
    %791 = vmatpush.msra.mxu0 %v82
    %792 = vmatpush.msra.mxu0 %v81
    %793 = vmatpush.msra.mxu0 %v80
    %794 = vmatpush.msra.mxu0 %v79
    %795 = vmatpush.msra.mxu0 %v78
    %796 = vmatpush.msra.mxu0 %v77
    %797 = vmatpush.msra.mxu0 %v76
    %798 = vmatpush.msra.mxu0 %v75
    %799 = vmatpush.msra.mxu0 %v74
    %800 = vmatmul.f32.gmra.mxu0 %v738
    %v801 = vpop.f32.mrf.mxu0
    %v802 = vadd.f32 %v782, %v801
    %803 = vdwg.mxu0
    %804 = vmatpush.msra.mxu0 %v105
    %805 = vmatpush.msra.mxu0 %v104
    %806 = vmatpush.msra.mxu0 %v103
    %807 = vmatpush.msra.mxu0 %v102
    %808 = vmatpush.msra.mxu0 %v101
    %809 = vmatpush.msra.mxu0 %v100
    %810 = vmatpush.msra.mxu0 %v99
    %811 = vmatpush.msra.mxu0 %v98
    %812 = vmatpush.msra.mxu0 %v97
    %813 = vmatpush.msra.mxu0 %v96
    %814 = vmatpush.msra.mxu0 %v95
    %815 = vmatpush.msra.mxu0 %v94
    %816 = vmatpush.msra.mxu0 %v93
    %817 = vmatpush.msra.mxu0 %v92
    %818 = vmatpush.msra.mxu0 %v91
    %819 = vmatpush.msra.mxu0 %v90
    %820 = vmatmul.f32.gmra.mxu0 %v739
    %v821 = vpop.f32.mrf.mxu0
    %v822 = vadd.f32 %v802, %v821
    %823 = vdwg.mxu0
    %s824 = scalar_lea.vmem %s1, 8
    %v825 = vld [vmem:[%s824] sm:$0xff]
    %827 = vst [vmem:[#allocation1] ss:$4 sm:$0xff] %v825
    %v828 = vld.sshfl [vmem:[#allocation1] sm:$0xff pattern:$0x73625140]
    %v829 = vld.sshfl [vmem:[#allocation1 + $0x8] sm:$0xff pattern:$0x73625140]
    %v830 = vld.sshfl [vmem:[#allocation1 + $0x10] sm:$0xff pattern:$0x73625140]
    %v831 = vld.sshfl [vmem:[#allocation1 + $0x18] sm:$0xff pattern:$0x73625140]
    %836 = vmatpush.msra.mxu0 %v57
    %837 = vmatpush.msra.mxu0 %v56
    %838 = vmatpush.msra.mxu0 %v55
    %839 = vmatpush.msra.mxu0 %v54
    %840 = vmatpush.msra.mxu0 %v53
    %841 = vmatpush.msra.mxu0 %v52
    %842 = vmatpush.msra.mxu0 %v51
    %843 = vmatpush.msra.mxu0 %v50
    %844 = vmatpush.msra.mxu0 %v49
    %845 = vmatpush.msra.mxu0 %v48
    %846 = vmatpush.msra.mxu0 %v47
    %847 = vmatpush.msra.mxu0 %v46
    %848 = vmatpush.msra.mxu0 %v45
    %849 = vmatpush.msra.mxu0 %v44
    %850 = vmatpush.msra.mxu0 %v43
    %851 = vmatpush.msra.mxu0 %v42
    %852 = vmatmul.f32.gmra.mxu0 %v828
    %v853 = vpop.f32.mrf.mxu0
    %v854 = vadd.f32 0.0, %v853
    %855 = vdwg.mxu0
    %856 = vmatpush.msra.mxu0 %v73
    %857 = vmatpush.msra.mxu0 %v72
    %858 = vmatpush.msra.mxu0 %v71
    %859 = vmatpush.msra.mxu0 %v70
    %860 = vmatpush.msra.mxu0 %v69
    %861 = vmatpush.msra.mxu0 %v68
    %862 = vmatpush.msra.mxu0 %v67
    %863 = vmatpush.msra.mxu0 %v66
    %864 = vmatpush.msra.mxu0 %v65
    %865 = vmatpush.msra.mxu0 %v64
    %866 = vmatpush.msra.mxu0 %v63
    %867 = vmatpush.msra.mxu0 %v62
    %868 = vmatpush.msra.mxu0 %v61
    %869 = vmatpush.msra.mxu0 %v60
    %870 = vmatpush.msra.mxu0 %v59
    %871 = vmatpush.msra.mxu0 %v58
    %872 = vmatmul.f32.gmra.mxu0 %v829
    %v873 = vpop.f32.mrf.mxu0
    %v874 = vadd.f32 %v854, %v873
    %875 = vdwg.mxu0
    %876 = vmatpush.msra.mxu0 %v89
    %877 = vmatpush.msra.mxu0 %v88
    %878 = vmatpush.msra.mxu0 %v87
    %879 = vmatpush.msra.mxu0 %v86
    %880 = vmatpush.msra.mxu0 %v85
    %881 = vmatpush.msra.mxu0 %v84
    %882 = vmatpush.msra.mxu0 %v83
    %883 = vmatpush.msra.mxu0 %v82
    %884 = vmatpush.msra.mxu0 %v81
    %885 = vmatpush.msra.mxu0 %v80
    %886 = vmatpush.msra.mxu0 %v79
    %887 = vmatpush.msra.mxu0 %v78
    %888 = vmatpush.msra.mxu0 %v77
    %889 = vmatpush.msra.mxu0 %v76
    %890 = vmatpush.msra.mxu0 %v75
    %891 = vmatpush.msra.mxu0 %v74
    %892 = vmatmul.f32.gmra.mxu0 %v830
    %v893 = vpop.f32.mrf.mxu0
    %v894 = vadd.f32 %v874, %v893
    %895 = vdwg.mxu0
    %896 = vmatpush.msra.mxu0 %v105
    %897 = vmatpush.msra.mxu0 %v104
    %898 = vmatpush.msra.mxu0 %v103
    %899 = vmatpush.msra.mxu0 %v102
    %900 = vmatpush.msra.mxu0 %v101
    %901 = vmatpush.msra.mxu0 %v100
    %902 = vmatpush.msra.mxu0 %v99
    %903 = vmatpush.msra.mxu0 %v98
    %904 = vmatpush.msra.mxu0 %v97
    %905 = vmatpush.msra.mxu0 %v96
    %906 = vmatpush.msra.mxu0 %v95
    %907 = vmatpush.msra.mxu0 %v94
    %908 = vmatpush.msra.mxu0 %v93
    %909 = vmatpush.msra.mxu0 %v92
    %910 = vmatpush.msra.mxu0 %v91
    %911 = vmatpush.msra.mxu0 %v90
    %912 = vmatmul.f32.gmra.mxu0 %v831
    %v913 = vpop.f32.mrf.mxu0
    %v914 = vadd.f32 %v894, %v913
    %915 = vdwg.mxu0
    %v916 = vmax.f32 %v822, %v914
    %s917 = scalar_lea.vmem %s2, 8
    %v918 = vld [vmem:[%s917] sm:$0xff]
    %920 = vst [vmem:[#allocation1] ss:$4 sm:$0xff] %v918
    %v921 = vld.sshfl [vmem:[#allocation1] sm:$0xff pattern:$0x73625140]
    %v922 = vld.sshfl [vmem:[#allocation1 + $0x8] sm:$0xff pattern:$0x73625140]
    %v923 = vld.sshfl [vmem:[#allocation1 + $0x10] sm:$0xff pattern:$0x73625140]
    %v924 = vld.sshfl [vmem:[#allocation1 + $0x18] sm:$0xff pattern:$0x73625140]
    %929 = vmatpush.msra.mxu0 %v57
    %930 = vmatpush.msra.mxu0 %v56
    %931 = vmatpush.msra.mxu0 %v55
    %932 = vmatpush.msra.mxu0 %v54
    %933 = vmatpush.msra.mxu0 %v53
    %934 = vmatpush.msra.mxu0 %v52
    %935 = vmatpush.msra.mxu0 %v51
    %936 = vmatpush.msra.mxu0 %v50
    %937 = vmatpush.msra.mxu0 %v49
    %938 = vmatpush.msra.mxu0 %v48
    %939 = vmatpush.msra.mxu0 %v47
    %940 = vmatpush.msra.mxu0 %v46
    %941 = vmatpush.msra.mxu0 %v45
    %942 = vmatpush.msra.mxu0 %v44
    %943 = vmatpush.msra.mxu0 %v43
    %944 = vmatpush.msra.mxu0 %v42
    %945 = vmatmul.f32.gmra.mxu0 %v921
    %v946 = vpop.f32.mrf.mxu0
    %v947 = vadd.f32 0.0, %v946
    %948 = vdwg.mxu0
    %949 = vmatpush.msra.mxu0 %v73
    %950 = vmatpush.msra.mxu0 %v72
    %951 = vmatpush.msra.mxu0 %v71
    %952 = vmatpush.msra.mxu0 %v70
    %953 = vmatpush.msra.mxu0 %v69
    %954 = vmatpush.msra.mxu0 %v68
    %955 = vmatpush.msra.mxu0 %v67
    %956 = vmatpush.msra.mxu0 %v66
    %957 = vmatpush.msra.mxu0 %v65
    %958 = vmatpush.msra.mxu0 %v64
    %959 = vmatpush.msra.mxu0 %v63
    %960 = vmatpush.msra.mxu0 %v62
    %961 = vmatpush.msra.mxu0 %v61
    %962 = vmatpush.msra.mxu0 %v60
    %963 = vmatpush.msra.mxu0 %v59
    %964 = vmatpush.msra.mxu0 %v58
    %965 = vmatmul.f32.gmra.mxu0 %v922
    %v966 = vpop.f32.mrf.mxu0
    %v967 = vadd.f32 %v947, %v966
    %968 = vdwg.mxu0
    %969 = vmatpush.msra.mxu0 %v89
    %970 = vmatpush.msra.mxu0 %v88
    %971 = vmatpush.msra.mxu0 %v87
    %972 = vmatpush.msra.mxu0 %v86
    %973 = vmatpush.msra.mxu0 %v85
    %974 = vmatpush.msra.mxu0 %v84
    %975 = vmatpush.msra.mxu0 %v83
    %976 = vmatpush.msra.mxu0 %v82
    %977 = vmatpush.msra.mxu0 %v81
    %978 = vmatpush.msra.mxu0 %v80
    %979 = vmatpush.msra.mxu0 %v79
    %980 = vmatpush.msra.mxu0 %v78
    %981 = vmatpush.msra.mxu0 %v77
    %982 = vmatpush.msra.mxu0 %v76
    %983 = vmatpush.msra.mxu0 %v75
    %984 = vmatpush.msra.mxu0 %v74
    %985 = vmatmul.f32.gmra.mxu0 %v923
    %v986 = vpop.f32.mrf.mxu0
    %v987 = vadd.f32 %v967, %v986
    %988 = vdwg.mxu0
    %989 = vmatpush.msra.mxu0 %v105
    %990 = vmatpush.msra.mxu0 %v104
    %991 = vmatpush.msra.mxu0 %v103
    %992 = vmatpush.msra.mxu0 %v102
    %993 = vmatpush.msra.mxu0 %v101
    %994 = vmatpush.msra.mxu0 %v100
    %995 = vmatpush.msra.mxu0 %v99
    %996 = vmatpush.msra.mxu0 %v98
    %997 = vmatpush.msra.mxu0 %v97
    %998 = vmatpush.msra.mxu0 %v96
    %999 = vmatpush.msra.mxu0 %v95
    %1000 = vmatpush.msra.mxu0 %v94
    %1001 = vmatpush.msra.mxu0 %v93
    %1002 = vmatpush.msra.mxu0 %v92
    %1003 = vmatpush.msra.mxu0 %v91
    %1004 = vmatpush.msra.mxu0 %v90
    %1005 = vmatmul.f32.gmra.mxu0 %v924
    %v1006 = vpop.f32.mrf.mxu0
    %v1007 = vadd.f32 %v987, %v1006
    %1008 = vdwg.mxu0
    %s1009 = scalar_lea.vmem %s3, 8
    %v1010 = vld [vmem:[%s1009] sm:$0xff]
    %1012 = vst [vmem:[#allocation1] ss:$4 sm:$0xff] %v1010
    %v1013 = vld.sshfl [vmem:[#allocation1] sm:$0xff pattern:$0x73625140]
    %v1014 = vld.sshfl [vmem:[#allocation1 + $0x8] sm:$0xff pattern:$0x73625140]
    %v1015 = vld.sshfl [vmem:[#allocation1 + $0x10] sm:$0xff pattern:$0x73625140]
    %v1016 = vld.sshfl [vmem:[#allocation1 + $0x18] sm:$0xff pattern:$0x73625140]
    %1021 = vmatpush.msra.mxu0 %v57
    %1022 = vmatpush.msra.mxu0 %v56
    %1023 = vmatpush.msra.mxu0 %v55
    %1024 = vmatpush.msra.mxu0 %v54
    %1025 = vmatpush.msra.mxu0 %v53
    %1026 = vmatpush.msra.mxu0 %v52
    %1027 = vmatpush.msra.mxu0 %v51
    %1028 = vmatpush.msra.mxu0 %v50
    %1029 = vmatpush.msra.mxu0 %v49
    %1030 = vmatpush.msra.mxu0 %v48
    %1031 = vmatpush.msra.mxu0 %v47
    %1032 = vmatpush.msra.mxu0 %v46
    %1033 = vmatpush.msra.mxu0 %v45
    %1034 = vmatpush.msra.mxu0 %v44
    %1035 = vmatpush.msra.mxu0 %v43
    %1036 = vmatpush.msra.mxu0 %v42
    %1037 = vmatmul.f32.gmra.mxu0 %v1013
    %v1038 = vpop.f32.mrf.mxu0
    %v1039 = vadd.f32 0.0, %v1038
    %1040 = vdwg.mxu0
    %1041 = vmatpush.msra.mxu0 %v73
    %1042 = vmatpush.msra.mxu0 %v72
    %1043 = vmatpush.msra.mxu0 %v71
    %1044 = vmatpush.msra.mxu0 %v70
    %1045 = vmatpush.msra.mxu0 %v69
    %1046 = vmatpush.msra.mxu0 %v68
    %1047 = vmatpush.msra.mxu0 %v67
    %1048 = vmatpush.msra.mxu0 %v66
    %1049 = vmatpush.msra.mxu0 %v65
    %1050 = vmatpush.msra.mxu0 %v64
    %1051 = vmatpush.msra.mxu0 %v63
    %1052 = vmatpush.msra.mxu0 %v62
    %1053 = vmatpush.msra.mxu0 %v61
    %1054 = vmatpush.msra.mxu0 %v60
    %1055 = vmatpush.msra.mxu0 %v59
    %1056 = vmatpush.msra.mxu0 %v58
    %1057 = vmatmul.f32.gmra.mxu0 %v1014
    %v1058 = vpop.f32.mrf.mxu0
    %v1059 = vadd.f32 %v1039, %v1058
    %1060 = vdwg.mxu0
    %1061 = vmatpush.msra.mxu0 %v89
    %1062 = vmatpush.msra.mxu0 %v88
    %1063 = vmatpush.msra.mxu0 %v87
    %1064 = vmatpush.msra.mxu0 %v86
    %1065 = vmatpush.msra.mxu0 %v85
    %1066 = vmatpush.msra.mxu0 %v84
    %1067 = vmatpush.msra.mxu0 %v83
    %1068 = vmatpush.msra.mxu0 %v82
    %1069 = vmatpush.msra.mxu0 %v81
    %1070 = vmatpush.msra.mxu0 %v80
    %1071 = vmatpush.msra.mxu0 %v79
    %1072 = vmatpush.msra.mxu0 %v78
    %1073 = vmatpush.msra.mxu0 %v77
    %1074 = vmatpush.msra.mxu0 %v76
    %1075 = vmatpush.msra.mxu0 %v75
    %1076 = vmatpush.msra.mxu0 %v74
    %1077 = vmatmul.f32.gmra.mxu0 %v1015
    %v1078 = vpop.f32.mrf.mxu0
    %v1079 = vadd.f32 %v1059, %v1078
    %1080 = vdwg.mxu0
    %1081 = vmatpush.msra.mxu0 %v105
    %1082 = vmatpush.msra.mxu0 %v104
    %1083 = vmatpush.msra.mxu0 %v103
    %1084 = vmatpush.msra.mxu0 %v102
    %1085 = vmatpush.msra.mxu0 %v101
    %1086 = vmatpush.msra.mxu0 %v100
    %1087 = vmatpush.msra.mxu0 %v99
    %1088 = vmatpush.msra.mxu0 %v98
    %1089 = vmatpush.msra.mxu0 %v97
    %1090 = vmatpush.msra.mxu0 %v96
    %1091 = vmatpush.msra.mxu0 %v95
    %1092 = vmatpush.msra.mxu0 %v94
    %1093 = vmatpush.msra.mxu0 %v93
    %1094 = vmatpush.msra.mxu0 %v92
    %1095 = vmatpush.msra.mxu0 %v91
    %1096 = vmatpush.msra.mxu0 %v90
    %1097 = vmatmul.f32.gmra.mxu0 %v1016
    %v1098 = vpop.f32.mrf.mxu0
    %v1099 = vadd.f32 %v1079, %v1098
    %1100 = vdwg.mxu0
    %v1101 = vmax.f32 %v1007, %v1099
    %v1102 = vmax.f32 %v916, %v1101
    %v1103 = vadd.f32 %v1102, %v493
    %s1104 = scalar_lea.vmem %s6, 512
    %v1105 = vld [vmem:[%s1104] sm:$0xff]
    %v1106 = vld [vmem:[%s1104 + $0x8] sm:$0xff]
    %v1107 = vld [vmem:[%s1104 + $0x10] sm:$0xff]
    %v1108 = vld [vmem:[%s1104 + $0x18] sm:$0xff]
    %v1109 = vld [vmem:[%s1104 + $0x20] sm:$0xff]
    %v1110 = vld [vmem:[%s1104 + $0x28] sm:$0xff]
    %v1111 = vld [vmem:[%s1104 + $0x30] sm:$0xff]
    %v1112 = vld [vmem:[%s1104 + $0x38] sm:$0xff]
    %v1113 = vld [vmem:[%s1104 + $0x40] sm:$0xff]
    %v1114 = vld [vmem:[%s1104 + $0x48] sm:$0xff]
    %v1115 = vld [vmem:[%s1104 + $0x50] sm:$0xff]
    %v1116 = vld [vmem:[%s1104 + $0x58] sm:$0xff]
    %v1117 = vld [vmem:[%s1104 + $0x60] sm:$0xff]
    %v1118 = vld [vmem:[%s1104 + $0x68] sm:$0xff]
    %v1119 = vld [vmem:[%s1104 + $0x70] sm:$0xff]
    %v1120 = vld [vmem:[%s1104 + $0x78] sm:$0xff]
    %v1121 = vld [vmem:[%s1104 + $0x80] sm:$0xff]
    %v1122 = vld [vmem:[%s1104 + $0x88] sm:$0xff]
    %v1123 = vld [vmem:[%s1104 + $0x90] sm:$0xff]
    %v1124 = vld [vmem:[%s1104 + $0x98] sm:$0xff]
    %v1125 = vld [vmem:[%s1104 + $0xa0] sm:$0xff]
    %v1126 = vld [vmem:[%s1104 + $0xa8] sm:$0xff]
    %v1127 = vld [vmem:[%s1104 + $0xb0] sm:$0xff]
    %v1128 = vld [vmem:[%s1104 + $0xb8] sm:$0xff]
    %v1129 = vld [vmem:[%s1104 + $0xc0] sm:$0xff]
    %v1130 = vld [vmem:[%s1104 + $0xc8] sm:$0xff]
    %v1131 = vld [vmem:[%s1104 + $0xd0] sm:$0xff]
    %v1132 = vld [vmem:[%s1104 + $0xd8] sm:$0xff]
    %v1133 = vld [vmem:[%s1104 + $0xe0] sm:$0xff]
    %v1134 = vld [vmem:[%s1104 + $0xe8] sm:$0xff]
    %v1135 = vld [vmem:[%s1104 + $0xf0] sm:$0xff]
    %v1136 = vld [vmem:[%s1104 + $0xf8] sm:$0xff]
    %v1137 = vld [vmem:[%s1104 + $0x100] sm:$0xff]
    %v1138 = vld [vmem:[%s1104 + $0x108] sm:$0xff]
    %v1139 = vld [vmem:[%s1104 + $0x110] sm:$0xff]
    %v1140 = vld [vmem:[%s1104 + $0x118] sm:$0xff]
    %v1141 = vld [vmem:[%s1104 + $0x120] sm:$0xff]
    %v1142 = vld [vmem:[%s1104 + $0x128] sm:$0xff]
    %v1143 = vld [vmem:[%s1104 + $0x130] sm:$0xff]
    %v1144 = vld [vmem:[%s1104 + $0x138] sm:$0xff]
    %v1145 = vld [vmem:[%s1104 + $0x140] sm:$0xff]
    %v1146 = vld [vmem:[%s1104 + $0x148] sm:$0xff]
    %v1147 = vld [vmem:[%s1104 + $0x150] sm:$0xff]
    %v1148 = vld [vmem:[%s1104 + $0x158] sm:$0xff]
    %v1149 = vld [vmem:[%s1104 + $0x160] sm:$0xff]
    %v1150 = vld [vmem:[%s1104 + $0x168] sm:$0xff]
    %v1151 = vld [vmem:[%s1104 + $0x170] sm:$0xff]
    %v1152 = vld [vmem:[%s1104 + $0x178] sm:$0xff]
    %v1153 = vld [vmem:[%s1104 + $0x180] sm:$0xff]
    %v1154 = vld [vmem:[%s1104 + $0x188] sm:$0xff]
    %v1155 = vld [vmem:[%s1104 + $0x190] sm:$0xff]
    %v1156 = vld [vmem:[%s1104 + $0x198] sm:$0xff]
    %v1157 = vld [vmem:[%s1104 + $0x1a0] sm:$0xff]
    %v1158 = vld [vmem:[%s1104 + $0x1a8] sm:$0xff]
    %v1159 = vld [vmem:[%s1104 + $0x1b0] sm:$0xff]
    %v1160 = vld [vmem:[%s1104 + $0x1b8] sm:$0xff]
    %v1161 = vld [vmem:[%s1104 + $0x1c0] sm:$0xff]
    %v1162 = vld [vmem:[%s1104 + $0x1c8] sm:$0xff]
    %v1163 = vld [vmem:[%s1104 + $0x1d0] sm:$0xff]
    %v1164 = vld [vmem:[%s1104 + $0x1d8] sm:$0xff]
    %v1165 = vld [vmem:[%s1104 + $0x1e0] sm:$0xff]
    %v1166 = vld [vmem:[%s1104 + $0x1e8] sm:$0xff]
    %v1167 = vld [vmem:[%s1104 + $0x1f0] sm:$0xff]
    %v1168 = vld [vmem:[%s1104 + $0x1f8] sm:$0xff]
    %v1170 = vsel %vm560, %v1103, 0
    %1172 = vmatpush.msra.mxu0 0.0
    %1173 = vmatpush.msra.mxu0 0.0
    %1174 = vmatpush.msra.mxu0 0.0
    %1175 = vmatpush.msra.mxu0 0.0
    %1176 = vmatpush.msra.mxu0 0.0
    %1177 = vmatpush.msra.mxu0 0.0
    %1178 = vmatpush.msra.mxu0 0.0
    %1179 = vmatpush.msra.mxu0 0.0
    %1180 = vmatpush.msra.mxu0 %v1161
    %1181 = vmatpush.msra.mxu0 %v1153
    %1182 = vmatpush.msra.mxu0 %v1145
    %1183 = vmatpush.msra.mxu0 %v1137
    %1184 = vmatpush.msra.mxu0 %v1129
    %1185 = vmatpush.msra.mxu0 %v1121
    %1186 = vmatpush.msra.mxu0 %v1113
    %1187 = vmatpush.msra.mxu0 %v1105
    %1188 = vmatmul.f32.gmra.mxu0 %v1170
    %v1189 = vpop.f32.mrf.mxu0
    %v1190 = vadd.f32 0.0, %v1189
    %1191 = vdwg.mxu0
    %1192 = vmatpush.msra.mxu0 0.0
    %1193 = vmatpush.msra.mxu0 0.0
    %1194 = vmatpush.msra.mxu0 0.0
    %1195 = vmatpush.msra.mxu0 0.0
    %1196 = vmatpush.msra.mxu0 0.0
    %1197 = vmatpush.msra.mxu0 0.0
    %1198 = vmatpush.msra.mxu0 0.0
    %1199 = vmatpush.msra.mxu0 0.0
    %1200 = vmatpush.msra.mxu0 %v1162
    %1201 = vmatpush.msra.mxu0 %v1154
    %1202 = vmatpush.msra.mxu0 %v1146
    %1203 = vmatpush.msra.mxu0 %v1138
    %1204 = vmatpush.msra.mxu0 %v1130
    %1205 = vmatpush.msra.mxu0 %v1122
    %1206 = vmatpush.msra.mxu0 %v1114
    %1207 = vmatpush.msra.mxu0 %v1106
    %1208 = vmatmul.f32.gmra.mxu0 %v1170
    %v1209 = vpop.f32.mrf.mxu0
    %v1210 = vadd.f32 0.0, %v1209
    %1211 = vdwg.mxu0
    %1212 = vmatpush.msra.mxu0 0.0
    %1213 = vmatpush.msra.mxu0 0.0
    %1214 = vmatpush.msra.mxu0 0.0
    %1215 = vmatpush.msra.mxu0 0.0
    %1216 = vmatpush.msra.mxu0 0.0
    %1217 = vmatpush.msra.mxu0 0.0
    %1218 = vmatpush.msra.mxu0 0.0
    %1219 = vmatpush.msra.mxu0 0.0
    %1220 = vmatpush.msra.mxu0 %v1163
    %1221 = vmatpush.msra.mxu0 %v1155
    %1222 = vmatpush.msra.mxu0 %v1147
    %1223 = vmatpush.msra.mxu0 %v1139
    %1224 = vmatpush.msra.mxu0 %v1131
    %1225 = vmatpush.msra.mxu0 %v1123
    %1226 = vmatpush.msra.mxu0 %v1115
    %1227 = vmatpush.msra.mxu0 %v1107
    %1228 = vmatmul.f32.gmra.mxu0 %v1170
    %v1229 = vpop.f32.mrf.mxu0
    %v1230 = vadd.f32 0.0, %v1229
    %1231 = vdwg.mxu0
    %1232 = vmatpush.msra.mxu0 0.0
    %1233 = vmatpush.msra.mxu0 0.0
    %1234 = vmatpush.msra.mxu0 0.0
    %1235 = vmatpush.msra.mxu0 0.0
    %1236 = vmatpush.msra.mxu0 0.0
    %1237 = vmatpush.msra.mxu0 0.0
    %1238 = vmatpush.msra.mxu0 0.0
    %1239 = vmatpush.msra.mxu0 0.0
    %1240 = vmatpush.msra.mxu0 %v1164
    %1241 = vmatpush.msra.mxu0 %v1156
    %1242 = vmatpush.msra.mxu0 %v1148
    %1243 = vmatpush.msra.mxu0 %v1140
    %1244 = vmatpush.msra.mxu0 %v1132
    %1245 = vmatpush.msra.mxu0 %v1124
    %1246 = vmatpush.msra.mxu0 %v1116
    %1247 = vmatpush.msra.mxu0 %v1108
    %1248 = vmatmul.f32.gmra.mxu0 %v1170
    %v1249 = vpop.f32.mrf.mxu0
    %v1250 = vadd.f32 0.0, %v1249
    %1251 = vdwg.mxu0
    %1252 = vmatpush.msra.mxu0 0.0
    %1253 = vmatpush.msra.mxu0 0.0
    %1254 = vmatpush.msra.mxu0 0.0
    %1255 = vmatpush.msra.mxu0 0.0
    %1256 = vmatpush.msra.mxu0 0.0
    %1257 = vmatpush.msra.mxu0 0.0
    %1258 = vmatpush.msra.mxu0 0.0
    %1259 = vmatpush.msra.mxu0 0.0
    %1260 = vmatpush.msra.mxu0 %v1165
    %1261 = vmatpush.msra.mxu0 %v1157
    %1262 = vmatpush.msra.mxu0 %v1149
    %1263 = vmatpush.msra.mxu0 %v1141
    %1264 = vmatpush.msra.mxu0 %v1133
    %1265 = vmatpush.msra.mxu0 %v1125
    %1266 = vmatpush.msra.mxu0 %v1117
    %1267 = vmatpush.msra.mxu0 %v1109
    %1268 = vmatmul.f32.gmra.mxu0 %v1170
    %v1269 = vpop.f32.mrf.mxu0
    %v1270 = vadd.f32 0.0, %v1269
    %1271 = vdwg.mxu0
    %1272 = vmatpush.msra.mxu0 0.0
    %1273 = vmatpush.msra.mxu0 0.0
    %1274 = vmatpush.msra.mxu0 0.0
    %1275 = vmatpush.msra.mxu0 0.0
    %1276 = vmatpush.msra.mxu0 0.0
    %1277 = vmatpush.msra.mxu0 0.0
    %1278 = vmatpush.msra.mxu0 0.0
    %1279 = vmatpush.msra.mxu0 0.0
    %1280 = vmatpush.msra.mxu0 %v1166
    %1281 = vmatpush.msra.mxu0 %v1158
    %1282 = vmatpush.msra.mxu0 %v1150
    %1283 = vmatpush.msra.mxu0 %v1142
    %1284 = vmatpush.msra.mxu0 %v1134
    %1285 = vmatpush.msra.mxu0 %v1126
    %1286 = vmatpush.msra.mxu0 %v1118
    %1287 = vmatpush.msra.mxu0 %v1110
    %1288 = vmatmul.f32.gmra.mxu0 %v1170
    %v1289 = vpop.f32.mrf.mxu0
    %v1290 = vadd.f32 0.0, %v1289
    %1291 = vdwg.mxu0
    %1292 = vmatpush.msra.mxu0 0.0
    %1293 = vmatpush.msra.mxu0 0.0
    %1294 = vmatpush.msra.mxu0 0.0
    %1295 = vmatpush.msra.mxu0 0.0
    %1296 = vmatpush.msra.mxu0 0.0
    %1297 = vmatpush.msra.mxu0 0.0
    %1298 = vmatpush.msra.mxu0 0.0
    %1299 = vmatpush.msra.mxu0 0.0
    %1300 = vmatpush.msra.mxu0 %v1167
    %1301 = vmatpush.msra.mxu0 %v1159
    %1302 = vmatpush.msra.mxu0 %v1151
    %1303 = vmatpush.msra.mxu0 %v1143
    %1304 = vmatpush.msra.mxu0 %v1135
    %1305 = vmatpush.msra.mxu0 %v1127
    %1306 = vmatpush.msra.mxu0 %v1119
    %1307 = vmatpush.msra.mxu0 %v1111
    %1308 = vmatmul.f32.gmra.mxu0 %v1170
    %v1309 = vpop.f32.mrf.mxu0
    %v1310 = vadd.f32 0.0, %v1309
    %1311 = vdwg.mxu0
    %1312 = vmatpush.msra.mxu0 0.0
    %1313 = vmatpush.msra.mxu0 0.0
    %1314 = vmatpush.msra.mxu0 0.0
    %1315 = vmatpush.msra.mxu0 0.0
    %1316 = vmatpush.msra.mxu0 0.0
    %1317 = vmatpush.msra.mxu0 0.0
    %1318 = vmatpush.msra.mxu0 0.0
    %1319 = vmatpush.msra.mxu0 0.0
    %1320 = vmatpush.msra.mxu0 %v1168
    %1321 = vmatpush.msra.mxu0 %v1160
    %1322 = vmatpush.msra.mxu0 %v1152
    %1323 = vmatpush.msra.mxu0 %v1144
    %1324 = vmatpush.msra.mxu0 %v1136
    %1325 = vmatpush.msra.mxu0 %v1128
    %1326 = vmatpush.msra.mxu0 %v1120
    %1327 = vmatpush.msra.mxu0 %v1112
    %1328 = vmatmul.f32.gmra.mxu0 %v1170
    %v1329 = vpop.f32.mrf.mxu0
    %v1330 = vadd.f32 0.0, %v1329
    %1331 = vdwg.mxu0
    %v1332 = vadd.f32 %v724, %v1190
    %v1333 = vadd.f32 %v725, %v1210
    %v1334 = vadd.f32 %v726, %v1230
    %v1335 = vadd.f32 %v727, %v1250
    %v1336 = vadd.f32 %v728, %v1270
    %v1337 = vadd.f32 %v729, %v1290
    %v1338 = vadd.f32 %v730, %v1310
    %v1339 = vadd.f32 %v731, %v1330
    %s1340 = scalar_lea.vmem %s0, 16
    %v1341 = vld [vmem:[%s1340] sm:$0xff]
    %1343 = vst [vmem:[#allocation1] ss:$4 sm:$0xff] %v1341
    %v1344 = vld.sshfl [vmem:[#allocation1] sm:$0xff pattern:$0x73625140]
    %v1345 = vld.sshfl [vmem:[#allocation1 + $0x8] sm:$0xff pattern:$0x73625140]
    %v1346 = vld.sshfl [vmem:[#allocation1 + $0x10] sm:$0xff pattern:$0x73625140]
    %v1347 = vld.sshfl [vmem:[#allocation1 + $0x18] sm:$0xff pattern:$0x73625140]
    %1352 = vmatpush.msra.mxu0 %v57
    %1353 = vmatpush.msra.mxu0 %v56
    %1354 = vmatpush.msra.mxu0 %v55
    %1355 = vmatpush.msra.mxu0 %v54
    %1356 = vmatpush.msra.mxu0 %v53
    %1357 = vmatpush.msra.mxu0 %v52
    %1358 = vmatpush.msra.mxu0 %v51
    %1359 = vmatpush.msra.mxu0 %v50
    %1360 = vmatpush.msra.mxu0 %v49
    %1361 = vmatpush.msra.mxu0 %v48
    %1362 = vmatpush.msra.mxu0 %v47
    %1363 = vmatpush.msra.mxu0 %v46
    %1364 = vmatpush.msra.mxu0 %v45
    %1365 = vmatpush.msra.mxu0 %v44
    %1366 = vmatpush.msra.mxu0 %v43
    %1367 = vmatpush.msra.mxu0 %v42
    %1368 = vmatmul.f32.gmra.mxu0 %v1344
    %v1369 = vpop.f32.mrf.mxu0
    %v1370 = vadd.f32 0.0, %v1369
    %1371 = vdwg.mxu0
    %1372 = vmatpush.msra.mxu0 %v73
    %1373 = vmatpush.msra.mxu0 %v72
    %1374 = vmatpush.msra.mxu0 %v71
    %1375 = vmatpush.msra.mxu0 %v70
    %1376 = vmatpush.msra.mxu0 %v69
    %1377 = vmatpush.msra.mxu0 %v68
    %1378 = vmatpush.msra.mxu0 %v67
    %1379 = vmatpush.msra.mxu0 %v66
    %1380 = vmatpush.msra.mxu0 %v65
    %1381 = vmatpush.msra.mxu0 %v64
    %1382 = vmatpush.msra.mxu0 %v63
    %1383 = vmatpush.msra.mxu0 %v62
    %1384 = vmatpush.msra.mxu0 %v61
    %1385 = vmatpush.msra.mxu0 %v60
    %1386 = vmatpush.msra.mxu0 %v59
    %1387 = vmatpush.msra.mxu0 %v58
    %1388 = vmatmul.f32.gmra.mxu0 %v1345
    %v1389 = vpop.f32.mrf.mxu0
    %v1390 = vadd.f32 %v1370, %v1389
    %1391 = vdwg.mxu0
    %1392 = vmatpush.msra.mxu0 %v89
    %1393 = vmatpush.msra.mxu0 %v88
    %1394 = vmatpush.msra.mxu0 %v87
    %1395 = vmatpush.msra.mxu0 %v86
    %1396 = vmatpush.msra.mxu0 %v85
    %1397 = vmatpush.msra.mxu0 %v84
    %1398 = vmatpush.msra.mxu0 %v83
    %1399 = vmatpush.msra.mxu0 %v82
    %1400 = vmatpush.msra.mxu0 %v81
    %1401 = vmatpush.msra.mxu0 %v80
    %1402 = vmatpush.msra.mxu0 %v79
    %1403 = vmatpush.msra.mxu0 %v78
    %1404 = vmatpush.msra.mxu0 %v77
    %1405 = vmatpush.msra.mxu0 %v76
    %1406 = vmatpush.msra.mxu0 %v75
    %1407 = vmatpush.msra.mxu0 %v74
    %1408 = vmatmul.f32.gmra.mxu0 %v1346
    %v1409 = vpop.f32.mrf.mxu0
    %v1410 = vadd.f32 %v1390, %v1409
    %1411 = vdwg.mxu0
    %1412 = vmatpush.msra.mxu0 %v105
    %1413 = vmatpush.msra.mxu0 %v104
    %1414 = vmatpush.msra.mxu0 %v103
    %1415 = vmatpush.msra.mxu0 %v102
    %1416 = vmatpush.msra.mxu0 %v101
    %1417 = vmatpush.msra.mxu0 %v100
    %1418 = vmatpush.msra.mxu0 %v99
    %1419 = vmatpush.msra.mxu0 %v98
    %1420 = vmatpush.msra.mxu0 %v97
    %1421 = vmatpush.msra.mxu0 %v96
    %1422 = vmatpush.msra.mxu0 %v95
    %1423 = vmatpush.msra.mxu0 %v94
    %1424 = vmatpush.msra.mxu0 %v93
    %1425 = vmatpush.msra.mxu0 %v92
    %1426 = vmatpush.msra.mxu0 %v91
    %1427 = vmatpush.msra.mxu0 %v90
    %1428 = vmatmul.f32.gmra.mxu0 %v1347
    %v1429 = vpop.f32.mrf.mxu0
    %v1430 = vadd.f32 %v1410, %v1429
    %1431 = vdwg.mxu0
    %s1432 = scalar_lea.vmem %s1, 16
    %v1433 = vld [vmem:[%s1432] sm:$0xff]
    %1435 = vst [vmem:[#allocation1] ss:$4 sm:$0xff] %v1433
    %v1436 = vld.sshfl [vmem:[#allocation1] sm:$0xff pattern:$0x73625140]
    %v1437 = vld.sshfl [vmem:[#allocation1 + $0x8] sm:$0xff pattern:$0x73625140]
    %v1438 = vld.sshfl [vmem:[#allocation1 + $0x10] sm:$0xff pattern:$0x73625140]
    %v1439 = vld.sshfl [vmem:[#allocation1 + $0x18] sm:$0xff pattern:$0x73625140]
    %1444 = vmatpush.msra.mxu0 %v57
    %1445 = vmatpush.msra.mxu0 %v56
    %1446 = vmatpush.msra.mxu0 %v55
    %1447 = vmatpush.msra.mxu0 %v54
    %1448 = vmatpush.msra.mxu0 %v53
    %1449 = vmatpush.msra.mxu0 %v52
    %1450 = vmatpush.msra.mxu0 %v51
    %1451 = vmatpush.msra.mxu0 %v50
    %1452 = vmatpush.msra.mxu0 %v49
    %1453 = vmatpush.msra.mxu0 %v48
    %1454 = vmatpush.msra.mxu0 %v47
    %1455 = vmatpush.msra.mxu0 %v46
    %1456 = vmatpush.msra.mxu0 %v45
    %1457 = vmatpush.msra.mxu0 %v44
    %1458 = vmatpush.msra.mxu0 %v43
    %1459 = vmatpush.msra.mxu0 %v42
    %1460 = vmatmul.f32.gmra.mxu0 %v1436
    %v1461 = vpop.f32.mrf.mxu0
    %v1462 = vadd.f32 0.0, %v1461
    %1463 = vdwg.mxu0
    %1464 = vmatpush.msra.mxu0 %v73
    %1465 = vmatpush.msra.mxu0 %v72
    %1466 = vmatpush.msra.mxu0 %v71
    %1467 = vmatpush.msra.mxu0 %v70
    %1468 = vmatpush.msra.mxu0 %v69
    %1469 = vmatpush.msra.mxu0 %v68
    %1470 = vmatpush.msra.mxu0 %v67
    %1471 = vmatpush.msra.mxu0 %v66
    %1472 = vmatpush.msra.mxu0 %v65
    %1473 = vmatpush.msra.mxu0 %v64
    %1474 = vmatpush.msra.mxu0 %v63
    %1475 = vmatpush.msra.mxu0 %v62
    %1476 = vmatpush.msra.mxu0 %v61
    %1477 = vmatpush.msra.mxu0 %v60
    %1478 = vmatpush.msra.mxu0 %v59
    %1479 = vmatpush.msra.mxu0 %v58
    %1480 = vmatmul.f32.gmra.mxu0 %v1437
    %v1481 = vpop.f32.mrf.mxu0
    %v1482 = vadd.f32 %v1462, %v1481
    %1483 = vdwg.mxu0
    %1484 = vmatpush.msra.mxu0 %v89
    %1485 = vmatpush.msra.mxu0 %v88
    %1486 = vmatpush.msra.mxu0 %v87
    %1487 = vmatpush.msra.mxu0 %v86
    %1488 = vmatpush.msra.mxu0 %v85
    %1489 = vmatpush.msra.mxu0 %v84
    %1490 = vmatpush.msra.mxu0 %v83
    %1491 = vmatpush.msra.mxu0 %v82
    %1492 = vmatpush.msra.mxu0 %v81
    %1493 = vmatpush.msra.mxu0 %v80
    %1494 = vmatpush.msra.mxu0 %v79
    %1495 = vmatpush.msra.mxu0 %v78
    %1496 = vmatpush.msra.mxu0 %v77
    %1497 = vmatpush.msra.mxu0 %v76
    %1498 = vmatpush.msra.mxu0 %v75
    %1499 = vmatpush.msra.mxu0 %v74
    %1500 = vmatmul.f32.gmra.mxu0 %v1438
    %v1501 = vpop.f32.mrf.mxu0
    %v1502 = vadd.f32 %v1482, %v1501
    %1503 = vdwg.mxu0
    %1504 = vmatpush.msra.mxu0 %v105
    %1505 = vmatpush.msra.mxu0 %v104
    %1506 = vmatpush.msra.mxu0 %v103
    %1507 = vmatpush.msra.mxu0 %v102
    %1508 = vmatpush.msra.mxu0 %v101
    %1509 = vmatpush.msra.mxu0 %v100
    %1510 = vmatpush.msra.mxu0 %v99
    %1511 = vmatpush.msra.mxu0 %v98
    %1512 = vmatpush.msra.mxu0 %v97
    %1513 = vmatpush.msra.mxu0 %v96
    %1514 = vmatpush.msra.mxu0 %v95
    %1515 = vmatpush.msra.mxu0 %v94
    %1516 = vmatpush.msra.mxu0 %v93
    %1517 = vmatpush.msra.mxu0 %v92
    %1518 = vmatpush.msra.mxu0 %v91
    %1519 = vmatpush.msra.mxu0 %v90
    %1520 = vmatmul.f32.gmra.mxu0 %v1439
    %v1521 = vpop.f32.mrf.mxu0
    %v1522 = vadd.f32 %v1502, %v1521
    %1523 = vdwg.mxu0
    %v1524 = vmax.f32 %v1430, %v1522
    %s1525 = scalar_lea.vmem %s2, 16
    %v1526 = vld [vmem:[%s1525] sm:$0xff]
    %1528 = vst [vmem:[#allocation1] ss:$4 sm:$0xff] %v1526
    %v1529 = vld.sshfl [vmem:[#allocation1] sm:$0xff pattern:$0x73625140]
    %v1530 = vld.sshfl [vmem:[#allocation1 + $0x8] sm:$0xff pattern:$0x73625140]
    %v1531 = vld.sshfl [vmem:[#allocation1 + $0x10] sm:$0xff pattern:$0x73625140]
    %v1532 = vld.sshfl [vmem:[#allocation1 + $0x18] sm:$0xff pattern:$0x73625140]
    %1537 = vmatpush.msra.mxu0 %v57
    %1538 = vmatpush.msra.mxu0 %v56
    %1539 = vmatpush.msra.mxu0 %v55
    %1540 = vmatpush.msra.mxu0 %v54
    %1541 = vmatpush.msra.mxu0 %v53
    %1542 = vmatpush.msra.mxu0 %v52
    %1543 = vmatpush.msra.mxu0 %v51
    %1544 = vmatpush.msra.mxu0 %v50
    %1545 = vmatpush.msra.mxu0 %v49
    %1546 = vmatpush.msra.mxu0 %v48
    %1547 = vmatpush.msra.mxu0 %v47
    %1548 = vmatpush.msra.mxu0 %v46
    %1549 = vmatpush.msra.mxu0 %v45
    %1550 = vmatpush.msra.mxu0 %v44
    %1551 = vmatpush.msra.mxu0 %v43
    %1552 = vmatpush.msra.mxu0 %v42
    %1553 = vmatmul.f32.gmra.mxu0 %v1529
    %v1554 = vpop.f32.mrf.mxu0
    %v1555 = vadd.f32 0.0, %v1554
    %1556 = vdwg.mxu0
    %1557 = vmatpush.msra.mxu0 %v73
    %1558 = vmatpush.msra.mxu0 %v72
    %1559 = vmatpush.msra.mxu0 %v71
    %1560 = vmatpush.msra.mxu0 %v70
    %1561 = vmatpush.msra.mxu0 %v69
    %1562 = vmatpush.msra.mxu0 %v68
    %1563 = vmatpush.msra.mxu0 %v67
    %1564 = vmatpush.msra.mxu0 %v66
    %1565 = vmatpush.msra.mxu0 %v65
    %1566 = vmatpush.msra.mxu0 %v64
    %1567 = vmatpush.msra.mxu0 %v63
    %1568 = vmatpush.msra.mxu0 %v62
    %1569 = vmatpush.msra.mxu0 %v61
    %1570 = vmatpush.msra.mxu0 %v60
    %1571 = vmatpush.msra.mxu0 %v59
    %1572 = vmatpush.msra.mxu0 %v58
    %1573 = vmatmul.f32.gmra.mxu0 %v1530
    %v1574 = vpop.f32.mrf.mxu0
    %v1575 = vadd.f32 %v1555, %v1574
    %1576 = vdwg.mxu0
    %1577 = vmatpush.msra.mxu0 %v89
    %1578 = vmatpush.msra.mxu0 %v88
    %1579 = vmatpush.msra.mxu0 %v87
    %1580 = vmatpush.msra.mxu0 %v86
    %1581 = vmatpush.msra.mxu0 %v85
    %1582 = vmatpush.msra.mxu0 %v84
    %1583 = vmatpush.msra.mxu0 %v83
    %1584 = vmatpush.msra.mxu0 %v82
    %1585 = vmatpush.msra.mxu0 %v81
    %1586 = vmatpush.msra.mxu0 %v80
    %1587 = vmatpush.msra.mxu0 %v79
    %1588 = vmatpush.msra.mxu0 %v78
    %1589 = vmatpush.msra.mxu0 %v77
    %1590 = vmatpush.msra.mxu0 %v76
    %1591 = vmatpush.msra.mxu0 %v75
    %1592 = vmatpush.msra.mxu0 %v74
    %1593 = vmatmul.f32.gmra.mxu0 %v1531
    %v1594 = vpop.f32.mrf.mxu0
    %v1595 = vadd.f32 %v1575, %v1594
    %1596 = vdwg.mxu0
    %1597 = vmatpush.msra.mxu0 %v105
    %1598 = vmatpush.msra.mxu0 %v104
    %1599 = vmatpush.msra.mxu0 %v103
    %1600 = vmatpush.msra.mxu0 %v102
    %1601 = vmatpush.msra.mxu0 %v101
    %1602 = vmatpush.msra.mxu0 %v100
    %1603 = vmatpush.msra.mxu0 %v99
    %1604 = vmatpush.msra.mxu0 %v98
    %1605 = vmatpush.msra.mxu0 %v97
    %1606 = vmatpush.msra.mxu0 %v96
    %1607 = vmatpush.msra.mxu0 %v95
    %1608 = vmatpush.msra.mxu0 %v94
    %1609 = vmatpush.msra.mxu0 %v93
    %1610 = vmatpush.msra.mxu0 %v92
    %1611 = vmatpush.msra.mxu0 %v91
    %1612 = vmatpush.msra.mxu0 %v90
    %1613 = vmatmul.f32.gmra.mxu0 %v1532
    %v1614 = vpop.f32.mrf.mxu0
    %v1615 = vadd.f32 %v1595, %v1614
    %1616 = vdwg.mxu0
    %s1617 = scalar_lea.vmem %s3, 16
    %v1618 = vld [vmem:[%s1617] sm:$0xff]
    %1620 = vst [vmem:[#allocation1] ss:$4 sm:$0xff] %v1618
    %v1621 = vld.sshfl [vmem:[#allocation1] sm:$0xff pattern:$0x73625140]
    %v1622 = vld.sshfl [vmem:[#allocation1 + $0x8] sm:$0xff pattern:$0x73625140]
    %v1623 = vld.sshfl [vmem:[#allocation1 + $0x10] sm:$0xff pattern:$0x73625140]
    %v1624 = vld.sshfl [vmem:[#allocation1 + $0x18] sm:$0xff pattern:$0x73625140]
    %1629 = vmatpush.msra.mxu0 %v57
    %1630 = vmatpush.msra.mxu0 %v56
    %1631 = vmatpush.msra.mxu0 %v55
    %1632 = vmatpush.msra.mxu0 %v54
    %1633 = vmatpush.msra.mxu0 %v53
    %1634 = vmatpush.msra.mxu0 %v52
    %1635 = vmatpush.msra.mxu0 %v51
    %1636 = vmatpush.msra.mxu0 %v50
    %1637 = vmatpush.msra.mxu0 %v49
    %1638 = vmatpush.msra.mxu0 %v48
    %1639 = vmatpush.msra.mxu0 %v47
    %1640 = vmatpush.msra.mxu0 %v46
    %1641 = vmatpush.msra.mxu0 %v45
    %1642 = vmatpush.msra.mxu0 %v44
    %1643 = vmatpush.msra.mxu0 %v43
    %1644 = vmatpush.msra.mxu0 %v42
    %1645 = vmatmul.f32.gmra.mxu0 %v1621
    %v1646 = vpop.f32.mrf.mxu0
    %v1647 = vadd.f32 0.0, %v1646
    %1648 = vdwg.mxu0
    %1649 = vmatpush.msra.mxu0 %v73
    %1650 = vmatpush.msra.mxu0 %v72
    %1651 = vmatpush.msra.mxu0 %v71
    %1652 = vmatpush.msra.mxu0 %v70
    %1653 = vmatpush.msra.mxu0 %v69
    %1654 = vmatpush.msra.mxu0 %v68
    %1655 = vmatpush.msra.mxu0 %v67
    %1656 = vmatpush.msra.mxu0 %v66
    %1657 = vmatpush.msra.mxu0 %v65
    %1658 = vmatpush.msra.mxu0 %v64
    %1659 = vmatpush.msra.mxu0 %v63
    %1660 = vmatpush.msra.mxu0 %v62
    %1661 = vmatpush.msra.mxu0 %v61
    %1662 = vmatpush.msra.mxu0 %v60
    %1663 = vmatpush.msra.mxu0 %v59
    %1664 = vmatpush.msra.mxu0 %v58
    %1665 = vmatmul.f32.gmra.mxu0 %v1622
    %v1666 = vpop.f32.mrf.mxu0
    %v1667 = vadd.f32 %v1647, %v1666
    %1668 = vdwg.mxu0
    %1669 = vmatpush.msra.mxu0 %v89
    %1670 = vmatpush.msra.mxu0 %v88
    %1671 = vmatpush.msra.mxu0 %v87
    %1672 = vmatpush.msra.mxu0 %v86
    %1673 = vmatpush.msra.mxu0 %v85
    %1674 = vmatpush.msra.mxu0 %v84
    %1675 = vmatpush.msra.mxu0 %v83
    %1676 = vmatpush.msra.mxu0 %v82
    %1677 = vmatpush.msra.mxu0 %v81
    %1678 = vmatpush.msra.mxu0 %v80
    %1679 = vmatpush.msra.mxu0 %v79
    %1680 = vmatpush.msra.mxu0 %v78
    %1681 = vmatpush.msra.mxu0 %v77
    %1682 = vmatpush.msra.mxu0 %v76
    %1683 = vmatpush.msra.mxu0 %v75
    %1684 = vmatpush.msra.mxu0 %v74
    %1685 = vmatmul.f32.gmra.mxu0 %v1623
    %v1686 = vpop.f32.mrf.mxu0
    %v1687 = vadd.f32 %v1667, %v1686
    %1688 = vdwg.mxu0
    %1689 = vmatpush.msra.mxu0 %v105
    %1690 = vmatpush.msra.mxu0 %v104
    %1691 = vmatpush.msra.mxu0 %v103
    %1692 = vmatpush.msra.mxu0 %v102
    %1693 = vmatpush.msra.mxu0 %v101
    %1694 = vmatpush.msra.mxu0 %v100
    %1695 = vmatpush.msra.mxu0 %v99
    %1696 = vmatpush.msra.mxu0 %v98
    %1697 = vmatpush.msra.mxu0 %v97
    %1698 = vmatpush.msra.mxu0 %v96
    %1699 = vmatpush.msra.mxu0 %v95
    %1700 = vmatpush.msra.mxu0 %v94
    %1701 = vmatpush.msra.mxu0 %v93
    %1702 = vmatpush.msra.mxu0 %v92
    %1703 = vmatpush.msra.mxu0 %v91
    %1704 = vmatpush.msra.mxu0 %v90
    %1705 = vmatmul.f32.gmra.mxu0 %v1624
    %v1706 = vpop.f32.mrf.mxu0
    %v1707 = vadd.f32 %v1687, %v1706
    %1708 = vdwg.mxu0
    %v1709 = vmax.f32 %v1615, %v1707
    %v1710 = vmax.f32 %v1524, %v1709
    %v1711 = vadd.f32 %v1710, %v493
    %s1712 = scalar_lea.vmem %s6, 1024
    %v1713 = vld [vmem:[%s1712] sm:$0xff]
    %v1714 = vld [vmem:[%s1712 + $0x8] sm:$0xff]
    %v1715 = vld [vmem:[%s1712 + $0x10] sm:$0xff]
    %v1716 = vld [vmem:[%s1712 + $0x18] sm:$0xff]
    %v1717 = vld [vmem:[%s1712 + $0x20] sm:$0xff]
    %v1718 = vld [vmem:[%s1712 + $0x28] sm:$0xff]
    %v1719 = vld [vmem:[%s1712 + $0x30] sm:$0xff]
    %v1720 = vld [vmem:[%s1712 + $0x38] sm:$0xff]
    %v1721 = vld [vmem:[%s1712 + $0x40] sm:$0xff]
    %v1722 = vld [vmem:[%s1712 + $0x48] sm:$0xff]
    %v1723 = vld [vmem:[%s1712 + $0x50] sm:$0xff]
    %v1724 = vld [vmem:[%s1712 + $0x58] sm:$0xff]
    %v1725 = vld [vmem:[%s1712 + $0x60] sm:$0xff]
    %v1726 = vld [vmem:[%s1712 + $0x68] sm:$0xff]
    %v1727 = vld [vmem:[%s1712 + $0x70] sm:$0xff]
    %v1728 = vld [vmem:[%s1712 + $0x78] sm:$0xff]
    %v1729 = vld [vmem:[%s1712 + $0x80] sm:$0xff]
    %v1730 = vld [vmem:[%s1712 + $0x88] sm:$0xff]
    %v1731 = vld [vmem:[%s1712 + $0x90] sm:$0xff]
    %v1732 = vld [vmem:[%s1712 + $0x98] sm:$0xff]
    %v1733 = vld [vmem:[%s1712 + $0xa0] sm:$0xff]
    %v1734 = vld [vmem:[%s1712 + $0xa8] sm:$0xff]
    %v1735 = vld [vmem:[%s1712 + $0xb0] sm:$0xff]
    %v1736 = vld [vmem:[%s1712 + $0xb8] sm:$0xff]
    %v1737 = vld [vmem:[%s1712 + $0xc0] sm:$0xff]
    %v1738 = vld [vmem:[%s1712 + $0xc8] sm:$0xff]
    %v1739 = vld [vmem:[%s1712 + $0xd0] sm:$0xff]
    %v1740 = vld [vmem:[%s1712 + $0xd8] sm:$0xff]
    %v1741 = vld [vmem:[%s1712 + $0xe0] sm:$0xff]
    %v1742 = vld [vmem:[%s1712 + $0xe8] sm:$0xff]
    %v1743 = vld [vmem:[%s1712 + $0xf0] sm:$0xff]
    %v1744 = vld [vmem:[%s1712 + $0xf8] sm:$0xff]
    %v1745 = vld [vmem:[%s1712 + $0x100] sm:$0xff]
    %v1746 = vld [vmem:[%s1712 + $0x108] sm:$0xff]
    %v1747 = vld [vmem:[%s1712 + $0x110] sm:$0xff]
    %v1748 = vld [vmem:[%s1712 + $0x118] sm:$0xff]
    %v1749 = vld [vmem:[%s1712 + $0x120] sm:$0xff]
    %v1750 = vld [vmem:[%s1712 + $0x128] sm:$0xff]
    %v1751 = vld [vmem:[%s1712 + $0x130] sm:$0xff]
    %v1752 = vld [vmem:[%s1712 + $0x138] sm:$0xff]
    %v1753 = vld [vmem:[%s1712 + $0x140] sm:$0xff]
    %v1754 = vld [vmem:[%s1712 + $0x148] sm:$0xff]
    %v1755 = vld [vmem:[%s1712 + $0x150] sm:$0xff]
    %v1756 = vld [vmem:[%s1712 + $0x158] sm:$0xff]
    %v1757 = vld [vmem:[%s1712 + $0x160] sm:$0xff]
    %v1758 = vld [vmem:[%s1712 + $0x168] sm:$0xff]
    %v1759 = vld [vmem:[%s1712 + $0x170] sm:$0xff]
    %v1760 = vld [vmem:[%s1712 + $0x178] sm:$0xff]
    %v1761 = vld [vmem:[%s1712 + $0x180] sm:$0xff]
    %v1762 = vld [vmem:[%s1712 + $0x188] sm:$0xff]
    %v1763 = vld [vmem:[%s1712 + $0x190] sm:$0xff]
    %v1764 = vld [vmem:[%s1712 + $0x198] sm:$0xff]
    %v1765 = vld [vmem:[%s1712 + $0x1a0] sm:$0xff]
    %v1766 = vld [vmem:[%s1712 + $0x1a8] sm:$0xff]
    %v1767 = vld [vmem:[%s1712 + $0x1b0] sm:$0xff]
    %v1768 = vld [vmem:[%s1712 + $0x1b8] sm:$0xff]
    %v1769 = vld [vmem:[%s1712 + $0x1c0] sm:$0xff]
    %v1770 = vld [vmem:[%s1712 + $0x1c8] sm:$0xff]
    %v1771 = vld [vmem:[%s1712 + $0x1d0] sm:$0xff]
    %v1772 = vld [vmem:[%s1712 + $0x1d8] sm:$0xff]
    %v1773 = vld [vmem:[%s1712 + $0x1e0] sm:$0xff]
    %v1774 = vld [vmem:[%s1712 + $0x1e8] sm:$0xff]
    %v1775 = vld [vmem:[%s1712 + $0x1f0] sm:$0xff]
    %v1776 = vld [vmem:[%s1712 + $0x1f8] sm:$0xff]
    %v1778 = vsel %vm560, %v1711, 0
    %1780 = vmatpush.msra.mxu0 0.0
    %1781 = vmatpush.msra.mxu0 0.0
    %1782 = vmatpush.msra.mxu0 0.0
    %1783 = vmatpush.msra.mxu0 0.0
    %1784 = vmatpush.msra.mxu0 0.0
    %1785 = vmatpush.msra.mxu0 0.0
    %1786 = vmatpush.msra.mxu0 0.0
    %1787 = vmatpush.msra.mxu0 0.0
    %1788 = vmatpush.msra.mxu0 %v1769
    %1789 = vmatpush.msra.mxu0 %v1761
    %1790 = vmatpush.msra.mxu0 %v1753
    %1791 = vmatpush.msra.mxu0 %v1745
    %1792 = vmatpush.msra.mxu0 %v1737
    %1793 = vmatpush.msra.mxu0 %v1729
    %1794 = vmatpush.msra.mxu0 %v1721
    %1795 = vmatpush.msra.mxu0 %v1713
    %1796 = vmatmul.f32.gmra.mxu0 %v1778
    %v1797 = vpop.f32.mrf.mxu0
    %v1798 = vadd.f32 0.0, %v1797
    %1799 = vdwg.mxu0
    %1800 = vmatpush.msra.mxu0 0.0
    %1801 = vmatpush.msra.mxu0 0.0
    %1802 = vmatpush.msra.mxu0 0.0
    %1803 = vmatpush.msra.mxu0 0.0
    %1804 = vmatpush.msra.mxu0 0.0
    %1805 = vmatpush.msra.mxu0 0.0
    %1806 = vmatpush.msra.mxu0 0.0
    %1807 = vmatpush.msra.mxu0 0.0
    %1808 = vmatpush.msra.mxu0 %v1770
    %1809 = vmatpush.msra.mxu0 %v1762
    %1810 = vmatpush.msra.mxu0 %v1754
    %1811 = vmatpush.msra.mxu0 %v1746
    %1812 = vmatpush.msra.mxu0 %v1738
    %1813 = vmatpush.msra.mxu0 %v1730
    %1814 = vmatpush.msra.mxu0 %v1722
    %1815 = vmatpush.msra.mxu0 %v1714
    %1816 = vmatmul.f32.gmra.mxu0 %v1778
    %v1817 = vpop.f32.mrf.mxu0
    %v1818 = vadd.f32 0.0, %v1817
    %1819 = vdwg.mxu0
    %1820 = vmatpush.msra.mxu0 0.0
    %1821 = vmatpush.msra.mxu0 0.0
    %1822 = vmatpush.msra.mxu0 0.0
    %1823 = vmatpush.msra.mxu0 0.0
    %1824 = vmatpush.msra.mxu0 0.0
    %1825 = vmatpush.msra.mxu0 0.0
    %1826 = vmatpush.msra.mxu0 0.0
    %1827 = vmatpush.msra.mxu0 0.0
    %1828 = vmatpush.msra.mxu0 %v1771
    %1829 = vmatpush.msra.mxu0 %v1763
    %1830 = vmatpush.msra.mxu0 %v1755
    %1831 = vmatpush.msra.mxu0 %v1747
    %1832 = vmatpush.msra.mxu0 %v1739
    %1833 = vmatpush.msra.mxu0 %v1731
    %1834 = vmatpush.msra.mxu0 %v1723
    %1835 = vmatpush.msra.mxu0 %v1715
    %1836 = vmatmul.f32.gmra.mxu0 %v1778
    %v1837 = vpop.f32.mrf.mxu0
    %v1838 = vadd.f32 0.0, %v1837
    %1839 = vdwg.mxu0
    %1840 = vmatpush.msra.mxu0 0.0
    %1841 = vmatpush.msra.mxu0 0.0
    %1842 = vmatpush.msra.mxu0 0.0
    %1843 = vmatpush.msra.mxu0 0.0
    %1844 = vmatpush.msra.mxu0 0.0
    %1845 = vmatpush.msra.mxu0 0.0
    %1846 = vmatpush.msra.mxu0 0.0
    %1847 = vmatpush.msra.mxu0 0.0
    %1848 = vmatpush.msra.mxu0 %v1772
    %1849 = vmatpush.msra.mxu0 %v1764
    %1850 = vmatpush.msra.mxu0 %v1756
    %1851 = vmatpush.msra.mxu0 %v1748
    %1852 = vmatpush.msra.mxu0 %v1740
    %1853 = vmatpush.msra.mxu0 %v1732
    %1854 = vmatpush.msra.mxu0 %v1724
    %1855 = vmatpush.msra.mxu0 %v1716
    %1856 = vmatmul.f32.gmra.mxu0 %v1778
    %v1857 = vpop.f32.mrf.mxu0
    %v1858 = vadd.f32 0.0, %v1857
    %1859 = vdwg.mxu0
    %1860 = vmatpush.msra.mxu0 0.0
    %1861 = vmatpush.msra.mxu0 0.0
    %1862 = vmatpush.msra.mxu0 0.0
    %1863 = vmatpush.msra.mxu0 0.0
    %1864 = vmatpush.msra.mxu0 0.0
    %1865 = vmatpush.msra.mxu0 0.0
    %1866 = vmatpush.msra.mxu0 0.0
    %1867 = vmatpush.msra.mxu0 0.0
    %1868 = vmatpush.msra.mxu0 %v1773
    %1869 = vmatpush.msra.mxu0 %v1765
    %1870 = vmatpush.msra.mxu0 %v1757
    %1871 = vmatpush.msra.mxu0 %v1749
    %1872 = vmatpush.msra.mxu0 %v1741
    %1873 = vmatpush.msra.mxu0 %v1733
    %1874 = vmatpush.msra.mxu0 %v1725
    %1875 = vmatpush.msra.mxu0 %v1717
    %1876 = vmatmul.f32.gmra.mxu0 %v1778
    %v1877 = vpop.f32.mrf.mxu0
    %v1878 = vadd.f32 0.0, %v1877
    %1879 = vdwg.mxu0
    %1880 = vmatpush.msra.mxu0 0.0
    %1881 = vmatpush.msra.mxu0 0.0
    %1882 = vmatpush.msra.mxu0 0.0
    %1883 = vmatpush.msra.mxu0 0.0
    %1884 = vmatpush.msra.mxu0 0.0
    %1885 = vmatpush.msra.mxu0 0.0
    %1886 = vmatpush.msra.mxu0 0.0
    %1887 = vmatpush.msra.mxu0 0.0
    %1888 = vmatpush.msra.mxu0 %v1774
    %1889 = vmatpush.msra.mxu0 %v1766
    %1890 = vmatpush.msra.mxu0 %v1758
    %1891 = vmatpush.msra.mxu0 %v1750
    %1892 = vmatpush.msra.mxu0 %v1742
    %1893 = vmatpush.msra.mxu0 %v1734
    %1894 = vmatpush.msra.mxu0 %v1726
    %1895 = vmatpush.msra.mxu0 %v1718
    %1896 = vmatmul.f32.gmra.mxu0 %v1778
    %v1897 = vpop.f32.mrf.mxu0
    %v1898 = vadd.f32 0.0, %v1897
    %1899 = vdwg.mxu0
    %1900 = vmatpush.msra.mxu0 0.0
    %1901 = vmatpush.msra.mxu0 0.0
    %1902 = vmatpush.msra.mxu0 0.0
    %1903 = vmatpush.msra.mxu0 0.0
    %1904 = vmatpush.msra.mxu0 0.0
    %1905 = vmatpush.msra.mxu0 0.0
    %1906 = vmatpush.msra.mxu0 0.0
    %1907 = vmatpush.msra.mxu0 0.0
    %1908 = vmatpush.msra.mxu0 %v1775
    %1909 = vmatpush.msra.mxu0 %v1767
    %1910 = vmatpush.msra.mxu0 %v1759
    %1911 = vmatpush.msra.mxu0 %v1751
    %1912 = vmatpush.msra.mxu0 %v1743
    %1913 = vmatpush.msra.mxu0 %v1735
    %1914 = vmatpush.msra.mxu0 %v1727
    %1915 = vmatpush.msra.mxu0 %v1719
    %1916 = vmatmul.f32.gmra.mxu0 %v1778
    %v1917 = vpop.f32.mrf.mxu0
    %v1918 = vadd.f32 0.0, %v1917
    %1919 = vdwg.mxu0
    %1920 = vmatpush.msra.mxu0 0.0
    %1921 = vmatpush.msra.mxu0 0.0
    %1922 = vmatpush.msra.mxu0 0.0
    %1923 = vmatpush.msra.mxu0 0.0
    %1924 = vmatpush.msra.mxu0 0.0
    %1925 = vmatpush.msra.mxu0 0.0
    %1926 = vmatpush.msra.mxu0 0.0
    %1927 = vmatpush.msra.mxu0 0.0
    %1928 = vmatpush.msra.mxu0 %v1776
    %1929 = vmatpush.msra.mxu0 %v1768
    %1930 = vmatpush.msra.mxu0 %v1760
    %1931 = vmatpush.msra.mxu0 %v1752
    %1932 = vmatpush.msra.mxu0 %v1744
    %1933 = vmatpush.msra.mxu0 %v1736
    %1934 = vmatpush.msra.mxu0 %v1728
    %1935 = vmatpush.msra.mxu0 %v1720
    %1936 = vmatmul.f32.gmra.mxu0 %v1778
    %v1937 = vpop.f32.mrf.mxu0
    %v1938 = vadd.f32 0.0, %v1937
    %1939 = vdwg.mxu0
    %v1940 = vadd.f32 %v1332, %v1798
    %v1941 = vadd.f32 %v1333, %v1818
    %v1942 = vadd.f32 %v1334, %v1838
    %v1943 = vadd.f32 %v1335, %v1858
    %v1944 = vadd.f32 %v1336, %v1878
    %v1945 = vadd.f32 %v1337, %v1898
    %v1946 = vadd.f32 %v1338, %v1918
    %v1947 = vadd.f32 %v1339, %v1938
    %s1948 = scalar_lea.vmem %s0, 24
    %v1949 = vld [vmem:[%s1948] sm:$0xff]
    %1951 = vst [vmem:[#allocation1] ss:$4 sm:$0xff] %v1949
    %v1952 = vld.sshfl [vmem:[#allocation1] sm:$0xff pattern:$0x73625140]
    %v1953 = vld.sshfl [vmem:[#allocation1 + $0x8] sm:$0xff pattern:$0x73625140]
    %v1954 = vld.sshfl [vmem:[#allocation1 + $0x10] sm:$0xff pattern:$0x73625140]
    %v1955 = vld.sshfl [vmem:[#allocation1 + $0x18] sm:$0xff pattern:$0x73625140]
    %1960 = vmatpush.msra.mxu0 %v57
    %1961 = vmatpush.msra.mxu0 %v56
    %1962 = vmatpush.msra.mxu0 %v55
    %1963 = vmatpush.msra.mxu0 %v54
    %1964 = vmatpush.msra.mxu0 %v53
    %1965 = vmatpush.msra.mxu0 %v52
    %1966 = vmatpush.msra.mxu0 %v51
    %1967 = vmatpush.msra.mxu0 %v50
    %1968 = vmatpush.msra.mxu0 %v49
    %1969 = vmatpush.msra.mxu0 %v48
    %1970 = vmatpush.msra.mxu0 %v47
    %1971 = vmatpush.msra.mxu0 %v46
    %1972 = vmatpush.msra.mxu0 %v45
    %1973 = vmatpush.msra.mxu0 %v44
    %1974 = vmatpush.msra.mxu0 %v43
    %1975 = vmatpush.msra.mxu0 %v42
    %1976 = vmatmul.f32.gmra.mxu0 %v1952
    %v1977 = vpop.f32.mrf.mxu0
    %v1978 = vadd.f32 0.0, %v1977
    %1979 = vdwg.mxu0
    %1980 = vmatpush.msra.mxu0 %v73
    %1981 = vmatpush.msra.mxu0 %v72
    %1982 = vmatpush.msra.mxu0 %v71
    %1983 = vmatpush.msra.mxu0 %v70
    %1984 = vmatpush.msra.mxu0 %v69
    %1985 = vmatpush.msra.mxu0 %v68
    %1986 = vmatpush.msra.mxu0 %v67
    %1987 = vmatpush.msra.mxu0 %v66
    %1988 = vmatpush.msra.mxu0 %v65
    %1989 = vmatpush.msra.mxu0 %v64
    %1990 = vmatpush.msra.mxu0 %v63
    %1991 = vmatpush.msra.mxu0 %v62
    %1992 = vmatpush.msra.mxu0 %v61
    %1993 = vmatpush.msra.mxu0 %v60
    %1994 = vmatpush.msra.mxu0 %v59
    %1995 = vmatpush.msra.mxu0 %v58
    %1996 = vmatmul.f32.gmra.mxu0 %v1953
    %v1997 = vpop.f32.mrf.mxu0
    %v1998 = vadd.f32 %v1978, %v1997
    %1999 = vdwg.mxu0
    %2000 = vmatpush.msra.mxu0 %v89
    %2001 = vmatpush.msra.mxu0 %v88
    %2002 = vmatpush.msra.mxu0 %v87
    %2003 = vmatpush.msra.mxu0 %v86
    %2004 = vmatpush.msra.mxu0 %v85
    %2005 = vmatpush.msra.mxu0 %v84
    %2006 = vmatpush.msra.mxu0 %v83
    %2007 = vmatpush.msra.mxu0 %v82
    %2008 = vmatpush.msra.mxu0 %v81
    %2009 = vmatpush.msra.mxu0 %v80
    %2010 = vmatpush.msra.mxu0 %v79
    %2011 = vmatpush.msra.mxu0 %v78
    %2012 = vmatpush.msra.mxu0 %v77
    %2013 = vmatpush.msra.mxu0 %v76
    %2014 = vmatpush.msra.mxu0 %v75
    %2015 = vmatpush.msra.mxu0 %v74
    %2016 = vmatmul.f32.gmra.mxu0 %v1954
    %v2017 = vpop.f32.mrf.mxu0
    %v2018 = vadd.f32 %v1998, %v2017
    %2019 = vdwg.mxu0
    %2020 = vmatpush.msra.mxu0 %v105
    %2021 = vmatpush.msra.mxu0 %v104
    %2022 = vmatpush.msra.mxu0 %v103
    %2023 = vmatpush.msra.mxu0 %v102
    %2024 = vmatpush.msra.mxu0 %v101
    %2025 = vmatpush.msra.mxu0 %v100
    %2026 = vmatpush.msra.mxu0 %v99
    %2027 = vmatpush.msra.mxu0 %v98
    %2028 = vmatpush.msra.mxu0 %v97
    %2029 = vmatpush.msra.mxu0 %v96
    %2030 = vmatpush.msra.mxu0 %v95
    %2031 = vmatpush.msra.mxu0 %v94
    %2032 = vmatpush.msra.mxu0 %v93
    %2033 = vmatpush.msra.mxu0 %v92
    %2034 = vmatpush.msra.mxu0 %v91
    %2035 = vmatpush.msra.mxu0 %v90
    %2036 = vmatmul.f32.gmra.mxu0 %v1955
    %v2037 = vpop.f32.mrf.mxu0
    %v2038 = vadd.f32 %v2018, %v2037
    %2039 = vdwg.mxu0
    %s2040 = scalar_lea.vmem %s1, 24
    %v2041 = vld [vmem:[%s2040] sm:$0xff]
    %2043 = vst [vmem:[#allocation1] ss:$4 sm:$0xff] %v2041
    %v2044 = vld.sshfl [vmem:[#allocation1] sm:$0xff pattern:$0x73625140]
    %v2045 = vld.sshfl [vmem:[#allocation1 + $0x8] sm:$0xff pattern:$0x73625140]
    %v2046 = vld.sshfl [vmem:[#allocation1 + $0x10] sm:$0xff pattern:$0x73625140]
    %v2047 = vld.sshfl [vmem:[#allocation1 + $0x18] sm:$0xff pattern:$0x73625140]
    %2052 = vmatpush.msra.mxu0 %v57
    %2053 = vmatpush.msra.mxu0 %v56
    %2054 = vmatpush.msra.mxu0 %v55
    %2055 = vmatpush.msra.mxu0 %v54
    %2056 = vmatpush.msra.mxu0 %v53
    %2057 = vmatpush.msra.mxu0 %v52
    %2058 = vmatpush.msra.mxu0 %v51
    %2059 = vmatpush.msra.mxu0 %v50
    %2060 = vmatpush.msra.mxu0 %v49
    %2061 = vmatpush.msra.mxu0 %v48
    %2062 = vmatpush.msra.mxu0 %v47
    %2063 = vmatpush.msra.mxu0 %v46
    %2064 = vmatpush.msra.mxu0 %v45
    %2065 = vmatpush.msra.mxu0 %v44
    %2066 = vmatpush.msra.mxu0 %v43
    %2067 = vmatpush.msra.mxu0 %v42
    %2068 = vmatmul.f32.gmra.mxu0 %v2044
    %v2069 = vpop.f32.mrf.mxu0
    %v2070 = vadd.f32 0.0, %v2069
    %2071 = vdwg.mxu0
    %2072 = vmatpush.msra.mxu0 %v73
    %2073 = vmatpush.msra.mxu0 %v72
    %2074 = vmatpush.msra.mxu0 %v71
    %2075 = vmatpush.msra.mxu0 %v70
    %2076 = vmatpush.msra.mxu0 %v69
    %2077 = vmatpush.msra.mxu0 %v68
    %2078 = vmatpush.msra.mxu0 %v67
    %2079 = vmatpush.msra.mxu0 %v66
    %2080 = vmatpush.msra.mxu0 %v65
    %2081 = vmatpush.msra.mxu0 %v64
    %2082 = vmatpush.msra.mxu0 %v63
    %2083 = vmatpush.msra.mxu0 %v62
    %2084 = vmatpush.msra.mxu0 %v61
    %2085 = vmatpush.msra.mxu0 %v60
    %2086 = vmatpush.msra.mxu0 %v59
    %2087 = vmatpush.msra.mxu0 %v58
    %2088 = vmatmul.f32.gmra.mxu0 %v2045
    %v2089 = vpop.f32.mrf.mxu0
    %v2090 = vadd.f32 %v2070, %v2089
    %2091 = vdwg.mxu0
    %2092 = vmatpush.msra.mxu0 %v89
    %2093 = vmatpush.msra.mxu0 %v88
    %2094 = vmatpush.msra.mxu0 %v87
    %2095 = vmatpush.msra.mxu0 %v86
    %2096 = vmatpush.msra.mxu0 %v85
    %2097 = vmatpush.msra.mxu0 %v84
    %2098 = vmatpush.msra.mxu0 %v83
    %2099 = vmatpush.msra.mxu0 %v82
    %2100 = vmatpush.msra.mxu0 %v81
    %2101 = vmatpush.msra.mxu0 %v80
    %2102 = vmatpush.msra.mxu0 %v79
    %2103 = vmatpush.msra.mxu0 %v78
    %2104 = vmatpush.msra.mxu0 %v77
    %2105 = vmatpush.msra.mxu0 %v76
    %2106 = vmatpush.msra.mxu0 %v75
    %2107 = vmatpush.msra.mxu0 %v74
    %2108 = vmatmul.f32.gmra.mxu0 %v2046
    %v2109 = vpop.f32.mrf.mxu0
    %v2110 = vadd.f32 %v2090, %v2109
    %2111 = vdwg.mxu0
    %2112 = vmatpush.msra.mxu0 %v105
    %2113 = vmatpush.msra.mxu0 %v104
    %2114 = vmatpush.msra.mxu0 %v103
    %2115 = vmatpush.msra.mxu0 %v102
    %2116 = vmatpush.msra.mxu0 %v101
    %2117 = vmatpush.msra.mxu0 %v100
    %2118 = vmatpush.msra.mxu0 %v99
    %2119 = vmatpush.msra.mxu0 %v98
    %2120 = vmatpush.msra.mxu0 %v97
    %2121 = vmatpush.msra.mxu0 %v96
    %2122 = vmatpush.msra.mxu0 %v95
    %2123 = vmatpush.msra.mxu0 %v94
    %2124 = vmatpush.msra.mxu0 %v93
    %2125 = vmatpush.msra.mxu0 %v92
    %2126 = vmatpush.msra.mxu0 %v91
    %2127 = vmatpush.msra.mxu0 %v90
    %2128 = vmatmul.f32.gmra.mxu0 %v2047
    %v2129 = vpop.f32.mrf.mxu0
    %v2130 = vadd.f32 %v2110, %v2129
    %2131 = vdwg.mxu0
    %v2132 = vmax.f32 %v2038, %v2130
    %s2133 = scalar_lea.vmem %s2, 24
    %v2134 = vld [vmem:[%s2133] sm:$0xff]
    %2136 = vst [vmem:[#allocation1] ss:$4 sm:$0xff] %v2134
    %v2137 = vld.sshfl [vmem:[#allocation1] sm:$0xff pattern:$0x73625140]
    %v2138 = vld.sshfl [vmem:[#allocation1 + $0x8] sm:$0xff pattern:$0x73625140]
    %v2139 = vld.sshfl [vmem:[#allocation1 + $0x10] sm:$0xff pattern:$0x73625140]
    %v2140 = vld.sshfl [vmem:[#allocation1 + $0x18] sm:$0xff pattern:$0x73625140]
    %2145 = vmatpush.msra.mxu0 %v57
    %2146 = vmatpush.msra.mxu0 %v56
    %2147 = vmatpush.msra.mxu0 %v55
    %2148 = vmatpush.msra.mxu0 %v54
    %2149 = vmatpush.msra.mxu0 %v53
    %2150 = vmatpush.msra.mxu0 %v52
    %2151 = vmatpush.msra.mxu0 %v51
    %2152 = vmatpush.msra.mxu0 %v50
    %2153 = vmatpush.msra.mxu0 %v49
    %2154 = vmatpush.msra.mxu0 %v48
    %2155 = vmatpush.msra.mxu0 %v47
    %2156 = vmatpush.msra.mxu0 %v46
    %2157 = vmatpush.msra.mxu0 %v45
    %2158 = vmatpush.msra.mxu0 %v44
    %2159 = vmatpush.msra.mxu0 %v43
    %2160 = vmatpush.msra.mxu0 %v42
    %2161 = vmatmul.f32.gmra.mxu0 %v2137
    %v2162 = vpop.f32.mrf.mxu0
    %v2163 = vadd.f32 0.0, %v2162
    %2164 = vdwg.mxu0
    %2165 = vmatpush.msra.mxu0 %v73
    %2166 = vmatpush.msra.mxu0 %v72
    %2167 = vmatpush.msra.mxu0 %v71
    %2168 = vmatpush.msra.mxu0 %v70
    %2169 = vmatpush.msra.mxu0 %v69
    %2170 = vmatpush.msra.mxu0 %v68
    %2171 = vmatpush.msra.mxu0 %v67
    %2172 = vmatpush.msra.mxu0 %v66
    %2173 = vmatpush.msra.mxu0 %v65
    %2174 = vmatpush.msra.mxu0 %v64
    %2175 = vmatpush.msra.mxu0 %v63
    %2176 = vmatpush.msra.mxu0 %v62
    %2177 = vmatpush.msra.mxu0 %v61
    %2178 = vmatpush.msra.mxu0 %v60
    %2179 = vmatpush.msra.mxu0 %v59
    %2180 = vmatpush.msra.mxu0 %v58
    %2181 = vmatmul.f32.gmra.mxu0 %v2138
    %v2182 = vpop.f32.mrf.mxu0
    %v2183 = vadd.f32 %v2163, %v2182
    %2184 = vdwg.mxu0
    %2185 = vmatpush.msra.mxu0 %v89
    %2186 = vmatpush.msra.mxu0 %v88
    %2187 = vmatpush.msra.mxu0 %v87
    %2188 = vmatpush.msra.mxu0 %v86
    %2189 = vmatpush.msra.mxu0 %v85
    %2190 = vmatpush.msra.mxu0 %v84
    %2191 = vmatpush.msra.mxu0 %v83
    %2192 = vmatpush.msra.mxu0 %v82
    %2193 = vmatpush.msra.mxu0 %v81
    %2194 = vmatpush.msra.mxu0 %v80
    %2195 = vmatpush.msra.mxu0 %v79
    %2196 = vmatpush.msra.mxu0 %v78
    %2197 = vmatpush.msra.mxu0 %v77
    %2198 = vmatpush.msra.mxu0 %v76
    %2199 = vmatpush.msra.mxu0 %v75
    %2200 = vmatpush.msra.mxu0 %v74
    %2201 = vmatmul.f32.gmra.mxu0 %v2139
    %v2202 = vpop.f32.mrf.mxu0
    %v2203 = vadd.f32 %v2183, %v2202
    %2204 = vdwg.mxu0
    %2205 = vmatpush.msra.mxu0 %v105
    %2206 = vmatpush.msra.mxu0 %v104
    %2207 = vmatpush.msra.mxu0 %v103
    %2208 = vmatpush.msra.mxu0 %v102
    %2209 = vmatpush.msra.mxu0 %v101
    %2210 = vmatpush.msra.mxu0 %v100
    %2211 = vmatpush.msra.mxu0 %v99
    %2212 = vmatpush.msra.mxu0 %v98
    %2213 = vmatpush.msra.mxu0 %v97
    %2214 = vmatpush.msra.mxu0 %v96
    %2215 = vmatpush.msra.mxu0 %v95
    %2216 = vmatpush.msra.mxu0 %v94
    %2217 = vmatpush.msra.mxu0 %v93
    %2218 = vmatpush.msra.mxu0 %v92
    %2219 = vmatpush.msra.mxu0 %v91
    %2220 = vmatpush.msra.mxu0 %v90
    %2221 = vmatmul.f32.gmra.mxu0 %v2140
    %v2222 = vpop.f32.mrf.mxu0
    %v2223 = vadd.f32 %v2203, %v2222
    %2224 = vdwg.mxu0
    %s2225 = scalar_lea.vmem %s3, 24
    %v2226 = vld [vmem:[%s2225] sm:$0xff]
    %2228 = vst [vmem:[#allocation1] ss:$4 sm:$0xff] %v2226
    %v2229 = vld.sshfl [vmem:[#allocation1] sm:$0xff pattern:$0x73625140]
    %v2230 = vld.sshfl [vmem:[#allocation1 + $0x8] sm:$0xff pattern:$0x73625140]
    %v2231 = vld.sshfl [vmem:[#allocation1 + $0x10] sm:$0xff pattern:$0x73625140]
    %v2232 = vld.sshfl [vmem:[#allocation1 + $0x18] sm:$0xff pattern:$0x73625140]
    %2237 = vmatpush.msra.mxu0 %v57
    %2238 = vmatpush.msra.mxu0 %v56
    %2239 = vmatpush.msra.mxu0 %v55
    %2240 = vmatpush.msra.mxu0 %v54
    %2241 = vmatpush.msra.mxu0 %v53
    %2242 = vmatpush.msra.mxu0 %v52
    %2243 = vmatpush.msra.mxu0 %v51
    %2244 = vmatpush.msra.mxu0 %v50
    %2245 = vmatpush.msra.mxu0 %v49
    %2246 = vmatpush.msra.mxu0 %v48
    %2247 = vmatpush.msra.mxu0 %v47
    %2248 = vmatpush.msra.mxu0 %v46
    %2249 = vmatpush.msra.mxu0 %v45
    %2250 = vmatpush.msra.mxu0 %v44
    %2251 = vmatpush.msra.mxu0 %v43
    %2252 = vmatpush.msra.mxu0 %v42
    %2253 = vmatmul.f32.gmra.mxu0 %v2229
    %v2254 = vpop.f32.mrf.mxu0
    %v2255 = vadd.f32 0.0, %v2254
    %2256 = vdwg.mxu0
    %2257 = vmatpush.msra.mxu0 %v73
    %2258 = vmatpush.msra.mxu0 %v72
    %2259 = vmatpush.msra.mxu0 %v71
    %2260 = vmatpush.msra.mxu0 %v70
    %2261 = vmatpush.msra.mxu0 %v69
    %2262 = vmatpush.msra.mxu0 %v68
    %2263 = vmatpush.msra.mxu0 %v67
    %2264 = vmatpush.msra.mxu0 %v66
    %2265 = vmatpush.msra.mxu0 %v65
    %2266 = vmatpush.msra.mxu0 %v64
    %2267 = vmatpush.msra.mxu0 %v63
    %2268 = vmatpush.msra.mxu0 %v62
    %2269 = vmatpush.msra.mxu0 %v61
    %2270 = vmatpush.msra.mxu0 %v60
    %2271 = vmatpush.msra.mxu0 %v59
    %2272 = vmatpush.msra.mxu0 %v58
    %2273 = vmatmul.f32.gmra.mxu0 %v2230
    %v2274 = vpop.f32.mrf.mxu0
    %v2275 = vadd.f32 %v2255, %v2274
    %2276 = vdwg.mxu0
    %2277 = vmatpush.msra.mxu0 %v89
    %2278 = vmatpush.msra.mxu0 %v88
    %2279 = vmatpush.msra.mxu0 %v87
    %2280 = vmatpush.msra.mxu0 %v86
    %2281 = vmatpush.msra.mxu0 %v85
    %2282 = vmatpush.msra.mxu0 %v84
    %2283 = vmatpush.msra.mxu0 %v83
    %2284 = vmatpush.msra.mxu0 %v82
    %2285 = vmatpush.msra.mxu0 %v81
    %2286 = vmatpush.msra.mxu0 %v80
    %2287 = vmatpush.msra.mxu0 %v79
    %2288 = vmatpush.msra.mxu0 %v78
    %2289 = vmatpush.msra.mxu0 %v77
    %2290 = vmatpush.msra.mxu0 %v76
    %2291 = vmatpush.msra.mxu0 %v75
    %2292 = vmatpush.msra.mxu0 %v74
    %2293 = vmatmul.f32.gmra.mxu0 %v2231
    %v2294 = vpop.f32.mrf.mxu0
    %v2295 = vadd.f32 %v2275, %v2294
    %2296 = vdwg.mxu0
    %2297 = vmatpush.msra.mxu0 %v105
    %2298 = vmatpush.msra.mxu0 %v104
    %2299 = vmatpush.msra.mxu0 %v103
    %2300 = vmatpush.msra.mxu0 %v102
    %2301 = vmatpush.msra.mxu0 %v101
    %2302 = vmatpush.msra.mxu0 %v100
    %2303 = vmatpush.msra.mxu0 %v99
    %2304 = vmatpush.msra.mxu0 %v98
    %2305 = vmatpush.msra.mxu0 %v97
    %2306 = vmatpush.msra.mxu0 %v96
    %2307 = vmatpush.msra.mxu0 %v95
    %2308 = vmatpush.msra.mxu0 %v94
    %2309 = vmatpush.msra.mxu0 %v93
    %2310 = vmatpush.msra.mxu0 %v92
    %2311 = vmatpush.msra.mxu0 %v91
    %2312 = vmatpush.msra.mxu0 %v90
    %2313 = vmatmul.f32.gmra.mxu0 %v2232
    %v2314 = vpop.f32.mrf.mxu0
    %v2315 = vadd.f32 %v2295, %v2314
    %2316 = vdwg.mxu0
    %v2317 = vmax.f32 %v2223, %v2315
    %v2318 = vmax.f32 %v2132, %v2317
    %v2319 = vadd.f32 %v2318, %v493
    %s2320 = scalar_lea.vmem %s6, 1536
    %v2321 = vld [vmem:[%s2320] sm:$0xff]
    %v2322 = vld [vmem:[%s2320 + $0x8] sm:$0xff]
    %v2323 = vld [vmem:[%s2320 + $0x10] sm:$0xff]
    %v2324 = vld [vmem:[%s2320 + $0x18] sm:$0xff]
    %v2325 = vld [vmem:[%s2320 + $0x20] sm:$0xff]
    %v2326 = vld [vmem:[%s2320 + $0x28] sm:$0xff]
    %v2327 = vld [vmem:[%s2320 + $0x30] sm:$0xff]
    %v2328 = vld [vmem:[%s2320 + $0x38] sm:$0xff]
    %v2329 = vld [vmem:[%s2320 + $0x40] sm:$0xff]
    %v2330 = vld [vmem:[%s2320 + $0x48] sm:$0xff]
    %v2331 = vld [vmem:[%s2320 + $0x50] sm:$0xff]
    %v2332 = vld [vmem:[%s2320 + $0x58] sm:$0xff]
    %v2333 = vld [vmem:[%s2320 + $0x60] sm:$0xff]
    %v2334 = vld [vmem:[%s2320 + $0x68] sm:$0xff]
    %v2335 = vld [vmem:[%s2320 + $0x70] sm:$0xff]
    %v2336 = vld [vmem:[%s2320 + $0x78] sm:$0xff]
    %v2337 = vld [vmem:[%s2320 + $0x80] sm:$0xff]
    %v2338 = vld [vmem:[%s2320 + $0x88] sm:$0xff]
    %v2339 = vld [vmem:[%s2320 + $0x90] sm:$0xff]
    %v2340 = vld [vmem:[%s2320 + $0x98] sm:$0xff]
    %v2341 = vld [vmem:[%s2320 + $0xa0] sm:$0xff]
    %v2342 = vld [vmem:[%s2320 + $0xa8] sm:$0xff]
    %v2343 = vld [vmem:[%s2320 + $0xb0] sm:$0xff]
    %v2344 = vld [vmem:[%s2320 + $0xb8] sm:$0xff]
    %v2345 = vld [vmem:[%s2320 + $0xc0] sm:$0xff]
    %v2346 = vld [vmem:[%s2320 + $0xc8] sm:$0xff]
    %v2347 = vld [vmem:[%s2320 + $0xd0] sm:$0xff]
    %v2348 = vld [vmem:[%s2320 + $0xd8] sm:$0xff]
    %v2349 = vld [vmem:[%s2320 + $0xe0] sm:$0xff]
    %v2350 = vld [vmem:[%s2320 + $0xe8] sm:$0xff]
    %v2351 = vld [vmem:[%s2320 + $0xf0] sm:$0xff]
    %v2352 = vld [vmem:[%s2320 + $0xf8] sm:$0xff]
    %v2353 = vld [vmem:[%s2320 + $0x100] sm:$0xff]
    %v2354 = vld [vmem:[%s2320 + $0x108] sm:$0xff]
    %v2355 = vld [vmem:[%s2320 + $0x110] sm:$0xff]
    %v2356 = vld [vmem:[%s2320 + $0x118] sm:$0xff]
    %v2357 = vld [vmem:[%s2320 + $0x120] sm:$0xff]
    %v2358 = vld [vmem:[%s2320 + $0x128] sm:$0xff]
    %v2359 = vld [vmem:[%s2320 + $0x130] sm:$0xff]
    %v2360 = vld [vmem:[%s2320 + $0x138] sm:$0xff]
    %v2361 = vld [vmem:[%s2320 + $0x140] sm:$0xff]
    %v2362 = vld [vmem:[%s2320 + $0x148] sm:$0xff]
    %v2363 = vld [vmem:[%s2320 + $0x150] sm:$0xff]
    %v2364 = vld [vmem:[%s2320 + $0x158] sm:$0xff]
    %v2365 = vld [vmem:[%s2320 + $0x160] sm:$0xff]
    %v2366 = vld [vmem:[%s2320 + $0x168] sm:$0xff]
    %v2367 = vld [vmem:[%s2320 + $0x170] sm:$0xff]
    %v2368 = vld [vmem:[%s2320 + $0x178] sm:$0xff]
    %v2369 = vld [vmem:[%s2320 + $0x180] sm:$0xff]
    %v2370 = vld [vmem:[%s2320 + $0x188] sm:$0xff]
    %v2371 = vld [vmem:[%s2320 + $0x190] sm:$0xff]
    %v2372 = vld [vmem:[%s2320 + $0x198] sm:$0xff]
    %v2373 = vld [vmem:[%s2320 + $0x1a0] sm:$0xff]
    %v2374 = vld [vmem:[%s2320 + $0x1a8] sm:$0xff]
    %v2375 = vld [vmem:[%s2320 + $0x1b0] sm:$0xff]
    %v2376 = vld [vmem:[%s2320 + $0x1b8] sm:$0xff]
    %v2377 = vld [vmem:[%s2320 + $0x1c0] sm:$0xff]
    %v2378 = vld [vmem:[%s2320 + $0x1c8] sm:$0xff]
    %v2379 = vld [vmem:[%s2320 + $0x1d0] sm:$0xff]
    %v2380 = vld [vmem:[%s2320 + $0x1d8] sm:$0xff]
    %v2381 = vld [vmem:[%s2320 + $0x1e0] sm:$0xff]
    %v2382 = vld [vmem:[%s2320 + $0x1e8] sm:$0xff]
    %v2383 = vld [vmem:[%s2320 + $0x1f0] sm:$0xff]
    %v2384 = vld [vmem:[%s2320 + $0x1f8] sm:$0xff]
    %v2386 = vsel %vm560, %v2319, 0
    %2388 = vmatpush.msra.mxu0 0.0
    %2389 = vmatpush.msra.mxu0 0.0
    %2390 = vmatpush.msra.mxu0 0.0
    %2391 = vmatpush.msra.mxu0 0.0
    %2392 = vmatpush.msra.mxu0 0.0
    %2393 = vmatpush.msra.mxu0 0.0
    %2394 = vmatpush.msra.mxu0 0.0
    %2395 = vmatpush.msra.mxu0 0.0
    %2396 = vmatpush.msra.mxu0 %v2377
    %2397 = vmatpush.msra.mxu0 %v2369
    %2398 = vmatpush.msra.mxu0 %v2361
    %2399 = vmatpush.msra.mxu0 %v2353
    %2400 = vmatpush.msra.mxu0 %v2345
    %2401 = vmatpush.msra.mxu0 %v2337
    %2402 = vmatpush.msra.mxu0 %v2329
    %2403 = vmatpush.msra.mxu0 %v2321
    %2404 = vmatmul.f32.gmra.mxu0 %v2386
    %v2405 = vpop.f32.mrf.mxu0
    %v2406 = vadd.f32 0.0, %v2405
    %2407 = vdwg.mxu0
    %2408 = vmatpush.msra.mxu0 0.0
    %2409 = vmatpush.msra.mxu0 0.0
    %2410 = vmatpush.msra.mxu0 0.0
    %2411 = vmatpush.msra.mxu0 0.0
    %2412 = vmatpush.msra.mxu0 0.0
    %2413 = vmatpush.msra.mxu0 0.0
    %2414 = vmatpush.msra.mxu0 0.0
    %2415 = vmatpush.msra.mxu0 0.0
    %2416 = vmatpush.msra.mxu0 %v2378
    %2417 = vmatpush.msra.mxu0 %v2370
    %2418 = vmatpush.msra.mxu0 %v2362
    %2419 = vmatpush.msra.mxu0 %v2354
    %2420 = vmatpush.msra.mxu0 %v2346
    %2421 = vmatpush.msra.mxu0 %v2338
    %2422 = vmatpush.msra.mxu0 %v2330
    %2423 = vmatpush.msra.mxu0 %v2322
    %2424 = vmatmul.f32.gmra.mxu0 %v2386
    %v2425 = vpop.f32.mrf.mxu0
    %v2426 = vadd.f32 0.0, %v2425
    %2427 = vdwg.mxu0
    %2428 = vmatpush.msra.mxu0 0.0
    %2429 = vmatpush.msra.mxu0 0.0
    %2430 = vmatpush.msra.mxu0 0.0
    %2431 = vmatpush.msra.mxu0 0.0
    %2432 = vmatpush.msra.mxu0 0.0
    %2433 = vmatpush.msra.mxu0 0.0
    %2434 = vmatpush.msra.mxu0 0.0
    %2435 = vmatpush.msra.mxu0 0.0
    %2436 = vmatpush.msra.mxu0 %v2379
    %2437 = vmatpush.msra.mxu0 %v2371
    %2438 = vmatpush.msra.mxu0 %v2363
    %2439 = vmatpush.msra.mxu0 %v2355
    %2440 = vmatpush.msra.mxu0 %v2347
    %2441 = vmatpush.msra.mxu0 %v2339
    %2442 = vmatpush.msra.mxu0 %v2331
    %2443 = vmatpush.msra.mxu0 %v2323
    %2444 = vmatmul.f32.gmra.mxu0 %v2386
    %v2445 = vpop.f32.mrf.mxu0
    %v2446 = vadd.f32 0.0, %v2445
    %2447 = vdwg.mxu0
    %2448 = vmatpush.msra.mxu0 0.0
    %2449 = vmatpush.msra.mxu0 0.0
    %2450 = vmatpush.msra.mxu0 0.0
    %2451 = vmatpush.msra.mxu0 0.0
    %2452 = vmatpush.msra.mxu0 0.0
    %2453 = vmatpush.msra.mxu0 0.0
    %2454 = vmatpush.msra.mxu0 0.0
    %2455 = vmatpush.msra.mxu0 0.0
    %2456 = vmatpush.msra.mxu0 %v2380
    %2457 = vmatpush.msra.mxu0 %v2372
    %2458 = vmatpush.msra.mxu0 %v2364
    %2459 = vmatpush.msra.mxu0 %v2356
    %2460 = vmatpush.msra.mxu0 %v2348
    %2461 = vmatpush.msra.mxu0 %v2340
    %2462 = vmatpush.msra.mxu0 %v2332
    %2463 = vmatpush.msra.mxu0 %v2324
    %2464 = vmatmul.f32.gmra.mxu0 %v2386
    %v2465 = vpop.f32.mrf.mxu0
    %v2466 = vadd.f32 0.0, %v2465
    %2467 = vdwg.mxu0
    %2468 = vmatpush.msra.mxu0 0.0
    %2469 = vmatpush.msra.mxu0 0.0
    %2470 = vmatpush.msra.mxu0 0.0
    %2471 = vmatpush.msra.mxu0 0.0
    %2472 = vmatpush.msra.mxu0 0.0
    %2473 = vmatpush.msra.mxu0 0.0
    %2474 = vmatpush.msra.mxu0 0.0
    %2475 = vmatpush.msra.mxu0 0.0
    %2476 = vmatpush.msra.mxu0 %v2381
    %2477 = vmatpush.msra.mxu0 %v2373
    %2478 = vmatpush.msra.mxu0 %v2365
    %2479 = vmatpush.msra.mxu0 %v2357
    %2480 = vmatpush.msra.mxu0 %v2349
    %2481 = vmatpush.msra.mxu0 %v2341
    %2482 = vmatpush.msra.mxu0 %v2333
    %2483 = vmatpush.msra.mxu0 %v2325
    %2484 = vmatmul.f32.gmra.mxu0 %v2386
    %v2485 = vpop.f32.mrf.mxu0
    %v2486 = vadd.f32 0.0, %v2485
    %2487 = vdwg.mxu0
    %2488 = vmatpush.msra.mxu0 0.0
    %2489 = vmatpush.msra.mxu0 0.0
    %2490 = vmatpush.msra.mxu0 0.0
    %2491 = vmatpush.msra.mxu0 0.0
    %2492 = vmatpush.msra.mxu0 0.0
    %2493 = vmatpush.msra.mxu0 0.0
    %2494 = vmatpush.msra.mxu0 0.0
    %2495 = vmatpush.msra.mxu0 0.0
    %2496 = vmatpush.msra.mxu0 %v2382
    %2497 = vmatpush.msra.mxu0 %v2374
    %2498 = vmatpush.msra.mxu0 %v2366
    %2499 = vmatpush.msra.mxu0 %v2358
    %2500 = vmatpush.msra.mxu0 %v2350
    %2501 = vmatpush.msra.mxu0 %v2342
    %2502 = vmatpush.msra.mxu0 %v2334
    %2503 = vmatpush.msra.mxu0 %v2326
    %2504 = vmatmul.f32.gmra.mxu0 %v2386
    %v2505 = vpop.f32.mrf.mxu0
    %v2506 = vadd.f32 0.0, %v2505
    %2507 = vdwg.mxu0
    %2508 = vmatpush.msra.mxu0 0.0
    %2509 = vmatpush.msra.mxu0 0.0
    %2510 = vmatpush.msra.mxu0 0.0
    %2511 = vmatpush.msra.mxu0 0.0
    %2512 = vmatpush.msra.mxu0 0.0
    %2513 = vmatpush.msra.mxu0 0.0
    %2514 = vmatpush.msra.mxu0 0.0
    %2515 = vmatpush.msra.mxu0 0.0
    %2516 = vmatpush.msra.mxu0 %v2383
    %2517 = vmatpush.msra.mxu0 %v2375
    %2518 = vmatpush.msra.mxu0 %v2367
    %2519 = vmatpush.msra.mxu0 %v2359
    %2520 = vmatpush.msra.mxu0 %v2351
    %2521 = vmatpush.msra.mxu0 %v2343
    %2522 = vmatpush.msra.mxu0 %v2335
    %2523 = vmatpush.msra.mxu0 %v2327
    %2524 = vmatmul.f32.gmra.mxu0 %v2386
    %v2525 = vpop.f32.mrf.mxu0
    %v2526 = vadd.f32 0.0, %v2525
    %2527 = vdwg.mxu0
    %2528 = vmatpush.msra.mxu0 0.0
    %2529 = vmatpush.msra.mxu0 0.0
    %2530 = vmatpush.msra.mxu0 0.0
    %2531 = vmatpush.msra.mxu0 0.0
    %2532 = vmatpush.msra.mxu0 0.0
    %2533 = vmatpush.msra.mxu0 0.0
    %2534 = vmatpush.msra.mxu0 0.0
    %2535 = vmatpush.msra.mxu0 0.0
    %2536 = vmatpush.msra.mxu0 %v2384
    %2537 = vmatpush.msra.mxu0 %v2376
    %2538 = vmatpush.msra.mxu0 %v2368
    %2539 = vmatpush.msra.mxu0 %v2360
    %2540 = vmatpush.msra.mxu0 %v2352
    %2541 = vmatpush.msra.mxu0 %v2344
    %2542 = vmatpush.msra.mxu0 %v2336
    %2543 = vmatpush.msra.mxu0 %v2328
    %2544 = vmatmul.f32.gmra.mxu0 %v2386
    %v2545 = vpop.f32.mrf.mxu0
    %v2546 = vadd.f32 0.0, %v2545
    %2547 = vdwg.mxu0
    %v2548 = vadd.f32 %v1940, %v2406
    %v2549 = vadd.f32 %v1941, %v2426
    %v2550 = vadd.f32 %v1942, %v2446
    %v2551 = vadd.f32 %v1943, %v2466
    %v2552 = vadd.f32 %v1944, %v2486
    %v2553 = vadd.f32 %v1945, %v2506
    %v2554 = vadd.f32 %v1946, %v2526
    %v2555 = vadd.f32 %v1947, %v2546
    %v2556 = vmax.f32 %v2548, 0.0
    %v2557 = vmax.f32 %v2549, 0.0
    %v2558 = vmax.f32 %v2550, 0.0
    %v2559 = vmax.f32 %v2551, 0.0
    %v2560 = vmax.f32 %v2552, 0.0
    %v2561 = vmax.f32 %v2553, 0.0
    %v2562 = vmax.f32 %v2554, 0.0
    %v2563 = vmax.f32 %v2555, 0.0
    %v2564 = vpack.c.bf16 %v2556, %v2556
    %v2565 = vpack.c.bf16 %v2557, %v2557
    %v2566 = vpack.c.bf16 %v2558, %v2558
    %v2567 = vpack.c.bf16 %v2559, %v2559
    %v2568 = vpack.c.bf16 %v2560, %v2560
    %v2569 = vpack.c.bf16 %v2561, %v2561
    %v2570 = vpack.c.bf16 %v2562, %v2562
    %v2571 = vpack.c.bf16 %v2563, %v2563
    %v2572 = vld [vmem:[%s8] sm:$0xff]
    %v2573 = vld [vmem:[%s8 + $0x8] sm:$0xff]
    %v2574 = vld [vmem:[%s8 + $0x10] sm:$0xff]
    %v2575 = vld [vmem:[%s8 + $0x18] sm:$0xff]
    %v2576 = vld [vmem:[%s8 + $0x20] sm:$0xff]
    %v2577 = vld [vmem:[%s8 + $0x28] sm:$0xff]
    %v2578 = vld [vmem:[%s8 + $0x30] sm:$0xff]
    %v2579 = vld [vmem:[%s8 + $0x38] sm:$0xff]
    %v2580 = vld [vmem:[%s8 + $0x40] sm:$0xff]
    %v2581 = vld [vmem:[%s8 + $0x48] sm:$0xff]
    %v2582 = vld [vmem:[%s8 + $0x50] sm:$0xff]
    %v2583 = vld [vmem:[%s8 + $0x58] sm:$0xff]
    %v2584 = vld [vmem:[%s8 + $0x60] sm:$0xff]
    %v2585 = vld [vmem:[%s8 + $0x68] sm:$0xff]
    %v2586 = vld [vmem:[%s8 + $0x70] sm:$0xff]
    %v2587 = vld [vmem:[%s8 + $0x78] sm:$0xff]
    %v2588 = vld [vmem:[%s8 + $0x80] sm:$0xff]
    %v2589 = vld [vmem:[%s8 + $0x88] sm:$0xff]
    %v2590 = vld [vmem:[%s8 + $0x90] sm:$0xff]
    %v2591 = vld [vmem:[%s8 + $0x98] sm:$0xff]
    %v2592 = vld [vmem:[%s8 + $0xa0] sm:$0xff]
    %v2593 = vld [vmem:[%s8 + $0xa8] sm:$0xff]
    %v2594 = vld [vmem:[%s8 + $0xb0] sm:$0xff]
    %v2595 = vld [vmem:[%s8 + $0xb8] sm:$0xff]
    %v2596 = vld [vmem:[%s8 + $0xc0] sm:$0xff]
    %v2597 = vld [vmem:[%s8 + $0xc8] sm:$0xff]
    %v2598 = vld [vmem:[%s8 + $0xd0] sm:$0xff]
    %v2599 = vld [vmem:[%s8 + $0xd8] sm:$0xff]
    %v2600 = vld [vmem:[%s8 + $0xe0] sm:$0xff]
    %v2601 = vld [vmem:[%s8 + $0xe8] sm:$0xff]
    %v2602 = vld [vmem:[%s8 + $0xf0] sm:$0xff]
    %v2603 = vld [vmem:[%s8 + $0xf8] sm:$0xff]
    %v2604 = vld [vmem:[%s8 + $0x100] sm:$0xff]
    %v2605 = vld [vmem:[%s8 + $0x108] sm:$0xff]
    %v2606 = vld [vmem:[%s8 + $0x110] sm:$0xff]
    %v2607 = vld [vmem:[%s8 + $0x118] sm:$0xff]
    %v2608 = vld [vmem:[%s8 + $0x120] sm:$0xff]
    %v2609 = vld [vmem:[%s8 + $0x128] sm:$0xff]
    %v2610 = vld [vmem:[%s8 + $0x130] sm:$0xff]
    %v2611 = vld [vmem:[%s8 + $0x138] sm:$0xff]
    %v2612 = vld [vmem:[%s8 + $0x140] sm:$0xff]
    %v2613 = vld [vmem:[%s8 + $0x148] sm:$0xff]
    %v2614 = vld [vmem:[%s8 + $0x150] sm:$0xff]
    %v2615 = vld [vmem:[%s8 + $0x158] sm:$0xff]
    %v2616 = vld [vmem:[%s8 + $0x160] sm:$0xff]
    %v2617 = vld [vmem:[%s8 + $0x168] sm:$0xff]
    %v2618 = vld [vmem:[%s8 + $0x170] sm:$0xff]
    %v2619 = vld [vmem:[%s8 + $0x178] sm:$0xff]
    %v2620 = vld [vmem:[%s8 + $0x180] sm:$0xff]
    %v2621 = vld [vmem:[%s8 + $0x188] sm:$0xff]
    %v2622 = vld [vmem:[%s8 + $0x190] sm:$0xff]
    %v2623 = vld [vmem:[%s8 + $0x198] sm:$0xff]
    %v2624 = vld [vmem:[%s8 + $0x1a0] sm:$0xff]
    %v2625 = vld [vmem:[%s8 + $0x1a8] sm:$0xff]
    %v2626 = vld [vmem:[%s8 + $0x1b0] sm:$0xff]
    %v2627 = vld [vmem:[%s8 + $0x1b8] sm:$0xff]
    %v2628 = vld [vmem:[%s8 + $0x1c0] sm:$0xff]
    %v2629 = vld [vmem:[%s8 + $0x1c8] sm:$0xff]
    %v2630 = vld [vmem:[%s8 + $0x1d0] sm:$0xff]
    %v2631 = vld [vmem:[%s8 + $0x1d8] sm:$0xff]
    %v2632 = vld [vmem:[%s8 + $0x1e0] sm:$0xff]
    %v2633 = vld [vmem:[%s8 + $0x1e8] sm:$0xff]
    %v2634 = vld [vmem:[%s8 + $0x1f0] sm:$0xff]
    %v2635 = vld [vmem:[%s8 + $0x1f8] sm:$0xff]
    %v2636 = vld [vmem:[%s8 + $0x200] sm:$0xff]
    %v2637 = vld [vmem:[%s8 + $0x208] sm:$0xff]
    %v2638 = vld [vmem:[%s8 + $0x210] sm:$0xff]
    %v2639 = vld [vmem:[%s8 + $0x218] sm:$0xff]
    %v2640 = vld [vmem:[%s8 + $0x220] sm:$0xff]
    %v2641 = vld [vmem:[%s8 + $0x228] sm:$0xff]
    %v2642 = vld [vmem:[%s8 + $0x230] sm:$0xff]
    %v2643 = vld [vmem:[%s8 + $0x238] sm:$0xff]
    %v2644 = vld [vmem:[%s8 + $0x240] sm:$0xff]
    %v2645 = vld [vmem:[%s8 + $0x248] sm:$0xff]
    %v2646 = vld [vmem:[%s8 + $0x250] sm:$0xff]
    %v2647 = vld [vmem:[%s8 + $0x258] sm:$0xff]
    %v2648 = vld [vmem:[%s8 + $0x260] sm:$0xff]
    %v2649 = vld [vmem:[%s8 + $0x268] sm:$0xff]
    %v2650 = vld [vmem:[%s8 + $0x270] sm:$0xff]
    %v2651 = vld [vmem:[%s8 + $0x278] sm:$0xff]
    %v2652 = vld [vmem:[%s8 + $0x280] sm:$0xff]
    %v2653 = vld [vmem:[%s8 + $0x288] sm:$0xff]
    %v2654 = vld [vmem:[%s8 + $0x290] sm:$0xff]
    %v2655 = vld [vmem:[%s8 + $0x298] sm:$0xff]
    %v2656 = vld [vmem:[%s8 + $0x2a0] sm:$0xff]
    %v2657 = vld [vmem:[%s8 + $0x2a8] sm:$0xff]
    %v2658 = vld [vmem:[%s8 + $0x2b0] sm:$0xff]
    %v2659 = vld [vmem:[%s8 + $0x2b8] sm:$0xff]
    %v2660 = vld [vmem:[%s8 + $0x2c0] sm:$0xff]
    %v2661 = vld [vmem:[%s8 + $0x2c8] sm:$0xff]
    %v2662 = vld [vmem:[%s8 + $0x2d0] sm:$0xff]
    %v2663 = vld [vmem:[%s8 + $0x2d8] sm:$0xff]
    %v2664 = vld [vmem:[%s8 + $0x2e0] sm:$0xff]
    %v2665 = vld [vmem:[%s8 + $0x2e8] sm:$0xff]
    %v2666 = vld [vmem:[%s8 + $0x2f0] sm:$0xff]
    %v2667 = vld [vmem:[%s8 + $0x2f8] sm:$0xff]
    %v2668 = vld [vmem:[%s8 + $0x300] sm:$0xff]
    %v2669 = vld [vmem:[%s8 + $0x308] sm:$0xff]
    %v2670 = vld [vmem:[%s8 + $0x310] sm:$0xff]
    %v2671 = vld [vmem:[%s8 + $0x318] sm:$0xff]
    %v2672 = vld [vmem:[%s8 + $0x320] sm:$0xff]
    %v2673 = vld [vmem:[%s8 + $0x328] sm:$0xff]
    %v2674 = vld [vmem:[%s8 + $0x330] sm:$0xff]
    %v2675 = vld [vmem:[%s8 + $0x338] sm:$0xff]
    %v2676 = vld [vmem:[%s8 + $0x340] sm:$0xff]
    %v2677 = vld [vmem:[%s8 + $0x348] sm:$0xff]
    %v2678 = vld [vmem:[%s8 + $0x350] sm:$0xff]
    %v2679 = vld [vmem:[%s8 + $0x358] sm:$0xff]
    %v2680 = vld [vmem:[%s8 + $0x360] sm:$0xff]
    %v2681 = vld [vmem:[%s8 + $0x368] sm:$0xff]
    %v2682 = vld [vmem:[%s8 + $0x370] sm:$0xff]
    %v2683 = vld [vmem:[%s8 + $0x378] sm:$0xff]
    %v2684 = vld [vmem:[%s8 + $0x380] sm:$0xff]
    %v2685 = vld [vmem:[%s8 + $0x388] sm:$0xff]
    %v2686 = vld [vmem:[%s8 + $0x390] sm:$0xff]
    %v2687 = vld [vmem:[%s8 + $0x398] sm:$0xff]
    %v2688 = vld [vmem:[%s8 + $0x3a0] sm:$0xff]
    %v2689 = vld [vmem:[%s8 + $0x3a8] sm:$0xff]
    %v2690 = vld [vmem:[%s8 + $0x3b0] sm:$0xff]
    %v2691 = vld [vmem:[%s8 + $0x3b8] sm:$0xff]
    %v2692 = vld [vmem:[%s8 + $0x3c0] sm:$0xff]
    %v2693 = vld [vmem:[%s8 + $0x3c8] sm:$0xff]
    %v2694 = vld [vmem:[%s8 + $0x3d0] sm:$0xff]
    %v2695 = vld [vmem:[%s8 + $0x3d8] sm:$0xff]
    %v2696 = vld [vmem:[%s8 + $0x3e0] sm:$0xff]
    %v2697 = vld [vmem:[%s8 + $0x3e8] sm:$0xff]
    %v2698 = vld [vmem:[%s8 + $0x3f0] sm:$0xff]
    %v2699 = vld [vmem:[%s8 + $0x3f8] sm:$0xff]
    %v2700 = vld [vmem:[%s8 + $0x400] sm:$0xff]
    %v2701 = vld [vmem:[%s8 + $0x408] sm:$0xff]
    %v2702 = vld [vmem:[%s8 + $0x410] sm:$0xff]
    %v2703 = vld [vmem:[%s8 + $0x418] sm:$0xff]
    %v2704 = vld [vmem:[%s8 + $0x420] sm:$0xff]
    %v2705 = vld [vmem:[%s8 + $0x428] sm:$0xff]
    %v2706 = vld [vmem:[%s8 + $0x430] sm:$0xff]
    %v2707 = vld [vmem:[%s8 + $0x438] sm:$0xff]
    %v2708 = vld [vmem:[%s8 + $0x440] sm:$0xff]
    %v2709 = vld [vmem:[%s8 + $0x448] sm:$0xff]
    %v2710 = vld [vmem:[%s8 + $0x450] sm:$0xff]
    %v2711 = vld [vmem:[%s8 + $0x458] sm:$0xff]
    %v2712 = vld [vmem:[%s8 + $0x460] sm:$0xff]
    %v2713 = vld [vmem:[%s8 + $0x468] sm:$0xff]
    %v2714 = vld [vmem:[%s8 + $0x470] sm:$0xff]
    %v2715 = vld [vmem:[%s8 + $0x478] sm:$0xff]
    %v2716 = vld [vmem:[%s8 + $0x480] sm:$0xff]
    %v2717 = vld [vmem:[%s8 + $0x488] sm:$0xff]
    %v2718 = vld [vmem:[%s8 + $0x490] sm:$0xff]
    %v2719 = vld [vmem:[%s8 + $0x498] sm:$0xff]
    %v2720 = vld [vmem:[%s8 + $0x4a0] sm:$0xff]
    %v2721 = vld [vmem:[%s8 + $0x4a8] sm:$0xff]
    %v2722 = vld [vmem:[%s8 + $0x4b0] sm:$0xff]
    %v2723 = vld [vmem:[%s8 + $0x4b8] sm:$0xff]
    %v2724 = vld [vmem:[%s8 + $0x4c0] sm:$0xff]
    %v2725 = vld [vmem:[%s8 + $0x4c8] sm:$0xff]
    %v2726 = vld [vmem:[%s8 + $0x4d0] sm:$0xff]
    %v2727 = vld [vmem:[%s8 + $0x4d8] sm:$0xff]
    %v2728 = vld [vmem:[%s8 + $0x4e0] sm:$0xff]
    %v2729 = vld [vmem:[%s8 + $0x4e8] sm:$0xff]
    %v2730 = vld [vmem:[%s8 + $0x4f0] sm:$0xff]
    %v2731 = vld [vmem:[%s8 + $0x4f8] sm:$0xff]
    %v2732 = vld [vmem:[%s8 + $0x500] sm:$0xff]
    %v2733 = vld [vmem:[%s8 + $0x508] sm:$0xff]
    %v2734 = vld [vmem:[%s8 + $0x510] sm:$0xff]
    %v2735 = vld [vmem:[%s8 + $0x518] sm:$0xff]
    %v2736 = vld [vmem:[%s8 + $0x520] sm:$0xff]
    %v2737 = vld [vmem:[%s8 + $0x528] sm:$0xff]
    %v2738 = vld [vmem:[%s8 + $0x530] sm:$0xff]
    %v2739 = vld [vmem:[%s8 + $0x538] sm:$0xff]
    %v2740 = vld [vmem:[%s8 + $0x540] sm:$0xff]
    %v2741 = vld [vmem:[%s8 + $0x548] sm:$0xff]
    %v2742 = vld [vmem:[%s8 + $0x550] sm:$0xff]
    %v2743 = vld [vmem:[%s8 + $0x558] sm:$0xff]
    %v2744 = vld [vmem:[%s8 + $0x560] sm:$0xff]
    %v2745 = vld [vmem:[%s8 + $0x568] sm:$0xff]
    %v2746 = vld [vmem:[%s8 + $0x570] sm:$0xff]
    %v2747 = vld [vmem:[%s8 + $0x578] sm:$0xff]
    %v2748 = vld [vmem:[%s8 + $0x580] sm:$0xff]
    %v2749 = vld [vmem:[%s8 + $0x588] sm:$0xff]
    %v2750 = vld [vmem:[%s8 + $0x590] sm:$0xff]
    %v2751 = vld [vmem:[%s8 + $0x598] sm:$0xff]
    %v2752 = vld [vmem:[%s8 + $0x5a0] sm:$0xff]
    %v2753 = vld [vmem:[%s8 + $0x5a8] sm:$0xff]
    %v2754 = vld [vmem:[%s8 + $0x5b0] sm:$0xff]
    %v2755 = vld [vmem:[%s8 + $0x5b8] sm:$0xff]
    %v2756 = vld [vmem:[%s8 + $0x5c0] sm:$0xff]
    %v2757 = vld [vmem:[%s8 + $0x5c8] sm:$0xff]
    %v2758 = vld [vmem:[%s8 + $0x5d0] sm:$0xff]
    %v2759 = vld [vmem:[%s8 + $0x5d8] sm:$0xff]
    %v2760 = vld [vmem:[%s8 + $0x5e0] sm:$0xff]
    %v2761 = vld [vmem:[%s8 + $0x5e8] sm:$0xff]
    %v2762 = vld [vmem:[%s8 + $0x5f0] sm:$0xff]
    %v2763 = vld [vmem:[%s8 + $0x5f8] sm:$0xff]
    %v2764 = vld [vmem:[%s8 + $0x600] sm:$0xff]
    %v2765 = vld [vmem:[%s8 + $0x608] sm:$0xff]
    %v2766 = vld [vmem:[%s8 + $0x610] sm:$0xff]
    %v2767 = vld [vmem:[%s8 + $0x618] sm:$0xff]
    %v2768 = vld [vmem:[%s8 + $0x620] sm:$0xff]
    %v2769 = vld [vmem:[%s8 + $0x628] sm:$0xff]
    %v2770 = vld [vmem:[%s8 + $0x630] sm:$0xff]
    %v2771 = vld [vmem:[%s8 + $0x638] sm:$0xff]
    %v2772 = vld [vmem:[%s8 + $0x640] sm:$0xff]
    %v2773 = vld [vmem:[%s8 + $0x648] sm:$0xff]
    %v2774 = vld [vmem:[%s8 + $0x650] sm:$0xff]
    %v2775 = vld [vmem:[%s8 + $0x658] sm:$0xff]
    %v2776 = vld [vmem:[%s8 + $0x660] sm:$0xff]
    %v2777 = vld [vmem:[%s8 + $0x668] sm:$0xff]
    %v2778 = vld [vmem:[%s8 + $0x670] sm:$0xff]
    %v2779 = vld [vmem:[%s8 + $0x678] sm:$0xff]
    %v2780 = vld [vmem:[%s8 + $0x680] sm:$0xff]
    %v2781 = vld [vmem:[%s8 + $0x688] sm:$0xff]
    %v2782 = vld [vmem:[%s8 + $0x690] sm:$0xff]
    %v2783 = vld [vmem:[%s8 + $0x698] sm:$0xff]
    %v2784 = vld [vmem:[%s8 + $0x6a0] sm:$0xff]
    %v2785 = vld [vmem:[%s8 + $0x6a8] sm:$0xff]
    %v2786 = vld [vmem:[%s8 + $0x6b0] sm:$0xff]
    %v2787 = vld [vmem:[%s8 + $0x6b8] sm:$0xff]
    %v2788 = vld [vmem:[%s8 + $0x6c0] sm:$0xff]
    %v2789 = vld [vmem:[%s8 + $0x6c8] sm:$0xff]
    %v2790 = vld [vmem:[%s8 + $0x6d0] sm:$0xff]
    %v2791 = vld [vmem:[%s8 + $0x6d8] sm:$0xff]
    %v2792 = vld [vmem:[%s8 + $0x6e0] sm:$0xff]
    %v2793 = vld [vmem:[%s8 + $0x6e8] sm:$0xff]
    %v2794 = vld [vmem:[%s8 + $0x6f0] sm:$0xff]
    %v2795 = vld [vmem:[%s8 + $0x6f8] sm:$0xff]
    %v2796 = vld [vmem:[%s8 + $0x700] sm:$0xff]
    %v2797 = vld [vmem:[%s8 + $0x708] sm:$0xff]
    %v2798 = vld [vmem:[%s8 + $0x710] sm:$0xff]
    %v2799 = vld [vmem:[%s8 + $0x718] sm:$0xff]
    %v2800 = vld [vmem:[%s8 + $0x720] sm:$0xff]
    %v2801 = vld [vmem:[%s8 + $0x728] sm:$0xff]
    %v2802 = vld [vmem:[%s8 + $0x730] sm:$0xff]
    %v2803 = vld [vmem:[%s8 + $0x738] sm:$0xff]
    %v2804 = vld [vmem:[%s8 + $0x740] sm:$0xff]
    %v2805 = vld [vmem:[%s8 + $0x748] sm:$0xff]
    %v2806 = vld [vmem:[%s8 + $0x750] sm:$0xff]
    %v2807 = vld [vmem:[%s8 + $0x758] sm:$0xff]
    %v2808 = vld [vmem:[%s8 + $0x760] sm:$0xff]
    %v2809 = vld [vmem:[%s8 + $0x768] sm:$0xff]
    %v2810 = vld [vmem:[%s8 + $0x770] sm:$0xff]
    %v2811 = vld [vmem:[%s8 + $0x778] sm:$0xff]
    %v2812 = vld [vmem:[%s8 + $0x780] sm:$0xff]
    %v2813 = vld [vmem:[%s8 + $0x788] sm:$0xff]
    %v2814 = vld [vmem:[%s8 + $0x790] sm:$0xff]
    %v2815 = vld [vmem:[%s8 + $0x798] sm:$0xff]
    %v2816 = vld [vmem:[%s8 + $0x7a0] sm:$0xff]
    %v2817 = vld [vmem:[%s8 + $0x7a8] sm:$0xff]
    %v2818 = vld [vmem:[%s8 + $0x7b0] sm:$0xff]
    %v2819 = vld [vmem:[%s8 + $0x7b8] sm:$0xff]
    %v2820 = vld [vmem:[%s8 + $0x7c0] sm:$0xff]
    %v2821 = vld [vmem:[%s8 + $0x7c8] sm:$0xff]
    %v2822 = vld [vmem:[%s8 + $0x7d0] sm:$0xff]
    %v2823 = vld [vmem:[%s8 + $0x7d8] sm:$0xff]
    %v2824 = vld [vmem:[%s8 + $0x7e0] sm:$0xff]
    %v2825 = vld [vmem:[%s8 + $0x7e8] sm:$0xff]
    %v2826 = vld [vmem:[%s8 + $0x7f0] sm:$0xff]
    %v2827 = vld [vmem:[%s8 + $0x7f8] sm:$0xff]
    %v2828 = vld [vmem:[%s8 + $0x800] sm:$0xff]
    %v2829 = vld [vmem:[%s8 + $0x808] sm:$0xff]
    %v2830 = vld [vmem:[%s8 + $0x810] sm:$0xff]
    %v2831 = vld [vmem:[%s8 + $0x818] sm:$0xff]
    %v2832 = vld [vmem:[%s8 + $0x820] sm:$0xff]
    %v2833 = vld [vmem:[%s8 + $0x828] sm:$0xff]
    %v2834 = vld [vmem:[%s8 + $0x830] sm:$0xff]
    %v2835 = vld [vmem:[%s8 + $0x838] sm:$0xff]
    %v2836 = vld [vmem:[%s8 + $0x840] sm:$0xff]
    %v2837 = vld [vmem:[%s8 + $0x848] sm:$0xff]
    %v2838 = vld [vmem:[%s8 + $0x850] sm:$0xff]
    %v2839 = vld [vmem:[%s8 + $0x858] sm:$0xff]
    %v2840 = vld [vmem:[%s8 + $0x860] sm:$0xff]
    %v2841 = vld [vmem:[%s8 + $0x868] sm:$0xff]
    %v2842 = vld [vmem:[%s8 + $0x870] sm:$0xff]
    %v2843 = vld [vmem:[%s8 + $0x878] sm:$0xff]
    %v2844 = vld [vmem:[%s8 + $0x880] sm:$0xff]
    %v2845 = vld [vmem:[%s8 + $0x888] sm:$0xff]
    %v2846 = vld [vmem:[%s8 + $0x890] sm:$0xff]
    %v2847 = vld [vmem:[%s8 + $0x898] sm:$0xff]
    %v2848 = vld [vmem:[%s8 + $0x8a0] sm:$0xff]
    %v2849 = vld [vmem:[%s8 + $0x8a8] sm:$0xff]
    %v2850 = vld [vmem:[%s8 + $0x8b0] sm:$0xff]
    %v2851 = vld [vmem:[%s8 + $0x8b8] sm:$0xff]
    %v2852 = vld [vmem:[%s8 + $0x8c0] sm:$0xff]
    %v2853 = vld [vmem:[%s8 + $0x8c8] sm:$0xff]
    %v2854 = vld [vmem:[%s8 + $0x8d0] sm:$0xff]
    %v2855 = vld [vmem:[%s8 + $0x8d8] sm:$0xff]
    %v2856 = vld [vmem:[%s8 + $0x8e0] sm:$0xff]
    %v2857 = vld [vmem:[%s8 + $0x8e8] sm:$0xff]
    %v2858 = vld [vmem:[%s8 + $0x8f0] sm:$0xff]
    %v2859 = vld [vmem:[%s8 + $0x8f8] sm:$0xff]
    %v2860 = vld [vmem:[%s8 + $0x900] sm:$0xff]
    %v2861 = vld [vmem:[%s8 + $0x908] sm:$0xff]
    %v2862 = vld [vmem:[%s8 + $0x910] sm:$0xff]
    %v2863 = vld [vmem:[%s8 + $0x918] sm:$0xff]
    %v2864 = vld [vmem:[%s8 + $0x920] sm:$0xff]
    %v2865 = vld [vmem:[%s8 + $0x928] sm:$0xff]
    %v2866 = vld [vmem:[%s8 + $0x930] sm:$0xff]
    %v2867 = vld [vmem:[%s8 + $0x938] sm:$0xff]
    %v2868 = vld [vmem:[%s8 + $0x940] sm:$0xff]
    %v2869 = vld [vmem:[%s8 + $0x948] sm:$0xff]
    %v2870 = vld [vmem:[%s8 + $0x950] sm:$0xff]
    %v2871 = vld [vmem:[%s8 + $0x958] sm:$0xff]
    %v2872 = vld [vmem:[%s8 + $0x960] sm:$0xff]
    %v2873 = vld [vmem:[%s8 + $0x968] sm:$0xff]
    %v2874 = vld [vmem:[%s8 + $0x970] sm:$0xff]
    %v2875 = vld [vmem:[%s8 + $0x978] sm:$0xff]
    %v2876 = vld [vmem:[%s8 + $0x980] sm:$0xff]
    %v2877 = vld [vmem:[%s8 + $0x988] sm:$0xff]
    %v2878 = vld [vmem:[%s8 + $0x990] sm:$0xff]
    %v2879 = vld [vmem:[%s8 + $0x998] sm:$0xff]
    %v2880 = vld [vmem:[%s8 + $0x9a0] sm:$0xff]
    %v2881 = vld [vmem:[%s8 + $0x9a8] sm:$0xff]
    %v2882 = vld [vmem:[%s8 + $0x9b0] sm:$0xff]
    %v2883 = vld [vmem:[%s8 + $0x9b8] sm:$0xff]
    %v2884 = vld [vmem:[%s8 + $0x9c0] sm:$0xff]
    %v2885 = vld [vmem:[%s8 + $0x9c8] sm:$0xff]
    %v2886 = vld [vmem:[%s8 + $0x9d0] sm:$0xff]
    %v2887 = vld [vmem:[%s8 + $0x9d8] sm:$0xff]
    %v2888 = vld [vmem:[%s8 + $0x9e0] sm:$0xff]
    %v2889 = vld [vmem:[%s8 + $0x9e8] sm:$0xff]
    %v2890 = vld [vmem:[%s8 + $0x9f0] sm:$0xff]
    %v2891 = vld [vmem:[%s8 + $0x9f8] sm:$0xff]
    %v2892 = vld [vmem:[%s8 + $0xa00] sm:$0xff]
    %v2893 = vld [vmem:[%s8 + $0xa08] sm:$0xff]
    %v2894 = vld [vmem:[%s8 + $0xa10] sm:$0xff]
    %v2895 = vld [vmem:[%s8 + $0xa18] sm:$0xff]
    %v2896 = vld [vmem:[%s8 + $0xa20] sm:$0xff]
    %v2897 = vld [vmem:[%s8 + $0xa28] sm:$0xff]
    %v2898 = vld [vmem:[%s8 + $0xa30] sm:$0xff]
    %v2899 = vld [vmem:[%s8 + $0xa38] sm:$0xff]
    %v2900 = vld [vmem:[%s8 + $0xa40] sm:$0xff]
    %v2901 = vld [vmem:[%s8 + $0xa48] sm:$0xff]
    %v2902 = vld [vmem:[%s8 + $0xa50] sm:$0xff]
    %v2903 = vld [vmem:[%s8 + $0xa58] sm:$0xff]
    %v2904 = vld [vmem:[%s8 + $0xa60] sm:$0xff]
    %v2905 = vld [vmem:[%s8 + $0xa68] sm:$0xff]
    %v2906 = vld [vmem:[%s8 + $0xa70] sm:$0xff]
    %v2907 = vld [vmem:[%s8 + $0xa78] sm:$0xff]
    %v2908 = vld [vmem:[%s8 + $0xa80] sm:$0xff]
    %v2909 = vld [vmem:[%s8 + $0xa88] sm:$0xff]
    %v2910 = vld [vmem:[%s8 + $0xa90] sm:$0xff]
    %v2911 = vld [vmem:[%s8 + $0xa98] sm:$0xff]
    %v2912 = vld [vmem:[%s8 + $0xaa0] sm:$0xff]
    %v2913 = vld [vmem:[%s8 + $0xaa8] sm:$0xff]
    %v2914 = vld [vmem:[%s8 + $0xab0] sm:$0xff]
    %v2915 = vld [vmem:[%s8 + $0xab8] sm:$0xff]
    %v2916 = vld [vmem:[%s8 + $0xac0] sm:$0xff]
    %v2917 = vld [vmem:[%s8 + $0xac8] sm:$0xff]
    %v2918 = vld [vmem:[%s8 + $0xad0] sm:$0xff]
    %v2919 = vld [vmem:[%s8 + $0xad8] sm:$0xff]
    %v2920 = vld [vmem:[%s8 + $0xae0] sm:$0xff]
    %v2921 = vld [vmem:[%s8 + $0xae8] sm:$0xff]
    %v2922 = vld [vmem:[%s8 + $0xaf0] sm:$0xff]
    %v2923 = vld [vmem:[%s8 + $0xaf8] sm:$0xff]
    %v2924 = vld [vmem:[%s8 + $0xb00] sm:$0xff]
    %v2925 = vld [vmem:[%s8 + $0xb08] sm:$0xff]
    %v2926 = vld [vmem:[%s8 + $0xb10] sm:$0xff]
    %v2927 = vld [vmem:[%s8 + $0xb18] sm:$0xff]
    %v2928 = vld [vmem:[%s8 + $0xb20] sm:$0xff]
    %v2929 = vld [vmem:[%s8 + $0xb28] sm:$0xff]
    %v2930 = vld [vmem:[%s8 + $0xb30] sm:$0xff]
    %v2931 = vld [vmem:[%s8 + $0xb38] sm:$0xff]
    %v2932 = vld [vmem:[%s8 + $0xb40] sm:$0xff]
    %v2933 = vld [vmem:[%s8 + $0xb48] sm:$0xff]
    %v2934 = vld [vmem:[%s8 + $0xb50] sm:$0xff]
    %v2935 = vld [vmem:[%s8 + $0xb58] sm:$0xff]
    %v2936 = vld [vmem:[%s8 + $0xb60] sm:$0xff]
    %v2937 = vld [vmem:[%s8 + $0xb68] sm:$0xff]
    %v2938 = vld [vmem:[%s8 + $0xb70] sm:$0xff]
    %v2939 = vld [vmem:[%s8 + $0xb78] sm:$0xff]
    %v2940 = vld [vmem:[%s8 + $0xb80] sm:$0xff]
    %v2941 = vld [vmem:[%s8 + $0xb88] sm:$0xff]
    %v2942 = vld [vmem:[%s8 + $0xb90] sm:$0xff]
    %v2943 = vld [vmem:[%s8 + $0xb98] sm:$0xff]
    %v2944 = vld [vmem:[%s8 + $0xba0] sm:$0xff]
    %v2945 = vld [vmem:[%s8 + $0xba8] sm:$0xff]
    %v2946 = vld [vmem:[%s8 + $0xbb0] sm:$0xff]
    %v2947 = vld [vmem:[%s8 + $0xbb8] sm:$0xff]
    %v2948 = vld [vmem:[%s8 + $0xbc0] sm:$0xff]
    %v2949 = vld [vmem:[%s8 + $0xbc8] sm:$0xff]
    %v2950 = vld [vmem:[%s8 + $0xbd0] sm:$0xff]
    %v2951 = vld [vmem:[%s8 + $0xbd8] sm:$0xff]
    %v2952 = vld [vmem:[%s8 + $0xbe0] sm:$0xff]
    %v2953 = vld [vmem:[%s8 + $0xbe8] sm:$0xff]
    %v2954 = vld [vmem:[%s8 + $0xbf0] sm:$0xff]
    %v2955 = vld [vmem:[%s8 + $0xbf8] sm:$0xff]
    %v2956 = vld [vmem:[%s8 + $0xc00] sm:$0xff]
    %v2957 = vld [vmem:[%s8 + $0xc08] sm:$0xff]
    %v2958 = vld [vmem:[%s8 + $0xc10] sm:$0xff]
    %v2959 = vld [vmem:[%s8 + $0xc18] sm:$0xff]
    %v2960 = vld [vmem:[%s8 + $0xc20] sm:$0xff]
    %v2961 = vld [vmem:[%s8 + $0xc28] sm:$0xff]
    %v2962 = vld [vmem:[%s8 + $0xc30] sm:$0xff]
    %v2963 = vld [vmem:[%s8 + $0xc38] sm:$0xff]
    %v2964 = vld [vmem:[%s8 + $0xc40] sm:$0xff]
    %v2965 = vld [vmem:[%s8 + $0xc48] sm:$0xff]
    %v2966 = vld [vmem:[%s8 + $0xc50] sm:$0xff]
    %v2967 = vld [vmem:[%s8 + $0xc58] sm:$0xff]
    %v2968 = vld [vmem:[%s8 + $0xc60] sm:$0xff]
    %v2969 = vld [vmem:[%s8 + $0xc68] sm:$0xff]
    %v2970 = vld [vmem:[%s8 + $0xc70] sm:$0xff]
    %v2971 = vld [vmem:[%s8 + $0xc78] sm:$0xff]
    %v2972 = vld [vmem:[%s8 + $0xc80] sm:$0xff]
    %v2973 = vld [vmem:[%s8 + $0xc88] sm:$0xff]
    %v2974 = vld [vmem:[%s8 + $0xc90] sm:$0xff]
    %v2975 = vld [vmem:[%s8 + $0xc98] sm:$0xff]
    %v2976 = vld [vmem:[%s8 + $0xca0] sm:$0xff]
    %v2977 = vld [vmem:[%s8 + $0xca8] sm:$0xff]
    %v2978 = vld [vmem:[%s8 + $0xcb0] sm:$0xff]
    %v2979 = vld [vmem:[%s8 + $0xcb8] sm:$0xff]
    %v2980 = vld [vmem:[%s8 + $0xcc0] sm:$0xff]
    %v2981 = vld [vmem:[%s8 + $0xcc8] sm:$0xff]
    %v2982 = vld [vmem:[%s8 + $0xcd0] sm:$0xff]
    %v2983 = vld [vmem:[%s8 + $0xcd8] sm:$0xff]
    %v2984 = vld [vmem:[%s8 + $0xce0] sm:$0xff]
    %v2985 = vld [vmem:[%s8 + $0xce8] sm:$0xff]
    %v2986 = vld [vmem:[%s8 + $0xcf0] sm:$0xff]
    %v2987 = vld [vmem:[%s8 + $0xcf8] sm:$0xff]
    %v2988 = vld [vmem:[%s8 + $0xd00] sm:$0xff]
    %v2989 = vld [vmem:[%s8 + $0xd08] sm:$0xff]
    %v2990 = vld [vmem:[%s8 + $0xd10] sm:$0xff]
    %v2991 = vld [vmem:[%s8 + $0xd18] sm:$0xff]
    %v2992 = vld [vmem:[%s8 + $0xd20] sm:$0xff]
    %v2993 = vld [vmem:[%s8 + $0xd28] sm:$0xff]
    %v2994 = vld [vmem:[%s8 + $0xd30] sm:$0xff]
    %v2995 = vld [vmem:[%s8 + $0xd38] sm:$0xff]
    %v2996 = vld [vmem:[%s8 + $0xd40] sm:$0xff]
    %v2997 = vld [vmem:[%s8 + $0xd48] sm:$0xff]
    %v2998 = vld [vmem:[%s8 + $0xd50] sm:$0xff]
    %v2999 = vld [vmem:[%s8 + $0xd58] sm:$0xff]
    %v3000 = vld [vmem:[%s8 + $0xd60] sm:$0xff]
    %v3001 = vld [vmem:[%s8 + $0xd68] sm:$0xff]
    %v3002 = vld [vmem:[%s8 + $0xd70] sm:$0xff]
    %v3003 = vld [vmem:[%s8 + $0xd78] sm:$0xff]
    %v3004 = vld [vmem:[%s8 + $0xd80] sm:$0xff]
    %v3005 = vld [vmem:[%s8 + $0xd88] sm:$0xff]
    %v3006 = vld [vmem:[%s8 + $0xd90] sm:$0xff]
    %v3007 = vld [vmem:[%s8 + $0xd98] sm:$0xff]
    %v3008 = vld [vmem:[%s8 + $0xda0] sm:$0xff]
    %v3009 = vld [vmem:[%s8 + $0xda8] sm:$0xff]
    %v3010 = vld [vmem:[%s8 + $0xdb0] sm:$0xff]
    %v3011 = vld [vmem:[%s8 + $0xdb8] sm:$0xff]
    %v3012 = vld [vmem:[%s8 + $0xdc0] sm:$0xff]
    %v3013 = vld [vmem:[%s8 + $0xdc8] sm:$0xff]
    %v3014 = vld [vmem:[%s8 + $0xdd0] sm:$0xff]
    %v3015 = vld [vmem:[%s8 + $0xdd8] sm:$0xff]
    %v3016 = vld [vmem:[%s8 + $0xde0] sm:$0xff]
    %v3017 = vld [vmem:[%s8 + $0xde8] sm:$0xff]
    %v3018 = vld [vmem:[%s8 + $0xdf0] sm:$0xff]
    %v3019 = vld [vmem:[%s8 + $0xdf8] sm:$0xff]
    %v3020 = vld [vmem:[%s8 + $0xe00] sm:$0xff]
    %v3021 = vld [vmem:[%s8 + $0xe08] sm:$0xff]
    %v3022 = vld [vmem:[%s8 + $0xe10] sm:$0xff]
    %v3023 = vld [vmem:[%s8 + $0xe18] sm:$0xff]
    %v3024 = vld [vmem:[%s8 + $0xe20] sm:$0xff]
    %v3025 = vld [vmem:[%s8 + $0xe28] sm:$0xff]
    %v3026 = vld [vmem:[%s8 + $0xe30] sm:$0xff]
    %v3027 = vld [vmem:[%s8 + $0xe38] sm:$0xff]
    %v3028 = vld [vmem:[%s8 + $0xe40] sm:$0xff]
    %v3029 = vld [vmem:[%s8 + $0xe48] sm:$0xff]
    %v3030 = vld [vmem:[%s8 + $0xe50] sm:$0xff]
    %v3031 = vld [vmem:[%s8 + $0xe58] sm:$0xff]
    %v3032 = vld [vmem:[%s8 + $0xe60] sm:$0xff]
    %v3033 = vld [vmem:[%s8 + $0xe68] sm:$0xff]
    %v3034 = vld [vmem:[%s8 + $0xe70] sm:$0xff]
    %v3035 = vld [vmem:[%s8 + $0xe78] sm:$0xff]
    %v3036 = vld [vmem:[%s8 + $0xe80] sm:$0xff]
    %v3037 = vld [vmem:[%s8 + $0xe88] sm:$0xff]
    %v3038 = vld [vmem:[%s8 + $0xe90] sm:$0xff]
    %v3039 = vld [vmem:[%s8 + $0xe98] sm:$0xff]
    %v3040 = vld [vmem:[%s8 + $0xea0] sm:$0xff]
    %v3041 = vld [vmem:[%s8 + $0xea8] sm:$0xff]
    %v3042 = vld [vmem:[%s8 + $0xeb0] sm:$0xff]
    %v3043 = vld [vmem:[%s8 + $0xeb8] sm:$0xff]
    %v3044 = vld [vmem:[%s8 + $0xec0] sm:$0xff]
    %v3045 = vld [vmem:[%s8 + $0xec8] sm:$0xff]
    %v3046 = vld [vmem:[%s8 + $0xed0] sm:$0xff]
    %v3047 = vld [vmem:[%s8 + $0xed8] sm:$0xff]
    %v3048 = vld [vmem:[%s8 + $0xee0] sm:$0xff]
    %v3049 = vld [vmem:[%s8 + $0xee8] sm:$0xff]
    %v3050 = vld [vmem:[%s8 + $0xef0] sm:$0xff]
    %v3051 = vld [vmem:[%s8 + $0xef8] sm:$0xff]
    %v3052 = vld [vmem:[%s8 + $0xf00] sm:$0xff]
    %v3053 = vld [vmem:[%s8 + $0xf08] sm:$0xff]
    %v3054 = vld [vmem:[%s8 + $0xf10] sm:$0xff]
    %v3055 = vld [vmem:[%s8 + $0xf18] sm:$0xff]
    %v3056 = vld [vmem:[%s8 + $0xf20] sm:$0xff]
    %v3057 = vld [vmem:[%s8 + $0xf28] sm:$0xff]
    %v3058 = vld [vmem:[%s8 + $0xf30] sm:$0xff]
    %v3059 = vld [vmem:[%s8 + $0xf38] sm:$0xff]
    %v3060 = vld [vmem:[%s8 + $0xf40] sm:$0xff]
    %v3061 = vld [vmem:[%s8 + $0xf48] sm:$0xff]
    %v3062 = vld [vmem:[%s8 + $0xf50] sm:$0xff]
    %v3063 = vld [vmem:[%s8 + $0xf58] sm:$0xff]
    %v3064 = vld [vmem:[%s8 + $0xf60] sm:$0xff]
    %v3065 = vld [vmem:[%s8 + $0xf68] sm:$0xff]
    %v3066 = vld [vmem:[%s8 + $0xf70] sm:$0xff]
    %v3067 = vld [vmem:[%s8 + $0xf78] sm:$0xff]
    %v3068 = vld [vmem:[%s8 + $0xf80] sm:$0xff]
    %v3069 = vld [vmem:[%s8 + $0xf88] sm:$0xff]
    %v3070 = vld [vmem:[%s8 + $0xf90] sm:$0xff]
    %v3071 = vld [vmem:[%s8 + $0xf98] sm:$0xff]
    %v3072 = vld [vmem:[%s8 + $0xfa0] sm:$0xff]
    %v3073 = vld [vmem:[%s8 + $0xfa8] sm:$0xff]
    %v3074 = vld [vmem:[%s8 + $0xfb0] sm:$0xff]
    %v3075 = vld [vmem:[%s8 + $0xfb8] sm:$0xff]
    %v3076 = vld [vmem:[%s8 + $0xfc0] sm:$0xff]
    %v3077 = vld [vmem:[%s8 + $0xfc8] sm:$0xff]
    %v3078 = vld [vmem:[%s8 + $0xfd0] sm:$0xff]
    %v3079 = vld [vmem:[%s8 + $0xfd8] sm:$0xff]
    %v3080 = vld [vmem:[%s8 + $0xfe0] sm:$0xff]
    %v3081 = vld [vmem:[%s8 + $0xfe8] sm:$0xff]
    %v3082 = vld [vmem:[%s8 + $0xff0] sm:$0xff]
    %v3083 = vld [vmem:[%s8 + $0xff8] sm:$0xff]
    %v3084 = vld [vmem:[%s9] sm:$0xff]
    %v3086 = vperm.slane %v3084, 0
    %v3087 = vperm.slane %v3084, 1
    %v3088 = vperm.slane %v3084, 2
    %v3089 = vperm.slane %v3084, 3
    %v3090 = vperm.slane %v3084, 4
    %v3091 = vperm.slane %v3084, 5
    %v3092 = vperm.slane %v3084, 6
    %v3093 = vperm.slane %v3084, 7
    %v3614 = vunpack.c.l.b16 %v2572
    %v3615 = vunpack.c.h.b16 %v2572
    %v3616 = vunpack.c.l.b16 %v2573
    %v3617 = vunpack.c.h.b16 %v2573
    %v3618 = vunpack.c.l.b16 %v2574
    %v3619 = vunpack.c.h.b16 %v2574
    %v3620 = vunpack.c.l.b16 %v2575
    %v3621 = vunpack.c.h.b16 %v2575
    %v3622 = vunpack.c.l.b16 %v2576
    %v3623 = vunpack.c.h.b16 %v2576
    %v3624 = vunpack.c.l.b16 %v2577
    %v3625 = vunpack.c.h.b16 %v2577
    %v3626 = vunpack.c.l.b16 %v2578
    %v3627 = vunpack.c.h.b16 %v2578
    %v3628 = vunpack.c.l.b16 %v2579
    %v3629 = vunpack.c.h.b16 %v2579
    %v3630 = vunpack.c.l.b16 %v2580
    %v3631 = vunpack.c.h.b16 %v2580
    %v3632 = vunpack.c.l.b16 %v2581
    %v3633 = vunpack.c.h.b16 %v2581
    %v3634 = vunpack.c.l.b16 %v2582
    %v3635 = vunpack.c.h.b16 %v2582
    %v3636 = vunpack.c.l.b16 %v2583
    %v3637 = vunpack.c.h.b16 %v2583
    %v3638 = vunpack.c.l.b16 %v2584
    %v3639 = vunpack.c.h.b16 %v2584
    %v3640 = vunpack.c.l.b16 %v2585
    %v3641 = vunpack.c.h.b16 %v2585
    %v3642 = vunpack.c.l.b16 %v2586
    %v3643 = vunpack.c.h.b16 %v2586
    %v3644 = vunpack.c.l.b16 %v2587
    %v3645 = vunpack.c.h.b16 %v2587
    %v3646 = vunpack.c.l.b16 %v2588
    %v3647 = vunpack.c.h.b16 %v2588
    %v3648 = vunpack.c.l.b16 %v2589
    %v3649 = vunpack.c.h.b16 %v2589
    %v3650 = vunpack.c.l.b16 %v2590
    %v3651 = vunpack.c.h.b16 %v2590
    %v3652 = vunpack.c.l.b16 %v2591
    %v3653 = vunpack.c.h.b16 %v2591
    %v3654 = vunpack.c.l.b16 %v2592
    %v3655 = vunpack.c.h.b16 %v2592
    %v3656 = vunpack.c.l.b16 %v2593
    %v3657 = vunpack.c.h.b16 %v2593
    %v3658 = vunpack.c.l.b16 %v2594
    %v3659 = vunpack.c.h.b16 %v2594
    %v3660 = vunpack.c.l.b16 %v2595
    %v3661 = vunpack.c.h.b16 %v2595
    %v3662 = vunpack.c.l.b16 %v2596
    %v3663 = vunpack.c.h.b16 %v2596
    %v3664 = vunpack.c.l.b16 %v2597
    %v3665 = vunpack.c.h.b16 %v2597
    %v3666 = vunpack.c.l.b16 %v2598
    %v3667 = vunpack.c.h.b16 %v2598
    %v3668 = vunpack.c.l.b16 %v2599
    %v3669 = vunpack.c.h.b16 %v2599
    %v3670 = vunpack.c.l.b16 %v2600
    %v3671 = vunpack.c.h.b16 %v2600
    %v3672 = vunpack.c.l.b16 %v2601
    %v3673 = vunpack.c.h.b16 %v2601
    %v3674 = vunpack.c.l.b16 %v2602
    %v3675 = vunpack.c.h.b16 %v2602
    %v3676 = vunpack.c.l.b16 %v2603
    %v3677 = vunpack.c.h.b16 %v2603
    %v3678 = vunpack.c.l.b16 %v2604
    %v3679 = vunpack.c.h.b16 %v2604
    %v3680 = vunpack.c.l.b16 %v2605
    %v3681 = vunpack.c.h.b16 %v2605
    %v3682 = vunpack.c.l.b16 %v2606
    %v3683 = vunpack.c.h.b16 %v2606
    %v3684 = vunpack.c.l.b16 %v2607
    %v3685 = vunpack.c.h.b16 %v2607
    %v3686 = vunpack.c.l.b16 %v2608
    %v3687 = vunpack.c.h.b16 %v2608
    %v3688 = vunpack.c.l.b16 %v2609
    %v3689 = vunpack.c.h.b16 %v2609
    %v3690 = vunpack.c.l.b16 %v2610
    %v3691 = vunpack.c.h.b16 %v2610
    %v3692 = vunpack.c.l.b16 %v2611
    %v3693 = vunpack.c.h.b16 %v2611
    %v3694 = vunpack.c.l.b16 %v2612
    %v3695 = vunpack.c.h.b16 %v2612
    %v3696 = vunpack.c.l.b16 %v2613
    %v3697 = vunpack.c.h.b16 %v2613
    %v3698 = vunpack.c.l.b16 %v2614
    %v3699 = vunpack.c.h.b16 %v2614
    %v3700 = vunpack.c.l.b16 %v2615
    %v3701 = vunpack.c.h.b16 %v2615
    %v3702 = vunpack.c.l.b16 %v2616
    %v3703 = vunpack.c.h.b16 %v2616
    %v3704 = vunpack.c.l.b16 %v2617
    %v3705 = vunpack.c.h.b16 %v2617
    %v3706 = vunpack.c.l.b16 %v2618
    %v3707 = vunpack.c.h.b16 %v2618
    %v3708 = vunpack.c.l.b16 %v2619
    %v3709 = vunpack.c.h.b16 %v2619
    %v3710 = vunpack.c.l.b16 %v2620
    %v3711 = vunpack.c.h.b16 %v2620
    %v3712 = vunpack.c.l.b16 %v2621
    %v3713 = vunpack.c.h.b16 %v2621
    %v3714 = vunpack.c.l.b16 %v2622
    %v3715 = vunpack.c.h.b16 %v2622
    %v3716 = vunpack.c.l.b16 %v2623
    %v3717 = vunpack.c.h.b16 %v2623
    %v3718 = vunpack.c.l.b16 %v2624
    %v3719 = vunpack.c.h.b16 %v2624
    %v3720 = vunpack.c.l.b16 %v2625
    %v3721 = vunpack.c.h.b16 %v2625
    %v3722 = vunpack.c.l.b16 %v2626
    %v3723 = vunpack.c.h.b16 %v2626
    %v3724 = vunpack.c.l.b16 %v2627
    %v3725 = vunpack.c.h.b16 %v2627
    %v3726 = vunpack.c.l.b16 %v2628
    %v3727 = vunpack.c.h.b16 %v2628
    %v3728 = vunpack.c.l.b16 %v2629
    %v3729 = vunpack.c.h.b16 %v2629
    %v3730 = vunpack.c.l.b16 %v2630
    %v3731 = vunpack.c.h.b16 %v2630
    %v3732 = vunpack.c.l.b16 %v2631
    %v3733 = vunpack.c.h.b16 %v2631
    %v3734 = vunpack.c.l.b16 %v2632
    %v3735 = vunpack.c.h.b16 %v2632
    %v3736 = vunpack.c.l.b16 %v2633
    %v3737 = vunpack.c.h.b16 %v2633
    %v3738 = vunpack.c.l.b16 %v2634
    %v3739 = vunpack.c.h.b16 %v2634
    %v3740 = vunpack.c.l.b16 %v2635
    %v3741 = vunpack.c.h.b16 %v2635
    %v3742 = vunpack.c.l.b16 %v2636
    %v3743 = vunpack.c.h.b16 %v2636
    %v3744 = vunpack.c.l.b16 %v2637
    %v3745 = vunpack.c.h.b16 %v2637
    %v3746 = vunpack.c.l.b16 %v2638
    %v3747 = vunpack.c.h.b16 %v2638
    %v3748 = vunpack.c.l.b16 %v2639
    %v3749 = vunpack.c.h.b16 %v2639
    %v3750 = vunpack.c.l.b16 %v2640
    %v3751 = vunpack.c.h.b16 %v2640
    %v3752 = vunpack.c.l.b16 %v2641
    %v3753 = vunpack.c.h.b16 %v2641
    %v3754 = vunpack.c.l.b16 %v2642
    %v3755 = vunpack.c.h.b16 %v2642
    %v3756 = vunpack.c.l.b16 %v2643
    %v3757 = vunpack.c.h.b16 %v2643
    %v3758 = vunpack.c.l.b16 %v2644
    %v3759 = vunpack.c.h.b16 %v2644
    %v3760 = vunpack.c.l.b16 %v2645
    %v3761 = vunpack.c.h.b16 %v2645
    %v3762 = vunpack.c.l.b16 %v2646
    %v3763 = vunpack.c.h.b16 %v2646
    %v3764 = vunpack.c.l.b16 %v2647
    %v3765 = vunpack.c.h.b16 %v2647
    %v3766 = vunpack.c.l.b16 %v2648
    %v3767 = vunpack.c.h.b16 %v2648
    %v3768 = vunpack.c.l.b16 %v2649
    %v3769 = vunpack.c.h.b16 %v2649
    %v3770 = vunpack.c.l.b16 %v2650
    %v3771 = vunpack.c.h.b16 %v2650
    %v3772 = vunpack.c.l.b16 %v2651
    %v3773 = vunpack.c.h.b16 %v2651
    %v3774 = vunpack.c.l.b16 %v2652
    %v3775 = vunpack.c.h.b16 %v2652
    %v3776 = vunpack.c.l.b16 %v2653
    %v3777 = vunpack.c.h.b16 %v2653
    %v3778 = vunpack.c.l.b16 %v2654
    %v3779 = vunpack.c.h.b16 %v2654
    %v3780 = vunpack.c.l.b16 %v2655
    %v3781 = vunpack.c.h.b16 %v2655
    %v3782 = vunpack.c.l.b16 %v2656
    %v3783 = vunpack.c.h.b16 %v2656
    %v3784 = vunpack.c.l.b16 %v2657
    %v3785 = vunpack.c.h.b16 %v2657
    %v3786 = vunpack.c.l.b16 %v2658
    %v3787 = vunpack.c.h.b16 %v2658
    %v3788 = vunpack.c.l.b16 %v2659
    %v3789 = vunpack.c.h.b16 %v2659
    %v3790 = vunpack.c.l.b16 %v2660
    %v3791 = vunpack.c.h.b16 %v2660
    %v3792 = vunpack.c.l.b16 %v2661
    %v3793 = vunpack.c.h.b16 %v2661
    %v3794 = vunpack.c.l.b16 %v2662
    %v3795 = vunpack.c.h.b16 %v2662
    %v3796 = vunpack.c.l.b16 %v2663
    %v3797 = vunpack.c.h.b16 %v2663
    %v3798 = vunpack.c.l.b16 %v2664
    %v3799 = vunpack.c.h.b16 %v2664
    %v3800 = vunpack.c.l.b16 %v2665
    %v3801 = vunpack.c.h.b16 %v2665
    %v3802 = vunpack.c.l.b16 %v2666
    %v3803 = vunpack.c.h.b16 %v2666
    %v3804 = vunpack.c.l.b16 %v2667
    %v3805 = vunpack.c.h.b16 %v2667
    %v3806 = vunpack.c.l.b16 %v2668
    %v3807 = vunpack.c.h.b16 %v2668
    %v3808 = vunpack.c.l.b16 %v2669
    %v3809 = vunpack.c.h.b16 %v2669
    %v3810 = vunpack.c.l.b16 %v2670
    %v3811 = vunpack.c.h.b16 %v2670
    %v3812 = vunpack.c.l.b16 %v2671
    %v3813 = vunpack.c.h.b16 %v2671
    %v3814 = vunpack.c.l.b16 %v2672
    %v3815 = vunpack.c.h.b16 %v2672
    %v3816 = vunpack.c.l.b16 %v2673
    %v3817 = vunpack.c.h.b16 %v2673
    %v3818 = vunpack.c.l.b16 %v2674
    %v3819 = vunpack.c.h.b16 %v2674
    %v3820 = vunpack.c.l.b16 %v2675
    %v3821 = vunpack.c.h.b16 %v2675
    %v3822 = vunpack.c.l.b16 %v2676
    %v3823 = vunpack.c.h.b16 %v2676
    %v3824 = vunpack.c.l.b16 %v2677
    %v3825 = vunpack.c.h.b16 %v2677
    %v3826 = vunpack.c.l.b16 %v2678
    %v3827 = vunpack.c.h.b16 %v2678
    %v3828 = vunpack.c.l.b16 %v2679
    %v3829 = vunpack.c.h.b16 %v2679
    %v3830 = vunpack.c.l.b16 %v2680
    %v3831 = vunpack.c.h.b16 %v2680
    %v3832 = vunpack.c.l.b16 %v2681
    %v3833 = vunpack.c.h.b16 %v2681
    %v3834 = vunpack.c.l.b16 %v2682
    %v3835 = vunpack.c.h.b16 %v2682
    %v3836 = vunpack.c.l.b16 %v2683
    %v3837 = vunpack.c.h.b16 %v2683
    %v3838 = vunpack.c.l.b16 %v2684
    %v3839 = vunpack.c.h.b16 %v2684
    %v3840 = vunpack.c.l.b16 %v2685
    %v3841 = vunpack.c.h.b16 %v2685
    %v3842 = vunpack.c.l.b16 %v2686
    %v3843 = vunpack.c.h.b16 %v2686
    %v3844 = vunpack.c.l.b16 %v2687
    %v3845 = vunpack.c.h.b16 %v2687
    %v3846 = vunpack.c.l.b16 %v2688
    %v3847 = vunpack.c.h.b16 %v2688
    %v3848 = vunpack.c.l.b16 %v2689
    %v3849 = vunpack.c.h.b16 %v2689
    %v3850 = vunpack.c.l.b16 %v2690
    %v3851 = vunpack.c.h.b16 %v2690
    %v3852 = vunpack.c.l.b16 %v2691
    %v3853 = vunpack.c.h.b16 %v2691
    %v3854 = vunpack.c.l.b16 %v2692
    %v3855 = vunpack.c.h.b16 %v2692
    %v3856 = vunpack.c.l.b16 %v2693
    %v3857 = vunpack.c.h.b16 %v2693
    %v3858 = vunpack.c.l.b16 %v2694
    %v3859 = vunpack.c.h.b16 %v2694
    %v3860 = vunpack.c.l.b16 %v2695
    %v3861 = vunpack.c.h.b16 %v2695
    %v3862 = vunpack.c.l.b16 %v2696
    %v3863 = vunpack.c.h.b16 %v2696
    %v3864 = vunpack.c.l.b16 %v2697
    %v3865 = vunpack.c.h.b16 %v2697
    %v3866 = vunpack.c.l.b16 %v2698
    %v3867 = vunpack.c.h.b16 %v2698
    %v3868 = vunpack.c.l.b16 %v2699
    %v3869 = vunpack.c.h.b16 %v2699
    %v3870 = vunpack.c.l.b16 %v2700
    %v3871 = vunpack.c.h.b16 %v2700
    %v3872 = vunpack.c.l.b16 %v2701
    %v3873 = vunpack.c.h.b16 %v2701
    %v3874 = vunpack.c.l.b16 %v2702
    %v3875 = vunpack.c.h.b16 %v2702
    %v3876 = vunpack.c.l.b16 %v2703
    %v3877 = vunpack.c.h.b16 %v2703
    %v3878 = vunpack.c.l.b16 %v2704
    %v3879 = vunpack.c.h.b16 %v2704
    %v3880 = vunpack.c.l.b16 %v2705
    %v3881 = vunpack.c.h.b16 %v2705
    %v3882 = vunpack.c.l.b16 %v2706
    %v3883 = vunpack.c.h.b16 %v2706
    %v3884 = vunpack.c.l.b16 %v2707
    %v3885 = vunpack.c.h.b16 %v2707
    %v3886 = vunpack.c.l.b16 %v2708
    %v3887 = vunpack.c.h.b16 %v2708
    %v3888 = vunpack.c.l.b16 %v2709
    %v3889 = vunpack.c.h.b16 %v2709
    %v3890 = vunpack.c.l.b16 %v2710
    %v3891 = vunpack.c.h.b16 %v2710
    %v3892 = vunpack.c.l.b16 %v2711
    %v3893 = vunpack.c.h.b16 %v2711
    %v3894 = vunpack.c.l.b16 %v2712
    %v3895 = vunpack.c.h.b16 %v2712
    %v3896 = vunpack.c.l.b16 %v2713
    %v3897 = vunpack.c.h.b16 %v2713
    %v3898 = vunpack.c.l.b16 %v2714
    %v3899 = vunpack.c.h.b16 %v2714
    %v3900 = vunpack.c.l.b16 %v2715
    %v3901 = vunpack.c.h.b16 %v2715
    %v3902 = vunpack.c.l.b16 %v2716
    %v3903 = vunpack.c.h.b16 %v2716
    %v3904 = vunpack.c.l.b16 %v2717
    %v3905 = vunpack.c.h.b16 %v2717
    %v3906 = vunpack.c.l.b16 %v2718
    %v3907 = vunpack.c.h.b16 %v2718
    %v3908 = vunpack.c.l.b16 %v2719
    %v3909 = vunpack.c.h.b16 %v2719
    %v3910 = vunpack.c.l.b16 %v2720
    %v3911 = vunpack.c.h.b16 %v2720
    %v3912 = vunpack.c.l.b16 %v2721
    %v3913 = vunpack.c.h.b16 %v2721
    %v3914 = vunpack.c.l.b16 %v2722
    %v3915 = vunpack.c.h.b16 %v2722
    %v3916 = vunpack.c.l.b16 %v2723
    %v3917 = vunpack.c.h.b16 %v2723
    %v3918 = vunpack.c.l.b16 %v2724
    %v3919 = vunpack.c.h.b16 %v2724
    %v3920 = vunpack.c.l.b16 %v2725
    %v3921 = vunpack.c.h.b16 %v2725
    %v3922 = vunpack.c.l.b16 %v2726
    %v3923 = vunpack.c.h.b16 %v2726
    %v3924 = vunpack.c.l.b16 %v2727
    %v3925 = vunpack.c.h.b16 %v2727
    %v3926 = vunpack.c.l.b16 %v2728
    %v3927 = vunpack.c.h.b16 %v2728
    %v3928 = vunpack.c.l.b16 %v2729
    %v3929 = vunpack.c.h.b16 %v2729
    %v3930 = vunpack.c.l.b16 %v2730
    %v3931 = vunpack.c.h.b16 %v2730
    %v3932 = vunpack.c.l.b16 %v2731
    %v3933 = vunpack.c.h.b16 %v2731
    %v3934 = vunpack.c.l.b16 %v2732
    %v3935 = vunpack.c.h.b16 %v2732
    %v3936 = vunpack.c.l.b16 %v2733
    %v3937 = vunpack.c.h.b16 %v2733
    %v3938 = vunpack.c.l.b16 %v2734
    %v3939 = vunpack.c.h.b16 %v2734
    %v3940 = vunpack.c.l.b16 %v2735
    %v3941 = vunpack.c.h.b16 %v2735
    %v3942 = vunpack.c.l.b16 %v2736
    %v3943 = vunpack.c.h.b16 %v2736
    %v3944 = vunpack.c.l.b16 %v2737
    %v3945 = vunpack.c.h.b16 %v2737
    %v3946 = vunpack.c.l.b16 %v2738
    %v3947 = vunpack.c.h.b16 %v2738
    %v3948 = vunpack.c.l.b16 %v2739
    %v3949 = vunpack.c.h.b16 %v2739
    %v3950 = vunpack.c.l.b16 %v2740
    %v3951 = vunpack.c.h.b16 %v2740
    %v3952 = vunpack.c.l.b16 %v2741
    %v3953 = vunpack.c.h.b16 %v2741
    %v3954 = vunpack.c.l.b16 %v2742
    %v3955 = vunpack.c.h.b16 %v2742
    %v3956 = vunpack.c.l.b16 %v2743
    %v3957 = vunpack.c.h.b16 %v2743
    %v3958 = vunpack.c.l.b16 %v2744
    %v3959 = vunpack.c.h.b16 %v2744
    %v3960 = vunpack.c.l.b16 %v2745
    %v3961 = vunpack.c.h.b16 %v2745
    %v3962 = vunpack.c.l.b16 %v2746
    %v3963 = vunpack.c.h.b16 %v2746
    %v3964 = vunpack.c.l.b16 %v2747
    %v3965 = vunpack.c.h.b16 %v2747
    %v3966 = vunpack.c.l.b16 %v2748
    %v3967 = vunpack.c.h.b16 %v2748
    %v3968 = vunpack.c.l.b16 %v2749
    %v3969 = vunpack.c.h.b16 %v2749
    %v3970 = vunpack.c.l.b16 %v2750
    %v3971 = vunpack.c.h.b16 %v2750
    %v3972 = vunpack.c.l.b16 %v2751
    %v3973 = vunpack.c.h.b16 %v2751
    %v3974 = vunpack.c.l.b16 %v2752
    %v3975 = vunpack.c.h.b16 %v2752
    %v3976 = vunpack.c.l.b16 %v2753
    %v3977 = vunpack.c.h.b16 %v2753
    %v3978 = vunpack.c.l.b16 %v2754
    %v3979 = vunpack.c.h.b16 %v2754
    %v3980 = vunpack.c.l.b16 %v2755
    %v3981 = vunpack.c.h.b16 %v2755
    %v3982 = vunpack.c.l.b16 %v2756
    %v3983 = vunpack.c.h.b16 %v2756
    %v3984 = vunpack.c.l.b16 %v2757
    %v3985 = vunpack.c.h.b16 %v2757
    %v3986 = vunpack.c.l.b16 %v2758
    %v3987 = vunpack.c.h.b16 %v2758
    %v3988 = vunpack.c.l.b16 %v2759
    %v3989 = vunpack.c.h.b16 %v2759
    %v3990 = vunpack.c.l.b16 %v2760
    %v3991 = vunpack.c.h.b16 %v2760
    %v3992 = vunpack.c.l.b16 %v2761
    %v3993 = vunpack.c.h.b16 %v2761
    %v3994 = vunpack.c.l.b16 %v2762
    %v3995 = vunpack.c.h.b16 %v2762
    %v3996 = vunpack.c.l.b16 %v2763
    %v3997 = vunpack.c.h.b16 %v2763
    %v3998 = vunpack.c.l.b16 %v2764
    %v3999 = vunpack.c.h.b16 %v2764
    %v4000 = vunpack.c.l.b16 %v2765
    %v4001 = vunpack.c.h.b16 %v2765
    %v4002 = vunpack.c.l.b16 %v2766
    %v4003 = vunpack.c.h.b16 %v2766
    %v4004 = vunpack.c.l.b16 %v2767
    %v4005 = vunpack.c.h.b16 %v2767
    %v4006 = vunpack.c.l.b16 %v2768
    %v4007 = vunpack.c.h.b16 %v2768
    %v4008 = vunpack.c.l.b16 %v2769
    %v4009 = vunpack.c.h.b16 %v2769
    %v4010 = vunpack.c.l.b16 %v2770
    %v4011 = vunpack.c.h.b16 %v2770
    %v4012 = vunpack.c.l.b16 %v2771
    %v4013 = vunpack.c.h.b16 %v2771
    %v4014 = vunpack.c.l.b16 %v2772
    %v4015 = vunpack.c.h.b16 %v2772
    %v4016 = vunpack.c.l.b16 %v2773
    %v4017 = vunpack.c.h.b16 %v2773
    %v4018 = vunpack.c.l.b16 %v2774
    %v4019 = vunpack.c.h.b16 %v2774
    %v4020 = vunpack.c.l.b16 %v2775
    %v4021 = vunpack.c.h.b16 %v2775
    %v4022 = vunpack.c.l.b16 %v2776
    %v4023 = vunpack.c.h.b16 %v2776
    %v4024 = vunpack.c.l.b16 %v2777
    %v4025 = vunpack.c.h.b16 %v2777
    %v4026 = vunpack.c.l.b16 %v2778
    %v4027 = vunpack.c.h.b16 %v2778
    %v4028 = vunpack.c.l.b16 %v2779
    %v4029 = vunpack.c.h.b16 %v2779
    %v4030 = vunpack.c.l.b16 %v2780
    %v4031 = vunpack.c.h.b16 %v2780
    %v4032 = vunpack.c.l.b16 %v2781
    %v4033 = vunpack.c.h.b16 %v2781
    %v4034 = vunpack.c.l.b16 %v2782
    %v4035 = vunpack.c.h.b16 %v2782
    %v4036 = vunpack.c.l.b16 %v2783
    %v4037 = vunpack.c.h.b16 %v2783
    %v4038 = vunpack.c.l.b16 %v2784
    %v4039 = vunpack.c.h.b16 %v2784
    %v4040 = vunpack.c.l.b16 %v2785
    %v4041 = vunpack.c.h.b16 %v2785
    %v4042 = vunpack.c.l.b16 %v2786
    %v4043 = vunpack.c.h.b16 %v2786
    %v4044 = vunpack.c.l.b16 %v2787
    %v4045 = vunpack.c.h.b16 %v2787
    %v4046 = vunpack.c.l.b16 %v2788
    %v4047 = vunpack.c.h.b16 %v2788
    %v4048 = vunpack.c.l.b16 %v2789
    %v4049 = vunpack.c.h.b16 %v2789
    %v4050 = vunpack.c.l.b16 %v2790
    %v4051 = vunpack.c.h.b16 %v2790
    %v4052 = vunpack.c.l.b16 %v2791
    %v4053 = vunpack.c.h.b16 %v2791
    %v4054 = vunpack.c.l.b16 %v2792
    %v4055 = vunpack.c.h.b16 %v2792
    %v4056 = vunpack.c.l.b16 %v2793
    %v4057 = vunpack.c.h.b16 %v2793
    %v4058 = vunpack.c.l.b16 %v2794
    %v4059 = vunpack.c.h.b16 %v2794
    %v4060 = vunpack.c.l.b16 %v2795
    %v4061 = vunpack.c.h.b16 %v2795
    %v4062 = vunpack.c.l.b16 %v2796
    %v4063 = vunpack.c.h.b16 %v2796
    %v4064 = vunpack.c.l.b16 %v2797
    %v4065 = vunpack.c.h.b16 %v2797
    %v4066 = vunpack.c.l.b16 %v2798
    %v4067 = vunpack.c.h.b16 %v2798
    %v4068 = vunpack.c.l.b16 %v2799
    %v4069 = vunpack.c.h.b16 %v2799
    %v4070 = vunpack.c.l.b16 %v2800
    %v4071 = vunpack.c.h.b16 %v2800
    %v4072 = vunpack.c.l.b16 %v2801
    %v4073 = vunpack.c.h.b16 %v2801
    %v4074 = vunpack.c.l.b16 %v2802
    %v4075 = vunpack.c.h.b16 %v2802
    %v4076 = vunpack.c.l.b16 %v2803
    %v4077 = vunpack.c.h.b16 %v2803
    %v4078 = vunpack.c.l.b16 %v2804
    %v4079 = vunpack.c.h.b16 %v2804
    %v4080 = vunpack.c.l.b16 %v2805
    %v4081 = vunpack.c.h.b16 %v2805
    %v4082 = vunpack.c.l.b16 %v2806
    %v4083 = vunpack.c.h.b16 %v2806
    %v4084 = vunpack.c.l.b16 %v2807
    %v4085 = vunpack.c.h.b16 %v2807
    %v4086 = vunpack.c.l.b16 %v2808
    %v4087 = vunpack.c.h.b16 %v2808
    %v4088 = vunpack.c.l.b16 %v2809
    %v4089 = vunpack.c.h.b16 %v2809
    %v4090 = vunpack.c.l.b16 %v2810
    %v4091 = vunpack.c.h.b16 %v2810
    %v4092 = vunpack.c.l.b16 %v2811
    %v4093 = vunpack.c.h.b16 %v2811
    %v4094 = vunpack.c.l.b16 %v2812
    %v4095 = vunpack.c.h.b16 %v2812
    %v4096 = vunpack.c.l.b16 %v2813
    %v4097 = vunpack.c.h.b16 %v2813
    %v4098 = vunpack.c.l.b16 %v2814
    %v4099 = vunpack.c.h.b16 %v2814
    %v4100 = vunpack.c.l.b16 %v2815
    %v4101 = vunpack.c.h.b16 %v2815
    %v4102 = vunpack.c.l.b16 %v2816
    %v4103 = vunpack.c.h.b16 %v2816
    %v4104 = vunpack.c.l.b16 %v2817
    %v4105 = vunpack.c.h.b16 %v2817
    %v4106 = vunpack.c.l.b16 %v2818
    %v4107 = vunpack.c.h.b16 %v2818
    %v4108 = vunpack.c.l.b16 %v2819
    %v4109 = vunpack.c.h.b16 %v2819
    %v4110 = vunpack.c.l.b16 %v2820
    %v4111 = vunpack.c.h.b16 %v2820
    %v4112 = vunpack.c.l.b16 %v2821
    %v4113 = vunpack.c.h.b16 %v2821
    %v4114 = vunpack.c.l.b16 %v2822
    %v4115 = vunpack.c.h.b16 %v2822
    %v4116 = vunpack.c.l.b16 %v2823
    %v4117 = vunpack.c.h.b16 %v2823
    %v4118 = vunpack.c.l.b16 %v2824
    %v4119 = vunpack.c.h.b16 %v2824
    %v4120 = vunpack.c.l.b16 %v2825
    %v4121 = vunpack.c.h.b16 %v2825
    %v4122 = vunpack.c.l.b16 %v2826
    %v4123 = vunpack.c.h.b16 %v2826
    %v4124 = vunpack.c.l.b16 %v2827
    %v4125 = vunpack.c.h.b16 %v2827
    %v4126 = vunpack.c.l.b16 %v2828
    %v4127 = vunpack.c.h.b16 %v2828
    %v4128 = vunpack.c.l.b16 %v2829
    %v4129 = vunpack.c.h.b16 %v2829
    %v4130 = vunpack.c.l.b16 %v2830
    %v4131 = vunpack.c.h.b16 %v2830
    %v4132 = vunpack.c.l.b16 %v2831
    %v4133 = vunpack.c.h.b16 %v2831
    %v4134 = vunpack.c.l.b16 %v2832
    %v4135 = vunpack.c.h.b16 %v2832
    %v4136 = vunpack.c.l.b16 %v2833
    %v4137 = vunpack.c.h.b16 %v2833
    %v4138 = vunpack.c.l.b16 %v2834
    %v4139 = vunpack.c.h.b16 %v2834
    %v4140 = vunpack.c.l.b16 %v2835
    %v4141 = vunpack.c.h.b16 %v2835
    %v4142 = vunpack.c.l.b16 %v2836
    %v4143 = vunpack.c.h.b16 %v2836
    %v4144 = vunpack.c.l.b16 %v2837
    %v4145 = vunpack.c.h.b16 %v2837
    %v4146 = vunpack.c.l.b16 %v2838
    %v4147 = vunpack.c.h.b16 %v2838
    %v4148 = vunpack.c.l.b16 %v2839
    %v4149 = vunpack.c.h.b16 %v2839
    %v4150 = vunpack.c.l.b16 %v2840
    %v4151 = vunpack.c.h.b16 %v2840
    %v4152 = vunpack.c.l.b16 %v2841
    %v4153 = vunpack.c.h.b16 %v2841
    %v4154 = vunpack.c.l.b16 %v2842
    %v4155 = vunpack.c.h.b16 %v2842
    %v4156 = vunpack.c.l.b16 %v2843
    %v4157 = vunpack.c.h.b16 %v2843
    %v4158 = vunpack.c.l.b16 %v2844
    %v4159 = vunpack.c.h.b16 %v2844
    %v4160 = vunpack.c.l.b16 %v2845
    %v4161 = vunpack.c.h.b16 %v2845
    %v4162 = vunpack.c.l.b16 %v2846
    %v4163 = vunpack.c.h.b16 %v2846
    %v4164 = vunpack.c.l.b16 %v2847
    %v4165 = vunpack.c.h.b16 %v2847
    %v4166 = vunpack.c.l.b16 %v2848
    %v4167 = vunpack.c.h.b16 %v2848
    %v4168 = vunpack.c.l.b16 %v2849
    %v4169 = vunpack.c.h.b16 %v2849
    %v4170 = vunpack.c.l.b16 %v2850
    %v4171 = vunpack.c.h.b16 %v2850
    %v4172 = vunpack.c.l.b16 %v2851
    %v4173 = vunpack.c.h.b16 %v2851
    %v4174 = vunpack.c.l.b16 %v2852
    %v4175 = vunpack.c.h.b16 %v2852
    %v4176 = vunpack.c.l.b16 %v2853
    %v4177 = vunpack.c.h.b16 %v2853
    %v4178 = vunpack.c.l.b16 %v2854
    %v4179 = vunpack.c.h.b16 %v2854
    %v4180 = vunpack.c.l.b16 %v2855
    %v4181 = vunpack.c.h.b16 %v2855
    %v4182 = vunpack.c.l.b16 %v2856
    %v4183 = vunpack.c.h.b16 %v2856
    %v4184 = vunpack.c.l.b16 %v2857
    %v4185 = vunpack.c.h.b16 %v2857
    %v4186 = vunpack.c.l.b16 %v2858
    %v4187 = vunpack.c.h.b16 %v2858
    %v4188 = vunpack.c.l.b16 %v2859
    %v4189 = vunpack.c.h.b16 %v2859
    %v4190 = vunpack.c.l.b16 %v2860
    %v4191 = vunpack.c.h.b16 %v2860
    %v4192 = vunpack.c.l.b16 %v2861
    %v4193 = vunpack.c.h.b16 %v2861
    %v4194 = vunpack.c.l.b16 %v2862
    %v4195 = vunpack.c.h.b16 %v2862
    %v4196 = vunpack.c.l.b16 %v2863
    %v4197 = vunpack.c.h.b16 %v2863
    %v4198 = vunpack.c.l.b16 %v2864
    %v4199 = vunpack.c.h.b16 %v2864
    %v4200 = vunpack.c.l.b16 %v2865
    %v4201 = vunpack.c.h.b16 %v2865
    %v4202 = vunpack.c.l.b16 %v2866
    %v4203 = vunpack.c.h.b16 %v2866
    %v4204 = vunpack.c.l.b16 %v2867
    %v4205 = vunpack.c.h.b16 %v2867
    %v4206 = vunpack.c.l.b16 %v2868
    %v4207 = vunpack.c.h.b16 %v2868
    %v4208 = vunpack.c.l.b16 %v2869
    %v4209 = vunpack.c.h.b16 %v2869
    %v4210 = vunpack.c.l.b16 %v2870
    %v4211 = vunpack.c.h.b16 %v2870
    %v4212 = vunpack.c.l.b16 %v2871
    %v4213 = vunpack.c.h.b16 %v2871
    %v4214 = vunpack.c.l.b16 %v2872
    %v4215 = vunpack.c.h.b16 %v2872
    %v4216 = vunpack.c.l.b16 %v2873
    %v4217 = vunpack.c.h.b16 %v2873
    %v4218 = vunpack.c.l.b16 %v2874
    %v4219 = vunpack.c.h.b16 %v2874
    %v4220 = vunpack.c.l.b16 %v2875
    %v4221 = vunpack.c.h.b16 %v2875
    %v4222 = vunpack.c.l.b16 %v2876
    %v4223 = vunpack.c.h.b16 %v2876
    %v4224 = vunpack.c.l.b16 %v2877
    %v4225 = vunpack.c.h.b16 %v2877
    %v4226 = vunpack.c.l.b16 %v2878
    %v4227 = vunpack.c.h.b16 %v2878
    %v4228 = vunpack.c.l.b16 %v2879
    %v4229 = vunpack.c.h.b16 %v2879
    %v4230 = vunpack.c.l.b16 %v2880
    %v4231 = vunpack.c.h.b16 %v2880
    %v4232 = vunpack.c.l.b16 %v2881
    %v4233 = vunpack.c.h.b16 %v2881
    %v4234 = vunpack.c.l.b16 %v2882
    %v4235 = vunpack.c.h.b16 %v2882
    %v4236 = vunpack.c.l.b16 %v2883
    %v4237 = vunpack.c.h.b16 %v2883
    %v4238 = vunpack.c.l.b16 %v2884
    %v4239 = vunpack.c.h.b16 %v2884
    %v4240 = vunpack.c.l.b16 %v2885
    %v4241 = vunpack.c.h.b16 %v2885
    %v4242 = vunpack.c.l.b16 %v2886
    %v4243 = vunpack.c.h.b16 %v2886
    %v4244 = vunpack.c.l.b16 %v2887
    %v4245 = vunpack.c.h.b16 %v2887
    %v4246 = vunpack.c.l.b16 %v2888
    %v4247 = vunpack.c.h.b16 %v2888
    %v4248 = vunpack.c.l.b16 %v2889
    %v4249 = vunpack.c.h.b16 %v2889
    %v4250 = vunpack.c.l.b16 %v2890
    %v4251 = vunpack.c.h.b16 %v2890
    %v4252 = vunpack.c.l.b16 %v2891
    %v4253 = vunpack.c.h.b16 %v2891
    %v4254 = vunpack.c.l.b16 %v2892
    %v4255 = vunpack.c.h.b16 %v2892
    %v4256 = vunpack.c.l.b16 %v2893
    %v4257 = vunpack.c.h.b16 %v2893
    %v4258 = vunpack.c.l.b16 %v2894
    %v4259 = vunpack.c.h.b16 %v2894
    %v4260 = vunpack.c.l.b16 %v2895
    %v4261 = vunpack.c.h.b16 %v2895
    %v4262 = vunpack.c.l.b16 %v2896
    %v4263 = vunpack.c.h.b16 %v2896
    %v4264 = vunpack.c.l.b16 %v2897
    %v4265 = vunpack.c.h.b16 %v2897
    %v4266 = vunpack.c.l.b16 %v2898
    %v4267 = vunpack.c.h.b16 %v2898
    %v4268 = vunpack.c.l.b16 %v2899
    %v4269 = vunpack.c.h.b16 %v2899
    %v4270 = vunpack.c.l.b16 %v2900
    %v4271 = vunpack.c.h.b16 %v2900
    %v4272 = vunpack.c.l.b16 %v2901
    %v4273 = vunpack.c.h.b16 %v2901
    %v4274 = vunpack.c.l.b16 %v2902
    %v4275 = vunpack.c.h.b16 %v2902
    %v4276 = vunpack.c.l.b16 %v2903
    %v4277 = vunpack.c.h.b16 %v2903
    %v4278 = vunpack.c.l.b16 %v2904
    %v4279 = vunpack.c.h.b16 %v2904
    %v4280 = vunpack.c.l.b16 %v2905
    %v4281 = vunpack.c.h.b16 %v2905
    %v4282 = vunpack.c.l.b16 %v2906
    %v4283 = vunpack.c.h.b16 %v2906
    %v4284 = vunpack.c.l.b16 %v2907
    %v4285 = vunpack.c.h.b16 %v2907
    %v4286 = vunpack.c.l.b16 %v2908
    %v4287 = vunpack.c.h.b16 %v2908
    %v4288 = vunpack.c.l.b16 %v2909
    %v4289 = vunpack.c.h.b16 %v2909
    %v4290 = vunpack.c.l.b16 %v2910
    %v4291 = vunpack.c.h.b16 %v2910
    %v4292 = vunpack.c.l.b16 %v2911
    %v4293 = vunpack.c.h.b16 %v2911
    %v4294 = vunpack.c.l.b16 %v2912
    %v4295 = vunpack.c.h.b16 %v2912
    %v4296 = vunpack.c.l.b16 %v2913
    %v4297 = vunpack.c.h.b16 %v2913
    %v4298 = vunpack.c.l.b16 %v2914
    %v4299 = vunpack.c.h.b16 %v2914
    %v4300 = vunpack.c.l.b16 %v2915
    %v4301 = vunpack.c.h.b16 %v2915
    %v4302 = vunpack.c.l.b16 %v2916
    %v4303 = vunpack.c.h.b16 %v2916
    %v4304 = vunpack.c.l.b16 %v2917
    %v4305 = vunpack.c.h.b16 %v2917
    %v4306 = vunpack.c.l.b16 %v2918
    %v4307 = vunpack.c.h.b16 %v2918
    %v4308 = vunpack.c.l.b16 %v2919
    %v4309 = vunpack.c.h.b16 %v2919
    %v4310 = vunpack.c.l.b16 %v2920
    %v4311 = vunpack.c.h.b16 %v2920
    %v4312 = vunpack.c.l.b16 %v2921
    %v4313 = vunpack.c.h.b16 %v2921
    %v4314 = vunpack.c.l.b16 %v2922
    %v4315 = vunpack.c.h.b16 %v2922
    %v4316 = vunpack.c.l.b16 %v2923
    %v4317 = vunpack.c.h.b16 %v2923
    %v4318 = vunpack.c.l.b16 %v2924
    %v4319 = vunpack.c.h.b16 %v2924
    %v4320 = vunpack.c.l.b16 %v2925
    %v4321 = vunpack.c.h.b16 %v2925
    %v4322 = vunpack.c.l.b16 %v2926
    %v4323 = vunpack.c.h.b16 %v2926
    %v4324 = vunpack.c.l.b16 %v2927
    %v4325 = vunpack.c.h.b16 %v2927
    %v4326 = vunpack.c.l.b16 %v2928
    %v4327 = vunpack.c.h.b16 %v2928
    %v4328 = vunpack.c.l.b16 %v2929
    %v4329 = vunpack.c.h.b16 %v2929
    %v4330 = vunpack.c.l.b16 %v2930
    %v4331 = vunpack.c.h.b16 %v2930
    %v4332 = vunpack.c.l.b16 %v2931
    %v4333 = vunpack.c.h.b16 %v2931
    %v4334 = vunpack.c.l.b16 %v2932
    %v4335 = vunpack.c.h.b16 %v2932
    %v4336 = vunpack.c.l.b16 %v2933
    %v4337 = vunpack.c.h.b16 %v2933
    %v4338 = vunpack.c.l.b16 %v2934
    %v4339 = vunpack.c.h.b16 %v2934
    %v4340 = vunpack.c.l.b16 %v2935
    %v4341 = vunpack.c.h.b16 %v2935
    %v4342 = vunpack.c.l.b16 %v2936
    %v4343 = vunpack.c.h.b16 %v2936
    %v4344 = vunpack.c.l.b16 %v2937
    %v4345 = vunpack.c.h.b16 %v2937
    %v4346 = vunpack.c.l.b16 %v2938
    %v4347 = vunpack.c.h.b16 %v2938
    %v4348 = vunpack.c.l.b16 %v2939
    %v4349 = vunpack.c.h.b16 %v2939
    %v4350 = vunpack.c.l.b16 %v2940
    %v4351 = vunpack.c.h.b16 %v2940
    %v4352 = vunpack.c.l.b16 %v2941
    %v4353 = vunpack.c.h.b16 %v2941
    %v4354 = vunpack.c.l.b16 %v2942
    %v4355 = vunpack.c.h.b16 %v2942
    %v4356 = vunpack.c.l.b16 %v2943
    %v4357 = vunpack.c.h.b16 %v2943
    %v4358 = vunpack.c.l.b16 %v2944
    %v4359 = vunpack.c.h.b16 %v2944
    %v4360 = vunpack.c.l.b16 %v2945
    %v4361 = vunpack.c.h.b16 %v2945
    %v4362 = vunpack.c.l.b16 %v2946
    %v4363 = vunpack.c.h.b16 %v2946
    %v4364 = vunpack.c.l.b16 %v2947
    %v4365 = vunpack.c.h.b16 %v2947
    %v4366 = vunpack.c.l.b16 %v2948
    %v4367 = vunpack.c.h.b16 %v2948
    %v4368 = vunpack.c.l.b16 %v2949
    %v4369 = vunpack.c.h.b16 %v2949
    %v4370 = vunpack.c.l.b16 %v2950
    %v4371 = vunpack.c.h.b16 %v2950
    %v4372 = vunpack.c.l.b16 %v2951
    %v4373 = vunpack.c.h.b16 %v2951
    %v4374 = vunpack.c.l.b16 %v2952
    %v4375 = vunpack.c.h.b16 %v2952
    %v4376 = vunpack.c.l.b16 %v2953
    %v4377 = vunpack.c.h.b16 %v2953
    %v4378 = vunpack.c.l.b16 %v2954
    %v4379 = vunpack.c.h.b16 %v2954
    %v4380 = vunpack.c.l.b16 %v2955
    %v4381 = vunpack.c.h.b16 %v2955
    %v4382 = vunpack.c.l.b16 %v2956
    %v4383 = vunpack.c.h.b16 %v2956
    %v4384 = vunpack.c.l.b16 %v2957
    %v4385 = vunpack.c.h.b16 %v2957
    %v4386 = vunpack.c.l.b16 %v2958
    %v4387 = vunpack.c.h.b16 %v2958
    %v4388 = vunpack.c.l.b16 %v2959
    %v4389 = vunpack.c.h.b16 %v2959
    %v4390 = vunpack.c.l.b16 %v2960
    %v4391 = vunpack.c.h.b16 %v2960
    %v4392 = vunpack.c.l.b16 %v2961
    %v4393 = vunpack.c.h.b16 %v2961
    %v4394 = vunpack.c.l.b16 %v2962
    %v4395 = vunpack.c.h.b16 %v2962
    %v4396 = vunpack.c.l.b16 %v2963
    %v4397 = vunpack.c.h.b16 %v2963
    %v4398 = vunpack.c.l.b16 %v2964
    %v4399 = vunpack.c.h.b16 %v2964
    %v4400 = vunpack.c.l.b16 %v2965
    %v4401 = vunpack.c.h.b16 %v2965
    %v4402 = vunpack.c.l.b16 %v2966
    %v4403 = vunpack.c.h.b16 %v2966
    %v4404 = vunpack.c.l.b16 %v2967
    %v4405 = vunpack.c.h.b16 %v2967
    %v4406 = vunpack.c.l.b16 %v2968
    %v4407 = vunpack.c.h.b16 %v2968
    %v4408 = vunpack.c.l.b16 %v2969
    %v4409 = vunpack.c.h.b16 %v2969
    %v4410 = vunpack.c.l.b16 %v2970
    %v4411 = vunpack.c.h.b16 %v2970
    %v4412 = vunpack.c.l.b16 %v2971
    %v4413 = vunpack.c.h.b16 %v2971
    %v4414 = vunpack.c.l.b16 %v2972
    %v4415 = vunpack.c.h.b16 %v2972
    %v4416 = vunpack.c.l.b16 %v2973
    %v4417 = vunpack.c.h.b16 %v2973
    %v4418 = vunpack.c.l.b16 %v2974
    %v4419 = vunpack.c.h.b16 %v2974
    %v4420 = vunpack.c.l.b16 %v2975
    %v4421 = vunpack.c.h.b16 %v2975
    %v4422 = vunpack.c.l.b16 %v2976
    %v4423 = vunpack.c.h.b16 %v2976
    %v4424 = vunpack.c.l.b16 %v2977
    %v4425 = vunpack.c.h.b16 %v2977
    %v4426 = vunpack.c.l.b16 %v2978
    %v4427 = vunpack.c.h.b16 %v2978
    %v4428 = vunpack.c.l.b16 %v2979
    %v4429 = vunpack.c.h.b16 %v2979
    %v4430 = vunpack.c.l.b16 %v2980
    %v4431 = vunpack.c.h.b16 %v2980
    %v4432 = vunpack.c.l.b16 %v2981
    %v4433 = vunpack.c.h.b16 %v2981
    %v4434 = vunpack.c.l.b16 %v2982
    %v4435 = vunpack.c.h.b16 %v2982
    %v4436 = vunpack.c.l.b16 %v2983
    %v4437 = vunpack.c.h.b16 %v2983
    %v4438 = vunpack.c.l.b16 %v2984
    %v4439 = vunpack.c.h.b16 %v2984
    %v4440 = vunpack.c.l.b16 %v2985
    %v4441 = vunpack.c.h.b16 %v2985
    %v4442 = vunpack.c.l.b16 %v2986
    %v4443 = vunpack.c.h.b16 %v2986
    %v4444 = vunpack.c.l.b16 %v2987
    %v4445 = vunpack.c.h.b16 %v2987
    %v4446 = vunpack.c.l.b16 %v2988
    %v4447 = vunpack.c.h.b16 %v2988
    %v4448 = vunpack.c.l.b16 %v2989
    %v4449 = vunpack.c.h.b16 %v2989
    %v4450 = vunpack.c.l.b16 %v2990
    %v4451 = vunpack.c.h.b16 %v2990
    %v4452 = vunpack.c.l.b16 %v2991
    %v4453 = vunpack.c.h.b16 %v2991
    %v4454 = vunpack.c.l.b16 %v2992
    %v4455 = vunpack.c.h.b16 %v2992
    %v4456 = vunpack.c.l.b16 %v2993
    %v4457 = vunpack.c.h.b16 %v2993
    %v4458 = vunpack.c.l.b16 %v2994
    %v4459 = vunpack.c.h.b16 %v2994
    %v4460 = vunpack.c.l.b16 %v2995
    %v4461 = vunpack.c.h.b16 %v2995
    %v4462 = vunpack.c.l.b16 %v2996
    %v4463 = vunpack.c.h.b16 %v2996
    %v4464 = vunpack.c.l.b16 %v2997
    %v4465 = vunpack.c.h.b16 %v2997
    %v4466 = vunpack.c.l.b16 %v2998
    %v4467 = vunpack.c.h.b16 %v2998
    %v4468 = vunpack.c.l.b16 %v2999
    %v4469 = vunpack.c.h.b16 %v2999
    %v4470 = vunpack.c.l.b16 %v3000
    %v4471 = vunpack.c.h.b16 %v3000
    %v4472 = vunpack.c.l.b16 %v3001
    %v4473 = vunpack.c.h.b16 %v3001
    %v4474 = vunpack.c.l.b16 %v3002
    %v4475 = vunpack.c.h.b16 %v3002
    %v4476 = vunpack.c.l.b16 %v3003
    %v4477 = vunpack.c.h.b16 %v3003
    %v4478 = vunpack.c.l.b16 %v3004
    %v4479 = vunpack.c.h.b16 %v3004
    %v4480 = vunpack.c.l.b16 %v3005
    %v4481 = vunpack.c.h.b16 %v3005
    %v4482 = vunpack.c.l.b16 %v3006
    %v4483 = vunpack.c.h.b16 %v3006
    %v4484 = vunpack.c.l.b16 %v3007
    %v4485 = vunpack.c.h.b16 %v3007
    %v4486 = vunpack.c.l.b16 %v3008
    %v4487 = vunpack.c.h.b16 %v3008
    %v4488 = vunpack.c.l.b16 %v3009
    %v4489 = vunpack.c.h.b16 %v3009
    %v4490 = vunpack.c.l.b16 %v3010
    %v4491 = vunpack.c.h.b16 %v3010
    %v4492 = vunpack.c.l.b16 %v3011
    %v4493 = vunpack.c.h.b16 %v3011
    %v4494 = vunpack.c.l.b16 %v3012
    %v4495 = vunpack.c.h.b16 %v3012
    %v4496 = vunpack.c.l.b16 %v3013
    %v4497 = vunpack.c.h.b16 %v3013
    %v4498 = vunpack.c.l.b16 %v3014
    %v4499 = vunpack.c.h.b16 %v3014
    %v4500 = vunpack.c.l.b16 %v3015
    %v4501 = vunpack.c.h.b16 %v3015
    %v4502 = vunpack.c.l.b16 %v3016
    %v4503 = vunpack.c.h.b16 %v3016
    %v4504 = vunpack.c.l.b16 %v3017
    %v4505 = vunpack.c.h.b16 %v3017
    %v4506 = vunpack.c.l.b16 %v3018
    %v4507 = vunpack.c.h.b16 %v3018
    %v4508 = vunpack.c.l.b16 %v3019
    %v4509 = vunpack.c.h.b16 %v3019
    %v4510 = vunpack.c.l.b16 %v3020
    %v4511 = vunpack.c.h.b16 %v3020
    %v4512 = vunpack.c.l.b16 %v3021
    %v4513 = vunpack.c.h.b16 %v3021
    %v4514 = vunpack.c.l.b16 %v3022
    %v4515 = vunpack.c.h.b16 %v3022
    %v4516 = vunpack.c.l.b16 %v3023
    %v4517 = vunpack.c.h.b16 %v3023
    %v4518 = vunpack.c.l.b16 %v3024
    %v4519 = vunpack.c.h.b16 %v3024
    %v4520 = vunpack.c.l.b16 %v3025
    %v4521 = vunpack.c.h.b16 %v3025
    %v4522 = vunpack.c.l.b16 %v3026
    %v4523 = vunpack.c.h.b16 %v3026
    %v4524 = vunpack.c.l.b16 %v3027
    %v4525 = vunpack.c.h.b16 %v3027
    %v4526 = vunpack.c.l.b16 %v3028
    %v4527 = vunpack.c.h.b16 %v3028
    %v4528 = vunpack.c.l.b16 %v3029
    %v4529 = vunpack.c.h.b16 %v3029
    %v4530 = vunpack.c.l.b16 %v3030
    %v4531 = vunpack.c.h.b16 %v3030
    %v4532 = vunpack.c.l.b16 %v3031
    %v4533 = vunpack.c.h.b16 %v3031
    %v4534 = vunpack.c.l.b16 %v3032
    %v4535 = vunpack.c.h.b16 %v3032
    %v4536 = vunpack.c.l.b16 %v3033
    %v4537 = vunpack.c.h.b16 %v3033
    %v4538 = vunpack.c.l.b16 %v3034
    %v4539 = vunpack.c.h.b16 %v3034
    %v4540 = vunpack.c.l.b16 %v3035
    %v4541 = vunpack.c.h.b16 %v3035
    %v4542 = vunpack.c.l.b16 %v3036
    %v4543 = vunpack.c.h.b16 %v3036
    %v4544 = vunpack.c.l.b16 %v3037
    %v4545 = vunpack.c.h.b16 %v3037
    %v4546 = vunpack.c.l.b16 %v3038
    %v4547 = vunpack.c.h.b16 %v3038
    %v4548 = vunpack.c.l.b16 %v3039
    %v4549 = vunpack.c.h.b16 %v3039
    %v4550 = vunpack.c.l.b16 %v3040
    %v4551 = vunpack.c.h.b16 %v3040
    %v4552 = vunpack.c.l.b16 %v3041
    %v4553 = vunpack.c.h.b16 %v3041
    %v4554 = vunpack.c.l.b16 %v3042
    %v4555 = vunpack.c.h.b16 %v3042
    %v4556 = vunpack.c.l.b16 %v3043
    %v4557 = vunpack.c.h.b16 %v3043
    %v4558 = vunpack.c.l.b16 %v3044
    %v4559 = vunpack.c.h.b16 %v3044
    %v4560 = vunpack.c.l.b16 %v3045
    %v4561 = vunpack.c.h.b16 %v3045
    %v4562 = vunpack.c.l.b16 %v3046
    %v4563 = vunpack.c.h.b16 %v3046
    %v4564 = vunpack.c.l.b16 %v3047
    %v4565 = vunpack.c.h.b16 %v3047
    %v4566 = vunpack.c.l.b16 %v3048
    %v4567 = vunpack.c.h.b16 %v3048
    %v4568 = vunpack.c.l.b16 %v3049
    %v4569 = vunpack.c.h.b16 %v3049
    %v4570 = vunpack.c.l.b16 %v3050
    %v4571 = vunpack.c.h.b16 %v3050
    %v4572 = vunpack.c.l.b16 %v3051
    %v4573 = vunpack.c.h.b16 %v3051
    %v4574 = vunpack.c.l.b16 %v3052
    %v4575 = vunpack.c.h.b16 %v3052
    %v4576 = vunpack.c.l.b16 %v3053
    %v4577 = vunpack.c.h.b16 %v3053
    %v4578 = vunpack.c.l.b16 %v3054
    %v4579 = vunpack.c.h.b16 %v3054
    %v4580 = vunpack.c.l.b16 %v3055
    %v4581 = vunpack.c.h.b16 %v3055
    %v4582 = vunpack.c.l.b16 %v3056
    %v4583 = vunpack.c.h.b16 %v3056
    %v4584 = vunpack.c.l.b16 %v3057
    %v4585 = vunpack.c.h.b16 %v3057
    %v4586 = vunpack.c.l.b16 %v3058
    %v4587 = vunpack.c.h.b16 %v3058
    %v4588 = vunpack.c.l.b16 %v3059
    %v4589 = vunpack.c.h.b16 %v3059
    %v4590 = vunpack.c.l.b16 %v3060
    %v4591 = vunpack.c.h.b16 %v3060
    %v4592 = vunpack.c.l.b16 %v3061
    %v4593 = vunpack.c.h.b16 %v3061
    %v4594 = vunpack.c.l.b16 %v3062
    %v4595 = vunpack.c.h.b16 %v3062
    %v4596 = vunpack.c.l.b16 %v3063
    %v4597 = vunpack.c.h.b16 %v3063
    %v4598 = vunpack.c.l.b16 %v3064
    %v4599 = vunpack.c.h.b16 %v3064
    %v4600 = vunpack.c.l.b16 %v3065
    %v4601 = vunpack.c.h.b16 %v3065
    %v4602 = vunpack.c.l.b16 %v3066
    %v4603 = vunpack.c.h.b16 %v3066
    %v4604 = vunpack.c.l.b16 %v3067
    %v4605 = vunpack.c.h.b16 %v3067
    %v4606 = vunpack.c.l.b16 %v3068
    %v4607 = vunpack.c.h.b16 %v3068
    %v4608 = vunpack.c.l.b16 %v3069
    %v4609 = vunpack.c.h.b16 %v3069
    %v4610 = vunpack.c.l.b16 %v3070
    %v4611 = vunpack.c.h.b16 %v3070
    %v4612 = vunpack.c.l.b16 %v3071
    %v4613 = vunpack.c.h.b16 %v3071
    %v4614 = vunpack.c.l.b16 %v3072
    %v4615 = vunpack.c.h.b16 %v3072
    %v4616 = vunpack.c.l.b16 %v3073
    %v4617 = vunpack.c.h.b16 %v3073
    %v4618 = vunpack.c.l.b16 %v3074
    %v4619 = vunpack.c.h.b16 %v3074
    %v4620 = vunpack.c.l.b16 %v3075
    %v4621 = vunpack.c.h.b16 %v3075
    %v4622 = vunpack.c.l.b16 %v3076
    %v4623 = vunpack.c.h.b16 %v3076
    %v4624 = vunpack.c.l.b16 %v3077
    %v4625 = vunpack.c.h.b16 %v3077
    %v4626 = vunpack.c.l.b16 %v3078
    %v4627 = vunpack.c.h.b16 %v3078
    %v4628 = vunpack.c.l.b16 %v3079
    %v4629 = vunpack.c.h.b16 %v3079
    %v4630 = vunpack.c.l.b16 %v3080
    %v4631 = vunpack.c.h.b16 %v3080
    %v4632 = vunpack.c.l.b16 %v3081
    %v4633 = vunpack.c.h.b16 %v3081
    %v4634 = vunpack.c.l.b16 %v3082
    %v4635 = vunpack.c.h.b16 %v3082
    %v4636 = vunpack.c.l.b16 %v3083
    %v4637 = vunpack.c.h.b16 %v3083
    %v4638 = vpack.c.b16 %v3622, %v3614
    %v4639 = vpack.c.b16 %v3623, %v3615
    %v4640 = vpack.c.b16 %v3624, %v3616
    %v4641 = vpack.c.b16 %v3625, %v3617
    %v4642 = vpack.c.b16 %v3626, %v3618
    %v4643 = vpack.c.b16 %v3627, %v3619
    %v4644 = vpack.c.b16 %v3628, %v3620
    %v4645 = vpack.c.b16 %v3629, %v3621
    %v4646 = vpack.c.b16 %v3638, %v3630
    %v4647 = vpack.c.b16 %v3639, %v3631
    %v4648 = vpack.c.b16 %v3640, %v3632
    %v4649 = vpack.c.b16 %v3641, %v3633
    %v4650 = vpack.c.b16 %v3642, %v3634
    %v4651 = vpack.c.b16 %v3643, %v3635
    %v4652 = vpack.c.b16 %v3644, %v3636
    %v4653 = vpack.c.b16 %v3645, %v3637
    %v4654 = vpack.c.b16 %v3654, %v3646
    %v4655 = vpack.c.b16 %v3655, %v3647
    %v4656 = vpack.c.b16 %v3656, %v3648
    %v4657 = vpack.c.b16 %v3657, %v3649
    %v4658 = vpack.c.b16 %v3658, %v3650
    %v4659 = vpack.c.b16 %v3659, %v3651
    %v4660 = vpack.c.b16 %v3660, %v3652
    %v4661 = vpack.c.b16 %v3661, %v3653
    %v4662 = vpack.c.b16 %v3670, %v3662
    %v4663 = vpack.c.b16 %v3671, %v3663
    %v4664 = vpack.c.b16 %v3672, %v3664
    %v4665 = vpack.c.b16 %v3673, %v3665
    %v4666 = vpack.c.b16 %v3674, %v3666
    %v4667 = vpack.c.b16 %v3675, %v3667
    %v4668 = vpack.c.b16 %v3676, %v3668
    %v4669 = vpack.c.b16 %v3677, %v3669
    %v4670 = vpack.c.b16 %v3686, %v3678
    %v4671 = vpack.c.b16 %v3687, %v3679
    %v4672 = vpack.c.b16 %v3688, %v3680
    %v4673 = vpack.c.b16 %v3689, %v3681
    %v4674 = vpack.c.b16 %v3690, %v3682
    %v4675 = vpack.c.b16 %v3691, %v3683
    %v4676 = vpack.c.b16 %v3692, %v3684
    %v4677 = vpack.c.b16 %v3693, %v3685
    %v4678 = vpack.c.b16 %v3702, %v3694
    %v4679 = vpack.c.b16 %v3703, %v3695
    %v4680 = vpack.c.b16 %v3704, %v3696
    %v4681 = vpack.c.b16 %v3705, %v3697
    %v4682 = vpack.c.b16 %v3706, %v3698
    %v4683 = vpack.c.b16 %v3707, %v3699
    %v4684 = vpack.c.b16 %v3708, %v3700
    %v4685 = vpack.c.b16 %v3709, %v3701
    %v4686 = vpack.c.b16 %v3718, %v3710
    %v4687 = vpack.c.b16 %v3719, %v3711
    %v4688 = vpack.c.b16 %v3720, %v3712
    %v4689 = vpack.c.b16 %v3721, %v3713
    %v4690 = vpack.c.b16 %v3722, %v3714
    %v4691 = vpack.c.b16 %v3723, %v3715
    %v4692 = vpack.c.b16 %v3724, %v3716
    %v4693 = vpack.c.b16 %v3725, %v3717
    %v4694 = vpack.c.b16 %v3734, %v3726
    %v4695 = vpack.c.b16 %v3735, %v3727
    %v4696 = vpack.c.b16 %v3736, %v3728
    %v4697 = vpack.c.b16 %v3737, %v3729
    %v4698 = vpack.c.b16 %v3738, %v3730
    %v4699 = vpack.c.b16 %v3739, %v3731
    %v4700 = vpack.c.b16 %v3740, %v3732
    %v4701 = vpack.c.b16 %v3741, %v3733
    %v4702 = vpack.c.b16 %v3750, %v3742
    %v4703 = vpack.c.b16 %v3751, %v3743
    %v4704 = vpack.c.b16 %v3752, %v3744
    %v4705 = vpack.c.b16 %v3753, %v3745
    %v4706 = vpack.c.b16 %v3754, %v3746
    %v4707 = vpack.c.b16 %v3755, %v3747
    %v4708 = vpack.c.b16 %v3756, %v3748
    %v4709 = vpack.c.b16 %v3757, %v3749
    %v4710 = vpack.c.b16 %v3766, %v3758
    %v4711 = vpack.c.b16 %v3767, %v3759
    %v4712 = vpack.c.b16 %v3768, %v3760
    %v4713 = vpack.c.b16 %v3769, %v3761
    %v4714 = vpack.c.b16 %v3770, %v3762
    %v4715 = vpack.c.b16 %v3771, %v3763
    %v4716 = vpack.c.b16 %v3772, %v3764
    %v4717 = vpack.c.b16 %v3773, %v3765
    %v4718 = vpack.c.b16 %v3782, %v3774
    %v4719 = vpack.c.b16 %v3783, %v3775
    %v4720 = vpack.c.b16 %v3784, %v3776
    %v4721 = vpack.c.b16 %v3785, %v3777
    %v4722 = vpack.c.b16 %v3786, %v3778
    %v4723 = vpack.c.b16 %v3787, %v3779
    %v4724 = vpack.c.b16 %v3788, %v3780
    %v4725 = vpack.c.b16 %v3789, %v3781
    %v4726 = vpack.c.b16 %v3798, %v3790
    %v4727 = vpack.c.b16 %v3799, %v3791
    %v4728 = vpack.c.b16 %v3800, %v3792
    %v4729 = vpack.c.b16 %v3801, %v3793
    %v4730 = vpack.c.b16 %v3802, %v3794
    %v4731 = vpack.c.b16 %v3803, %v3795
    %v4732 = vpack.c.b16 %v3804, %v3796
    %v4733 = vpack.c.b16 %v3805, %v3797
    %v4734 = vpack.c.b16 %v3814, %v3806
    %v4735 = vpack.c.b16 %v3815, %v3807
    %v4736 = vpack.c.b16 %v3816, %v3808
    %v4737 = vpack.c.b16 %v3817, %v3809
    %v4738 = vpack.c.b16 %v3818, %v3810
    %v4739 = vpack.c.b16 %v3819, %v3811
    %v4740 = vpack.c.b16 %v3820, %v3812
    %v4741 = vpack.c.b16 %v3821, %v3813
    %v4742 = vpack.c.b16 %v3830, %v3822
    %v4743 = vpack.c.b16 %v3831, %v3823
    %v4744 = vpack.c.b16 %v3832, %v3824
    %v4745 = vpack.c.b16 %v3833, %v3825
    %v4746 = vpack.c.b16 %v3834, %v3826
    %v4747 = vpack.c.b16 %v3835, %v3827
    %v4748 = vpack.c.b16 %v3836, %v3828
    %v4749 = vpack.c.b16 %v3837, %v3829
    %v4750 = vpack.c.b16 %v3846, %v3838
    %v4751 = vpack.c.b16 %v3847, %v3839
    %v4752 = vpack.c.b16 %v3848, %v3840
    %v4753 = vpack.c.b16 %v3849, %v3841
    %v4754 = vpack.c.b16 %v3850, %v3842
    %v4755 = vpack.c.b16 %v3851, %v3843
    %v4756 = vpack.c.b16 %v3852, %v3844
    %v4757 = vpack.c.b16 %v3853, %v3845
    %v4758 = vpack.c.b16 %v3862, %v3854
    %v4759 = vpack.c.b16 %v3863, %v3855
    %v4760 = vpack.c.b16 %v3864, %v3856
    %v4761 = vpack.c.b16 %v3865, %v3857
    %v4762 = vpack.c.b16 %v3866, %v3858
    %v4763 = vpack.c.b16 %v3867, %v3859
    %v4764 = vpack.c.b16 %v3868, %v3860
    %v4765 = vpack.c.b16 %v3869, %v3861
    %v4766 = vpack.c.b16 %v3878, %v3870
    %v4767 = vpack.c.b16 %v3879, %v3871
    %v4768 = vpack.c.b16 %v3880, %v3872
    %v4769 = vpack.c.b16 %v3881, %v3873
    %v4770 = vpack.c.b16 %v3882, %v3874
    %v4771 = vpack.c.b16 %v3883, %v3875
    %v4772 = vpack.c.b16 %v3884, %v3876
    %v4773 = vpack.c.b16 %v3885, %v3877
    %v4774 = vpack.c.b16 %v3894, %v3886
    %v4775 = vpack.c.b16 %v3895, %v3887
    %v4776 = vpack.c.b16 %v3896, %v3888
    %v4777 = vpack.c.b16 %v3897, %v3889
    %v4778 = vpack.c.b16 %v3898, %v3890
    %v4779 = vpack.c.b16 %v3899, %v3891
    %v4780 = vpack.c.b16 %v3900, %v3892
    %v4781 = vpack.c.b16 %v3901, %v3893
    %v4782 = vpack.c.b16 %v3910, %v3902
    %v4783 = vpack.c.b16 %v3911, %v3903
    %v4784 = vpack.c.b16 %v3912, %v3904
    %v4785 = vpack.c.b16 %v3913, %v3905
    %v4786 = vpack.c.b16 %v3914, %v3906
    %v4787 = vpack.c.b16 %v3915, %v3907
    %v4788 = vpack.c.b16 %v3916, %v3908
    %v4789 = vpack.c.b16 %v3917, %v3909
    %v4790 = vpack.c.b16 %v3926, %v3918
    %v4791 = vpack.c.b16 %v3927, %v3919
    %v4792 = vpack.c.b16 %v3928, %v3920
    %v4793 = vpack.c.b16 %v3929, %v3921
    %v4794 = vpack.c.b16 %v3930, %v3922
    %v4795 = vpack.c.b16 %v3931, %v3923
    %v4796 = vpack.c.b16 %v3932, %v3924
    %v4797 = vpack.c.b16 %v3933, %v3925
    %v4798 = vpack.c.b16 %v3942, %v3934
    %v4799 = vpack.c.b16 %v3943, %v3935
    %v4800 = vpack.c.b16 %v3944, %v3936
    %v4801 = vpack.c.b16 %v3945, %v3937
    %v4802 = vpack.c.b16 %v3946, %v3938
    %v4803 = vpack.c.b16 %v3947, %v3939
    %v4804 = vpack.c.b16 %v3948, %v3940
    %v4805 = vpack.c.b16 %v3949, %v3941
    %v4806 = vpack.c.b16 %v3958, %v3950
    %v4807 = vpack.c.b16 %v3959, %v3951
    %v4808 = vpack.c.b16 %v3960, %v3952
    %v4809 = vpack.c.b16 %v3961, %v3953
    %v4810 = vpack.c.b16 %v3962, %v3954
    %v4811 = vpack.c.b16 %v3963, %v3955
    %v4812 = vpack.c.b16 %v3964, %v3956
    %v4813 = vpack.c.b16 %v3965, %v3957
    %v4814 = vpack.c.b16 %v3974, %v3966
    %v4815 = vpack.c.b16 %v3975, %v3967
    %v4816 = vpack.c.b16 %v3976, %v3968
    %v4817 = vpack.c.b16 %v3977, %v3969
    %v4818 = vpack.c.b16 %v3978, %v3970
    %v4819 = vpack.c.b16 %v3979, %v3971
    %v4820 = vpack.c.b16 %v3980, %v3972
    %v4821 = vpack.c.b16 %v3981, %v3973
    %v4822 = vpack.c.b16 %v3990, %v3982
    %v4823 = vpack.c.b16 %v3991, %v3983
    %v4824 = vpack.c.b16 %v3992, %v3984
    %v4825 = vpack.c.b16 %v3993, %v3985
    %v4826 = vpack.c.b16 %v3994, %v3986
    %v4827 = vpack.c.b16 %v3995, %v3987
    %v4828 = vpack.c.b16 %v3996, %v3988
    %v4829 = vpack.c.b16 %v3997, %v3989
    %v4830 = vpack.c.b16 %v4006, %v3998
    %v4831 = vpack.c.b16 %v4007, %v3999
    %v4832 = vpack.c.b16 %v4008, %v4000
    %v4833 = vpack.c.b16 %v4009, %v4001
    %v4834 = vpack.c.b16 %v4010, %v4002
    %v4835 = vpack.c.b16 %v4011, %v4003
    %v4836 = vpack.c.b16 %v4012, %v4004
    %v4837 = vpack.c.b16 %v4013, %v4005
    %v4838 = vpack.c.b16 %v4022, %v4014
    %v4839 = vpack.c.b16 %v4023, %v4015
    %v4840 = vpack.c.b16 %v4024, %v4016
    %v4841 = vpack.c.b16 %v4025, %v4017
    %v4842 = vpack.c.b16 %v4026, %v4018
    %v4843 = vpack.c.b16 %v4027, %v4019
    %v4844 = vpack.c.b16 %v4028, %v4020
    %v4845 = vpack.c.b16 %v4029, %v4021
    %v4846 = vpack.c.b16 %v4038, %v4030
    %v4847 = vpack.c.b16 %v4039, %v4031
    %v4848 = vpack.c.b16 %v4040, %v4032
    %v4849 = vpack.c.b16 %v4041, %v4033
    %v4850 = vpack.c.b16 %v4042, %v4034
    %v4851 = vpack.c.b16 %v4043, %v4035
    %v4852 = vpack.c.b16 %v4044, %v4036
    %v4853 = vpack.c.b16 %v4045, %v4037
    %v4854 = vpack.c.b16 %v4054, %v4046
    %v4855 = vpack.c.b16 %v4055, %v4047
    %v4856 = vpack.c.b16 %v4056, %v4048
    %v4857 = vpack.c.b16 %v4057, %v4049
    %v4858 = vpack.c.b16 %v4058, %v4050
    %v4859 = vpack.c.b16 %v4059, %v4051
    %v4860 = vpack.c.b16 %v4060, %v4052
    %v4861 = vpack.c.b16 %v4061, %v4053
    %v4862 = vpack.c.b16 %v4070, %v4062
    %v4863 = vpack.c.b16 %v4071, %v4063
    %v4864 = vpack.c.b16 %v4072, %v4064
    %v4865 = vpack.c.b16 %v4073, %v4065
    %v4866 = vpack.c.b16 %v4074, %v4066
    %v4867 = vpack.c.b16 %v4075, %v4067
    %v4868 = vpack.c.b16 %v4076, %v4068
    %v4869 = vpack.c.b16 %v4077, %v4069
    %v4870 = vpack.c.b16 %v4086, %v4078
    %v4871 = vpack.c.b16 %v4087, %v4079
    %v4872 = vpack.c.b16 %v4088, %v4080
    %v4873 = vpack.c.b16 %v4089, %v4081
    %v4874 = vpack.c.b16 %v4090, %v4082
    %v4875 = vpack.c.b16 %v4091, %v4083
    %v4876 = vpack.c.b16 %v4092, %v4084
    %v4877 = vpack.c.b16 %v4093, %v4085
    %v4878 = vpack.c.b16 %v4102, %v4094
    %v4879 = vpack.c.b16 %v4103, %v4095
    %v4880 = vpack.c.b16 %v4104, %v4096
    %v4881 = vpack.c.b16 %v4105, %v4097
    %v4882 = vpack.c.b16 %v4106, %v4098
    %v4883 = vpack.c.b16 %v4107, %v4099
    %v4884 = vpack.c.b16 %v4108, %v4100
    %v4885 = vpack.c.b16 %v4109, %v4101
    %v4886 = vpack.c.b16 %v4118, %v4110
    %v4887 = vpack.c.b16 %v4119, %v4111
    %v4888 = vpack.c.b16 %v4120, %v4112
    %v4889 = vpack.c.b16 %v4121, %v4113
    %v4890 = vpack.c.b16 %v4122, %v4114
    %v4891 = vpack.c.b16 %v4123, %v4115
    %v4892 = vpack.c.b16 %v4124, %v4116
    %v4893 = vpack.c.b16 %v4125, %v4117
    %v4894 = vpack.c.b16 %v4134, %v4126
    %v4895 = vpack.c.b16 %v4135, %v4127
    %v4896 = vpack.c.b16 %v4136, %v4128
    %v4897 = vpack.c.b16 %v4137, %v4129
    %v4898 = vpack.c.b16 %v4138, %v4130
    %v4899 = vpack.c.b16 %v4139, %v4131
    %v4900 = vpack.c.b16 %v4140, %v4132
    %v4901 = vpack.c.b16 %v4141, %v4133
    %v4902 = vpack.c.b16 %v4150, %v4142
    %v4903 = vpack.c.b16 %v4151, %v4143
    %v4904 = vpack.c.b16 %v4152, %v4144
    %v4905 = vpack.c.b16 %v4153, %v4145
    %v4906 = vpack.c.b16 %v4154, %v4146
    %v4907 = vpack.c.b16 %v4155, %v4147
    %v4908 = vpack.c.b16 %v4156, %v4148
    %v4909 = vpack.c.b16 %v4157, %v4149
    %v4910 = vpack.c.b16 %v4166, %v4158
    %v4911 = vpack.c.b16 %v4167, %v4159
    %v4912 = vpack.c.b16 %v4168, %v4160
    %v4913 = vpack.c.b16 %v4169, %v4161
    %v4914 = vpack.c.b16 %v4170, %v4162
    %v4915 = vpack.c.b16 %v4171, %v4163
    %v4916 = vpack.c.b16 %v4172, %v4164
    %v4917 = vpack.c.b16 %v4173, %v4165
    %v4918 = vpack.c.b16 %v4182, %v4174
    %v4919 = vpack.c.b16 %v4183, %v4175
    %v4920 = vpack.c.b16 %v4184, %v4176
    %v4921 = vpack.c.b16 %v4185, %v4177
    %v4922 = vpack.c.b16 %v4186, %v4178
    %v4923 = vpack.c.b16 %v4187, %v4179
    %v4924 = vpack.c.b16 %v4188, %v4180
    %v4925 = vpack.c.b16 %v4189, %v4181
    %v4926 = vpack.c.b16 %v4198, %v4190
    %v4927 = vpack.c.b16 %v4199, %v4191
    %v4928 = vpack.c.b16 %v4200, %v4192
    %v4929 = vpack.c.b16 %v4201, %v4193
    %v4930 = vpack.c.b16 %v4202, %v4194
    %v4931 = vpack.c.b16 %v4203, %v4195
    %v4932 = vpack.c.b16 %v4204, %v4196
    %v4933 = vpack.c.b16 %v4205, %v4197
    %v4934 = vpack.c.b16 %v4214, %v4206
    %v4935 = vpack.c.b16 %v4215, %v4207
    %v4936 = vpack.c.b16 %v4216, %v4208
    %v4937 = vpack.c.b16 %v4217, %v4209
    %v4938 = vpack.c.b16 %v4218, %v4210
    %v4939 = vpack.c.b16 %v4219, %v4211
    %v4940 = vpack.c.b16 %v4220, %v4212
    %v4941 = vpack.c.b16 %v4221, %v4213
    %v4942 = vpack.c.b16 %v4230, %v4222
    %v4943 = vpack.c.b16 %v4231, %v4223
    %v4944 = vpack.c.b16 %v4232, %v4224
    %v4945 = vpack.c.b16 %v4233, %v4225
    %v4946 = vpack.c.b16 %v4234, %v4226
    %v4947 = vpack.c.b16 %v4235, %v4227
    %v4948 = vpack.c.b16 %v4236, %v4228
    %v4949 = vpack.c.b16 %v4237, %v4229
    %v4950 = vpack.c.b16 %v4246, %v4238
    %v4951 = vpack.c.b16 %v4247, %v4239
    %v4952 = vpack.c.b16 %v4248, %v4240
    %v4953 = vpack.c.b16 %v4249, %v4241
    %v4954 = vpack.c.b16 %v4250, %v4242
    %v4955 = vpack.c.b16 %v4251, %v4243
    %v4956 = vpack.c.b16 %v4252, %v4244
    %v4957 = vpack.c.b16 %v4253, %v4245
    %v4958 = vpack.c.b16 %v4262, %v4254
    %v4959 = vpack.c.b16 %v4263, %v4255
    %v4960 = vpack.c.b16 %v4264, %v4256
    %v4961 = vpack.c.b16 %v4265, %v4257
    %v4962 = vpack.c.b16 %v4266, %v4258
    %v4963 = vpack.c.b16 %v4267, %v4259
    %v4964 = vpack.c.b16 %v4268, %v4260
    %v4965 = vpack.c.b16 %v4269, %v4261
    %v4966 = vpack.c.b16 %v4278, %v4270
    %v4967 = vpack.c.b16 %v4279, %v4271
    %v4968 = vpack.c.b16 %v4280, %v4272
    %v4969 = vpack.c.b16 %v4281, %v4273
    %v4970 = vpack.c.b16 %v4282, %v4274
    %v4971 = vpack.c.b16 %v4283, %v4275
    %v4972 = vpack.c.b16 %v4284, %v4276
    %v4973 = vpack.c.b16 %v4285, %v4277
    %v4974 = vpack.c.b16 %v4294, %v4286
    %v4975 = vpack.c.b16 %v4295, %v4287
    %v4976 = vpack.c.b16 %v4296, %v4288
    %v4977 = vpack.c.b16 %v4297, %v4289
    %v4978 = vpack.c.b16 %v4298, %v4290
    %v4979 = vpack.c.b16 %v4299, %v4291
    %v4980 = vpack.c.b16 %v4300, %v4292
    %v4981 = vpack.c.b16 %v4301, %v4293
    %v4982 = vpack.c.b16 %v4310, %v4302
    %v4983 = vpack.c.b16 %v4311, %v4303
    %v4984 = vpack.c.b16 %v4312, %v4304
    %v4985 = vpack.c.b16 %v4313, %v4305
    %v4986 = vpack.c.b16 %v4314, %v4306
    %v4987 = vpack.c.b16 %v4315, %v4307
    %v4988 = vpack.c.b16 %v4316, %v4308
    %v4989 = vpack.c.b16 %v4317, %v4309
    %v4990 = vpack.c.b16 %v4326, %v4318
    %v4991 = vpack.c.b16 %v4327, %v4319
    %v4992 = vpack.c.b16 %v4328, %v4320
    %v4993 = vpack.c.b16 %v4329, %v4321
    %v4994 = vpack.c.b16 %v4330, %v4322
    %v4995 = vpack.c.b16 %v4331, %v4323
    %v4996 = vpack.c.b16 %v4332, %v4324
    %v4997 = vpack.c.b16 %v4333, %v4325
    %v4998 = vpack.c.b16 %v4342, %v4334
    %v4999 = vpack.c.b16 %v4343, %v4335
    %v5000 = vpack.c.b16 %v4344, %v4336
    %v5001 = vpack.c.b16 %v4345, %v4337
    %v5002 = vpack.c.b16 %v4346, %v4338
    %v5003 = vpack.c.b16 %v4347, %v4339
    %v5004 = vpack.c.b16 %v4348, %v4340
    %v5005 = vpack.c.b16 %v4349, %v4341
    %v5006 = vpack.c.b16 %v4358, %v4350
    %v5007 = vpack.c.b16 %v4359, %v4351
    %v5008 = vpack.c.b16 %v4360, %v4352
    %v5009 = vpack.c.b16 %v4361, %v4353
    %v5010 = vpack.c.b16 %v4362, %v4354
    %v5011 = vpack.c.b16 %v4363, %v4355
    %v5012 = vpack.c.b16 %v4364, %v4356
    %v5013 = vpack.c.b16 %v4365, %v4357
    %v5014 = vpack.c.b16 %v4374, %v4366
    %v5015 = vpack.c.b16 %v4375, %v4367
    %v5016 = vpack.c.b16 %v4376, %v4368
    %v5017 = vpack.c.b16 %v4377, %v4369
    %v5018 = vpack.c.b16 %v4378, %v4370
    %v5019 = vpack.c.b16 %v4379, %v4371
    %v5020 = vpack.c.b16 %v4380, %v4372
    %v5021 = vpack.c.b16 %v4381, %v4373
    %v5022 = vpack.c.b16 %v4390, %v4382
    %v5023 = vpack.c.b16 %v4391, %v4383
    %v5024 = vpack.c.b16 %v4392, %v4384
    %v5025 = vpack.c.b16 %v4393, %v4385
    %v5026 = vpack.c.b16 %v4394, %v4386
    %v5027 = vpack.c.b16 %v4395, %v4387
    %v5028 = vpack.c.b16 %v4396, %v4388
    %v5029 = vpack.c.b16 %v4397, %v4389
    %v5030 = vpack.c.b16 %v4406, %v4398
    %v5031 = vpack.c.b16 %v4407, %v4399
    %v5032 = vpack.c.b16 %v4408, %v4400
    %v5033 = vpack.c.b16 %v4409, %v4401
    %v5034 = vpack.c.b16 %v4410, %v4402
    %v5035 = vpack.c.b16 %v4411, %v4403
    %v5036 = vpack.c.b16 %v4412, %v4404
    %v5037 = vpack.c.b16 %v4413, %v4405
    %v5038 = vpack.c.b16 %v4422, %v4414
    %v5039 = vpack.c.b16 %v4423, %v4415
    %v5040 = vpack.c.b16 %v4424, %v4416
    %v5041 = vpack.c.b16 %v4425, %v4417
    %v5042 = vpack.c.b16 %v4426, %v4418
    %v5043 = vpack.c.b16 %v4427, %v4419
    %v5044 = vpack.c.b16 %v4428, %v4420
    %v5045 = vpack.c.b16 %v4429, %v4421
    %v5046 = vpack.c.b16 %v4438, %v4430
    %v5047 = vpack.c.b16 %v4439, %v4431
    %v5048 = vpack.c.b16 %v4440, %v4432
    %v5049 = vpack.c.b16 %v4441, %v4433
    %v5050 = vpack.c.b16 %v4442, %v4434
    %v5051 = vpack.c.b16 %v4443, %v4435
    %v5052 = vpack.c.b16 %v4444, %v4436
    %v5053 = vpack.c.b16 %v4445, %v4437
    %v5054 = vpack.c.b16 %v4454, %v4446
    %v5055 = vpack.c.b16 %v4455, %v4447
    %v5056 = vpack.c.b16 %v4456, %v4448
    %v5057 = vpack.c.b16 %v4457, %v4449
    %v5058 = vpack.c.b16 %v4458, %v4450
    %v5059 = vpack.c.b16 %v4459, %v4451
    %v5060 = vpack.c.b16 %v4460, %v4452
    %v5061 = vpack.c.b16 %v4461, %v4453
    %v5062 = vpack.c.b16 %v4470, %v4462
    %v5063 = vpack.c.b16 %v4471, %v4463
    %v5064 = vpack.c.b16 %v4472, %v4464
    %v5065 = vpack.c.b16 %v4473, %v4465
    %v5066 = vpack.c.b16 %v4474, %v4466
    %v5067 = vpack.c.b16 %v4475, %v4467
    %v5068 = vpack.c.b16 %v4476, %v4468
    %v5069 = vpack.c.b16 %v4477, %v4469
    %v5070 = vpack.c.b16 %v4486, %v4478
    %v5071 = vpack.c.b16 %v4487, %v4479
    %v5072 = vpack.c.b16 %v4488, %v4480
    %v5073 = vpack.c.b16 %v4489, %v4481
    %v5074 = vpack.c.b16 %v4490, %v4482
    %v5075 = vpack.c.b16 %v4491, %v4483
    %v5076 = vpack.c.b16 %v4492, %v4484
    %v5077 = vpack.c.b16 %v4493, %v4485
    %v5078 = vpack.c.b16 %v4502, %v4494
    %v5079 = vpack.c.b16 %v4503, %v4495
    %v5080 = vpack.c.b16 %v4504, %v4496
    %v5081 = vpack.c.b16 %v4505, %v4497
    %v5082 = vpack.c.b16 %v4506, %v4498
    %v5083 = vpack.c.b16 %v4507, %v4499
    %v5084 = vpack.c.b16 %v4508, %v4500
    %v5085 = vpack.c.b16 %v4509, %v4501
    %v5086 = vpack.c.b16 %v4518, %v4510
    %v5087 = vpack.c.b16 %v4519, %v4511
    %v5088 = vpack.c.b16 %v4520, %v4512
    %v5089 = vpack.c.b16 %v4521, %v4513
    %v5090 = vpack.c.b16 %v4522, %v4514
    %v5091 = vpack.c.b16 %v4523, %v4515
    %v5092 = vpack.c.b16 %v4524, %v4516
    %v5093 = vpack.c.b16 %v4525, %v4517
    %v5094 = vpack.c.b16 %v4534, %v4526
    %v5095 = vpack.c.b16 %v4535, %v4527
    %v5096 = vpack.c.b16 %v4536, %v4528
    %v5097 = vpack.c.b16 %v4537, %v4529
    %v5098 = vpack.c.b16 %v4538, %v4530
    %v5099 = vpack.c.b16 %v4539, %v4531
    %v5100 = vpack.c.b16 %v4540, %v4532
    %v5101 = vpack.c.b16 %v4541, %v4533
    %v5102 = vpack.c.b16 %v4550, %v4542
    %v5103 = vpack.c.b16 %v4551, %v4543
    %v5104 = vpack.c.b16 %v4552, %v4544
    %v5105 = vpack.c.b16 %v4553, %v4545
    %v5106 = vpack.c.b16 %v4554, %v4546
    %v5107 = vpack.c.b16 %v4555, %v4547
    %v5108 = vpack.c.b16 %v4556, %v4548
    %v5109 = vpack.c.b16 %v4557, %v4549
    %v5110 = vpack.c.b16 %v4566, %v4558
    %v5111 = vpack.c.b16 %v4567, %v4559
    %v5112 = vpack.c.b16 %v4568, %v4560
    %v5113 = vpack.c.b16 %v4569, %v4561
    %v5114 = vpack.c.b16 %v4570, %v4562
    %v5115 = vpack.c.b16 %v4571, %v4563
    %v5116 = vpack.c.b16 %v4572, %v4564
    %v5117 = vpack.c.b16 %v4573, %v4565
    %v5118 = vpack.c.b16 %v4582, %v4574
    %v5119 = vpack.c.b16 %v4583, %v4575
    %v5120 = vpack.c.b16 %v4584, %v4576
    %v5121 = vpack.c.b16 %v4585, %v4577
    %v5122 = vpack.c.b16 %v4586, %v4578
    %v5123 = vpack.c.b16 %v4587, %v4579
    %v5124 = vpack.c.b16 %v4588, %v4580
    %v5125 = vpack.c.b16 %v4589, %v4581
    %v5126 = vpack.c.b16 %v4598, %v4590
    %v5127 = vpack.c.b16 %v4599, %v4591
    %v5128 = vpack.c.b16 %v4600, %v4592
    %v5129 = vpack.c.b16 %v4601, %v4593
    %v5130 = vpack.c.b16 %v4602, %v4594
    %v5131 = vpack.c.b16 %v4603, %v4595
    %v5132 = vpack.c.b16 %v4604, %v4596
    %v5133 = vpack.c.b16 %v4605, %v4597
    %v5134 = vpack.c.b16 %v4614, %v4606
    %v5135 = vpack.c.b16 %v4615, %v4607
    %v5136 = vpack.c.b16 %v4616, %v4608
    %v5137 = vpack.c.b16 %v4617, %v4609
    %v5138 = vpack.c.b16 %v4618, %v4610
    %v5139 = vpack.c.b16 %v4619, %v4611
    %v5140 = vpack.c.b16 %v4620, %v4612
    %v5141 = vpack.c.b16 %v4621, %v4613
    %v5142 = vpack.c.b16 %v4630, %v4622
    %v5143 = vpack.c.b16 %v4631, %v4623
    %v5144 = vpack.c.b16 %v4632, %v4624
    %v5145 = vpack.c.b16 %v4633, %v4625
    %v5146 = vpack.c.b16 %v4634, %v4626
    %v5147 = vpack.c.b16 %v4635, %v4627
    %v5148 = vpack.c.b16 %v4636, %v4628
    %v5149 = vpack.c.b16 %v4637, %v4629
    %5662 = vmatpush.bf16.msra.mxu0 %v4694
    %5663 = vmatpush.bf16.msra.mxu0 %v4686
    %5664 = vmatpush.bf16.msra.mxu0 %v4678
    %5665 = vmatpush.bf16.msra.mxu0 %v4670
    %5666 = vmatpush.bf16.msra.mxu0 %v4662
    %5667 = vmatpush.bf16.msra.mxu0 %v4654
    %5668 = vmatpush.bf16.msra.mxu0 %v4646
    %5669 = vmatpush.bf16.msra.mxu0 %v4638
    %5670 = vmatmul.bf16.gmra.mxu0 %v2564
    %v5671 = vpop.f32.mrf.mxu0
    %v5672 = vadd.f32 %v3086, %v5671
    %v5673 = vpop.f32.mrf.mxu0
    %5674 = vdwg.mxu0
    %5675 = vmatpush.bf16.msra.mxu0 %v4758
    %5676 = vmatpush.bf16.msra.mxu0 %v4750
    %5677 = vmatpush.bf16.msra.mxu0 %v4742
    %5678 = vmatpush.bf16.msra.mxu0 %v4734
    %5679 = vmatpush.bf16.msra.mxu0 %v4726
    %5680 = vmatpush.bf16.msra.mxu0 %v4718
    %5681 = vmatpush.bf16.msra.mxu0 %v4710
    %5682 = vmatpush.bf16.msra.mxu0 %v4702
    %5683 = vmatmul.bf16.gmra.mxu0 %v2565
    %v5684 = vpop.f32.mrf.mxu0
    %v5685 = vadd.f32 %v5672, %v5684
    %v5686 = vpop.f32.mrf.mxu0
    %5687 = vdwg.mxu0
    %5688 = vmatpush.bf16.msra.mxu0 %v4822
    %5689 = vmatpush.bf16.msra.mxu0 %v4814
    %5690 = vmatpush.bf16.msra.mxu0 %v4806
    %5691 = vmatpush.bf16.msra.mxu0 %v4798
    %5692 = vmatpush.bf16.msra.mxu0 %v4790
    %5693 = vmatpush.bf16.msra.mxu0 %v4782
    %5694 = vmatpush.bf16.msra.mxu0 %v4774
    %5695 = vmatpush.bf16.msra.mxu0 %v4766
    %5696 = vmatmul.bf16.gmra.mxu0 %v2566
    %v5697 = vpop.f32.mrf.mxu0
    %v5698 = vadd.f32 %v5685, %v5697
    %v5699 = vpop.f32.mrf.mxu0
    %5700 = vdwg.mxu0
    %5701 = vmatpush.bf16.msra.mxu0 %v4886
    %5702 = vmatpush.bf16.msra.mxu0 %v4878
    %5703 = vmatpush.bf16.msra.mxu0 %v4870
    %5704 = vmatpush.bf16.msra.mxu0 %v4862
    %5705 = vmatpush.bf16.msra.mxu0 %v4854
    %5706 = vmatpush.bf16.msra.mxu0 %v4846
    %5707 = vmatpush.bf16.msra.mxu0 %v4838
    %5708 = vmatpush.bf16.msra.mxu0 %v4830
    %5709 = vmatmul.bf16.gmra.mxu0 %v2567
    %v5710 = vpop.f32.mrf.mxu0
    %v5711 = vadd.f32 %v5698, %v5710
    %v5712 = vpop.f32.mrf.mxu0
    %5713 = vdwg.mxu0
    %5714 = vmatpush.bf16.msra.mxu0 %v4950
    %5715 = vmatpush.bf16.msra.mxu0 %v4942
    %5716 = vmatpush.bf16.msra.mxu0 %v4934
    %5717 = vmatpush.bf16.msra.mxu0 %v4926
    %5718 = vmatpush.bf16.msra.mxu0 %v4918
    %5719 = vmatpush.bf16.msra.mxu0 %v4910
    %5720 = vmatpush.bf16.msra.mxu0 %v4902
    %5721 = vmatpush.bf16.msra.mxu0 %v4894
    %5722 = vmatmul.bf16.gmra.mxu0 %v2568
    %v5723 = vpop.f32.mrf.mxu0
    %v5724 = vadd.f32 %v5711, %v5723
    %v5725 = vpop.f32.mrf.mxu0
    %5726 = vdwg.mxu0
    %5727 = vmatpush.bf16.msra.mxu0 %v5014
    %5728 = vmatpush.bf16.msra.mxu0 %v5006
    %5729 = vmatpush.bf16.msra.mxu0 %v4998
    %5730 = vmatpush.bf16.msra.mxu0 %v4990
    %5731 = vmatpush.bf16.msra.mxu0 %v4982
    %5732 = vmatpush.bf16.msra.mxu0 %v4974
    %5733 = vmatpush.bf16.msra.mxu0 %v4966
    %5734 = vmatpush.bf16.msra.mxu0 %v4958
    %5735 = vmatmul.bf16.gmra.mxu0 %v2569
    %v5736 = vpop.f32.mrf.mxu0
    %v5737 = vadd.f32 %v5724, %v5736
    %v5738 = vpop.f32.mrf.mxu0
    %5739 = vdwg.mxu0
    %5740 = vmatpush.bf16.msra.mxu0 %v5078
    %5741 = vmatpush.bf16.msra.mxu0 %v5070
    %5742 = vmatpush.bf16.msra.mxu0 %v5062
    %5743 = vmatpush.bf16.msra.mxu0 %v5054
    %5744 = vmatpush.bf16.msra.mxu0 %v5046
    %5745 = vmatpush.bf16.msra.mxu0 %v5038
    %5746 = vmatpush.bf16.msra.mxu0 %v5030
    %5747 = vmatpush.bf16.msra.mxu0 %v5022
    %5748 = vmatmul.bf16.gmra.mxu0 %v2570
    %v5749 = vpop.f32.mrf.mxu0
    %v5750 = vadd.f32 %v5737, %v5749
    %v5751 = vpop.f32.mrf.mxu0
    %5752 = vdwg.mxu0
    %5753 = vmatpush.bf16.msra.mxu0 %v5142
    %5754 = vmatpush.bf16.msra.mxu0 %v5134
    %5755 = vmatpush.bf16.msra.mxu0 %v5126
    %5756 = vmatpush.bf16.msra.mxu0 %v5118
    %5757 = vmatpush.bf16.msra.mxu0 %v5110
    %5758 = vmatpush.bf16.msra.mxu0 %v5102
    %5759 = vmatpush.bf16.msra.mxu0 %v5094
    %5760 = vmatpush.bf16.msra.mxu0 %v5086
    %5761 = vmatmul.bf16.gmra.mxu0 %v2571
    %v5762 = vpop.f32.mrf.mxu0
    %v5763 = vadd.f32 %v5750, %v5762
    %v5764 = vpop.f32.mrf.mxu0
    %5765 = vdwg.mxu0
    %5766 = vmatpush.bf16.msra.mxu0 %v4695
    %5767 = vmatpush.bf16.msra.mxu0 %v4687
    %5768 = vmatpush.bf16.msra.mxu0 %v4679
    %5769 = vmatpush.bf16.msra.mxu0 %v4671
    %5770 = vmatpush.bf16.msra.mxu0 %v4663
    %5771 = vmatpush.bf16.msra.mxu0 %v4655
    %5772 = vmatpush.bf16.msra.mxu0 %v4647
    %5773 = vmatpush.bf16.msra.mxu0 %v4639
    %5774 = vmatmul.bf16.gmra.mxu0 %v2564
    %v5775 = vpop.f32.mrf.mxu0
    %v5776 = vadd.f32 %v3087, %v5775
    %v5777 = vpop.f32.mrf.mxu0
    %5778 = vdwg.mxu0
    %5779 = vmatpush.bf16.msra.mxu0 %v4759
    %5780 = vmatpush.bf16.msra.mxu0 %v4751
    %5781 = vmatpush.bf16.msra.mxu0 %v4743
    %5782 = vmatpush.bf16.msra.mxu0 %v4735
    %5783 = vmatpush.bf16.msra.mxu0 %v4727
    %5784 = vmatpush.bf16.msra.mxu0 %v4719
    %5785 = vmatpush.bf16.msra.mxu0 %v4711
    %5786 = vmatpush.bf16.msra.mxu0 %v4703
    %5787 = vmatmul.bf16.gmra.mxu0 %v2565
    %v5788 = vpop.f32.mrf.mxu0
    %v5789 = vadd.f32 %v5776, %v5788
    %v5790 = vpop.f32.mrf.mxu0
    %5791 = vdwg.mxu0
    %5792 = vmatpush.bf16.msra.mxu0 %v4823
    %5793 = vmatpush.bf16.msra.mxu0 %v4815
    %5794 = vmatpush.bf16.msra.mxu0 %v4807
    %5795 = vmatpush.bf16.msra.mxu0 %v4799
    %5796 = vmatpush.bf16.msra.mxu0 %v4791
    %5797 = vmatpush.bf16.msra.mxu0 %v4783
    %5798 = vmatpush.bf16.msra.mxu0 %v4775
    %5799 = vmatpush.bf16.msra.mxu0 %v4767
    %5800 = vmatmul.bf16.gmra.mxu0 %v2566
    %v5801 = vpop.f32.mrf.mxu0
    %v5802 = vadd.f32 %v5789, %v5801
    %v5803 = vpop.f32.mrf.mxu0
    %5804 = vdwg.mxu0
    %5805 = vmatpush.bf16.msra.mxu0 %v4887
    %5806 = vmatpush.bf16.msra.mxu0 %v4879
    %5807 = vmatpush.bf16.msra.mxu0 %v4871
    %5808 = vmatpush.bf16.msra.mxu0 %v4863
    %5809 = vmatpush.bf16.msra.mxu0 %v4855
    %5810 = vmatpush.bf16.msra.mxu0 %v4847
    %5811 = vmatpush.bf16.msra.mxu0 %v4839
    %5812 = vmatpush.bf16.msra.mxu0 %v4831
    %5813 = vmatmul.bf16.gmra.mxu0 %v2567
    %v5814 = vpop.f32.mrf.mxu0
    %v5815 = vadd.f32 %v5802, %v5814
    %v5816 = vpop.f32.mrf.mxu0
    %5817 = vdwg.mxu0
    %5818 = vmatpush.bf16.msra.mxu0 %v4951
    %5819 = vmatpush.bf16.msra.mxu0 %v4943
    %5820 = vmatpush.bf16.msra.mxu0 %v4935
    %5821 = vmatpush.bf16.msra.mxu0 %v4927
    %5822 = vmatpush.bf16.msra.mxu0 %v4919
    %5823 = vmatpush.bf16.msra.mxu0 %v4911
    %5824 = vmatpush.bf16.msra.mxu0 %v4903
    %5825 = vmatpush.bf16.msra.mxu0 %v4895
    %5826 = vmatmul.bf16.gmra.mxu0 %v2568
    %v5827 = vpop.f32.mrf.mxu0
    %v5828 = vadd.f32 %v5815, %v5827
    %v5829 = vpop.f32.mrf.mxu0
    %5830 = vdwg.mxu0
    %5831 = vmatpush.bf16.msra.mxu0 %v5015
    %5832 = vmatpush.bf16.msra.mxu0 %v5007
    %5833 = vmatpush.bf16.msra.mxu0 %v4999
    %5834 = vmatpush.bf16.msra.mxu0 %v4991
    %5835 = vmatpush.bf16.msra.mxu0 %v4983
    %5836 = vmatpush.bf16.msra.mxu0 %v4975
    %5837 = vmatpush.bf16.msra.mxu0 %v4967
    %5838 = vmatpush.bf16.msra.mxu0 %v4959
    %5839 = vmatmul.bf16.gmra.mxu0 %v2569
    %v5840 = vpop.f32.mrf.mxu0
    %v5841 = vadd.f32 %v5828, %v5840
    %v5842 = vpop.f32.mrf.mxu0
    %5843 = vdwg.mxu0
    %5844 = vmatpush.bf16.msra.mxu0 %v5079
    %5845 = vmatpush.bf16.msra.mxu0 %v5071
    %5846 = vmatpush.bf16.msra.mxu0 %v5063
    %5847 = vmatpush.bf16.msra.mxu0 %v5055
    %5848 = vmatpush.bf16.msra.mxu0 %v5047
    %5849 = vmatpush.bf16.msra.mxu0 %v5039
    %5850 = vmatpush.bf16.msra.mxu0 %v5031
    %5851 = vmatpush.bf16.msra.mxu0 %v5023
    %5852 = vmatmul.bf16.gmra.mxu0 %v2570
    %v5853 = vpop.f32.mrf.mxu0
    %v5854 = vadd.f32 %v5841, %v5853
    %v5855 = vpop.f32.mrf.mxu0
    %5856 = vdwg.mxu0
    %5857 = vmatpush.bf16.msra.mxu0 %v5143
    %5858 = vmatpush.bf16.msra.mxu0 %v5135
    %5859 = vmatpush.bf16.msra.mxu0 %v5127
    %5860 = vmatpush.bf16.msra.mxu0 %v5119
    %5861 = vmatpush.bf16.msra.mxu0 %v5111
    %5862 = vmatpush.bf16.msra.mxu0 %v5103
    %5863 = vmatpush.bf16.msra.mxu0 %v5095
    %5864 = vmatpush.bf16.msra.mxu0 %v5087
    %5865 = vmatmul.bf16.gmra.mxu0 %v2571
    %v5866 = vpop.f32.mrf.mxu0
    %v5867 = vadd.f32 %v5854, %v5866
    %v5868 = vpop.f32.mrf.mxu0
    %5869 = vdwg.mxu0
    %5870 = vmatpush.bf16.msra.mxu0 %v4696
    %5871 = vmatpush.bf16.msra.mxu0 %v4688
    %5872 = vmatpush.bf16.msra.mxu0 %v4680
    %5873 = vmatpush.bf16.msra.mxu0 %v4672
    %5874 = vmatpush.bf16.msra.mxu0 %v4664
    %5875 = vmatpush.bf16.msra.mxu0 %v4656
    %5876 = vmatpush.bf16.msra.mxu0 %v4648
    %5877 = vmatpush.bf16.msra.mxu0 %v4640
    %5878 = vmatmul.bf16.gmra.mxu0 %v2564
    %v5879 = vpop.f32.mrf.mxu0
    %v5880 = vadd.f32 %v3088, %v5879
    %v5881 = vpop.f32.mrf.mxu0
    %5882 = vdwg.mxu0
    %5883 = vmatpush.bf16.msra.mxu0 %v4760
    %5884 = vmatpush.bf16.msra.mxu0 %v4752
    %5885 = vmatpush.bf16.msra.mxu0 %v4744
    %5886 = vmatpush.bf16.msra.mxu0 %v4736
    %5887 = vmatpush.bf16.msra.mxu0 %v4728
    %5888 = vmatpush.bf16.msra.mxu0 %v4720
    %5889 = vmatpush.bf16.msra.mxu0 %v4712
    %5890 = vmatpush.bf16.msra.mxu0 %v4704
    %5891 = vmatmul.bf16.gmra.mxu0 %v2565
    %v5892 = vpop.f32.mrf.mxu0
    %v5893 = vadd.f32 %v5880, %v5892
    %v5894 = vpop.f32.mrf.mxu0
    %5895 = vdwg.mxu0
    %5896 = vmatpush.bf16.msra.mxu0 %v4824
    %5897 = vmatpush.bf16.msra.mxu0 %v4816
    %5898 = vmatpush.bf16.msra.mxu0 %v4808
    %5899 = vmatpush.bf16.msra.mxu0 %v4800
    %5900 = vmatpush.bf16.msra.mxu0 %v4792
    %5901 = vmatpush.bf16.msra.mxu0 %v4784
    %5902 = vmatpush.bf16.msra.mxu0 %v4776
    %5903 = vmatpush.bf16.msra.mxu0 %v4768
    %5904 = vmatmul.bf16.gmra.mxu0 %v2566
    %v5905 = vpop.f32.mrf.mxu0
    %v5906 = vadd.f32 %v5893, %v5905
    %v5907 = vpop.f32.mrf.mxu0
    %5908 = vdwg.mxu0
    %5909 = vmatpush.bf16.msra.mxu0 %v4888
    %5910 = vmatpush.bf16.msra.mxu0 %v4880
    %5911 = vmatpush.bf16.msra.mxu0 %v4872
    %5912 = vmatpush.bf16.msra.mxu0 %v4864
    %5913 = vmatpush.bf16.msra.mxu0 %v4856
    %5914 = vmatpush.bf16.msra.mxu0 %v4848
    %5915 = vmatpush.bf16.msra.mxu0 %v4840
    %5916 = vmatpush.bf16.msra.mxu0 %v4832
    %5917 = vmatmul.bf16.gmra.mxu0 %v2567
    %v5918 = vpop.f32.mrf.mxu0
    %v5919 = vadd.f32 %v5906, %v5918
    %v5920 = vpop.f32.mrf.mxu0
    %5921 = vdwg.mxu0
    %5922 = vmatpush.bf16.msra.mxu0 %v4952
    %5923 = vmatpush.bf16.msra.mxu0 %v4944
    %5924 = vmatpush.bf16.msra.mxu0 %v4936
    %5925 = vmatpush.bf16.msra.mxu0 %v4928
    %5926 = vmatpush.bf16.msra.mxu0 %v4920
    %5927 = vmatpush.bf16.msra.mxu0 %v4912
    %5928 = vmatpush.bf16.msra.mxu0 %v4904
    %5929 = vmatpush.bf16.msra.mxu0 %v4896
    %5930 = vmatmul.bf16.gmra.mxu0 %v2568
    %v5931 = vpop.f32.mrf.mxu0
    %v5932 = vadd.f32 %v5919, %v5931
    %v5933 = vpop.f32.mrf.mxu0
    %5934 = vdwg.mxu0
    %5935 = vmatpush.bf16.msra.mxu0 %v5016
    %5936 = vmatpush.bf16.msra.mxu0 %v5008
    %5937 = vmatpush.bf16.msra.mxu0 %v5000
    %5938 = vmatpush.bf16.msra.mxu0 %v4992
    %5939 = vmatpush.bf16.msra.mxu0 %v4984
    %5940 = vmatpush.bf16.msra.mxu0 %v4976
    %5941 = vmatpush.bf16.msra.mxu0 %v4968
    %5942 = vmatpush.bf16.msra.mxu0 %v4960
    %5943 = vmatmul.bf16.gmra.mxu0 %v2569
    %v5944 = vpop.f32.mrf.mxu0
    %v5945 = vadd.f32 %v5932, %v5944
    %v5946 = vpop.f32.mrf.mxu0
    %5947 = vdwg.mxu0
    %5948 = vmatpush.bf16.msra.mxu0 %v5080
    %5949 = vmatpush.bf16.msra.mxu0 %v5072
    %5950 = vmatpush.bf16.msra.mxu0 %v5064
    %5951 = vmatpush.bf16.msra.mxu0 %v5056
    %5952 = vmatpush.bf16.msra.mxu0 %v5048
    %5953 = vmatpush.bf16.msra.mxu0 %v5040
    %5954 = vmatpush.bf16.msra.mxu0 %v5032
    %5955 = vmatpush.bf16.msra.mxu0 %v5024
    %5956 = vmatmul.bf16.gmra.mxu0 %v2570
    %v5957 = vpop.f32.mrf.mxu0
    %v5958 = vadd.f32 %v5945, %v5957
    %v5959 = vpop.f32.mrf.mxu0
    %5960 = vdwg.mxu0
    %5961 = vmatpush.bf16.msra.mxu0 %v5144
    %5962 = vmatpush.bf16.msra.mxu0 %v5136
    %5963 = vmatpush.bf16.msra.mxu0 %v5128
    %5964 = vmatpush.bf16.msra.mxu0 %v5120
    %5965 = vmatpush.bf16.msra.mxu0 %v5112
    %5966 = vmatpush.bf16.msra.mxu0 %v5104
    %5967 = vmatpush.bf16.msra.mxu0 %v5096
    %5968 = vmatpush.bf16.msra.mxu0 %v5088
    %5969 = vmatmul.bf16.gmra.mxu0 %v2571
    %v5970 = vpop.f32.mrf.mxu0
    %v5971 = vadd.f32 %v5958, %v5970
    %v5972 = vpop.f32.mrf.mxu0
    %5973 = vdwg.mxu0
    %5974 = vmatpush.bf16.msra.mxu0 %v4697
    %5975 = vmatpush.bf16.msra.mxu0 %v4689
    %5976 = vmatpush.bf16.msra.mxu0 %v4681
    %5977 = vmatpush.bf16.msra.mxu0 %v4673
    %5978 = vmatpush.bf16.msra.mxu0 %v4665
    %5979 = vmatpush.bf16.msra.mxu0 %v4657
    %5980 = vmatpush.bf16.msra.mxu0 %v4649
    %5981 = vmatpush.bf16.msra.mxu0 %v4641
    %5982 = vmatmul.bf16.gmra.mxu0 %v2564
    %v5983 = vpop.f32.mrf.mxu0
    %v5984 = vadd.f32 %v3089, %v5983
    %v5985 = vpop.f32.mrf.mxu0
    %5986 = vdwg.mxu0
    %5987 = vmatpush.bf16.msra.mxu0 %v4761
    %5988 = vmatpush.bf16.msra.mxu0 %v4753
    %5989 = vmatpush.bf16.msra.mxu0 %v4745
    %5990 = vmatpush.bf16.msra.mxu0 %v4737
    %5991 = vmatpush.bf16.msra.mxu0 %v4729
    %5992 = vmatpush.bf16.msra.mxu0 %v4721
    %5993 = vmatpush.bf16.msra.mxu0 %v4713
    %5994 = vmatpush.bf16.msra.mxu0 %v4705
    %5995 = vmatmul.bf16.gmra.mxu0 %v2565
    %v5996 = vpop.f32.mrf.mxu0
    %v5997 = vadd.f32 %v5984, %v5996
    %v5998 = vpop.f32.mrf.mxu0
    %5999 = vdwg.mxu0
    %6000 = vmatpush.bf16.msra.mxu0 %v4825
    %6001 = vmatpush.bf16.msra.mxu0 %v4817
    %6002 = vmatpush.bf16.msra.mxu0 %v4809
    %6003 = vmatpush.bf16.msra.mxu0 %v4801
    %6004 = vmatpush.bf16.msra.mxu0 %v4793
    %6005 = vmatpush.bf16.msra.mxu0 %v4785
    %6006 = vmatpush.bf16.msra.mxu0 %v4777
    %6007 = vmatpush.bf16.msra.mxu0 %v4769
    %6008 = vmatmul.bf16.gmra.mxu0 %v2566
    %v6009 = vpop.f32.mrf.mxu0
    %v6010 = vadd.f32 %v5997, %v6009
    %v6011 = vpop.f32.mrf.mxu0
    %6012 = vdwg.mxu0
    %6013 = vmatpush.bf16.msra.mxu0 %v4889
    %6014 = vmatpush.bf16.msra.mxu0 %v4881
    %6015 = vmatpush.bf16.msra.mxu0 %v4873
    %6016 = vmatpush.bf16.msra.mxu0 %v4865
    %6017 = vmatpush.bf16.msra.mxu0 %v4857
    %6018 = vmatpush.bf16.msra.mxu0 %v4849
    %6019 = vmatpush.bf16.msra.mxu0 %v4841
    %6020 = vmatpush.bf16.msra.mxu0 %v4833
    %6021 = vmatmul.bf16.gmra.mxu0 %v2567
    %v6022 = vpop.f32.mrf.mxu0
    %v6023 = vadd.f32 %v6010, %v6022
    %v6024 = vpop.f32.mrf.mxu0
    %6025 = vdwg.mxu0
    %6026 = vmatpush.bf16.msra.mxu0 %v4953
    %6027 = vmatpush.bf16.msra.mxu0 %v4945
    %6028 = vmatpush.bf16.msra.mxu0 %v4937
    %6029 = vmatpush.bf16.msra.mxu0 %v4929
    %6030 = vmatpush.bf16.msra.mxu0 %v4921
    %6031 = vmatpush.bf16.msra.mxu0 %v4913
    %6032 = vmatpush.bf16.msra.mxu0 %v4905
    %6033 = vmatpush.bf16.msra.mxu0 %v4897
    %6034 = vmatmul.bf16.gmra.mxu0 %v2568
    %v6035 = vpop.f32.mrf.mxu0
    %v6036 = vadd.f32 %v6023, %v6035
    %v6037 = vpop.f32.mrf.mxu0
    %6038 = vdwg.mxu0
    %6039 = vmatpush.bf16.msra.mxu0 %v5017
    %6040 = vmatpush.bf16.msra.mxu0 %v5009
    %6041 = vmatpush.bf16.msra.mxu0 %v5001
    %6042 = vmatpush.bf16.msra.mxu0 %v4993
    %6043 = vmatpush.bf16.msra.mxu0 %v4985
    %6044 = vmatpush.bf16.msra.mxu0 %v4977
    %6045 = vmatpush.bf16.msra.mxu0 %v4969
    %6046 = vmatpush.bf16.msra.mxu0 %v4961
    %6047 = vmatmul.bf16.gmra.mxu0 %v2569
    %v6048 = vpop.f32.mrf.mxu0
    %v6049 = vadd.f32 %v6036, %v6048
    %v6050 = vpop.f32.mrf.mxu0
    %6051 = vdwg.mxu0
    %6052 = vmatpush.bf16.msra.mxu0 %v5081
    %6053 = vmatpush.bf16.msra.mxu0 %v5073
    %6054 = vmatpush.bf16.msra.mxu0 %v5065
    %6055 = vmatpush.bf16.msra.mxu0 %v5057
    %6056 = vmatpush.bf16.msra.mxu0 %v5049
    %6057 = vmatpush.bf16.msra.mxu0 %v5041
    %6058 = vmatpush.bf16.msra.mxu0 %v5033
    %6059 = vmatpush.bf16.msra.mxu0 %v5025
    %6060 = vmatmul.bf16.gmra.mxu0 %v2570
    %v6061 = vpop.f32.mrf.mxu0
    %v6062 = vadd.f32 %v6049, %v6061
    %v6063 = vpop.f32.mrf.mxu0
    %6064 = vdwg.mxu0
    %6065 = vmatpush.bf16.msra.mxu0 %v5145
    %6066 = vmatpush.bf16.msra.mxu0 %v5137
    %6067 = vmatpush.bf16.msra.mxu0 %v5129
    %6068 = vmatpush.bf16.msra.mxu0 %v5121
    %6069 = vmatpush.bf16.msra.mxu0 %v5113
    %6070 = vmatpush.bf16.msra.mxu0 %v5105
    %6071 = vmatpush.bf16.msra.mxu0 %v5097
    %6072 = vmatpush.bf16.msra.mxu0 %v5089
    %6073 = vmatmul.bf16.gmra.mxu0 %v2571
    %v6074 = vpop.f32.mrf.mxu0
    %v6075 = vadd.f32 %v6062, %v6074
    %v6076 = vpop.f32.mrf.mxu0
    %6077 = vdwg.mxu0
    %6078 = vmatpush.bf16.msra.mxu0 %v4698
    %6079 = vmatpush.bf16.msra.mxu0 %v4690
    %6080 = vmatpush.bf16.msra.mxu0 %v4682
    %6081 = vmatpush.bf16.msra.mxu0 %v4674
    %6082 = vmatpush.bf16.msra.mxu0 %v4666
    %6083 = vmatpush.bf16.msra.mxu0 %v4658
    %6084 = vmatpush.bf16.msra.mxu0 %v4650
    %6085 = vmatpush.bf16.msra.mxu0 %v4642
    %6086 = vmatmul.bf16.gmra.mxu0 %v2564
    %v6087 = vpop.f32.mrf.mxu0
    %v6088 = vadd.f32 %v3090, %v6087
    %v6089 = vpop.f32.mrf.mxu0
    %6090 = vdwg.mxu0
    %6091 = vmatpush.bf16.msra.mxu0 %v4762
    %6092 = vmatpush.bf16.msra.mxu0 %v4754
    %6093 = vmatpush.bf16.msra.mxu0 %v4746
    %6094 = vmatpush.bf16.msra.mxu0 %v4738
    %6095 = vmatpush.bf16.msra.mxu0 %v4730
    %6096 = vmatpush.bf16.msra.mxu0 %v4722
    %6097 = vmatpush.bf16.msra.mxu0 %v4714
    %6098 = vmatpush.bf16.msra.mxu0 %v4706
    %6099 = vmatmul.bf16.gmra.mxu0 %v2565
    %v6100 = vpop.f32.mrf.mxu0
    %v6101 = vadd.f32 %v6088, %v6100
    %v6102 = vpop.f32.mrf.mxu0
    %6103 = vdwg.mxu0
    %6104 = vmatpush.bf16.msra.mxu0 %v4826
    %6105 = vmatpush.bf16.msra.mxu0 %v4818
    %6106 = vmatpush.bf16.msra.mxu0 %v4810
    %6107 = vmatpush.bf16.msra.mxu0 %v4802
    %6108 = vmatpush.bf16.msra.mxu0 %v4794
    %6109 = vmatpush.bf16.msra.mxu0 %v4786
    %6110 = vmatpush.bf16.msra.mxu0 %v4778
    %6111 = vmatpush.bf16.msra.mxu0 %v4770
    %6112 = vmatmul.bf16.gmra.mxu0 %v2566
    %v6113 = vpop.f32.mrf.mxu0
    %v6114 = vadd.f32 %v6101, %v6113
    %v6115 = vpop.f32.mrf.mxu0
    %6116 = vdwg.mxu0
    %6117 = vmatpush.bf16.msra.mxu0 %v4890
    %6118 = vmatpush.bf16.msra.mxu0 %v4882
    %6119 = vmatpush.bf16.msra.mxu0 %v4874
    %6120 = vmatpush.bf16.msra.mxu0 %v4866
    %6121 = vmatpush.bf16.msra.mxu0 %v4858
    %6122 = vmatpush.bf16.msra.mxu0 %v4850
    %6123 = vmatpush.bf16.msra.mxu0 %v4842
    %6124 = vmatpush.bf16.msra.mxu0 %v4834
    %6125 = vmatmul.bf16.gmra.mxu0 %v2567
    %v6126 = vpop.f32.mrf.mxu0
    %v6127 = vadd.f32 %v6114, %v6126
    %v6128 = vpop.f32.mrf.mxu0
    %6129 = vdwg.mxu0
    %6130 = vmatpush.bf16.msra.mxu0 %v4954
    %6131 = vmatpush.bf16.msra.mxu0 %v4946
    %6132 = vmatpush.bf16.msra.mxu0 %v4938
    %6133 = vmatpush.bf16.msra.mxu0 %v4930
    %6134 = vmatpush.bf16.msra.mxu0 %v4922
    %6135 = vmatpush.bf16.msra.mxu0 %v4914
    %6136 = vmatpush.bf16.msra.mxu0 %v4906
    %6137 = vmatpush.bf16.msra.mxu0 %v4898
    %6138 = vmatmul.bf16.gmra.mxu0 %v2568
    %v6139 = vpop.f32.mrf.mxu0
    %v6140 = vadd.f32 %v6127, %v6139
    %v6141 = vpop.f32.mrf.mxu0
    %6142 = vdwg.mxu0
    %6143 = vmatpush.bf16.msra.mxu0 %v5018
    %6144 = vmatpush.bf16.msra.mxu0 %v5010
    %6145 = vmatpush.bf16.msra.mxu0 %v5002
    %6146 = vmatpush.bf16.msra.mxu0 %v4994
    %6147 = vmatpush.bf16.msra.mxu0 %v4986
    %6148 = vmatpush.bf16.msra.mxu0 %v4978
    %6149 = vmatpush.bf16.msra.mxu0 %v4970
    %6150 = vmatpush.bf16.msra.mxu0 %v4962
    %6151 = vmatmul.bf16.gmra.mxu0 %v2569
    %v6152 = vpop.f32.mrf.mxu0
    %v6153 = vadd.f32 %v6140, %v6152
    %v6154 = vpop.f32.mrf.mxu0
    %6155 = vdwg.mxu0
    %6156 = vmatpush.bf16.msra.mxu0 %v5082
    %6157 = vmatpush.bf16.msra.mxu0 %v5074
    %6158 = vmatpush.bf16.msra.mxu0 %v5066
    %6159 = vmatpush.bf16.msra.mxu0 %v5058
    %6160 = vmatpush.bf16.msra.mxu0 %v5050
    %6161 = vmatpush.bf16.msra.mxu0 %v5042
    %6162 = vmatpush.bf16.msra.mxu0 %v5034
    %6163 = vmatpush.bf16.msra.mxu0 %v5026
    %6164 = vmatmul.bf16.gmra.mxu0 %v2570
    %v6165 = vpop.f32.mrf.mxu0
    %v6166 = vadd.f32 %v6153, %v6165
    %v6167 = vpop.f32.mrf.mxu0
    %6168 = vdwg.mxu0
    %6169 = vmatpush.bf16.msra.mxu0 %v5146
    %6170 = vmatpush.bf16.msra.mxu0 %v5138
    %6171 = vmatpush.bf16.msra.mxu0 %v5130
    %6172 = vmatpush.bf16.msra.mxu0 %v5122
    %6173 = vmatpush.bf16.msra.mxu0 %v5114
    %6174 = vmatpush.bf16.msra.mxu0 %v5106
    %6175 = vmatpush.bf16.msra.mxu0 %v5098
    %6176 = vmatpush.bf16.msra.mxu0 %v5090
    %6177 = vmatmul.bf16.gmra.mxu0 %v2571
    %v6178 = vpop.f32.mrf.mxu0
    %v6179 = vadd.f32 %v6166, %v6178
    %v6180 = vpop.f32.mrf.mxu0
    %6181 = vdwg.mxu0
    %6182 = vmatpush.bf16.msra.mxu0 %v4699
    %6183 = vmatpush.bf16.msra.mxu0 %v4691
    %6184 = vmatpush.bf16.msra.mxu0 %v4683
    %6185 = vmatpush.bf16.msra.mxu0 %v4675
    %6186 = vmatpush.bf16.msra.mxu0 %v4667
    %6187 = vmatpush.bf16.msra.mxu0 %v4659
    %6188 = vmatpush.bf16.msra.mxu0 %v4651
    %6189 = vmatpush.bf16.msra.mxu0 %v4643
    %6190 = vmatmul.bf16.gmra.mxu0 %v2564
    %v6191 = vpop.f32.mrf.mxu0
    %v6192 = vadd.f32 %v3091, %v6191
    %v6193 = vpop.f32.mrf.mxu0
    %6194 = vdwg.mxu0
    %6195 = vmatpush.bf16.msra.mxu0 %v4763
    %6196 = vmatpush.bf16.msra.mxu0 %v4755
    %6197 = vmatpush.bf16.msra.mxu0 %v4747
    %6198 = vmatpush.bf16.msra.mxu0 %v4739
    %6199 = vmatpush.bf16.msra.mxu0 %v4731
    %6200 = vmatpush.bf16.msra.mxu0 %v4723
    %6201 = vmatpush.bf16.msra.mxu0 %v4715
    %6202 = vmatpush.bf16.msra.mxu0 %v4707
    %6203 = vmatmul.bf16.gmra.mxu0 %v2565
    %v6204 = vpop.f32.mrf.mxu0
    %v6205 = vadd.f32 %v6192, %v6204
    %v6206 = vpop.f32.mrf.mxu0
    %6207 = vdwg.mxu0
    %6208 = vmatpush.bf16.msra.mxu0 %v4827
    %6209 = vmatpush.bf16.msra.mxu0 %v4819
    %6210 = vmatpush.bf16.msra.mxu0 %v4811
    %6211 = vmatpush.bf16.msra.mxu0 %v4803
    %6212 = vmatpush.bf16.msra.mxu0 %v4795
    %6213 = vmatpush.bf16.msra.mxu0 %v4787
    %6214 = vmatpush.bf16.msra.mxu0 %v4779
    %6215 = vmatpush.bf16.msra.mxu0 %v4771
    %6216 = vmatmul.bf16.gmra.mxu0 %v2566
    %v6217 = vpop.f32.mrf.mxu0
    %v6218 = vadd.f32 %v6205, %v6217
    %v6219 = vpop.f32.mrf.mxu0
    %6220 = vdwg.mxu0
    %6221 = vmatpush.bf16.msra.mxu0 %v4891
    %6222 = vmatpush.bf16.msra.mxu0 %v4883
    %6223 = vmatpush.bf16.msra.mxu0 %v4875
    %6224 = vmatpush.bf16.msra.mxu0 %v4867
    %6225 = vmatpush.bf16.msra.mxu0 %v4859
    %6226 = vmatpush.bf16.msra.mxu0 %v4851
    %6227 = vmatpush.bf16.msra.mxu0 %v4843
    %6228 = vmatpush.bf16.msra.mxu0 %v4835
    %6229 = vmatmul.bf16.gmra.mxu0 %v2567
    %v6230 = vpop.f32.mrf.mxu0
    %v6231 = vadd.f32 %v6218, %v6230
    %v6232 = vpop.f32.mrf.mxu0
    %6233 = vdwg.mxu0
    %6234 = vmatpush.bf16.msra.mxu0 %v4955
    %6235 = vmatpush.bf16.msra.mxu0 %v4947
    %6236 = vmatpush.bf16.msra.mxu0 %v4939
    %6237 = vmatpush.bf16.msra.mxu0 %v4931
    %6238 = vmatpush.bf16.msra.mxu0 %v4923
    %6239 = vmatpush.bf16.msra.mxu0 %v4915
    %6240 = vmatpush.bf16.msra.mxu0 %v4907
    %6241 = vmatpush.bf16.msra.mxu0 %v4899
    %6242 = vmatmul.bf16.gmra.mxu0 %v2568
    %v6243 = vpop.f32.mrf.mxu0
    %v6244 = vadd.f32 %v6231, %v6243
    %v6245 = vpop.f32.mrf.mxu0
    %6246 = vdwg.mxu0
    %6247 = vmatpush.bf16.msra.mxu0 %v5019
    %6248 = vmatpush.bf16.msra.mxu0 %v5011
    %6249 = vmatpush.bf16.msra.mxu0 %v5003
    %6250 = vmatpush.bf16.msra.mxu0 %v4995
    %6251 = vmatpush.bf16.msra.mxu0 %v4987
    %6252 = vmatpush.bf16.msra.mxu0 %v4979
    %6253 = vmatpush.bf16.msra.mxu0 %v4971
    %6254 = vmatpush.bf16.msra.mxu0 %v4963
    %6255 = vmatmul.bf16.gmra.mxu0 %v2569
    %v6256 = vpop.f32.mrf.mxu0
    %v6257 = vadd.f32 %v6244, %v6256
    %v6258 = vpop.f32.mrf.mxu0
    %6259 = vdwg.mxu0
    %6260 = vmatpush.bf16.msra.mxu0 %v5083
    %6261 = vmatpush.bf16.msra.mxu0 %v5075
    %6262 = vmatpush.bf16.msra.mxu0 %v5067
    %6263 = vmatpush.bf16.msra.mxu0 %v5059
    %6264 = vmatpush.bf16.msra.mxu0 %v5051
    %6265 = vmatpush.bf16.msra.mxu0 %v5043
    %6266 = vmatpush.bf16.msra.mxu0 %v5035
    %6267 = vmatpush.bf16.msra.mxu0 %v5027
    %6268 = vmatmul.bf16.gmra.mxu0 %v2570
    %v6269 = vpop.f32.mrf.mxu0
    %v6270 = vadd.f32 %v6257, %v6269
    %v6271 = vpop.f32.mrf.mxu0
    %6272 = vdwg.mxu0
    %6273 = vmatpush.bf16.msra.mxu0 %v5147
    %6274 = vmatpush.bf16.msra.mxu0 %v5139
    %6275 = vmatpush.bf16.msra.mxu0 %v5131
    %6276 = vmatpush.bf16.msra.mxu0 %v5123
    %6277 = vmatpush.bf16.msra.mxu0 %v5115
    %6278 = vmatpush.bf16.msra.mxu0 %v5107
    %6279 = vmatpush.bf16.msra.mxu0 %v5099
    %6280 = vmatpush.bf16.msra.mxu0 %v5091
    %6281 = vmatmul.bf16.gmra.mxu0 %v2571
    %v6282 = vpop.f32.mrf.mxu0
    %v6283 = vadd.f32 %v6270, %v6282
    %v6284 = vpop.f32.mrf.mxu0
    %6285 = vdwg.mxu0
    %6286 = vmatpush.bf16.msra.mxu0 %v4700
    %6287 = vmatpush.bf16.msra.mxu0 %v4692
    %6288 = vmatpush.bf16.msra.mxu0 %v4684
    %6289 = vmatpush.bf16.msra.mxu0 %v4676
    %6290 = vmatpush.bf16.msra.mxu0 %v4668
    %6291 = vmatpush.bf16.msra.mxu0 %v4660
    %6292 = vmatpush.bf16.msra.mxu0 %v4652
    %6293 = vmatpush.bf16.msra.mxu0 %v4644
    %6294 = vmatmul.bf16.gmra.mxu0 %v2564
    %v6295 = vpop.f32.mrf.mxu0
    %v6296 = vadd.f32 %v3092, %v6295
    %v6297 = vpop.f32.mrf.mxu0
    %6298 = vdwg.mxu0
    %6299 = vmatpush.bf16.msra.mxu0 %v4764
    %6300 = vmatpush.bf16.msra.mxu0 %v4756
    %6301 = vmatpush.bf16.msra.mxu0 %v4748
    %6302 = vmatpush.bf16.msra.mxu0 %v4740
    %6303 = vmatpush.bf16.msra.mxu0 %v4732
    %6304 = vmatpush.bf16.msra.mxu0 %v4724
    %6305 = vmatpush.bf16.msra.mxu0 %v4716
    %6306 = vmatpush.bf16.msra.mxu0 %v4708
    %6307 = vmatmul.bf16.gmra.mxu0 %v2565
    %v6308 = vpop.f32.mrf.mxu0
    %v6309 = vadd.f32 %v6296, %v6308
    %v6310 = vpop.f32.mrf.mxu0
    %6311 = vdwg.mxu0
    %6312 = vmatpush.bf16.msra.mxu0 %v4828
    %6313 = vmatpush.bf16.msra.mxu0 %v4820
    %6314 = vmatpush.bf16.msra.mxu0 %v4812
    %6315 = vmatpush.bf16.msra.mxu0 %v4804
    %6316 = vmatpush.bf16.msra.mxu0 %v4796
    %6317 = vmatpush.bf16.msra.mxu0 %v4788
    %6318 = vmatpush.bf16.msra.mxu0 %v4780
    %6319 = vmatpush.bf16.msra.mxu0 %v4772
    %6320 = vmatmul.bf16.gmra.mxu0 %v2566
    %v6321 = vpop.f32.mrf.mxu0
    %v6322 = vadd.f32 %v6309, %v6321
    %v6323 = vpop.f32.mrf.mxu0
    %6324 = vdwg.mxu0
    %6325 = vmatpush.bf16.msra.mxu0 %v4892
    %6326 = vmatpush.bf16.msra.mxu0 %v4884
    %6327 = vmatpush.bf16.msra.mxu0 %v4876
    %6328 = vmatpush.bf16.msra.mxu0 %v4868
    %6329 = vmatpush.bf16.msra.mxu0 %v4860
    %6330 = vmatpush.bf16.msra.mxu0 %v4852
    %6331 = vmatpush.bf16.msra.mxu0 %v4844
    %6332 = vmatpush.bf16.msra.mxu0 %v4836
    %6333 = vmatmul.bf16.gmra.mxu0 %v2567
    %v6334 = vpop.f32.mrf.mxu0
    %v6335 = vadd.f32 %v6322, %v6334
    %v6336 = vpop.f32.mrf.mxu0
    %6337 = vdwg.mxu0
    %6338 = vmatpush.bf16.msra.mxu0 %v4956
    %6339 = vmatpush.bf16.msra.mxu0 %v4948
    %6340 = vmatpush.bf16.msra.mxu0 %v4940
    %6341 = vmatpush.bf16.msra.mxu0 %v4932
    %6342 = vmatpush.bf16.msra.mxu0 %v4924
    %6343 = vmatpush.bf16.msra.mxu0 %v4916
    %6344 = vmatpush.bf16.msra.mxu0 %v4908
    %6345 = vmatpush.bf16.msra.mxu0 %v4900
    %6346 = vmatmul.bf16.gmra.mxu0 %v2568
    %v6347 = vpop.f32.mrf.mxu0
    %v6348 = vadd.f32 %v6335, %v6347
    %v6349 = vpop.f32.mrf.mxu0
    %6350 = vdwg.mxu0
    %6351 = vmatpush.bf16.msra.mxu0 %v5020
    %6352 = vmatpush.bf16.msra.mxu0 %v5012
    %6353 = vmatpush.bf16.msra.mxu0 %v5004
    %6354 = vmatpush.bf16.msra.mxu0 %v4996
    %6355 = vmatpush.bf16.msra.mxu0 %v4988
    %6356 = vmatpush.bf16.msra.mxu0 %v4980
    %6357 = vmatpush.bf16.msra.mxu0 %v4972
    %6358 = vmatpush.bf16.msra.mxu0 %v4964
    %6359 = vmatmul.bf16.gmra.mxu0 %v2569
    %v6360 = vpop.f32.mrf.mxu0
    %v6361 = vadd.f32 %v6348, %v6360
    %v6362 = vpop.f32.mrf.mxu0
    %6363 = vdwg.mxu0
    %6364 = vmatpush.bf16.msra.mxu0 %v5084
    %6365 = vmatpush.bf16.msra.mxu0 %v5076
    %6366 = vmatpush.bf16.msra.mxu0 %v5068
    %6367 = vmatpush.bf16.msra.mxu0 %v5060
    %6368 = vmatpush.bf16.msra.mxu0 %v5052
    %6369 = vmatpush.bf16.msra.mxu0 %v5044
    %6370 = vmatpush.bf16.msra.mxu0 %v5036
    %6371 = vmatpush.bf16.msra.mxu0 %v5028
    %6372 = vmatmul.bf16.gmra.mxu0 %v2570
    %v6373 = vpop.f32.mrf.mxu0
    %v6374 = vadd.f32 %v6361, %v6373
    %v6375 = vpop.f32.mrf.mxu0
    %6376 = vdwg.mxu0
    %6377 = vmatpush.bf16.msra.mxu0 %v5148
    %6378 = vmatpush.bf16.msra.mxu0 %v5140
    %6379 = vmatpush.bf16.msra.mxu0 %v5132
    %6380 = vmatpush.bf16.msra.mxu0 %v5124
    %6381 = vmatpush.bf16.msra.mxu0 %v5116
    %6382 = vmatpush.bf16.msra.mxu0 %v5108
    %6383 = vmatpush.bf16.msra.mxu0 %v5100
    %6384 = vmatpush.bf16.msra.mxu0 %v5092
    %6385 = vmatmul.bf16.gmra.mxu0 %v2571
    %v6386 = vpop.f32.mrf.mxu0
    %v6387 = vadd.f32 %v6374, %v6386
    %v6388 = vpop.f32.mrf.mxu0
    %6389 = vdwg.mxu0
    %6390 = vmatpush.bf16.msra.mxu0 %v4701
    %6391 = vmatpush.bf16.msra.mxu0 %v4693
    %6392 = vmatpush.bf16.msra.mxu0 %v4685
    %6393 = vmatpush.bf16.msra.mxu0 %v4677
    %6394 = vmatpush.bf16.msra.mxu0 %v4669
    %6395 = vmatpush.bf16.msra.mxu0 %v4661
    %6396 = vmatpush.bf16.msra.mxu0 %v4653
    %6397 = vmatpush.bf16.msra.mxu0 %v4645
    %6398 = vmatmul.bf16.gmra.mxu0 %v2564
    %v6399 = vpop.f32.mrf.mxu0
    %v6400 = vadd.f32 %v3093, %v6399
    %v6401 = vpop.f32.mrf.mxu0
    %6402 = vdwg.mxu0
    %6403 = vmatpush.bf16.msra.mxu0 %v4765
    %6404 = vmatpush.bf16.msra.mxu0 %v4757
    %6405 = vmatpush.bf16.msra.mxu0 %v4749
    %6406 = vmatpush.bf16.msra.mxu0 %v4741
    %6407 = vmatpush.bf16.msra.mxu0 %v4733
    %6408 = vmatpush.bf16.msra.mxu0 %v4725
    %6409 = vmatpush.bf16.msra.mxu0 %v4717
    %6410 = vmatpush.bf16.msra.mxu0 %v4709
    %6411 = vmatmul.bf16.gmra.mxu0 %v2565
    %v6412 = vpop.f32.mrf.mxu0
    %v6413 = vadd.f32 %v6400, %v6412
    %v6414 = vpop.f32.mrf.mxu0
    %6415 = vdwg.mxu0
    %6416 = vmatpush.bf16.msra.mxu0 %v4829
    %6417 = vmatpush.bf16.msra.mxu0 %v4821
    %6418 = vmatpush.bf16.msra.mxu0 %v4813
    %6419 = vmatpush.bf16.msra.mxu0 %v4805
    %6420 = vmatpush.bf16.msra.mxu0 %v4797
    %6421 = vmatpush.bf16.msra.mxu0 %v4789
    %6422 = vmatpush.bf16.msra.mxu0 %v4781
    %6423 = vmatpush.bf16.msra.mxu0 %v4773
    %6424 = vmatmul.bf16.gmra.mxu0 %v2566
    %v6425 = vpop.f32.mrf.mxu0
    %v6426 = vadd.f32 %v6413, %v6425
    %v6427 = vpop.f32.mrf.mxu0
    %6428 = vdwg.mxu0
    %6429 = vmatpush.bf16.msra.mxu0 %v4893
    %6430 = vmatpush.bf16.msra.mxu0 %v4885
    %6431 = vmatpush.bf16.msra.mxu0 %v4877
    %6432 = vmatpush.bf16.msra.mxu0 %v4869
    %6433 = vmatpush.bf16.msra.mxu0 %v4861
    %6434 = vmatpush.bf16.msra.mxu0 %v4853
    %6435 = vmatpush.bf16.msra.mxu0 %v4845
    %6436 = vmatpush.bf16.msra.mxu0 %v4837
    %6437 = vmatmul.bf16.gmra.mxu0 %v2567
    %v6438 = vpop.f32.mrf.mxu0
    %v6439 = vadd.f32 %v6426, %v6438
    %v6440 = vpop.f32.mrf.mxu0
    %6441 = vdwg.mxu0
    %6442 = vmatpush.bf16.msra.mxu0 %v4957
    %6443 = vmatpush.bf16.msra.mxu0 %v4949
    %6444 = vmatpush.bf16.msra.mxu0 %v4941
    %6445 = vmatpush.bf16.msra.mxu0 %v4933
    %6446 = vmatpush.bf16.msra.mxu0 %v4925
    %6447 = vmatpush.bf16.msra.mxu0 %v4917
    %6448 = vmatpush.bf16.msra.mxu0 %v4909
    %6449 = vmatpush.bf16.msra.mxu0 %v4901
    %6450 = vmatmul.bf16.gmra.mxu0 %v2568
    %v6451 = vpop.f32.mrf.mxu0
    %v6452 = vadd.f32 %v6439, %v6451
    %v6453 = vpop.f32.mrf.mxu0
    %6454 = vdwg.mxu0
    %6455 = vmatpush.bf16.msra.mxu0 %v5021
    %6456 = vmatpush.bf16.msra.mxu0 %v5013
    %6457 = vmatpush.bf16.msra.mxu0 %v5005
    %6458 = vmatpush.bf16.msra.mxu0 %v4997
    %6459 = vmatpush.bf16.msra.mxu0 %v4989
    %6460 = vmatpush.bf16.msra.mxu0 %v4981
    %6461 = vmatpush.bf16.msra.mxu0 %v4973
    %6462 = vmatpush.bf16.msra.mxu0 %v4965
    %6463 = vmatmul.bf16.gmra.mxu0 %v2569
    %v6464 = vpop.f32.mrf.mxu0
    %v6465 = vadd.f32 %v6452, %v6464
    %v6466 = vpop.f32.mrf.mxu0
    %6467 = vdwg.mxu0
    %6468 = vmatpush.bf16.msra.mxu0 %v5085
    %6469 = vmatpush.bf16.msra.mxu0 %v5077
    %6470 = vmatpush.bf16.msra.mxu0 %v5069
    %6471 = vmatpush.bf16.msra.mxu0 %v5061
    %6472 = vmatpush.bf16.msra.mxu0 %v5053
    %6473 = vmatpush.bf16.msra.mxu0 %v5045
    %6474 = vmatpush.bf16.msra.mxu0 %v5037
    %6475 = vmatpush.bf16.msra.mxu0 %v5029
    %6476 = vmatmul.bf16.gmra.mxu0 %v2570
    %v6477 = vpop.f32.mrf.mxu0
    %v6478 = vadd.f32 %v6465, %v6477
    %v6479 = vpop.f32.mrf.mxu0
    %6480 = vdwg.mxu0
    %6481 = vmatpush.bf16.msra.mxu0 %v5149
    %6482 = vmatpush.bf16.msra.mxu0 %v5141
    %6483 = vmatpush.bf16.msra.mxu0 %v5133
    %6484 = vmatpush.bf16.msra.mxu0 %v5125
    %6485 = vmatpush.bf16.msra.mxu0 %v5117
    %6486 = vmatpush.bf16.msra.mxu0 %v5109
    %6487 = vmatpush.bf16.msra.mxu0 %v5101
    %6488 = vmatpush.bf16.msra.mxu0 %v5093
    %6489 = vmatmul.bf16.gmra.mxu0 %v2571
    %v6490 = vpop.f32.mrf.mxu0
    %v6491 = vadd.f32 %v6478, %v6490
    %v6492 = vpop.f32.mrf.mxu0
    %6493 = vdwg.mxu0
    %v6494 = vmax.f32 %v5763, 0.0
    %v6495 = vmax.f32 %v5867, 0.0
    %v6496 = vmax.f32 %v5971, 0.0
    %v6497 = vmax.f32 %v6075, 0.0
    %v6498 = vmax.f32 %v6179, 0.0
    %v6499 = vmax.f32 %v6283, 0.0
    %v6500 = vmax.f32 %v6387, 0.0
    %v6501 = vmax.f32 %v6491, 0.0
    %v6502 = vld [vmem:[%s10] sm:$0xff]
    %v6503 = vld [vmem:[%s10 + $0x8] sm:$0xff]
    %v6504 = vld [vmem:[%s10 + $0x10] sm:$0xff]
    %v6505 = vld [vmem:[%s10 + $0x18] sm:$0xff]
    %v6506 = vld [vmem:[%s10 + $0x20] sm:$0xff]
    %v6507 = vld [vmem:[%s10 + $0x28] sm:$0xff]
    %v6508 = vld [vmem:[%s10 + $0x30] sm:$0xff]
    %v6509 = vld [vmem:[%s10 + $0x38] sm:$0xff]
    %v6510 = vld [vmem:[%s10 + $0x40] sm:$0xff]
    %v6511 = vld [vmem:[%s10 + $0x48] sm:$0xff]
    %v6512 = vld [vmem:[%s10 + $0x50] sm:$0xff]
    %v6513 = vld [vmem:[%s10 + $0x58] sm:$0xff]
    %v6514 = vld [vmem:[%s10 + $0x60] sm:$0xff]
    %v6515 = vld [vmem:[%s10 + $0x68] sm:$0xff]
    %v6516 = vld [vmem:[%s10 + $0x70] sm:$0xff]
    %v6517 = vld [vmem:[%s10 + $0x78] sm:$0xff]
    %v6518 = vld [vmem:[%s10 + $0x80] sm:$0xff]
    %v6519 = vld [vmem:[%s10 + $0x88] sm:$0xff]
    %v6520 = vld [vmem:[%s10 + $0x90] sm:$0xff]
    %v6521 = vld [vmem:[%s10 + $0x98] sm:$0xff]
    %v6522 = vld [vmem:[%s10 + $0xa0] sm:$0xff]
    %v6523 = vld [vmem:[%s10 + $0xa8] sm:$0xff]
    %v6524 = vld [vmem:[%s10 + $0xb0] sm:$0xff]
    %v6525 = vld [vmem:[%s10 + $0xb8] sm:$0xff]
    %v6526 = vld [vmem:[%s10 + $0xc0] sm:$0xff]
    %v6527 = vld [vmem:[%s10 + $0xc8] sm:$0xff]
    %v6528 = vld [vmem:[%s10 + $0xd0] sm:$0xff]
    %v6529 = vld [vmem:[%s10 + $0xd8] sm:$0xff]
    %v6530 = vld [vmem:[%s10 + $0xe0] sm:$0xff]
    %v6531 = vld [vmem:[%s10 + $0xe8] sm:$0xff]
    %v6532 = vld [vmem:[%s10 + $0xf0] sm:$0xff]
    %v6533 = vld [vmem:[%s10 + $0xf8] sm:$0xff]
    %v6534 = vld [vmem:[%s10 + $0x100] sm:$0xff]
    %v6535 = vld [vmem:[%s10 + $0x108] sm:$0xff]
    %v6536 = vld [vmem:[%s10 + $0x110] sm:$0xff]
    %v6537 = vld [vmem:[%s10 + $0x118] sm:$0xff]
    %v6538 = vld [vmem:[%s10 + $0x120] sm:$0xff]
    %v6539 = vld [vmem:[%s10 + $0x128] sm:$0xff]
    %v6540 = vld [vmem:[%s10 + $0x130] sm:$0xff]
    %v6541 = vld [vmem:[%s10 + $0x138] sm:$0xff]
    %v6542 = vld [vmem:[%s10 + $0x140] sm:$0xff]
    %v6543 = vld [vmem:[%s10 + $0x148] sm:$0xff]
    %v6544 = vld [vmem:[%s10 + $0x150] sm:$0xff]
    %v6545 = vld [vmem:[%s10 + $0x158] sm:$0xff]
    %v6546 = vld [vmem:[%s10 + $0x160] sm:$0xff]
    %v6547 = vld [vmem:[%s10 + $0x168] sm:$0xff]
    %v6548 = vld [vmem:[%s10 + $0x170] sm:$0xff]
    %v6549 = vld [vmem:[%s10 + $0x178] sm:$0xff]
    %v6550 = vld [vmem:[%s10 + $0x180] sm:$0xff]
    %v6551 = vld [vmem:[%s10 + $0x188] sm:$0xff]
    %v6552 = vld [vmem:[%s10 + $0x190] sm:$0xff]
    %v6553 = vld [vmem:[%s10 + $0x198] sm:$0xff]
    %v6554 = vld [vmem:[%s10 + $0x1a0] sm:$0xff]
    %v6555 = vld [vmem:[%s10 + $0x1a8] sm:$0xff]
    %v6556 = vld [vmem:[%s10 + $0x1b0] sm:$0xff]
    %v6557 = vld [vmem:[%s10 + $0x1b8] sm:$0xff]
    %v6558 = vld [vmem:[%s10 + $0x1c0] sm:$0xff]
    %v6559 = vld [vmem:[%s10 + $0x1c8] sm:$0xff]
    %v6560 = vld [vmem:[%s10 + $0x1d0] sm:$0xff]
    %v6561 = vld [vmem:[%s10 + $0x1d8] sm:$0xff]
    %v6562 = vld [vmem:[%s10 + $0x1e0] sm:$0xff]
    %v6563 = vld [vmem:[%s10 + $0x1e8] sm:$0xff]
    %v6564 = vld [vmem:[%s10 + $0x1f0] sm:$0xff]
    %v6565 = vld [vmem:[%s10 + $0x1f8] sm:$0xff]
    %v6566 = vld [vmem:[%s10 + $0x200] sm:$0xff]
    %v6567 = vld [vmem:[%s10 + $0x208] sm:$0xff]
    %v6568 = vld [vmem:[%s10 + $0x210] sm:$0xff]
    %v6569 = vld [vmem:[%s10 + $0x218] sm:$0xff]
    %v6570 = vld [vmem:[%s10 + $0x220] sm:$0xff]
    %v6571 = vld [vmem:[%s10 + $0x228] sm:$0xff]
    %v6572 = vld [vmem:[%s10 + $0x230] sm:$0xff]
    %v6573 = vld [vmem:[%s10 + $0x238] sm:$0xff]
    %v6574 = vld [vmem:[%s10 + $0x240] sm:$0xff]
    %v6575 = vld [vmem:[%s10 + $0x248] sm:$0xff]
    %v6576 = vld [vmem:[%s10 + $0x250] sm:$0xff]
    %v6577 = vld [vmem:[%s10 + $0x258] sm:$0xff]
    %v6578 = vld [vmem:[%s10 + $0x260] sm:$0xff]
    %v6579 = vld [vmem:[%s10 + $0x268] sm:$0xff]
    %v6580 = vld [vmem:[%s10 + $0x270] sm:$0xff]
    %v6581 = vld [vmem:[%s10 + $0x278] sm:$0xff]
    %v6582 = vld [vmem:[%s10 + $0x280] sm:$0xff]
    %v6583 = vld [vmem:[%s10 + $0x288] sm:$0xff]
    %v6584 = vld [vmem:[%s10 + $0x290] sm:$0xff]
    %v6585 = vld [vmem:[%s10 + $0x298] sm:$0xff]
    %v6586 = vld [vmem:[%s10 + $0x2a0] sm:$0xff]
    %v6587 = vld [vmem:[%s10 + $0x2a8] sm:$0xff]
    %v6588 = vld [vmem:[%s10 + $0x2b0] sm:$0xff]
    %v6589 = vld [vmem:[%s10 + $0x2b8] sm:$0xff]
    %v6590 = vld [vmem:[%s10 + $0x2c0] sm:$0xff]
    %v6591 = vld [vmem:[%s10 + $0x2c8] sm:$0xff]
    %v6592 = vld [vmem:[%s10 + $0x2d0] sm:$0xff]
    %v6593 = vld [vmem:[%s10 + $0x2d8] sm:$0xff]
    %v6594 = vld [vmem:[%s10 + $0x2e0] sm:$0xff]
    %v6595 = vld [vmem:[%s10 + $0x2e8] sm:$0xff]
    %v6596 = vld [vmem:[%s10 + $0x2f0] sm:$0xff]
    %v6597 = vld [vmem:[%s10 + $0x2f8] sm:$0xff]
    %v6598 = vld [vmem:[%s10 + $0x300] sm:$0xff]
    %v6599 = vld [vmem:[%s10 + $0x308] sm:$0xff]
    %v6600 = vld [vmem:[%s10 + $0x310] sm:$0xff]
    %v6601 = vld [vmem:[%s10 + $0x318] sm:$0xff]
    %v6602 = vld [vmem:[%s10 + $0x320] sm:$0xff]
    %v6603 = vld [vmem:[%s10 + $0x328] sm:$0xff]
    %v6604 = vld [vmem:[%s10 + $0x330] sm:$0xff]
    %v6605 = vld [vmem:[%s10 + $0x338] sm:$0xff]
    %v6606 = vld [vmem:[%s10 + $0x340] sm:$0xff]
    %v6607 = vld [vmem:[%s10 + $0x348] sm:$0xff]
    %v6608 = vld [vmem:[%s10 + $0x350] sm:$0xff]
    %v6609 = vld [vmem:[%s10 + $0x358] sm:$0xff]
    %v6610 = vld [vmem:[%s10 + $0x360] sm:$0xff]
    %v6611 = vld [vmem:[%s10 + $0x368] sm:$0xff]
    %v6612 = vld [vmem:[%s10 + $0x370] sm:$0xff]
    %v6613 = vld [vmem:[%s10 + $0x378] sm:$0xff]
    %v6614 = vld [vmem:[%s10 + $0x380] sm:$0xff]
    %v6615 = vld [vmem:[%s10 + $0x388] sm:$0xff]
    %v6616 = vld [vmem:[%s10 + $0x390] sm:$0xff]
    %v6617 = vld [vmem:[%s10 + $0x398] sm:$0xff]
    %v6618 = vld [vmem:[%s10 + $0x3a0] sm:$0xff]
    %v6619 = vld [vmem:[%s10 + $0x3a8] sm:$0xff]
    %v6620 = vld [vmem:[%s10 + $0x3b0] sm:$0xff]
    %v6621 = vld [vmem:[%s10 + $0x3b8] sm:$0xff]
    %v6622 = vld [vmem:[%s10 + $0x3c0] sm:$0xff]
    %v6623 = vld [vmem:[%s10 + $0x3c8] sm:$0xff]
    %v6624 = vld [vmem:[%s10 + $0x3d0] sm:$0xff]
    %v6625 = vld [vmem:[%s10 + $0x3d8] sm:$0xff]
    %v6626 = vld [vmem:[%s10 + $0x3e0] sm:$0xff]
    %v6627 = vld [vmem:[%s10 + $0x3e8] sm:$0xff]
    %v6628 = vld [vmem:[%s10 + $0x3f0] sm:$0xff]
    %v6629 = vld [vmem:[%s10 + $0x3f8] sm:$0xff]
    %v6630 = vld [vmem:[%s11] sm:$0x1]
    %v6632 = vperm.slane %v6630, 0
    %6634 = vmatpush.msra.mxu0 %v6517
    %6635 = vmatpush.msra.mxu0 %v6516
    %6636 = vmatpush.msra.mxu0 %v6515
    %6637 = vmatpush.msra.mxu0 %v6514
    %6638 = vmatpush.msra.mxu0 %v6513
    %6639 = vmatpush.msra.mxu0 %v6512
    %6640 = vmatpush.msra.mxu0 %v6511
    %6641 = vmatpush.msra.mxu0 %v6510
    %6642 = vmatpush.msra.mxu0 %v6509
    %6643 = vmatpush.msra.mxu0 %v6508
    %6644 = vmatpush.msra.mxu0 %v6507
    %6645 = vmatpush.msra.mxu0 %v6506
    %6646 = vmatpush.msra.mxu0 %v6505
    %6647 = vmatpush.msra.mxu0 %v6504
    %6648 = vmatpush.msra.mxu0 %v6503
    %6649 = vmatpush.msra.mxu0 %v6502
    %6650 = vmatmul.f32.gmra.mxu0 %v6494
    %v6651 = vpop.f32.mrf.mxu0
    %v6652 = vadd.f32 %v6632, %v6651
    %6653 = vdwg.mxu0
    %6654 = vmatpush.msra.mxu0 %v6533
    %6655 = vmatpush.msra.mxu0 %v6532
    %6656 = vmatpush.msra.mxu0 %v6531
    %6657 = vmatpush.msra.mxu0 %v6530
    %6658 = vmatpush.msra.mxu0 %v6529
    %6659 = vmatpush.msra.mxu0 %v6528
    %6660 = vmatpush.msra.mxu0 %v6527
    %6661 = vmatpush.msra.mxu0 %v6526
    %6662 = vmatpush.msra.mxu0 %v6525
    %6663 = vmatpush.msra.mxu0 %v6524
    %6664 = vmatpush.msra.mxu0 %v6523
    %6665 = vmatpush.msra.mxu0 %v6522
    %6666 = vmatpush.msra.mxu0 %v6521
    %6667 = vmatpush.msra.mxu0 %v6520
    %6668 = vmatpush.msra.mxu0 %v6519
    %6669 = vmatpush.msra.mxu0 %v6518
    %6670 = vmatmul.f32.gmra.mxu0 %v6495
    %v6671 = vpop.f32.mrf.mxu0
    %v6672 = vadd.f32 %v6652, %v6671
    %6673 = vdwg.mxu0
    %6674 = vmatpush.msra.mxu0 %v6549
    %6675 = vmatpush.msra.mxu0 %v6548
    %6676 = vmatpush.msra.mxu0 %v6547
    %6677 = vmatpush.msra.mxu0 %v6546
    %6678 = vmatpush.msra.mxu0 %v6545
    %6679 = vmatpush.msra.mxu0 %v6544
    %6680 = vmatpush.msra.mxu0 %v6543
    %6681 = vmatpush.msra.mxu0 %v6542
    %6682 = vmatpush.msra.mxu0 %v6541
    %6683 = vmatpush.msra.mxu0 %v6540
    %6684 = vmatpush.msra.mxu0 %v6539
    %6685 = vmatpush.msra.mxu0 %v6538
    %6686 = vmatpush.msra.mxu0 %v6537
    %6687 = vmatpush.msra.mxu0 %v6536
    %6688 = vmatpush.msra.mxu0 %v6535
    %6689 = vmatpush.msra.mxu0 %v6534
    %6690 = vmatmul.f32.gmra.mxu0 %v6496
    %v6691 = vpop.f32.mrf.mxu0
    %v6692 = vadd.f32 %v6672, %v6691
    %6693 = vdwg.mxu0
    %6694 = vmatpush.msra.mxu0 %v6565
    %6695 = vmatpush.msra.mxu0 %v6564
    %6696 = vmatpush.msra.mxu0 %v6563
    %6697 = vmatpush.msra.mxu0 %v6562
    %6698 = vmatpush.msra.mxu0 %v6561
    %6699 = vmatpush.msra.mxu0 %v6560
    %6700 = vmatpush.msra.mxu0 %v6559
    %6701 = vmatpush.msra.mxu0 %v6558
    %6702 = vmatpush.msra.mxu0 %v6557
    %6703 = vmatpush.msra.mxu0 %v6556
    %6704 = vmatpush.msra.mxu0 %v6555
    %6705 = vmatpush.msra.mxu0 %v6554
    %6706 = vmatpush.msra.mxu0 %v6553
    %6707 = vmatpush.msra.mxu0 %v6552
    %6708 = vmatpush.msra.mxu0 %v6551
    %6709 = vmatpush.msra.mxu0 %v6550
    %6710 = vmatmul.f32.gmra.mxu0 %v6497
    %v6711 = vpop.f32.mrf.mxu0
    %v6712 = vadd.f32 %v6692, %v6711
    %6713 = vdwg.mxu0
    %6714 = vmatpush.msra.mxu0 %v6581
    %6715 = vmatpush.msra.mxu0 %v6580
    %6716 = vmatpush.msra.mxu0 %v6579
    %6717 = vmatpush.msra.mxu0 %v6578
    %6718 = vmatpush.msra.mxu0 %v6577
    %6719 = vmatpush.msra.mxu0 %v6576
    %6720 = vmatpush.msra.mxu0 %v6575
    %6721 = vmatpush.msra.mxu0 %v6574
    %6722 = vmatpush.msra.mxu0 %v6573
    %6723 = vmatpush.msra.mxu0 %v6572
    %6724 = vmatpush.msra.mxu0 %v6571
    %6725 = vmatpush.msra.mxu0 %v6570
    %6726 = vmatpush.msra.mxu0 %v6569
    %6727 = vmatpush.msra.mxu0 %v6568
    %6728 = vmatpush.msra.mxu0 %v6567
    %6729 = vmatpush.msra.mxu0 %v6566
    %6730 = vmatmul.f32.gmra.mxu0 %v6498
    %v6731 = vpop.f32.mrf.mxu0
    %v6732 = vadd.f32 %v6712, %v6731
    %6733 = vdwg.mxu0
    %6734 = vmatpush.msra.mxu0 %v6597
    %6735 = vmatpush.msra.mxu0 %v6596
    %6736 = vmatpush.msra.mxu0 %v6595
    %6737 = vmatpush.msra.mxu0 %v6594
    %6738 = vmatpush.msra.mxu0 %v6593
    %6739 = vmatpush.msra.mxu0 %v6592
    %6740 = vmatpush.msra.mxu0 %v6591
    %6741 = vmatpush.msra.mxu0 %v6590
    %6742 = vmatpush.msra.mxu0 %v6589
    %6743 = vmatpush.msra.mxu0 %v6588
    %6744 = vmatpush.msra.mxu0 %v6587
    %6745 = vmatpush.msra.mxu0 %v6586
    %6746 = vmatpush.msra.mxu0 %v6585
    %6747 = vmatpush.msra.mxu0 %v6584
    %6748 = vmatpush.msra.mxu0 %v6583
    %6749 = vmatpush.msra.mxu0 %v6582
    %6750 = vmatmul.f32.gmra.mxu0 %v6499
    %v6751 = vpop.f32.mrf.mxu0
    %v6752 = vadd.f32 %v6732, %v6751
    %6753 = vdwg.mxu0
    %6754 = vmatpush.msra.mxu0 %v6613
    %6755 = vmatpush.msra.mxu0 %v6612
    %6756 = vmatpush.msra.mxu0 %v6611
    %6757 = vmatpush.msra.mxu0 %v6610
    %6758 = vmatpush.msra.mxu0 %v6609
    %6759 = vmatpush.msra.mxu0 %v6608
    %6760 = vmatpush.msra.mxu0 %v6607
    %6761 = vmatpush.msra.mxu0 %v6606
    %6762 = vmatpush.msra.mxu0 %v6605
    %6763 = vmatpush.msra.mxu0 %v6604
    %6764 = vmatpush.msra.mxu0 %v6603
    %6765 = vmatpush.msra.mxu0 %v6602
    %6766 = vmatpush.msra.mxu0 %v6601
    %6767 = vmatpush.msra.mxu0 %v6600
    %6768 = vmatpush.msra.mxu0 %v6599
    %6769 = vmatpush.msra.mxu0 %v6598
    %6770 = vmatmul.f32.gmra.mxu0 %v6500
    %v6771 = vpop.f32.mrf.mxu0
    %v6772 = vadd.f32 %v6752, %v6771
    %6773 = vdwg.mxu0
    %6774 = vmatpush.msra.mxu0 %v6629
    %6775 = vmatpush.msra.mxu0 %v6628
    %6776 = vmatpush.msra.mxu0 %v6627
    %6777 = vmatpush.msra.mxu0 %v6626
    %6778 = vmatpush.msra.mxu0 %v6625
    %6779 = vmatpush.msra.mxu0 %v6624
    %6780 = vmatpush.msra.mxu0 %v6623
    %6781 = vmatpush.msra.mxu0 %v6622
    %6782 = vmatpush.msra.mxu0 %v6621
    %6783 = vmatpush.msra.mxu0 %v6620
    %6784 = vmatpush.msra.mxu0 %v6619
    %6785 = vmatpush.msra.mxu0 %v6618
    %6786 = vmatpush.msra.mxu0 %v6617
    %6787 = vmatpush.msra.mxu0 %v6616
    %6788 = vmatpush.msra.mxu0 %v6615
    %6789 = vmatpush.msra.mxu0 %v6614
    %6790 = vmatmul.f32.gmra.mxu0 %v6501
    %v6791 = vpop.f32.mrf.mxu0
    %v6792 = vadd.f32 %v6772, %v6791
    %6793 = vdwg.mxu0
    %vm6794 = vcmask 9216
    %6795 = vst.msk [vmem:[#allocation2] sm:$0x3] %vm6794, %v6792
    // Predicated region
    $region50: #{forward.3} parent=1 // pred_check
      _
    $region51: #{forward.3} parent=1 // pred_check_branch
      %6797 = sbr.rel (0) target = $region53
    $region52: #{forward.3} parent=1 // pred_region
      %6799 = vsyncadd [#allocation3], 0
      %s6801 = sshll.u32 [#allocation2], 4
      %s6802 = int_to_ptr.vmem [resolvable:$true] %s6801
      %s6803 = sshll.u32 %s12, 4
      %s6804 = int_to_ptr.hbm [resolvable:$true] %s6803
      %6806 = dma.vmem_to_hbm [thread:$0]  %s6802, 32, %s6804, [#allocation3]
    $region53: #{forward.3} parent=1 // pred_fallthru
      _
    // Predicated region
    $region54: #{forward.3} parent=1 // pred_check
      _
    $region55: #{forward.3} parent=1 // pred_check_branch
      %6808 = sbr.rel (0) target = $region57
    $region56: #{forward.3} parent=1 // pred_region
      %6810 = dma.done [#allocation3], 32
    $region57: #{forward.3} parent=1 // pred_fallthru
      _
    %6811 = vsyncpa [#allocation3], 1

</llo_original>
